<compile_context>
chip_gen: v5e
topology: v5e:2x2
jax: 0.10.0
libtpu: 0.0.40
codegen_flags: <defaults>
</compile_context>

<pallas_src>
import math

import jax
import jax.numpy as jnp
from jax.experimental import pallas as pl
from jax.experimental.pallas import tpu as pltpu

BN_EPS = 1e-5
NUM_CLASSES = 10
FEATURE_DIM = 512
IN_FEATURES = 18
PAD_IN = 128    # zero-padded K of the first matmul (lane-dense, numerically free)
PAD_RED = 128   # zero-padded SE reduction width (16 / 32 -> 128)
PAD_CLS = 128   # zero-padded logits width (10 -> 128), sliced outside
BLOCK_B = 128   # batch tile per grid step


# ----------------------------- Pallas kernel ------------------------------- #

def _se_gate(h, sa, sb):
    # h is f32; feed bf16 into the MXU, accumulate in f32, gate in f32.
    g = jnp.maximum(
        jnp.dot(h.astype(sa.dtype), sa, preferred_element_type=jnp.float32), 0.0)
    g = jax.nn.sigmoid(
        jnp.dot(g.astype(sb.dtype), sb, preferred_element_type=jnp.float32))
    return h * g


def _mlp_block(h, w, b, sa=None, sb=None):
    # Linear with BatchNorm already folded into (w, b); eval-mode Dropout = id.
    y = jnp.dot(h.astype(w.dtype), w, preferred_element_type=jnp.float32) + b
    y = jnp.maximum(y, 0.0)
    if sa is not None:
        y = _se_gate(y, sa, sb)
    return y


def basenet_kernel(x_ref,
                   w1, b1, sa1, sb1,
                   w2, b2, sa2, sb2,
                   w3, b3, sa3, sb3,
                   w4, b4,
                   wfc, bfc,
                   feat_ref, logit_ref):
    h = x_ref[...]                                   # (TB, 128) f32
    h = _mlp_block(h, w1[...], b1[...], sa1[...], sb1[...])
    h = _mlp_block(h, w2[...], b2[...], sa2[...], sb2[...])
    h = _mlp_block(h, w3[...], b3[...], sa3[...], sb3[...])
    h = _mlp_block(h, w4[...], b4[...])
    feat_ref[...] = h
    # TODO(synk): BaseNet.__init__ sets self.fc = None (assigned by subclasses);
    # a deterministic Linear head stands in for the 'logits' entry.
    logit_ref[...] = (
        jnp.dot(h.astype(wfc.dtype), wfc[...], preferred_element_type=jnp.float32)
        + bfc[...])


# ----------------------------- Python wrapper ------------------------------ #

_KERNEL_PARAM_ORDER = (
    "w1", "b1", "sa1", "sb1",
    "w2", "b2", "sa2", "sb2",
    "w3", "b3", "sa3", "sb3",
    "w4", "b4",
    "wfc", "bfc",
)


def prepare_params(params, compute_dtype=jnp.bfloat16):
    """Fold BN into the Linears (eval mode), zero-pad tiny dims to 128 lanes,
    and cast matmul operands to the MXU-native dtype. Biases stay f32."""
    kp = {}
    for i in range(1, 5):
        w = params[f"w{i}"]
        b = params[f"b{i}"]
        bn = params[f"bn{i}"]                     # rows: gamma, beta, mean, var
        gamma, beta, mean, var = bn[0], bn[1], bn[2], bn[3]
        scale = gamma * jax.lax.rsqrt(var + BN_EPS)
        w = w * scale[None, :]
        b = (b - mean[None, :]) * scale[None, :] + beta[None, :]
        if i == 1:                                # pad K=18 -> 128 with zeros
            w = jnp.pad(w, ((0, PAD_IN - w.shape[0]), (0, 0)))
        kp[f"w{i}"] = w.astype(compute_dtype)
        kp[f"b{i}"] = b.astype(jnp.float32)
        if i <= 3:                                # SE layers after blocks 1-3
            sa = jnp.pad(params[f"sa{i}"],
                         ((0, 0), (0, PAD_RED - params[f"sa{i}"].shape[1])))
            sb = jnp.pad(params[f"sb{i}"],
                         ((0, PAD_RED - params[f"sb{i}"].shape[0]), (0, 0)))
            kp[f"sa{i}"] = sa.astype(compute_dtype)
            kp[f"sb{i}"] = sb.astype(compute_dtype)
    wfc = jnp.pad(params["wfc"], ((0, 0), (0, PAD_CLS - params["wfc"].shape[1])))
    bfc = jnp.pad(params["bfc"], ((0, 0), (0, PAD_CLS - params["bfc"].shape[1])))
    kp["wfc"] = wfc.astype(compute_dtype)
    kp["bfc"] = bfc.astype(jnp.float32)
    return kp


def basenet_forward(x, kparams, *, block_b=BLOCK_B):
    B = x.shape[0]
    n_blocks = pl.cdiv(B, block_b)
    b_pad = n_blocks * block_b
    x_p = jnp.pad(x.astype(jnp.float32),
                  ((0, b_pad - B), (0, PAD_IN - x.shape[1])))

    weights = tuple(kparams[k] for k in _KERNEL_PARAM_ORDER)

    def const_spec(a):
        # Full-array block, constant index map -> stays resident in VMEM
        # (no re-DMA across batch-grid steps).
        return pl.BlockSpec(a.shape, lambda i: (0, 0))

    in_specs = ([pl.BlockSpec((block_b, PAD_IN), lambda i: (i, 0))]
                + [const_spec(w) for w in weights])
    out_specs = (
        pl.BlockSpec((block_b, FEATURE_DIM), lambda i: (i, 0)),
        pl.BlockSpec((block_b, PAD_CLS), lambda i: (i, 0)),
    )

    feats, logits = pl.pallas_call(
        basenet_kernel,
        out_shape=(
            jax.ShapeDtypeStruct((b_pad, FEATURE_DIM), jnp.float32),
            jax.ShapeDtypeStruct((b_pad, PAD_CLS), jnp.float32),
        ),
        grid_spec=pltpu.PrefetchScalarGridSpec(
            num_scalar_prefetch=0,
            grid=(n_blocks,),
            in_specs=in_specs,
            out_specs=out_specs,
        ),
        compiler_params=pltpu.CompilerParams(
            dimension_semantics=("parallel",)),
    )(x_p, *weights)

    return {"features": feats[:B], "logits": logits[:B, :NUM_CLASSES]}


# ---------------------- deterministic parameter setup ---------------------- #

def init_params(key, num_classes=NUM_CLASSES):
    """Shapes follow get_convnet('resnet18') with the module's init scheme:
       Linear weights ~ kaiming_normal(fan_out, relu), bias = 0;
       BN gamma = 1, beta = 0, running_mean = 0, running_var = 1."""
    dims = [(18, 256), (256, 512), (512, 512), (512, 512)]
    keys = list(jax.random.split(key, 16))
    ki = iter(keys)
    params = {}
    for i, (din, dout) in enumerate(dims, start=1):
        std = math.sqrt(2.0 / dout)  # kaiming_normal_, mode='fan_out', relu
        params[f"w{i}"] = std * jax.random.normal(next(ki), (din, dout), jnp.float32)
        params[f"b{i}"] = jnp.zeros((1, dout), jnp.float32)
        params[f"bn{i}"] = jnp.stack(
            [jnp.ones(dout), jnp.zeros(dout), jnp.zeros(dout), jnp.ones(dout)]
        ).astype(jnp.float32)  # rows: gamma, beta, running_mean, running_var
        if i <= 3:  # SELayer follows the first three blocks
            red = dout // 16
            params[f"sa{i}"] = (1.0 / math.sqrt(dout)) * jax.random.normal(
                next(ki), (dout, red), jnp.float32)
            params[f"sb{i}"] = (1.0 / math.sqrt(red)) * jax.random.normal(
                next(ki), (red, dout), jnp.float32)
    params["wfc"] = 0.02 * jax.random.normal(next(ki), (FEATURE_DIM, num_classes),
                                             jnp.float32)
    params["bfc"] = jnp.zeros((1, num_classes), jnp.float32)
    return params


# --------------------------- pure-JAX reference ---------------------------- #

def reference_forward(x, params):
    def block(h, i, se):
        y = h @ params[f"w{i}"] + params[f"b{i}"]
        bn = params[f"bn{i}"]
        y = (y - bn[2:3]) / jnp.sqrt(bn[3:4] + BN_EPS) * bn[0:1] + bn[1:2]
        y = jnp.maximum(y, 0.0)
        if se:
            g = jnp.maximum(y @ params[f"sa{i}"], 0.0)
            g = jax.nn.sigmoid(g @ params[f"sb{i}"])
            y = y * g
        return y

    h = x
    h = block(h, 1, True)
    h = block(h, 2, True)
    h = block(h, 3, True)
    h = block(h, 4, False)
    return {"features": h, "logits": h @ params["wfc"] + params["bfc"]}


# ----------------------------------- main ----------------------------------- #

if __name__ == "__main__":
    key = jax.random.PRNGKey(0)
    pkey, xkey = jax.random.split(key)
    params = init_params(pkey)
    kparams = prepare_params(params)

    B = 256  # 2 batch tiles of 128 -> exercises the pipelined / parallel grid
    x = jax.random.normal(xkey, (B, IN_FEATURES), dtype=jnp.float32)

    out = jax.block_until_ready(basenet_forward(x, kparams))
    ref = reference_forward(x, params)

    assert out["features"].shape == (B, FEATURE_DIM)
    assert out["logits"].shape == (B, NUM_CLASSES)
    # bf16 matmul operands (f32 accumulation) vs. f32 reference.
    assert jnp.allclose(out["features"], ref["features"], atol=2e-2, rtol=2e-2)
    assert jnp.allclose(out["logits"], ref["logits"], atol=2e-2, rtol=2e-2)

    print("KERNEL_OK")
</pallas_src>

<mosaic_0001>
module attributes {stable_mosaic.version = 11 : i64} {
  func.func @basenet_kernel(%arg0: i32, %arg1: memref<128x128xf32, #tpu.memory_space<vmem>>, %arg2: memref<128x256xbf16, #tpu.memory_space<vmem>>, %arg3: memref<1x256xf32, #tpu.memory_space<vmem>>, %arg4: memref<256x128xbf16, #tpu.memory_space<vmem>>, %arg5: memref<128x256xbf16, #tpu.memory_space<vmem>>, %arg6: memref<256x512xbf16, #tpu.memory_space<vmem>>, %arg7: memref<1x512xf32, #tpu.memory_space<vmem>>, %arg8: memref<512x128xbf16, #tpu.memory_space<vmem>>, %arg9: memref<128x512xbf16, #tpu.memory_space<vmem>>, %arg10: memref<512x512xbf16, #tpu.memory_space<vmem>>, %arg11: memref<1x512xf32, #tpu.memory_space<vmem>>, %arg12: memref<512x128xbf16, #tpu.memory_space<vmem>>, %arg13: memref<128x512xbf16, #tpu.memory_space<vmem>>, %arg14: memref<512x512xbf16, #tpu.memory_space<vmem>>, %arg15: memref<1x512xf32, #tpu.memory_space<vmem>>, %arg16: memref<512x128xbf16, #tpu.memory_space<vmem>>, %arg17: memref<1x128xf32, #tpu.memory_space<vmem>>, %arg18: memref<128x512xf32, #tpu.memory_space<vmem>>, %arg19: memref<128x128xf32, #tpu.memory_space<vmem>>) attributes {dimension_semantics = [#tpu.dimension_semantics<parallel>], iteration_bounds = array<i64: 2>, scalar_prefetch = 0 : i64, scratch_operands = 0 : i64, tpu.core_type = #tpu.core_type<tc>, window_params = [{transform_indices = @transform_0, window_bounds = array<i64: 128, 128>}, {pipeline_mode = #tpu.pipeline_mode<synchronous>, transform_indices = @transform_1, window_bounds = array<i64: 128, 256>}, {pipeline_mode = #tpu.pipeline_mode<synchronous>, transform_indices = @transform_2, window_bounds = array<i64: 1, 256>}, {pipeline_mode = #tpu.pipeline_mode<synchronous>, transform_indices = @transform_3, window_bounds = array<i64: 256, 128>}, {pipeline_mode = #tpu.pipeline_mode<synchronous>, transform_indices = @transform_4, window_bounds = array<i64: 128, 256>}, {pipeline_mode = #tpu.pipeline_mode<synchronous>, transform_indices = @transform_5, window_bounds = array<i64: 256, 512>}, {pipeline_mode = #tpu.pipeline_mode<synchronous>, transform_indices = @transform_6, window_bounds = array<i64: 1, 512>}, {pipeline_mode = #tpu.pipeline_mode<synchronous>, transform_indices = @transform_7, window_bounds = array<i64: 512, 128>}, {pipeline_mode = #tpu.pipeline_mode<synchronous>, transform_indices = @transform_8, window_bounds = array<i64: 128, 512>}, {pipeline_mode = #tpu.pipeline_mode<synchronous>, transform_indices = @transform_9, window_bounds = array<i64: 512, 512>}, {pipeline_mode = #tpu.pipeline_mode<synchronous>, transform_indices = @transform_10, window_bounds = array<i64: 1, 512>}, {pipeline_mode = #tpu.pipeline_mode<synchronous>, transform_indices = @transform_11, window_bounds = array<i64: 512, 128>}, {pipeline_mode = #tpu.pipeline_mode<synchronous>, transform_indices = @transform_12, window_bounds = array<i64: 128, 512>}, {pipeline_mode = #tpu.pipeline_mode<synchronous>, transform_indices = @transform_13, window_bounds = array<i64: 512, 512>}, {pipeline_mode = #tpu.pipeline_mode<synchronous>, transform_indices = @transform_14, window_bounds = array<i64: 1, 512>}, {pipeline_mode = #tpu.pipeline_mode<synchronous>, transform_indices = @transform_15, window_bounds = array<i64: 512, 128>}, {pipeline_mode = #tpu.pipeline_mode<synchronous>, transform_indices = @transform_16, window_bounds = array<i64: 1, 128>}, {transform_indices = @transform_17, window_bounds = array<i64: 128, 512>}, {transform_indices = @transform_18, window_bounds = array<i64: 128, 128>}]} {
    %c0 = arith.constant 0 : index
    %c0_0 = arith.constant 0 : index
    %0 = vector.load %arg1[%c0, %c0_0] : memref<128x128xf32, #tpu.memory_space<vmem>>, vector<128x128xf32>
    %c0_1 = arith.constant 0 : index
    %c0_2 = arith.constant 0 : index
    %1 = vector.load %arg2[%c0_1, %c0_2] : memref<128x256xbf16, #tpu.memory_space<vmem>>, vector<128x256xbf16>
    %c0_3 = arith.constant 0 : index
    %c0_4 = arith.constant 0 : index
    %2 = vector.load %arg3[%c0_3, %c0_4] : memref<1x256xf32, #tpu.memory_space<vmem>>, vector<1x256xf32>
    %c0_5 = arith.constant 0 : index
    %c0_6 = arith.constant 0 : index
    %3 = vector.load %arg4[%c0_5, %c0_6] : memref<256x128xbf16, #tpu.memory_space<vmem>>, vector<256x128xbf16>
    %c0_7 = arith.constant 0 : index
    %c0_8 = arith.constant 0 : index
    %4 = vector.load %arg5[%c0_7, %c0_8] : memref<128x256xbf16, #tpu.memory_space<vmem>>, vector<128x256xbf16>
    %5 = arith.truncf %0 : vector<128x128xf32> to vector<128x128xbf16>
    %cst = arith.constant dense<0.000000e+00> : vector<128x256xf32>
    %6 = tpu.matmul %5, %1, %cst {dimension_numbers = #tpu.dot_dimension_numbers<[1], [0], [0], [1], [0, 0, 1, 1], [], []>} : vector<128x128xbf16>, vector<128x256xbf16>, vector<128x256xf32> -> vector<128x256xf32>
    %7 = vector.broadcast %2 : vector<1x256xf32> to vector<128x256xf32>
    %8 = arith.addf %6, %7 : vector<128x256xf32>
    %cst_9 = arith.constant 0.000000e+00 : f32
    %9 = vector.broadcast %cst_9 : f32 to vector<128x256xf32>
    %10 = arith.maximumf %8, %9 : vector<128x256xf32>
    %11 = arith.truncf %10 : vector<128x256xf32> to vector<128x256xbf16>
    %cst_10 = arith.constant dense<0.000000e+00> : vector<128x128xf32>
    %12 = tpu.matmul %11, %3, %cst_10 {dimension_numbers = #tpu.dot_dimension_numbers<[1], [0], [0], [1], [0, 0, 1, 1], [], []>} : vector<128x256xbf16>, vector<256x128xbf16>, vector<128x128xf32> -> vector<128x128xf32>
    %cst_11 = arith.constant 0.000000e+00 : f32
    %13 = vector.broadcast %cst_11 : f32 to vector<128x128xf32>
    %14 = arith.maximumf %12, %13 : vector<128x128xf32>
    %15 = arith.truncf %14 : vector<128x128xf32> to vector<128x128xbf16>
    %cst_12 = arith.constant dense<0.000000e+00> : vector<128x256xf32>
    %16 = tpu.matmul %15, %4, %cst_12 {dimension_numbers = #tpu.dot_dimension_numbers<[1], [0], [0], [1], [0, 0, 1, 1], [], []>} : vector<128x128xbf16>, vector<128x256xbf16>, vector<128x256xf32> -> vector<128x256xf32>
    %17 = arith.negf %16 : vector<128x256xf32>
    %18 = math.exp %17 : vector<128x256xf32>
    %cst_13 = arith.constant 1.000000e+00 : f32
    %19 = vector.broadcast %cst_13 : f32 to vector<128x256xf32>
    %20 = arith.addf %19, %18 : vector<128x256xf32>
    %21 = arith.divf %19, %20 : vector<128x256xf32>
    %22 = arith.mulf %10, %21 : vector<128x256xf32>
    %c0_14 = arith.constant 0 : index
    %c0_15 = arith.constant 0 : index
    %23 = vector.load %arg6[%c0_14, %c0_15] : memref<256x512xbf16, #tpu.memory_space<vmem>>, vector<256x512xbf16>
    %c0_16 = arith.constant 0 : index
    %c0_17 = arith.constant 0 : index
    %24 = vector.load %arg7[%c0_16, %c0_17] : memref<1x512xf32, #tpu.memory_space<vmem>>, vector<1x512xf32>
    %c0_18 = arith.constant 0 : index
    %c0_19 = arith.constant 0 : index
    %25 = vector.load %arg8[%c0_18, %c0_19] : memref<512x128xbf16, #tpu.memory_space<vmem>>, vector<512x128xbf16>
    %c0_20 = arith.constant 0 : index
    %c0_21 = arith.constant 0 : index
    %26 = vector.load %arg9[%c0_20, %c0_21] : memref<128x512xbf16, #tpu.memory_space<vmem>>, vector<128x512xbf16>
    %27 = arith.truncf %22 : vector<128x256xf32> to vector<128x256xbf16>
    %cst_22 = arith.constant dense<0.000000e+00> : vector<128x512xf32>
    %28 = tpu.matmul %27, %23, %cst_22 {dimension_numbers = #tpu.dot_dimension_numbers<[1], [0], [0], [1], [0, 0, 1, 1], [], []>} : vector<128x256xbf16>, vector<256x512xbf16>, vector<128x512xf32> -> vector<128x512xf32>
    %29 = vector.broadcast %24 : vector<1x512xf32> to vector<128x512xf32>
    %30 = arith.addf %28, %29 : vector<128x512xf32>
    %cst_23 = arith.constant 0.000000e+00 : f32
    %31 = vector.broadcast %cst_23 : f32 to vector<128x512xf32>
    %32 = arith.maximumf %30, %31 : vector<128x512xf32>
    %33 = arith.truncf %32 : vector<128x512xf32> to vector<128x512xbf16>
    %cst_24 = arith.constant dense<0.000000e+00> : vector<128x128xf32>
    %34 = tpu.matmul %33, %25, %cst_24 {dimension_numbers = #tpu.dot_dimension_numbers<[1], [0], [0], [1], [0, 0, 1, 1], [], []>} : vector<128x512xbf16>, vector<512x128xbf16>, vector<128x128xf32> -> vector<128x128xf32>
    %cst_25 = arith.constant 0.000000e+00 : f32
    %35 = vector.broadcast %cst_25 : f32 to vector<128x128xf32>
    %36 = arith.maximumf %34, %35 : vector<128x128xf32>
    %37 = arith.truncf %36 : vector<128x128xf32> to vector<128x128xbf16>
    %cst_26 = arith.constant dense<0.000000e+00> : vector<128x512xf32>
    %38 = tpu.matmul %37, %26, %cst_26 {dimension_numbers = #tpu.dot_dimension_numbers<[1], [0], [0], [1], [0, 0, 1, 1], [], []>} : vector<128x128xbf16>, vector<128x512xbf16>, vector<128x512xf32> -> vector<128x512xf32>
    %39 = arith.negf %38 : vector<128x512xf32>
    %40 = math.exp %39 : vector<128x512xf32>
    %cst_27 = arith.constant 1.000000e+00 : f32
    %41 = vector.broadcast %cst_27 : f32 to vector<128x512xf32>
    %42 = arith.addf %41, %40 : vector<128x512xf32>
    %43 = arith.divf %41, %42 : vector<128x512xf32>
    %44 = arith.mulf %32, %43 : vector<128x512xf32>
    %c0_28 = arith.constant 0 : index
    %c0_29 = arith.constant 0 : index
    %45 = vector.load %arg10[%c0_28, %c0_29] : memref<512x512xbf16, #tpu.memory_space<vmem>>, vector<512x512xbf16>
    %c0_30 = arith.constant 0 : index
    %c0_31 = arith.constant 0 : index
    %46 = vector.load %arg11[%c0_30, %c0_31] : memref<1x512xf32, #tpu.memory_space<vmem>>, vector<1x512xf32>
    %c0_32 = arith.constant 0 : index
    %c0_33 = arith.constant 0 : index
    %47 = vector.load %arg12[%c0_32, %c0_33] : memref<512x128xbf16, #tpu.memory_space<vmem>>, vector<512x128xbf16>
    %c0_34 = arith.constant 0 : index
    %c0_35 = arith.constant 0 : index
    %48 = vector.load %arg13[%c0_34, %c0_35] : memref<128x512xbf16, #tpu.memory_space<vmem>>, vector<128x512xbf16>
    %49 = arith.truncf %44 : vector<128x512xf32> to vector<128x512xbf16>
    %cst_36 = arith.constant dense<0.000000e+00> : vector<128x512xf32>
    %50 = tpu.matmul %49, %45, %cst_36 {dimension_numbers = #tpu.dot_dimension_numbers<[1], [0], [0], [1], [0, 0, 1, 1], [], []>} : vector<128x512xbf16>, vector<512x512xbf16>, vector<128x512xf32> -> vector<128x512xf32>
    %51 = vector.broadcast %46 : vector<1x512xf32> to vector<128x512xf32>
    %52 = arith.addf %50, %51 : vector<128x512xf32>
    %cst_37 = arith.constant 0.000000e+00 : f32
    %53 = vector.broadcast %cst_37 : f32 to vector<128x512xf32>
    %54 = arith.maximumf %52, %53 : vector<128x512xf32>
    %55 = arith.truncf %54 : vector<128x512xf32> to vector<128x512xbf16>
    %cst_38 = arith.constant dense<0.000000e+00> : vector<128x128xf32>
    %56 = tpu.matmul %55, %47, %cst_38 {dimension_numbers = #tpu.dot_dimension_numbers<[1], [0], [0], [1], [0, 0, 1, 1], [], []>} : vector<128x512xbf16>, vector<512x128xbf16>, vector<128x128xf32> -> vector<128x128xf32>
    %cst_39 = arith.constant 0.000000e+00 : f32
    %57 = vector.broadcast %cst_39 : f32 to vector<128x128xf32>
    %58 = arith.maximumf %56, %57 : vector<128x128xf32>
    %59 = arith.truncf %58 : vector<128x128xf32> to vector<128x128xbf16>
    %cst_40 = arith.constant dense<0.000000e+00> : vector<128x512xf32>
    %60 = tpu.matmul %59, %48, %cst_40 {dimension_numbers = #tpu.dot_dimension_numbers<[1], [0], [0], [1], [0, 0, 1, 1], [], []>} : vector<128x128xbf16>, vector<128x512xbf16>, vector<128x512xf32> -> vector<128x512xf32>
    %61 = arith.negf %60 : vector<128x512xf32>
    %62 = math.exp %61 : vector<128x512xf32>
    %cst_41 = arith.constant 1.000000e+00 : f32
    %63 = vector.broadcast %cst_41 : f32 to vector<128x512xf32>
    %64 = arith.addf %63, %62 : vector<128x512xf32>
    %65 = arith.divf %63, %64 : vector<128x512xf32>
    %66 = arith.mulf %54, %65 : vector<128x512xf32>
    %c0_42 = arith.constant 0 : index
    %c0_43 = arith.constant 0 : index
    %67 = vector.load %arg14[%c0_42, %c0_43] : memref<512x512xbf16, #tpu.memory_space<vmem>>, vector<512x512xbf16>
    %c0_44 = arith.constant 0 : index
    %c0_45 = arith.constant 0 : index
    %68 = vector.load %arg15[%c0_44, %c0_45] : memref<1x512xf32, #tpu.memory_space<vmem>>, vector<1x512xf32>
    %69 = arith.truncf %66 : vector<128x512xf32> to vector<128x512xbf16>
    %cst_46 = arith.constant dense<0.000000e+00> : vector<128x512xf32>
    %70 = tpu.matmul %69, %67, %cst_46 {dimension_numbers = #tpu.dot_dimension_numbers<[1], [0], [0], [1], [0, 0, 1, 1], [], []>} : vector<128x512xbf16>, vector<512x512xbf16>, vector<128x512xf32> -> vector<128x512xf32>
    %71 = vector.broadcast %68 : vector<1x512xf32> to vector<128x512xf32>
    %72 = arith.addf %70, %71 : vector<128x512xf32>
    %cst_47 = arith.constant 0.000000e+00 : f32
    %73 = vector.broadcast %cst_47 : f32 to vector<128x512xf32>
    %74 = arith.maximumf %72, %73 : vector<128x512xf32>
    %c0_48 = arith.constant 0 : index
    %c0_49 = arith.constant 0 : index
    %75 = vector.load %arg18[%c0_48, %c0_49] : memref<128x512xf32, #tpu.memory_space<vmem>>, vector<128x512xf32>
    tpu.vector_store %arg18[%c0_48, %c0_49], %74 {strides = array<i32>} : memref<128x512xf32, #tpu.memory_space<vmem>>, vector<128x512xf32>,
    %76 = arith.truncf %74 : vector<128x512xf32> to vector<128x512xbf16>
    %c0_50 = arith.constant 0 : index
    %c0_51 = arith.constant 0 : index
    %77 = vector.load %arg16[%c0_50, %c0_51] : memref<512x128xbf16, #tpu.memory_space<vmem>>, vector<512x128xbf16>
    %cst_52 = arith.constant dense<0.000000e+00> : vector<128x128xf32>
    %78 = tpu.matmul %76, %77, %cst_52 {dimension_numbers = #tpu.dot_dimension_numbers<[1], [0], [0], [1], [0, 0, 1, 1], [], []>} : vector<128x512xbf16>, vector<512x128xbf16>, vector<128x128xf32> -> vector<128x128xf32>
    %c0_53 = arith.constant 0 : index
    %c0_54 = arith.constant 0 : index
    %79 = vector.load %arg17[%c0_53, %c0_54] : memref<1x128xf32, #tpu.memory_space<vmem>>, vector<1x128xf32>
    %80 = vector.broadcast %79 : vector<1x128xf32> to vector<128x128xf32>
    %81 = arith.addf %78, %80 : vector<128x128xf32>
    %c0_55 = arith.constant 0 : index
    %c0_56 = arith.constant 0 : index
    %82 = vector.load %arg19[%c0_55, %c0_56] : memref<128x128xf32, #tpu.memory_space<vmem>>, vector<128x128xf32>
    tpu.vector_store %arg19[%c0_55, %c0_56], %81 {strides = array<i32>} : memref<128x128xf32, #tpu.memory_space<vmem>>, vector<128x128xf32>,
    return
  }
  func.func @transform_0(%arg0: i32) -> (i32, i32) {
    %c0_i32 = arith.constant 0 : i32
    %c0_i32_0 = arith.constant 0 : i32
    return %arg0, %c0_i32 : i32, i32
  }
  func.func @transform_1(%arg0: i32) -> (i32, i32) {
    %c0_i32 = arith.constant 0 : i32
    %c0_i32_0 = arith.constant 0 : i32
    %c0_i32_1 = arith.constant 0 : i32
    return %c0_i32, %c0_i32_0 : i32, i32
  }
  func.func @transform_2(%arg0: i32) -> (i32, i32) {
    %c0_i32 = arith.constant 0 : i32
    %c0_i32_0 = arith.constant 0 : i32
    %c0_i32_1 = arith.constant 0 : i32
    return %c0_i32, %c0_i32_0 : i32, i32
  }
  func.func @transform_3(%arg0: i32) -> (i32, i32) {
    %c0_i32 = arith.constant 0 : i32
    %c0_i32_0 = arith.constant 0 : i32
    %c0_i32_1 = arith.constant 0 : i32
    return %c0_i32, %c0_i32_0 : i32, i32
  }
  func.func @transform_4(%arg0: i32) -> (i32, i32) {
    %c0_i32 = arith.constant 0 : i32
    %c0_i32_0 = arith.constant 0 : i32
    %c0_i32_1 = arith.constant 0 : i32
    return %c0_i32, %c0_i32_0 : i32, i32
  }
  func.func @transform_5(%arg0: i32) -> (i32, i32) {
    %c0_i32 = arith.constant 0 : i32
    %c0_i32_0 = arith.constant 0 : i32
    %c0_i32_1 = arith.constant 0 : i32
    return %c0_i32, %c0_i32_0 : i32, i32
  }
  func.func @transform_6(%arg0: i32) -> (i32, i32) {
    %c0_i32 = arith.constant 0 : i32
    %c0_i32_0 = arith.constant 0 : i32
    %c0_i32_1 = arith.constant 0 : i32
    return %c0_i32, %c0_i32_0 : i32, i32
  }
  func.func @transform_7(%arg0: i32) -> (i32, i32) {
    %c0_i32 = arith.constant 0 : i32
    %c0_i32_0 = arith.constant 0 : i32
    %c0_i32_1 = arith.constant 0 : i32
    return %c0_i32, %c0_i32_0 : i32, i32
  }
  func.func @transform_8(%arg0: i32) -> (i32, i32) {
    %c0_i32 = arith.constant 0 : i32
    %c0_i32_0 = arith.constant 0 : i32
    %c0_i32_1 = arith.constant 0 : i32
    return %c0_i32, %c0_i32_0 : i32, i32
  }
  func.func @transform_9(%arg0: i32) -> (i32, i32) {
    %c0_i32 = arith.constant 0 : i32
    %c0_i32_0 = arith.constant 0 : i32
    %c0_i32_1 = arith.constant 0 : i32
    return %c0_i32, %c0_i32_0 : i32, i32
  }
  func.func @transform_10(%arg0: i32) -> (i32, i32) {
    %c0_i32 = arith.constant 0 : i32
    %c0_i32_0 = arith.constant 0 : i32
    %c0_i32_1 = arith.constant 0 : i32
    return %c0_i32, %c0_i32_0 : i32, i32
  }
  func.func @transform_11(%arg0: i32) -> (i32, i32) {
    %c0_i32 = arith.constant 0 : i32
    %c0_i32_0 = arith.constant 0 : i32
    %c0_i32_1 = arith.constant 0 : i32
    return %c0_i32, %c0_i32_0 : i32, i32
  }
  func.func @transform_12(%arg0: i32) -> (i32, i32) {
    %c0_i32 = arith.constant 0 : i32
    %c0_i32_0 = arith.constant 0 : i32
    %c0_i32_1 = arith.constant 0 : i32
    return %c0_i32, %c0_i32_0 : i32, i32
  }
  func.func @transform_13(%arg0: i32) -> (i32, i32) {
    %c0_i32 = arith.constant 0 : i32
    %c0_i32_0 = arith.constant 0 : i32
    %c0_i32_1 = arith.constant 0 : i32
    return %c0_i32, %c0_i32_0 : i32, i32
  }
  func.func @transform_14(%arg0: i32) -> (i32, i32) {
    %c0_i32 = arith.constant 0 : i32
    %c0_i32_0 = arith.constant 0 : i32
    %c0_i32_1 = arith.constant 0 : i32
    return %c0_i32, %c0_i32_0 : i32, i32
  }
  func.func @transform_15(%arg0: i32) -> (i32, i32) {
    %c0_i32 = arith.constant 0 : i32
    %c0_i32_0 = arith.constant 0 : i32
    %c0_i32_1 = arith.constant 0 : i32
    return %c0_i32, %c0_i32_0 : i32, i32
  }
  func.func @transform_16(%arg0: i32) -> (i32, i32) {
    %c0_i32 = arith.constant 0 : i32
    %c0_i32_0 = arith.constant 0 : i32
    %c0_i32_1 = arith.constant 0 : i32
    return %c0_i32, %c0_i32_0 : i32, i32
  }
  func.func @transform_17(%arg0: i32) -> (i32, i32) {
    %c0_i32 = arith.constant 0 : i32
    %c0_i32_0 = arith.constant 0 : i32
    return %arg0, %c0_i32 : i32, i32
  }
  func.func @transform_18(%arg0: i32) -> (i32, i32) {
    %c0_i32 = arith.constant 0 : i32
    %c0_i32_0 = arith.constant 0 : i32
    return %arg0, %c0_i32 : i32, i32
  }
}

</mosaic_0001>

<llo_original>
// kernel: tpu_custom_call.1
$region0: #{tpu_custom_call.1}
  #allocation0 [shape = 'u32[]', space=smem, size = 0x4, offset = 0x4, fixed_abs, tag = 'smem constant byte address 0x4 - core index']
  #allocation1 [shape = 'u32[72,128]{1,0:T(1,128)}', space=vmem, size = 0x9000, scoped, tag = 'internal scratch']
  %s0 = inlined_call_operand.hbm [shape: f32[256,128], index: 0, kind: input, shape index: {}]
  %s1 = inlined_call_operand.hbm [shape: bf16[128,256], index: 1, kind: input, shape index: {}]
  %s2 = inlined_call_operand.hbm [shape: f32[1,256], index: 2, kind: input, shape index: {}]
  %s3 = inlined_call_operand.hbm [shape: bf16[256,128], index: 3, kind: input, shape index: {}]
  %s4 = inlined_call_operand.hbm [shape: bf16[128,256], index: 4, kind: input, shape index: {}]
  %s5 = inlined_call_operand.hbm [shape: bf16[256,512], index: 5, kind: input, shape index: {}]
  %s6 = inlined_call_operand.vmem [shape: f32[1,512], index: 6, kind: input, shape index: {}]
  %s7 = inlined_call_operand.hbm [shape: bf16[512,128], index: 7, kind: input, shape index: {}]
  %s8 = inlined_call_operand.hbm [shape: bf16[128,512], index: 8, kind: input, shape index: {}]
  %s9 = inlined_call_operand.hbm [shape: bf16[512,512], index: 9, kind: input, shape index: {}]
  %s10 = inlined_call_operand.vmem [shape: f32[1,512], index: 10, kind: input, shape index: {}]
  %s11 = inlined_call_operand.hbm [shape: bf16[512,128], index: 11, kind: input, shape index: {}]
  %s12 = inlined_call_operand.hbm [shape: bf16[128,512], index: 12, kind: input, shape index: {}]
  %s13 = inlined_call_operand.hbm [shape: bf16[512,512], index: 13, kind: input, shape index: {}]
  %s14 = inlined_call_operand.vmem [shape: f32[1,512], index: 14, kind: input, shape index: {}]
  %s15 = inlined_call_operand.hbm [shape: bf16[512,128], index: 15, kind: input, shape index: {}]
  %s16 = inlined_call_operand.vmem [shape: f32[1,128], index: 16, kind: input, shape index: {}]
  %s17 = inlined_call_operand.hbm [shape: f32[256,512], index: 17, kind: output, shape index: {0}]
  %s18 = inlined_call_operand.hbm [shape: f32[256,128], index: 18, kind: output, shape index: {1}]
  %19 = xla_tuple %s17, %s18
  %s20 = sld [smem:[#allocation0]]
  $region161: #{tpu_custom_call.1} parent=0
    _
  %s22 = ssub.s32 1, %s20
  %s23 = scalar_select 0, %s22, %s20
  $region1: #{tpu_custom_call.1} parent=0
    #allocation2 [shape = 'u8[131072]{0}', space=vmem, size = 0x20000, scoped, tag = 'input window, operand 0']
    #allocation3 [shape = 's32[2]{0}', space=sflag, size = 0x8, scoped, tag = 'scoped memory for tpu_custom_call.1']
    #allocation4 [shape = 's32[2]{0}', space=sflag, size = 0x8, scoped, tag = 'scoped memory for tpu_custom_call.1']
    #allocation5 [shape = 'u8[65536]{0}', space=vmem, size = 0x10000, scoped, tag = 'input window, operand 1, single buffered']
    #allocation6 [shape = 's32[1]{0}', space=sflag, size = 0x4, scoped, tag = 'scoped memory for tpu_custom_call.1']
    #allocation7 [shape = 'u8[1024]{0}', space=vmem, size = 0x400, scoped, tag = 'input window, operand 2, single buffered']
    #allocation8 [shape = 'u8[65536]{0}', space=vmem, size = 0x10000, scoped, tag = 'input window, operand 3, single buffered']
    #allocation9 [shape = 's32[1]{0}', space=sflag, size = 0x4, scoped, tag = 'scoped memory for tpu_custom_call.1']
    #allocation10 [shape = 'u8[65536]{0}', space=vmem, size = 0x10000, scoped, tag = 'input window, operand 4, single buffered']
    #allocation11 [shape = 'u8[262144]{0}', space=vmem, size = 0x40000, scoped, tag = 'input window, operand 5, single buffered']
    #allocation12 [shape = 's32[1]{0}', space=sflag, size = 0x4, scoped, tag = 'scoped memory for tpu_custom_call.1']
    #allocation13 [shape = 'u8[131072]{0}', space=vmem, size = 0x20000, scoped, tag = 'input window, operand 7, single buffered']
    #allocation14 [shape = 'u8[131072]{0}', space=vmem, size = 0x20000, scoped, tag = 'input window, operand 8, single buffered']
    #allocation15 [shape = 's32[1]{0}', space=sflag, size = 0x4, scoped, tag = 'scoped memory for tpu_custom_call.1']
    #allocation16 [shape = 'u8[524288]{0}', space=vmem, size = 0x80000, scoped, tag = 'input window, operand 9, single buffered']
    #allocation17 [shape = 'u8[131072]{0}', space=vmem, size = 0x20000, scoped, tag = 'input window, operand 11, single buffered']
    #allocation18 [shape = 's32[1]{0}', space=sflag, size = 0x4, scoped, tag = 'scoped memory for tpu_custom_call.1']
    #allocation19 [shape = 'u8[131072]{0}', space=vmem, size = 0x20000, scoped, tag = 'input window, operand 12, single buffered']
    #allocation20 [shape = 'u8[524288]{0}', space=vmem, size = 0x80000, scoped, tag = 'input window, operand 13, single buffered']
    #allocation21 [shape = 's32[1]{0}', space=sflag, size = 0x4, scoped, tag = 'scoped memory for tpu_custom_call.1']
    #allocation22 [shape = 'u8[131072]{0}', space=vmem, size = 0x20000, scoped, tag = 'input window, operand 15, single buffered']
    #allocation23 [shape = 'u8[524288]{0}', space=vmem, size = 0x80000, scoped, tag = 'output window, operand 0']
    #allocation24 [shape = 'u8[131072]{0}', space=vmem, size = 0x20000, scoped, tag = 'output window, operand 1']
    #allocation25 [shape = 's32[2]{0}', space=sflag, size = 0x8, scoped, tag = 'scoped memory for tpu_custom_call.1']
    %24 = vsyncpa [#allocation3], 0
    %s25 = scalar_lea.sflag [#allocation3], 1
    %26 = vsyncpa %s25, 0
    %27 = vsyncpa [#allocation6], 0
    %28 = vsyncpa [#allocation9], 0
    %29 = vsyncpa [#allocation12], 0
    %30 = vsyncpa [#allocation15], 0
    %31 = vsyncpa [#allocation18], 0
    %32 = vsyncpa [#allocation21], 0
    %33 = vsyncpa [#allocation4], 0
    %s34 = scalar_lea.sflag [#allocation4], 1
    %35 = vsyncpa %s34, 0
    %36 = vsyncpa [#allocation25], 0
    %s37 = scalar_lea.sflag [#allocation25], 1
    %38 = vsyncpa %s37, 0
    loop: start=0, step=1, limit=4
    $region2: #{tpu_custom_call.1} parent=1 // loop_pre_header
      _
    $region3: #{tpu_custom_call.1} parent=1 // loop_header
      %s40 = sphi 0, %s44
      %p41 = scmp.ge.s32.totalorder %s40, 4
      %s50 = sphi 0, %s52
      %s53 = sphi 0, %s50
      %s54 = sphi 0, %s53
      %s70 = sphi 0, %s54
      %s74 = sphi 0, %s74
      %s76 = sphi 0, %s74
      %s77 = sphi 0, %s76
      %s91 = sphi 0, %s77
      %s95 = sphi 0, %s95
      %s97 = sphi 0, %s95
      %s98 = sphi 0, %s97
      %s112 = sphi 0, %s98
      %s116 = sphi 0, %s116
      %s118 = sphi 0, %s116
      %s119 = sphi 0, %s118
      %s133 = sphi 0, %s119
      %s137 = sphi 0, %s137
      %s139 = sphi 0, %s137
      %s140 = sphi 0, %s139
      %s154 = sphi 0, %s140
      %s158 = sphi 0, %s158
      %s160 = sphi 0, %s158
      %s161 = sphi 0, %s160
      %s175 = sphi 0, %s161
      %s179 = sphi 0, %s179
      %s181 = sphi 0, %s179
      %s182 = sphi 0, %s181
      %s196 = sphi 0, %s182
      %s200 = sphi 0, %s200
      %s202 = sphi 0, %s200
      %s203 = sphi 0, %s202
      %s217 = sphi 0, %s203
      %s221 = sphi 0, %s221
      %s223 = sphi 0, %s221
      %s224 = sphi 0, %s223
      %s238 = sphi 0, %s224
      %s242 = sphi 0, %s242
      %s244 = sphi 0, %s242
      %s245 = sphi 0, %s244
      %s259 = sphi 0, %s245
      %s263 = sphi 0, %s263
      %s265 = sphi 0, %s263
      %s266 = sphi 0, %s265
      %s280 = sphi 0, %s266
      %s284 = sphi 0, %s284
      %s286 = sphi 0, %s284
      %s287 = sphi 0, %s286
      %s301 = sphi 0, %s287
      %s305 = sphi 0, %s305
      %s307 = sphi 0, %s305
      %s308 = sphi 0, %s307
      %s322 = sphi 0, %s308
      %s326 = sphi 0, %s326
      %s328 = sphi 0, %s326
      %s329 = sphi 0, %s328
      %s343 = sphi 0, %s329
      %s347 = sphi 0, %s347
      %s349 = sphi 0, %s347
      %s350 = sphi 0, %s349
      %s364 = sphi 0, %s350
      %s368 = sphi 0, %s368
      %s370 = sphi 0, %s368
      %s371 = sphi 0, %s370
      %s385 = sphi 0, %s371
      %s389 = sphi 0, %s389
      %s391 = sphi 0, %s389
      %s392 = sphi 0, %s391
      %s406 = sphi 0, %s392
      %s412 = sphi 0, %s414
      %s415 = sphi 0, %s412
      %s416 = sphi 0, %s415
      %s432 = sphi 0, %s416
      %s438 = sphi 0, %s440
      %s441 = sphi 0, %s438
      %s442 = sphi 0, %s441
      %s458 = sphi 0, %s442
    $region4: #{tpu_custom_call.1} parent=1 // loop_header_branch
      %43 = sbr.rel (%p41) target = $region8
    $region5: #{tpu_custom_call.1} parent=1 // loop_body
      %s45 = ssub.s32 %s40, 1
      %s46 = ssub.s32 %s40, 2
      %s47 = sadd.s32 %s40, 1
      %s48 = ssub.s32 %s40, %s47
      %p49 = scmp.eq.s32.totalorder %s48, 0
      %s51 = sadd.s32 %s50, 1
      %s52 = scalar_select %p49, %s50, %s51
      %p55 = pneg %p49
      %p56 = scmp.eq.s32.totalorder %s40, 1
      %p57 = por %p55, %p56
      %p58 = scmp.ne.s32.totalorder %s50, %s53
      %p59 = scmp.eq.s32.totalorder %s40, 0
      %p60 = por %p58, %p59
      %p61 = scmp.ne.s32.totalorder %s50, %s53
      %p62 = scmp.eq.s32.totalorder %s45, 1
      %p63 = por %p61, %p62
      %p64 = scmp.ne.s32.totalorder %s53, %s54
      %p65 = scmp.eq.s32.totalorder %s45, 0
      %p66 = por %p64, %p65
      %p67 = scmp.ne.s32.totalorder %s53, %s54
      %p68 = scmp.eq.s32.totalorder %s46, 1
      %p69 = por %p67, %p68
      %p71 = scmp.ne.s32.totalorder %s54, %s70
      %p72 = scmp.eq.s32.totalorder %s46, 0
      %p73 = por %p71, %p72
      %s75 = sadd.s32 %s74, 1
      %p78 = scmp.eq.s32.totalorder %s40, 1
      %p79 = scmp.ne.s32.totalorder %s74, %s76
      %p80 = scmp.eq.s32.totalorder %s40, 0
      %p81 = por %p79, %p80
      %p82 = scmp.ne.s32.totalorder %s74, %s76
      %p83 = scmp.eq.s32.totalorder %s45, 1
      %p84 = por %p82, %p83
      %p85 = scmp.ne.s32.totalorder %s76, %s77
      %p86 = scmp.eq.s32.totalorder %s45, 0
      %p87 = por %p85, %p86
      %p88 = scmp.ne.s32.totalorder %s76, %s77
      %p89 = scmp.eq.s32.totalorder %s46, 1
      %p90 = por %p88, %p89
      %p92 = scmp.ne.s32.totalorder %s77, %s91
      %p93 = scmp.eq.s32.totalorder %s46, 0
      %p94 = por %p92, %p93
      %s96 = sadd.s32 %s95, 1
      %p99 = scmp.eq.s32.totalorder %s40, 1
      %p100 = scmp.ne.s32.totalorder %s95, %s97
      %p101 = scmp.eq.s32.totalorder %s40, 0
      %p102 = por %p100, %p101
      %p103 = scmp.ne.s32.totalorder %s95, %s97
      %p104 = scmp.eq.s32.totalorder %s45, 1
      %p105 = por %p103, %p104
      %p106 = scmp.ne.s32.totalorder %s97, %s98
      %p107 = scmp.eq.s32.totalorder %s45, 0
      %p108 = por %p106, %p107
      %p109 = scmp.ne.s32.totalorder %s97, %s98
      %p110 = scmp.eq.s32.totalorder %s46, 1
      %p111 = por %p109, %p110
      %p113 = scmp.ne.s32.totalorder %s98, %s112
      %p114 = scmp.eq.s32.totalorder %s46, 0
      %p115 = por %p113, %p114
      %s117 = sadd.s32 %s116, 1
      %p120 = scmp.eq.s32.totalorder %s40, 1
      %p121 = scmp.ne.s32.totalorder %s116, %s118
      %p122 = scmp.eq.s32.totalorder %s40, 0
      %p123 = por %p121, %p122
      %p124 = scmp.ne.s32.totalorder %s116, %s118
      %p125 = scmp.eq.s32.totalorder %s45, 1
      %p126 = por %p124, %p125
      %p127 = scmp.ne.s32.totalorder %s118, %s119
      %p128 = scmp.eq.s32.totalorder %s45, 0
      %p129 = por %p127, %p128
      %p130 = scmp.ne.s32.totalorder %s118, %s119
      %p131 = scmp.eq.s32.totalorder %s46, 1
      %p132 = por %p130, %p131
      %p134 = scmp.ne.s32.totalorder %s119, %s133
      %p135 = scmp.eq.s32.totalorder %s46, 0
      %p136 = por %p134, %p135
      %s138 = sadd.s32 %s137, 1
      %p141 = scmp.eq.s32.totalorder %s40, 1
      %p142 = scmp.ne.s32.totalorder %s137, %s139
      %p143 = scmp.eq.s32.totalorder %s40, 0
      %p144 = por %p142, %p143
      %p145 = scmp.ne.s32.totalorder %s137, %s139
      %p146 = scmp.eq.s32.totalorder %s45, 1
      %p147 = por %p145, %p146
      %p148 = scmp.ne.s32.totalorder %s139, %s140
      %p149 = scmp.eq.s32.totalorder %s45, 0
      %p150 = por %p148, %p149
      %p151 = scmp.ne.s32.totalorder %s139, %s140
      %p152 = scmp.eq.s32.totalorder %s46, 1
      %p153 = por %p151, %p152
      %p155 = scmp.ne.s32.totalorder %s140, %s154
      %p156 = scmp.eq.s32.totalorder %s46, 0
      %p157 = por %p155, %p156
      %s159 = sadd.s32 %s158, 1
      %p162 = scmp.eq.s32.totalorder %s40, 1
      %p163 = scmp.ne.s32.totalorder %s158, %s160
      %p164 = scmp.eq.s32.totalorder %s40, 0
      %p165 = por %p163, %p164
      %p166 = scmp.ne.s32.totalorder %s158, %s160
      %p167 = scmp.eq.s32.totalorder %s45, 1
      %p168 = por %p166, %p167
      %p169 = scmp.ne.s32.totalorder %s160, %s161
      %p170 = scmp.eq.s32.totalorder %s45, 0
      %p171 = por %p169, %p170
      %p172 = scmp.ne.s32.totalorder %s160, %s161
      %p173 = scmp.eq.s32.totalorder %s46, 1
      %p174 = por %p172, %p173
      %p176 = scmp.ne.s32.totalorder %s161, %s175
      %p177 = scmp.eq.s32.totalorder %s46, 0
      %p178 = por %p176, %p177
      %s180 = sadd.s32 %s179, 1
      %p183 = scmp.eq.s32.totalorder %s40, 1
      %p184 = scmp.ne.s32.totalorder %s179, %s181
      %p185 = scmp.eq.s32.totalorder %s40, 0
      %p186 = por %p184, %p185
      %p187 = scmp.ne.s32.totalorder %s179, %s181
      %p188 = scmp.eq.s32.totalorder %s45, 1
      %p189 = por %p187, %p188
      %p190 = scmp.ne.s32.totalorder %s181, %s182
      %p191 = scmp.eq.s32.totalorder %s45, 0
      %p192 = por %p190, %p191
      %p193 = scmp.ne.s32.totalorder %s181, %s182
      %p194 = scmp.eq.s32.totalorder %s46, 1
      %p195 = por %p193, %p194
      %p197 = scmp.ne.s32.totalorder %s182, %s196
      %p198 = scmp.eq.s32.totalorder %s46, 0
      %p199 = por %p197, %p198
      %s201 = sadd.s32 %s200, 1
      %p204 = scmp.eq.s32.totalorder %s40, 1
      %p205 = scmp.ne.s32.totalorder %s200, %s202
      %p206 = scmp.eq.s32.totalorder %s40, 0
      %p207 = por %p205, %p206
      %p208 = scmp.ne.s32.totalorder %s200, %s202
      %p209 = scmp.eq.s32.totalorder %s45, 1
      %p210 = por %p208, %p209
      %p211 = scmp.ne.s32.totalorder %s202, %s203
      %p212 = scmp.eq.s32.totalorder %s45, 0
      %p213 = por %p211, %p212
      %p214 = scmp.ne.s32.totalorder %s202, %s203
      %p215 = scmp.eq.s32.totalorder %s46, 1
      %p216 = por %p214, %p215
      %p218 = scmp.ne.s32.totalorder %s203, %s217
      %p219 = scmp.eq.s32.totalorder %s46, 0
      %p220 = por %p218, %p219
      %s222 = sadd.s32 %s221, 1
      %p225 = scmp.eq.s32.totalorder %s40, 1
      %p226 = scmp.ne.s32.totalorder %s221, %s223
      %p227 = scmp.eq.s32.totalorder %s40, 0
      %p228 = por %p226, %p227
      %p229 = scmp.ne.s32.totalorder %s221, %s223
      %p230 = scmp.eq.s32.totalorder %s45, 1
      %p231 = por %p229, %p230
      %p232 = scmp.ne.s32.totalorder %s223, %s224
      %p233 = scmp.eq.s32.totalorder %s45, 0
      %p234 = por %p232, %p233
      %p235 = scmp.ne.s32.totalorder %s223, %s224
      %p236 = scmp.eq.s32.totalorder %s46, 1
      %p237 = por %p235, %p236
      %p239 = scmp.ne.s32.totalorder %s224, %s238
      %p240 = scmp.eq.s32.totalorder %s46, 0
      %p241 = por %p239, %p240
      %s243 = sadd.s32 %s242, 1
      %p246 = scmp.eq.s32.totalorder %s40, 1
      %p247 = scmp.ne.s32.totalorder %s242, %s244
      %p248 = scmp.eq.s32.totalorder %s40, 0
      %p249 = por %p247, %p248
      %p250 = scmp.ne.s32.totalorder %s242, %s244
      %p251 = scmp.eq.s32.totalorder %s45, 1
      %p252 = por %p250, %p251
      %p253 = scmp.ne.s32.totalorder %s244, %s245
      %p254 = scmp.eq.s32.totalorder %s45, 0
      %p255 = por %p253, %p254
      %p256 = scmp.ne.s32.totalorder %s244, %s245
      %p257 = scmp.eq.s32.totalorder %s46, 1
      %p258 = por %p256, %p257
      %p260 = scmp.ne.s32.totalorder %s245, %s259
      %p261 = scmp.eq.s32.totalorder %s46, 0
      %p262 = por %p260, %p261
      %s264 = sadd.s32 %s263, 1
      %p267 = scmp.eq.s32.totalorder %s40, 1
      %p268 = scmp.ne.s32.totalorder %s263, %s265
      %p269 = scmp.eq.s32.totalorder %s40, 0
      %p270 = por %p268, %p269
      %p271 = scmp.ne.s32.totalorder %s263, %s265
      %p272 = scmp.eq.s32.totalorder %s45, 1
      %p273 = por %p271, %p272
      %p274 = scmp.ne.s32.totalorder %s265, %s266
      %p275 = scmp.eq.s32.totalorder %s45, 0
      %p276 = por %p274, %p275
      %p277 = scmp.ne.s32.totalorder %s265, %s266
      %p278 = scmp.eq.s32.totalorder %s46, 1
      %p279 = por %p277, %p278
      %p281 = scmp.ne.s32.totalorder %s266, %s280
      %p282 = scmp.eq.s32.totalorder %s46, 0
      %p283 = por %p281, %p282
      %s285 = sadd.s32 %s284, 1
      %p288 = scmp.eq.s32.totalorder %s40, 1
      %p289 = scmp.ne.s32.totalorder %s284, %s286
      %p290 = scmp.eq.s32.totalorder %s40, 0
      %p291 = por %p289, %p290
      %p292 = scmp.ne.s32.totalorder %s284, %s286
      %p293 = scmp.eq.s32.totalorder %s45, 1
      %p294 = por %p292, %p293
      %p295 = scmp.ne.s32.totalorder %s286, %s287
      %p296 = scmp.eq.s32.totalorder %s45, 0
      %p297 = por %p295, %p296
      %p298 = scmp.ne.s32.totalorder %s286, %s287
      %p299 = scmp.eq.s32.totalorder %s46, 1
      %p300 = por %p298, %p299
      %p302 = scmp.ne.s32.totalorder %s287, %s301
      %p303 = scmp.eq.s32.totalorder %s46, 0
      %p304 = por %p302, %p303
      %s306 = sadd.s32 %s305, 1
      %p309 = scmp.eq.s32.totalorder %s40, 1
      %p310 = scmp.ne.s32.totalorder %s305, %s307
      %p311 = scmp.eq.s32.totalorder %s40, 0
      %p312 = por %p310, %p311
      %p313 = scmp.ne.s32.totalorder %s305, %s307
      %p314 = scmp.eq.s32.totalorder %s45, 1
      %p315 = por %p313, %p314
      %p316 = scmp.ne.s32.totalorder %s307, %s308
      %p317 = scmp.eq.s32.totalorder %s45, 0
      %p318 = por %p316, %p317
      %p319 = scmp.ne.s32.totalorder %s307, %s308
      %p320 = scmp.eq.s32.totalorder %s46, 1
      %p321 = por %p319, %p320
      %p323 = scmp.ne.s32.totalorder %s308, %s322
      %p324 = scmp.eq.s32.totalorder %s46, 0
      %p325 = por %p323, %p324
      %s327 = sadd.s32 %s326, 1
      %p330 = scmp.eq.s32.totalorder %s40, 1
      %p331 = scmp.ne.s32.totalorder %s326, %s328
      %p332 = scmp.eq.s32.totalorder %s40, 0
      %p333 = por %p331, %p332
      %p334 = scmp.ne.s32.totalorder %s326, %s328
      %p335 = scmp.eq.s32.totalorder %s45, 1
      %p336 = por %p334, %p335
      %p337 = scmp.ne.s32.totalorder %s328, %s329
      %p338 = scmp.eq.s32.totalorder %s45, 0
      %p339 = por %p337, %p338
      %p340 = scmp.ne.s32.totalorder %s328, %s329
      %p341 = scmp.eq.s32.totalorder %s46, 1
      %p342 = por %p340, %p341
      %p344 = scmp.ne.s32.totalorder %s329, %s343
      %p345 = scmp.eq.s32.totalorder %s46, 0
      %p346 = por %p344, %p345
      %s348 = sadd.s32 %s347, 1
      %p351 = scmp.eq.s32.totalorder %s40, 1
      %p352 = scmp.ne.s32.totalorder %s347, %s349
      %p353 = scmp.eq.s32.totalorder %s40, 0
      %p354 = por %p352, %p353
      %p355 = scmp.ne.s32.totalorder %s347, %s349
      %p356 = scmp.eq.s32.totalorder %s45, 1
      %p357 = por %p355, %p356
      %p358 = scmp.ne.s32.totalorder %s349, %s350
      %p359 = scmp.eq.s32.totalorder %s45, 0
      %p360 = por %p358, %p359
      %p361 = scmp.ne.s32.totalorder %s349, %s350
      %p362 = scmp.eq.s32.totalorder %s46, 1
      %p363 = por %p361, %p362
      %p365 = scmp.ne.s32.totalorder %s350, %s364
      %p366 = scmp.eq.s32.totalorder %s46, 0
      %p367 = por %p365, %p366
      %s369 = sadd.s32 %s368, 1
      %p372 = scmp.eq.s32.totalorder %s40, 1
      %p373 = scmp.ne.s32.totalorder %s368, %s370
      %p374 = scmp.eq.s32.totalorder %s40, 0
      %p375 = por %p373, %p374
      %p376 = scmp.ne.s32.totalorder %s368, %s370
      %p377 = scmp.eq.s32.totalorder %s45, 1
      %p378 = por %p376, %p377
      %p379 = scmp.ne.s32.totalorder %s370, %s371
      %p380 = scmp.eq.s32.totalorder %s45, 0
      %p381 = por %p379, %p380
      %p382 = scmp.ne.s32.totalorder %s370, %s371
      %p383 = scmp.eq.s32.totalorder %s46, 1
      %p384 = por %p382, %p383
      %p386 = scmp.ne.s32.totalorder %s371, %s385
      %p387 = scmp.eq.s32.totalorder %s46, 0
      %p388 = por %p386, %p387
      %s390 = sadd.s32 %s389, 1
      %p393 = scmp.eq.s32.totalorder %s40, 1
      %p394 = scmp.ne.s32.totalorder %s389, %s391
      %p395 = scmp.eq.s32.totalorder %s40, 0
      %p396 = por %p394, %p395
      %p397 = scmp.ne.s32.totalorder %s389, %s391
      %p398 = scmp.eq.s32.totalorder %s45, 1
      %p399 = por %p397, %p398
      %p400 = scmp.ne.s32.totalorder %s391, %s392
      %p401 = scmp.eq.s32.totalorder %s45, 0
      %p402 = por %p400, %p401
      %p403 = scmp.ne.s32.totalorder %s391, %s392
      %p404 = scmp.eq.s32.totalorder %s46, 1
      %p405 = por %p403, %p404
      %p407 = scmp.ne.s32.totalorder %s392, %s406
      %p408 = scmp.eq.s32.totalorder %s46, 0
      %p409 = por %p407, %p408
      %s410 = ssub.s32 %s40, %s47
      %p411 = scmp.eq.s32.totalorder %s410, 0
      %s413 = sadd.s32 %s412, 1
      %s414 = scalar_select %p411, %s412, %s413
      %p417 = pneg %p411
      %p418 = scmp.eq.s32.totalorder %s40, 1
      %p419 = por %p417, %p418
      %p420 = scmp.ne.s32.totalorder %s412, %s415
      %p421 = scmp.eq.s32.totalorder %s40, 0
      %p422 = por %p420, %p421
      %p423 = scmp.ne.s32.totalorder %s412, %s415
      %p424 = scmp.eq.s32.totalorder %s45, 1
      %p425 = por %p423, %p424
      %p426 = scmp.ne.s32.totalorder %s415, %s416
      %p427 = scmp.eq.s32.totalorder %s45, 0
      %p428 = por %p426, %p427
      %p429 = scmp.ne.s32.totalorder %s415, %s416
      %p430 = scmp.eq.s32.totalorder %s46, 1
      %p431 = por %p429, %p430
      %p433 = scmp.ne.s32.totalorder %s416, %s432
      %p434 = scmp.eq.s32.totalorder %s46, 0
      %p435 = por %p433, %p434
      %s436 = ssub.s32 %s40, %s47
      %p437 = scmp.eq.s32.totalorder %s436, 0
      %s439 = sadd.s32 %s438, 1
      %s440 = scalar_select %p437, %s438, %s439
      %p443 = pneg %p437
      %p444 = scmp.eq.s32.totalorder %s40, 1
      %p445 = por %p443, %p444
      %p446 = scmp.ne.s32.totalorder %s438, %s441
      %p447 = scmp.eq.s32.totalorder %s40, 0
      %p448 = por %p446, %p447
      %p449 = scmp.ne.s32.totalorder %s438, %s441
      %p450 = scmp.eq.s32.totalorder %s45, 1
      %p451 = por %p449, %p450
      %p452 = scmp.ne.s32.totalorder %s441, %s442
      %p453 = scmp.eq.s32.totalorder %s45, 0
      %p454 = por %p452, %p453
      %p455 = scmp.ne.s32.totalorder %s441, %s442
      %p456 = scmp.eq.s32.totalorder %s46, 1
      %p457 = por %p455, %p456
      %p459 = scmp.ne.s32.totalorder %s442, %s458
      %p460 = scmp.eq.s32.totalorder %s46, 0
      %p461 = por %p459, %p460
      %p462 = scmp.le.s32.totalorder 1, %s40
      %p463 = scmp.lt.s32.totalorder %s40, 3
      %p464 = pnand %p462, %p463
      %p465 = pneg %p464
      // Predicated region
      $region9: #{tpu_custom_call.1} parent=5 // pred_check
        _
      $region10: #{tpu_custom_call.1} parent=5 // pred_check_branch
        %467 = sbr.rel (%p464) target = $region12
      $region11: #{tpu_custom_call.1} parent=5 // pred_region
        %s468 = ssub.s32 %s40, 1
        // Predicated region
        $region13: #{tpu_custom_call.1} parent=11 // pred_check
          %p469 = pneg %p87
        $region14: #{tpu_custom_call.1} parent=11 // pred_check_branch
          %471 = sbr.rel (%p469) target = $region16
        $region15: #{tpu_custom_call.1} parent=11 // pred_region
          %473 = vsyncadd [#allocation6], 0
          %s474 = sshll.u32 %s1, 4
          %s475 = int_to_ptr.hbm [resolvable:$true] %s474
          %s476 = sshll.u32 [#allocation5], 4
          %s477 = int_to_ptr.vmem [resolvable:$true] %s476
          %482 = dma.hbm_to_vmem [thread:$0]  %s475, 2048, %s477, [#allocation6], 128, 128, 8
        $region16: #{tpu_custom_call.1} parent=11 // pred_fallthru
          _
        // Predicated region
        $region17: #{tpu_custom_call.1} parent=11 // pred_check
          %p483 = pneg %p108
        $region18: #{tpu_custom_call.1} parent=11 // pred_check_branch
          %485 = sbr.rel (%p483) target = $region20
        $region19: #{tpu_custom_call.1} parent=11 // pred_region
          %487 = vsyncadd [#allocation6], 0
          %s489 = sshll.u32 %s2, 4
          %s490 = int_to_ptr.hbm [resolvable:$true] %s489
          %s491 = sshll.u32 [#allocation7], 4
          %s492 = int_to_ptr.vmem [resolvable:$true] %s491
          %494 = dma.hbm_to_vmem [thread:$0]  %s490, 32, %s492, [#allocation6]
        $region20: #{tpu_custom_call.1} parent=11 // pred_fallthru
          _
        // Predicated region
        $region21: #{tpu_custom_call.1} parent=11 // pred_check
          %p495 = pneg %p129
        $region22: #{tpu_custom_call.1} parent=11 // pred_check_branch
          %497 = sbr.rel (%p495) target = $region24
        $region23: #{tpu_custom_call.1} parent=11 // pred_region
          %499 = vsyncadd [#allocation9], 0
          %s500 = sshll.u32 %s3, 4
          %s501 = int_to_ptr.hbm [resolvable:$true] %s500
          %s502 = sshll.u32 [#allocation8], 4
          %s503 = int_to_ptr.vmem [resolvable:$true] %s502
          %508 = dma.hbm_to_vmem [thread:$0]  %s501, 2048, %s503, [#allocation9], 64, 64, 4
        $region24: #{tpu_custom_call.1} parent=11 // pred_fallthru
          _
        // Predicated region
        $region25: #{tpu_custom_call.1} parent=11 // pred_check
          %p509 = pneg %p150
        $region26: #{tpu_custom_call.1} parent=11 // pred_check_branch
          %511 = sbr.rel (%p509) target = $region28
        $region27: #{tpu_custom_call.1} parent=11 // pred_region
          %513 = vsyncadd [#allocation9], 0
          %s514 = sshll.u32 %s4, 4
          %s515 = int_to_ptr.hbm [resolvable:$true] %s514
          %s516 = sshll.u32 [#allocation10], 4
          %s517 = int_to_ptr.vmem [resolvable:$true] %s516
          %522 = dma.hbm_to_vmem [thread:$0]  %s515, 2048, %s517, [#allocation9], 128, 128, 8
        $region28: #{tpu_custom_call.1} parent=11 // pred_fallthru
          _
        // Predicated region
        $region29: #{tpu_custom_call.1} parent=11 // pred_check
          %p523 = pneg %p171
        $region30: #{tpu_custom_call.1} parent=11 // pred_check_branch
          %525 = sbr.rel (%p523) target = $region32
        $region31: #{tpu_custom_call.1} parent=11 // pred_region
          %527 = vsyncadd [#allocation12], 0
          %s528 = sshll.u32 %s5, 4
          %s529 = int_to_ptr.hbm [resolvable:$true] %s528
          %s530 = sshll.u32 [#allocation11], 4
          %s531 = int_to_ptr.vmem [resolvable:$true] %s530
          %536 = dma.hbm_to_vmem [thread:$0]  %s529, 8192, %s531, [#allocation12], 256, 256, 16
        $region32: #{tpu_custom_call.1} parent=11 // pred_fallthru
          _
        // Predicated region
        $region33: #{tpu_custom_call.1} parent=11 // pred_check
          %p537 = pneg %p192
        $region34: #{tpu_custom_call.1} parent=11 // pred_check_branch
          %539 = sbr.rel (%p537) target = $region36
        $region35: #{tpu_custom_call.1} parent=11 // pred_region
          _
        $region36: #{tpu_custom_call.1} parent=11 // pred_fallthru
          _
        // Predicated region
        $region37: #{tpu_custom_call.1} parent=11 // pred_check
          %p540 = pneg %p213
        $region38: #{tpu_custom_call.1} parent=11 // pred_check_branch
          %542 = sbr.rel (%p540) target = $region40
        $region39: #{tpu_custom_call.1} parent=11 // pred_region
          %544 = vsyncadd [#allocation12], 0
          %s545 = sshll.u32 %s7, 4
          %s546 = int_to_ptr.hbm [resolvable:$true] %s545
          %s547 = sshll.u32 [#allocation13], 4
          %s548 = int_to_ptr.vmem [resolvable:$true] %s547
          %553 = dma.hbm_to_vmem [thread:$0]  %s546, 4096, %s548, [#allocation12], 64, 64, 4
        $region40: #{tpu_custom_call.1} parent=11 // pred_fallthru
          _
        // Predicated region
        $region41: #{tpu_custom_call.1} parent=11 // pred_check
          %p554 = pneg %p234
        $region42: #{tpu_custom_call.1} parent=11 // pred_check_branch
          %556 = sbr.rel (%p554) target = $region44
        $region43: #{tpu_custom_call.1} parent=11 // pred_region
          %558 = vsyncadd [#allocation15], 0
          %s559 = sshll.u32 %s8, 4
          %s560 = int_to_ptr.hbm [resolvable:$true] %s559
          %s561 = sshll.u32 [#allocation14], 4
          %s562 = int_to_ptr.vmem [resolvable:$true] %s561
          %567 = dma.hbm_to_vmem [thread:$0]  %s560, 4096, %s562, [#allocation15], 256, 256, 16
        $region44: #{tpu_custom_call.1} parent=11 // pred_fallthru
          _
        // Predicated region
        $region45: #{tpu_custom_call.1} parent=11 // pred_check
          %p568 = pneg %p255
        $region46: #{tpu_custom_call.1} parent=11 // pred_check_branch
          %570 = sbr.rel (%p568) target = $region48
        $region47: #{tpu_custom_call.1} parent=11 // pred_region
          %572 = vsyncadd [#allocation15], 0
          %s573 = sshll.u32 %s9, 4
          %s574 = int_to_ptr.hbm [resolvable:$true] %s573
          %s575 = sshll.u32 [#allocation16], 4
          %s576 = int_to_ptr.vmem [resolvable:$true] %s575
          %581 = dma.hbm_to_vmem [thread:$0]  %s574, 16384, %s576, [#allocation15], 256, 256, 16
        $region48: #{tpu_custom_call.1} parent=11 // pred_fallthru
          _
        // Predicated region
        $region49: #{tpu_custom_call.1} parent=11 // pred_check
          %p582 = pneg %p276
        $region50: #{tpu_custom_call.1} parent=11 // pred_check_branch
          %584 = sbr.rel (%p582) target = $region52
        $region51: #{tpu_custom_call.1} parent=11 // pred_region
          _
        $region52: #{tpu_custom_call.1} parent=11 // pred_fallthru
          _
        // Predicated region
        $region53: #{tpu_custom_call.1} parent=11 // pred_check
          %p585 = pneg %p297
        $region54: #{tpu_custom_call.1} parent=11 // pred_check_branch
          %587 = sbr.rel (%p585) target = $region56
        $region55: #{tpu_custom_call.1} parent=11 // pred_region
          %589 = vsyncadd [#allocation18], 0
          %s590 = sshll.u32 %s11, 4
          %s591 = int_to_ptr.hbm [resolvable:$true] %s590
          %s592 = sshll.u32 [#allocation17], 4
          %s593 = int_to_ptr.vmem [resolvable:$true] %s592
          %598 = dma.hbm_to_vmem [thread:$0]  %s591, 4096, %s593, [#allocation18], 64, 64, 4
        $region56: #{tpu_custom_call.1} parent=11 // pred_fallthru
          _
        // Predicated region
        $region57: #{tpu_custom_call.1} parent=11 // pred_check
          %p599 = pneg %p318
        $region58: #{tpu_custom_call.1} parent=11 // pred_check_branch
          %601 = sbr.rel (%p599) target = $region60
        $region59: #{tpu_custom_call.1} parent=11 // pred_region
          %603 = vsyncadd [#allocation18], 0
          %s604 = sshll.u32 %s12, 4
          %s605 = int_to_ptr.hbm [resolvable:$true] %s604
          %s606 = sshll.u32 [#allocation19], 4
          %s607 = int_to_ptr.vmem [resolvable:$true] %s606
          %612 = dma.hbm_to_vmem [thread:$0]  %s605, 4096, %s607, [#allocation18], 256, 256, 16
        $region60: #{tpu_custom_call.1} parent=11 // pred_fallthru
          _
        // Predicated region
        $region61: #{tpu_custom_call.1} parent=11 // pred_check
          %p613 = pneg %p339
        $region62: #{tpu_custom_call.1} parent=11 // pred_check_branch
          %615 = sbr.rel (%p613) target = $region64
        $region63: #{tpu_custom_call.1} parent=11 // pred_region
          %617 = vsyncadd [#allocation21], 0
          %s618 = sshll.u32 %s13, 4
          %s619 = int_to_ptr.hbm [resolvable:$true] %s618
          %s620 = sshll.u32 [#allocation20], 4
          %s621 = int_to_ptr.vmem [resolvable:$true] %s620
          %626 = dma.hbm_to_vmem [thread:$0]  %s619, 16384, %s621, [#allocation21], 256, 256, 16
        $region64: #{tpu_custom_call.1} parent=11 // pred_fallthru
          _
        // Predicated region
        $region65: #{tpu_custom_call.1} parent=11 // pred_check
          %p627 = pneg %p360
        $region66: #{tpu_custom_call.1} parent=11 // pred_check_branch
          %629 = sbr.rel (%p627) target = $region68
        $region67: #{tpu_custom_call.1} parent=11 // pred_region
          _
        $region68: #{tpu_custom_call.1} parent=11 // pred_fallthru
          _
        // Predicated region
        $region69: #{tpu_custom_call.1} parent=11 // pred_check
          %p630 = pneg %p381
        $region70: #{tpu_custom_call.1} parent=11 // pred_check_branch
          %632 = sbr.rel (%p630) target = $region72
        $region71: #{tpu_custom_call.1} parent=11 // pred_region
          %634 = vsyncadd [#allocation21], 0
          %s635 = sshll.u32 %s15, 4
          %s636 = int_to_ptr.hbm [resolvable:$true] %s635
          %s637 = sshll.u32 [#allocation22], 4
          %s638 = int_to_ptr.vmem [resolvable:$true] %s637
          %643 = dma.hbm_to_vmem [thread:$0]  %s636, 4096, %s638, [#allocation21], 64, 64, 4
        $region72: #{tpu_custom_call.1} parent=11 // pred_fallthru
          _
        // Predicated region
        $region73: #{tpu_custom_call.1} parent=11 // pred_check
          %p644 = pneg %p402
        $region74: #{tpu_custom_call.1} parent=11 // pred_check_branch
          %646 = sbr.rel (%p644) target = $region76
        $region75: #{tpu_custom_call.1} parent=11 // pred_region
          _
        $region76: #{tpu_custom_call.1} parent=11 // pred_fallthru
          _
      $region12: #{tpu_custom_call.1} parent=5 // pred_fallthru
        _
      %p647 = scmp.lt.s32.totalorder %s40, 2
      // Predicated region
      $region77: #{tpu_custom_call.1} parent=5 // pred_check
        %p648 = pneg %p647
      $region78: #{tpu_custom_call.1} parent=5 // pred_check_branch
        %650 = sbr.rel (%p648) target = $region80
      $region79: #{tpu_custom_call.1} parent=5 // pred_region
        // Predicated region
        $region81: #{tpu_custom_call.1} parent=79 // pred_check
          %p651 = pneg %p60
        $region82: #{tpu_custom_call.1} parent=79 // pred_check_branch
          %653 = sbr.rel (%p651) target = $region84
        $region83: #{tpu_custom_call.1} parent=79 // pred_region
          %s654 = sand.u32 %s50, 1
          %s655 = scalar_lea.sflag [#allocation3], %s654
          %s656 = sand.u32 %s50, 1
          %s657 = smul.addr %s656, 128
          %s658 = scalar_lea.vmem [#allocation2], %s657
          %s659 = smul.u32 16, %s40
          %661 = vsyncadd %s655, 0
          %s662 = smul.addr %s659, 8
          %s663 = scalar_lea.hbm %s0, %s662
          %s664 = sshll.u32 %s663, 4
          %s665 = int_to_ptr.hbm [resolvable:$true] %s664
          %s666 = sshll.u32 %s658, 4
          %s667 = int_to_ptr.vmem [resolvable:$true] %s666
          %672 = dma.hbm_to_vmem [thread:$0]  %s665, 2048, %s667, %s655, 128, 128, 8
        $region84: #{tpu_custom_call.1} parent=79 // pred_fallthru
          _
      $region80: #{tpu_custom_call.1} parent=5 // pred_fallthru
        _
      %p673 = scmp.le.s32.totalorder 1, %s40
      %p674 = scmp.lt.s32.totalorder %s40, 3
      %p675 = pnand %p673, %p674
      %p676 = pneg %p675
      // Predicated region
      $region85: #{tpu_custom_call.1} parent=5 // pred_check
        _
      $region86: #{tpu_custom_call.1} parent=5 // pred_check_branch
        %678 = sbr.rel (%p675) target = $region88
      $region87: #{tpu_custom_call.1} parent=5 // pred_region
        %s679 = ssub.s32 %s40, 1
        %s680 = sand.u32 %s53, 1
        %s681 = scalar_lea.sflag [#allocation3], %s680
        %s682 = sand.u32 %s53, 1
        %s683 = smul.addr %s682, 128
        %s684 = scalar_lea.vmem [#allocation2], %s683
        // Predicated region
        $region89: #{tpu_custom_call.1} parent=87 // pred_check
          %p685 = pneg %p66
        $region90: #{tpu_custom_call.1} parent=87 // pred_check_branch
          %687 = sbr.rel (%p685) target = $region92
        $region91: #{tpu_custom_call.1} parent=87 // pred_region
          %689 = dma.done %s681, 2048
        $region92: #{tpu_custom_call.1} parent=87 // pred_fallthru
          _
        // Predicated region
        $region93: #{tpu_custom_call.1} parent=87 // pred_check
          %p690 = pneg %p87
        $region94: #{tpu_custom_call.1} parent=87 // pred_check_branch
          %692 = sbr.rel (%p690) target = $region96
        $region95: #{tpu_custom_call.1} parent=87 // pred_region
          %694 = dma.done [#allocation6], 2048
        $region96: #{tpu_custom_call.1} parent=87 // pred_fallthru
          _
        // Predicated region
        $region97: #{tpu_custom_call.1} parent=87 // pred_check
          %p695 = pneg %p108
        $region98: #{tpu_custom_call.1} parent=87 // pred_check_branch
          %697 = sbr.rel (%p695) target = $region100
        $region99: #{tpu_custom_call.1} parent=87 // pred_region
          %699 = dma.done [#allocation6], 32
        $region100: #{tpu_custom_call.1} parent=87 // pred_fallthru
          _
        // Predicated region
        $region101: #{tpu_custom_call.1} parent=87 // pred_check
          %p700 = pneg %p129
        $region102: #{tpu_custom_call.1} parent=87 // pred_check_branch
          %702 = sbr.rel (%p700) target = $region104
        $region103: #{tpu_custom_call.1} parent=87 // pred_region
          %704 = dma.done [#allocation9], 2048
        $region104: #{tpu_custom_call.1} parent=87 // pred_fallthru
          _
        // Predicated region
        $region105: #{tpu_custom_call.1} parent=87 // pred_check
          %p705 = pneg %p150
        $region106: #{tpu_custom_call.1} parent=87 // pred_check_branch
          %707 = sbr.rel (%p705) target = $region108
        $region107: #{tpu_custom_call.1} parent=87 // pred_region
          %709 = dma.done [#allocation9], 2048
        $region108: #{tpu_custom_call.1} parent=87 // pred_fallthru
          _
        // Predicated region
        $region109: #{tpu_custom_call.1} parent=87 // pred_check
          %p710 = pneg %p171
        $region110: #{tpu_custom_call.1} parent=87 // pred_check_branch
          %712 = sbr.rel (%p710) target = $region112
        $region111: #{tpu_custom_call.1} parent=87 // pred_region
          %714 = dma.done [#allocation12], 8192
        $region112: #{tpu_custom_call.1} parent=87 // pred_fallthru
          _
        // Predicated region
        $region113: #{tpu_custom_call.1} parent=87 // pred_check
          %p715 = pneg %p213
        $region114: #{tpu_custom_call.1} parent=87 // pred_check_branch
          %717 = sbr.rel (%p715) target = $region116
        $region115: #{tpu_custom_call.1} parent=87 // pred_region
          %719 = dma.done [#allocation12], 4096
        $region116: #{tpu_custom_call.1} parent=87 // pred_fallthru
          _
        // Predicated region
        $region117: #{tpu_custom_call.1} parent=87 // pred_check
          %p720 = pneg %p234
        $region118: #{tpu_custom_call.1} parent=87 // pred_check_branch
          %722 = sbr.rel (%p720) target = $region120
        $region119: #{tpu_custom_call.1} parent=87 // pred_region
          %724 = dma.done [#allocation15], 4096
        $region120: #{tpu_custom_call.1} parent=87 // pred_fallthru
          _
        // Predicated region
        $region121: #{tpu_custom_call.1} parent=87 // pred_check
          %p725 = pneg %p255
        $region122: #{tpu_custom_call.1} parent=87 // pred_check_branch
          %727 = sbr.rel (%p725) target = $region124
        $region123: #{tpu_custom_call.1} parent=87 // pred_region
          %729 = dma.done [#allocation15], 16384
        $region124: #{tpu_custom_call.1} parent=87 // pred_fallthru
          _
        // Predicated region
        $region125: #{tpu_custom_call.1} parent=87 // pred_check
          %p730 = pneg %p297
        $region126: #{tpu_custom_call.1} parent=87 // pred_check_branch
          %732 = sbr.rel (%p730) target = $region128
        $region127: #{tpu_custom_call.1} parent=87 // pred_region
          %734 = dma.done [#allocation18], 4096
        $region128: #{tpu_custom_call.1} parent=87 // pred_fallthru
          _
        // Predicated region
        $region129: #{tpu_custom_call.1} parent=87 // pred_check
          %p735 = pneg %p318
        $region130: #{tpu_custom_call.1} parent=87 // pred_check_branch
          %737 = sbr.rel (%p735) target = $region132
        $region131: #{tpu_custom_call.1} parent=87 // pred_region
          %739 = dma.done [#allocation18], 4096
        $region132: #{tpu_custom_call.1} parent=87 // pred_fallthru
          _
        // Predicated region
        $region133: #{tpu_custom_call.1} parent=87 // pred_check
          %p740 = pneg %p339
        $region134: #{tpu_custom_call.1} parent=87 // pred_check_branch
          %742 = sbr.rel (%p740) target = $region136
        $region135: #{tpu_custom_call.1} parent=87 // pred_region
          %744 = dma.done [#allocation21], 16384
        $region136: #{tpu_custom_call.1} parent=87 // pred_fallthru
          _
        // Predicated region
        $region137: #{tpu_custom_call.1} parent=87 // pred_check
          %p745 = pneg %p381
        $region138: #{tpu_custom_call.1} parent=87 // pred_check_branch
          %747 = sbr.rel (%p745) target = $region140
        $region139: #{tpu_custom_call.1} parent=87 // pred_region
          %749 = dma.done [#allocation21], 4096
        $region140: #{tpu_custom_call.1} parent=87 // pred_fallthru
          _
        %s750 = sand.u32 %s53, 1
        %s751 = scalar_lea.sflag [#allocation3], %s750
        %s752 = sand.u32 %s53, 1
        %s753 = smul.addr %s752, 128
        %s754 = scalar_lea.vmem [#allocation2], %s753
        %p755 = pneg %p66
        %p756 = pneg %p63
        %p757 = pneg %p87
        %p758 = pneg %p84
        %p759 = pneg %p108
        %p760 = pneg %p105
        %p761 = pneg %p129
        %p762 = pneg %p126
        %p763 = pneg %p150
        %p764 = pneg %p147
        %p765 = pneg %p171
        %p766 = pneg %p168
        %p767 = pneg %p192
        %p768 = pneg %p189
        %p769 = pneg %p213
        %p770 = pneg %p210
        %p771 = pneg %p234
        %p772 = pneg %p231
        %p773 = pneg %p255
        %p774 = pneg %p252
        %p775 = pneg %p276
        %p776 = pneg %p273
        %p777 = pneg %p297
        %p778 = pneg %p294
        %p779 = pneg %p318
        %p780 = pneg %p315
        %p781 = pneg %p339
        %p782 = pneg %p336
        %p783 = pneg %p360
        %p784 = pneg %p357
        %p785 = pneg %p381
        %p786 = pneg %p378
        %p787 = pneg %p402
        %p788 = pneg %p399
        %p789 = pneg %p428
        %p790 = pneg %p425
        %s791 = sand.u32 %s415, 1
        %s792 = scalar_lea.sflag [#allocation4], %s791
        %s793 = sand.u32 %s415, 1
        %s794 = smul.addr %s793, 512
        %s795 = scalar_lea.vmem [#allocation23], %s794
        %p796 = pneg %p454
        %p797 = pneg %p451
        %s798 = sand.u32 %s441, 1
        %s799 = scalar_lea.sflag [#allocation25], %s798
        %s800 = sand.u32 %s441, 1
        %s801 = smul.addr %s800, 128
        %s802 = scalar_lea.vmem [#allocation24], %s801
        %s803 = smul.u32 16, %s45
        %s804 = smul.u32 16, %s45
        %s805 = smul.u32 16, %s45
        %v806 = vld [vmem:[%s684] sm:$0xff]
        %v807 = vld [vmem:[%s684 + $0x8] sm:$0xff]
        %v808 = vld [vmem:[%s684 + $0x10] sm:$0xff]
        %v809 = vld [vmem:[%s684 + $0x18] sm:$0xff]
        %v810 = vld [vmem:[%s684 + $0x20] sm:$0xff]
        %v811 = vld [vmem:[%s684 + $0x28] sm:$0xff]
        %v812 = vld [vmem:[%s684 + $0x30] sm:$0xff]
        %v813 = vld [vmem:[%s684 + $0x38] sm:$0xff]
        %v814 = vld [vmem:[%s684 + $0x40] sm:$0xff]
        %v815 = vld [vmem:[%s684 + $0x48] sm:$0xff]
        %v816 = vld [vmem:[%s684 + $0x50] sm:$0xff]
        %v817 = vld [vmem:[%s684 + $0x58] sm:$0xff]
        %v818 = vld [vmem:[%s684 + $0x60] sm:$0xff]
        %v819 = vld [vmem:[%s684 + $0x68] sm:$0xff]
        %v820 = vld [vmem:[%s684 + $0x70] sm:$0xff]
        %v821 = vld [vmem:[%s684 + $0x78] sm:$0xff]
        %v822 = vld [vmem:[#allocation5] sm:$0xff]
        %v823 = vld [vmem:[#allocation5 + $0x8] sm:$0xff]
        %v824 = vld [vmem:[#allocation5 + $0x10] sm:$0xff]
        %v825 = vld [vmem:[#allocation5 + $0x18] sm:$0xff]
        %v826 = vld [vmem:[#allocation5 + $0x20] sm:$0xff]
        %v827 = vld [vmem:[#allocation5 + $0x28] sm:$0xff]
        %v828 = vld [vmem:[#allocation5 + $0x30] sm:$0xff]
        %v829 = vld [vmem:[#allocation5 + $0x38] sm:$0xff]
        %v830 = vld [vmem:[#allocation5 + $0x40] sm:$0xff]
        %v831 = vld [vmem:[#allocation5 + $0x48] sm:$0xff]
        %v832 = vld [vmem:[#allocation5 + $0x50] sm:$0xff]
        %v833 = vld [vmem:[#allocation5 + $0x58] sm:$0xff]
        %v834 = vld [vmem:[#allocation5 + $0x60] sm:$0xff]
        %v835 = vld [vmem:[#allocation5 + $0x68] sm:$0xff]
        %v836 = vld [vmem:[#allocation5 + $0x70] sm:$0xff]
        %v837 = vld [vmem:[#allocation5 + $0x78] sm:$0xff]
        %v838 = vld [vmem:[#allocation7] sm:$0x3]
        %v839 = vld [vmem:[#allocation8] sm:$0xf]
        %v840 = vld [vmem:[#allocation8 + $0x4] sm:$0xf]
        %v841 = vld [vmem:[#allocation8 + $0x8] sm:$0xf]
        %v842 = vld [vmem:[#allocation8 + $0xc] sm:$0xf]
        %v843 = vld [vmem:[#allocation8 + $0x10] sm:$0xf]
        %v844 = vld [vmem:[#allocation8 + $0x14] sm:$0xf]
        %v845 = vld [vmem:[#allocation8 + $0x18] sm:$0xf]
        %v846 = vld [vmem:[#allocation8 + $0x1c] sm:$0xf]
        %v847 = vld [vmem:[#allocation8 + $0x20] sm:$0xf]
        %v848 = vld [vmem:[#allocation8 + $0x24] sm:$0xf]
        %v849 = vld [vmem:[#allocation8 + $0x28] sm:$0xf]
        %v850 = vld [vmem:[#allocation8 + $0x2c] sm:$0xf]
        %v851 = vld [vmem:[#allocation8 + $0x30] sm:$0xf]
        %v852 = vld [vmem:[#allocation8 + $0x34] sm:$0xf]
        %v853 = vld [vmem:[#allocation8 + $0x38] sm:$0xf]
        %v854 = vld [vmem:[#allocation8 + $0x3c] sm:$0xf]
        %v855 = vld [vmem:[#allocation8 + $0x40] sm:$0xf]
        %v856 = vld [vmem:[#allocation8 + $0x44] sm:$0xf]
        %v857 = vld [vmem:[#allocation8 + $0x48] sm:$0xf]
        %v858 = vld [vmem:[#allocation8 + $0x4c] sm:$0xf]
        %v859 = vld [vmem:[#allocation8 + $0x50] sm:$0xf]
        %v860 = vld [vmem:[#allocation8 + $0x54] sm:$0xf]
        %v861 = vld [vmem:[#allocation8 + $0x58] sm:$0xf]
        %v862 = vld [vmem:[#allocation8 + $0x5c] sm:$0xf]
        %v863 = vld [vmem:[#allocation8 + $0x60] sm:$0xf]
        %v864 = vld [vmem:[#allocation8 + $0x64] sm:$0xf]
        %v865 = vld [vmem:[#allocation8 + $0x68] sm:$0xf]
        %v866 = vld [vmem:[#allocation8 + $0x6c] sm:$0xf]
        %v867 = vld [vmem:[#allocation8 + $0x70] sm:$0xf]
        %v868 = vld [vmem:[#allocation8 + $0x74] sm:$0xf]
        %v869 = vld [vmem:[#allocation8 + $0x78] sm:$0xf]
        %v870 = vld [vmem:[#allocation8 + $0x7c] sm:$0xf]
        %v871 = vld [vmem:[#allocation10] sm:$0xff]
        %v872 = vld [vmem:[#allocation10 + $0x8] sm:$0xff]
        %v873 = vld [vmem:[#allocation10 + $0x10] sm:$0xff]
        %v874 = vld [vmem:[#allocation10 + $0x18] sm:$0xff]
        %v875 = vld [vmem:[#allocation10 + $0x20] sm:$0xff]
        %v876 = vld [vmem:[#allocation10 + $0x28] sm:$0xff]
        %v877 = vld [vmem:[#allocation10 + $0x30] sm:$0xff]
        %v878 = vld [vmem:[#allocation10 + $0x38] sm:$0xff]
        %v879 = vld [vmem:[#allocation10 + $0x40] sm:$0xff]
        %v880 = vld [vmem:[#allocation10 + $0x48] sm:$0xff]
        %v881 = vld [vmem:[#allocation10 + $0x50] sm:$0xff]
        %v882 = vld [vmem:[#allocation10 + $0x58] sm:$0xff]
        %v883 = vld [vmem:[#allocation10 + $0x60] sm:$0xff]
        %v884 = vld [vmem:[#allocation10 + $0x68] sm:$0xff]
        %v885 = vld [vmem:[#allocation10 + $0x70] sm:$0xff]
        %v886 = vld [vmem:[#allocation10 + $0x78] sm:$0xff]
        %v887 = vpack.c.bf16 %v807, %v806
        %v888 = vpack.c.bf16 %v809, %v808
        %v889 = vpack.c.bf16 %v811, %v810
        %v890 = vpack.c.bf16 %v813, %v812
        %v891 = vpack.c.bf16 %v815, %v814
        %v892 = vpack.c.bf16 %v817, %v816
        %v893 = vpack.c.bf16 %v819, %v818
        %v894 = vpack.c.bf16 %v821, %v820
        %v896 = vperm.slane %v838, 0
        %v897 = vperm.slane %v838, 1
        %v916 = vunpack.c.l.b16 %v822
        %v917 = vunpack.c.h.b16 %v822
        %v918 = vunpack.c.l.b16 %v823
        %v919 = vunpack.c.h.b16 %v823
        %v920 = vunpack.c.l.b16 %v824
        %v921 = vunpack.c.h.b16 %v824
        %v922 = vunpack.c.l.b16 %v825
        %v923 = vunpack.c.h.b16 %v825
        %v924 = vunpack.c.l.b16 %v826
        %v925 = vunpack.c.h.b16 %v826
        %v926 = vunpack.c.l.b16 %v827
        %v927 = vunpack.c.h.b16 %v827
        %v928 = vunpack.c.l.b16 %v828
        %v929 = vunpack.c.h.b16 %v828
        %v930 = vunpack.c.l.b16 %v829
        %v931 = vunpack.c.h.b16 %v829
        %v932 = vunpack.c.l.b16 %v830
        %v933 = vunpack.c.h.b16 %v830
        %v934 = vunpack.c.l.b16 %v831
        %v935 = vunpack.c.h.b16 %v831
        %v936 = vunpack.c.l.b16 %v832
        %v937 = vunpack.c.h.b16 %v832
        %v938 = vunpack.c.l.b16 %v833
        %v939 = vunpack.c.h.b16 %v833
        %v940 = vunpack.c.l.b16 %v834
        %v941 = vunpack.c.h.b16 %v834
        %v942 = vunpack.c.l.b16 %v835
        %v943 = vunpack.c.h.b16 %v835
        %v944 = vunpack.c.l.b16 %v836
        %v945 = vunpack.c.h.b16 %v836
        %v946 = vunpack.c.l.b16 %v837
        %v947 = vunpack.c.h.b16 %v837
        %v948 = vpack.c.b16 %v918, %v916
        %v949 = vpack.c.b16 %v919, %v917
        %v950 = vpack.c.b16 %v922, %v920
        %v951 = vpack.c.b16 %v923, %v921
        %v952 = vpack.c.b16 %v926, %v924
        %v953 = vpack.c.b16 %v927, %v925
        %v954 = vpack.c.b16 %v930, %v928
        %v955 = vpack.c.b16 %v931, %v929
        %v956 = vpack.c.b16 %v934, %v932
        %v957 = vpack.c.b16 %v935, %v933
        %v958 = vpack.c.b16 %v938, %v936
        %v959 = vpack.c.b16 %v939, %v937
        %v960 = vpack.c.b16 %v942, %v940
        %v961 = vpack.c.b16 %v943, %v941
        %v962 = vpack.c.b16 %v946, %v944
        %v963 = vpack.c.b16 %v947, %v945
        %980 = vmatpush.bf16.msra.mxu0 %v962
        %981 = vmatpush.bf16.msra.mxu0 %v960
        %982 = vmatpush.bf16.msra.mxu0 %v958
        %983 = vmatpush.bf16.msra.mxu0 %v956
        %984 = vmatpush.bf16.msra.mxu0 %v954
        %985 = vmatpush.bf16.msra.mxu0 %v952
        %986 = vmatpush.bf16.msra.mxu0 %v950
        %987 = vmatpush.bf16.msra.mxu0 %v948
        %988 = vmatmul.bf16.gmra.mxu0 %v887
        %v989 = vpop.f32.mrf.mxu0
        %v990 = vadd.f32 %v896, %v989
        %v991 = vpop.f32.mrf.mxu0
        %v992 = vadd.f32 %v896, %v991
        %993 = vmatmul.bf16.gmra.mxu0 %v888
        %v994 = vpop.f32.mrf.mxu0
        %v995 = vadd.f32 %v896, %v994
        %v996 = vpop.f32.mrf.mxu0
        %v997 = vadd.f32 %v896, %v996
        %998 = vmatmul.bf16.gmra.mxu0 %v889
        %v999 = vpop.f32.mrf.mxu0
        %v1000 = vadd.f32 %v896, %v999
        %v1001 = vpop.f32.mrf.mxu0
        %v1002 = vadd.f32 %v896, %v1001
        %1003 = vmatmul.bf16.gmra.mxu0 %v890
        %v1004 = vpop.f32.mrf.mxu0
        %v1005 = vadd.f32 %v896, %v1004
        %v1006 = vpop.f32.mrf.mxu0
        %v1007 = vadd.f32 %v896, %v1006
        %1008 = vmatmul.bf16.gmra.mxu0 %v891
        %v1009 = vpop.f32.mrf.mxu0
        %v1010 = vadd.f32 %v896, %v1009
        %v1011 = vpop.f32.mrf.mxu0
        %v1012 = vadd.f32 %v896, %v1011
        %1013 = vmatmul.bf16.gmra.mxu0 %v892
        %v1014 = vpop.f32.mrf.mxu0
        %v1015 = vadd.f32 %v896, %v1014
        %v1016 = vpop.f32.mrf.mxu0
        %v1017 = vadd.f32 %v896, %v1016
        %1018 = vmatmul.bf16.gmra.mxu0 %v893
        %v1019 = vpop.f32.mrf.mxu0
        %v1020 = vadd.f32 %v896, %v1019
        %v1021 = vpop.f32.mrf.mxu0
        %v1022 = vadd.f32 %v896, %v1021
        %1023 = vmatmul.bf16.gmra.mxu0 %v894
        %v1024 = vpop.f32.mrf.mxu0
        %v1025 = vadd.f32 %v896, %v1024
        %v1026 = vpop.f32.mrf.mxu0
        %v1027 = vadd.f32 %v896, %v1026
        %1028 = vdwg.mxu0
        %1029 = vmatpush.bf16.msra.mxu0 %v963
        %1030 = vmatpush.bf16.msra.mxu0 %v961
        %1031 = vmatpush.bf16.msra.mxu0 %v959
        %1032 = vmatpush.bf16.msra.mxu0 %v957
        %1033 = vmatpush.bf16.msra.mxu0 %v955
        %1034 = vmatpush.bf16.msra.mxu0 %v953
        %1035 = vmatpush.bf16.msra.mxu0 %v951
        %1036 = vmatpush.bf16.msra.mxu0 %v949
        %1037 = vmatmul.bf16.gmra.mxu0 %v887
        %v1038 = vpop.f32.mrf.mxu0
        %v1039 = vadd.f32 %v897, %v1038
        %v1040 = vpop.f32.mrf.mxu0
        %v1041 = vadd.f32 %v897, %v1040
        %1042 = vmatmul.bf16.gmra.mxu0 %v888
        %v1043 = vpop.f32.mrf.mxu0
        %v1044 = vadd.f32 %v897, %v1043
        %v1045 = vpop.f32.mrf.mxu0
        %v1046 = vadd.f32 %v897, %v1045
        %1047 = vmatmul.bf16.gmra.mxu0 %v889
        %v1048 = vpop.f32.mrf.mxu0
        %v1049 = vadd.f32 %v897, %v1048
        %v1050 = vpop.f32.mrf.mxu0
        %v1051 = vadd.f32 %v897, %v1050
        %1052 = vmatmul.bf16.gmra.mxu0 %v890
        %v1053 = vpop.f32.mrf.mxu0
        %v1054 = vadd.f32 %v897, %v1053
        %v1055 = vpop.f32.mrf.mxu0
        %v1056 = vadd.f32 %v897, %v1055
        %1057 = vmatmul.bf16.gmra.mxu0 %v891
        %v1058 = vpop.f32.mrf.mxu0
        %v1059 = vadd.f32 %v897, %v1058
        %v1060 = vpop.f32.mrf.mxu0
        %v1061 = vadd.f32 %v897, %v1060
        %1062 = vmatmul.bf16.gmra.mxu0 %v892
        %v1063 = vpop.f32.mrf.mxu0
        %v1064 = vadd.f32 %v897, %v1063
        %v1065 = vpop.f32.mrf.mxu0
        %v1066 = vadd.f32 %v897, %v1065
        %1067 = vmatmul.bf16.gmra.mxu0 %v893
        %v1068 = vpop.f32.mrf.mxu0
        %v1069 = vadd.f32 %v897, %v1068
        %v1070 = vpop.f32.mrf.mxu0
        %v1071 = vadd.f32 %v897, %v1070
        %1072 = vmatmul.bf16.gmra.mxu0 %v894
        %v1073 = vpop.f32.mrf.mxu0
        %v1074 = vadd.f32 %v897, %v1073
        %v1075 = vpop.f32.mrf.mxu0
        %v1076 = vadd.f32 %v897, %v1075
        %1077 = vdwg.mxu0
        %v1078 = vmax.f32 %v990, 0.0
        %v1079 = vmax.f32 %v1039, 0.0
        %v1080 = vmax.f32 %v992, 0.0
        %v1081 = vmax.f32 %v1041, 0.0
        %v1082 = vmax.f32 %v995, 0.0
        %v1083 = vmax.f32 %v1044, 0.0
        %v1084 = vmax.f32 %v997, 0.0
        %v1085 = vmax.f32 %v1046, 0.0
        %v1086 = vmax.f32 %v1000, 0.0
        %v1087 = vmax.f32 %v1049, 0.0
        %v1088 = vmax.f32 %v1002, 0.0
        %v1089 = vmax.f32 %v1051, 0.0
        %v1090 = vmax.f32 %v1005, 0.0
        %v1091 = vmax.f32 %v1054, 0.0
        %v1092 = vmax.f32 %v1007, 0.0
        %v1093 = vmax.f32 %v1056, 0.0
        %v1094 = vmax.f32 %v1010, 0.0
        %v1095 = vmax.f32 %v1059, 0.0
        %v1096 = vmax.f32 %v1012, 0.0
        %v1097 = vmax.f32 %v1061, 0.0
        %v1098 = vmax.f32 %v1015, 0.0
        %v1099 = vmax.f32 %v1064, 0.0
        %v1100 = vmax.f32 %v1017, 0.0
        %v1101 = vmax.f32 %v1066, 0.0
        %v1102 = vmax.f32 %v1020, 0.0
        %v1103 = vmax.f32 %v1069, 0.0
        %v1104 = vmax.f32 %v1022, 0.0
        %v1105 = vmax.f32 %v1071, 0.0
        %v1106 = vmax.f32 %v1025, 0.0
        %v1107 = vmax.f32 %v1074, 0.0
        %v1108 = vmax.f32 %v1027, 0.0
        %v1109 = vmax.f32 %v1076, 0.0
        %v1110 = vpack.c.bf16 %v1080, %v1078
        %v1111 = vpack.c.bf16 %v1081, %v1079
        %v1112 = vpack.c.bf16 %v1084, %v1082
        %v1113 = vpack.c.bf16 %v1085, %v1083
        %v1114 = vpack.c.bf16 %v1088, %v1086
        %v1115 = vpack.c.bf16 %v1089, %v1087
        %v1116 = vpack.c.bf16 %v1092, %v1090
        %v1117 = vpack.c.bf16 %v1093, %v1091
        %v1118 = vpack.c.bf16 %v1096, %v1094
        %v1119 = vpack.c.bf16 %v1097, %v1095
        %v1120 = vpack.c.bf16 %v1100, %v1098
        %v1121 = vpack.c.bf16 %v1101, %v1099
        %v1122 = vpack.c.bf16 %v1104, %v1102
        %v1123 = vpack.c.bf16 %v1105, %v1103
        %v1124 = vpack.c.bf16 %v1108, %v1106
        %v1125 = vpack.c.bf16 %v1109, %v1107
        %v1158 = vunpack.c.l.b16 %v839
        %v1159 = vunpack.c.l.b16 %v840
        %v1160 = vunpack.c.l.b16 %v841
        %v1161 = vunpack.c.l.b16 %v842
        %v1162 = vunpack.c.l.b16 %v843
        %v1163 = vunpack.c.l.b16 %v844
        %v1164 = vunpack.c.l.b16 %v845
        %v1165 = vunpack.c.l.b16 %v846
        %v1166 = vunpack.c.l.b16 %v847
        %v1167 = vunpack.c.l.b16 %v848
        %v1168 = vunpack.c.l.b16 %v849
        %v1169 = vunpack.c.l.b16 %v850
        %v1170 = vunpack.c.l.b16 %v851
        %v1171 = vunpack.c.l.b16 %v852
        %v1172 = vunpack.c.l.b16 %v853
        %v1173 = vunpack.c.l.b16 %v854
        %v1174 = vunpack.c.l.b16 %v855
        %v1175 = vunpack.c.l.b16 %v856
        %v1176 = vunpack.c.l.b16 %v857
        %v1177 = vunpack.c.l.b16 %v858
        %v1178 = vunpack.c.l.b16 %v859
        %v1179 = vunpack.c.l.b16 %v860
        %v1180 = vunpack.c.l.b16 %v861
        %v1181 = vunpack.c.l.b16 %v862
        %v1182 = vunpack.c.l.b16 %v863
        %v1183 = vunpack.c.l.b16 %v864
        %v1184 = vunpack.c.l.b16 %v865
        %v1185 = vunpack.c.l.b16 %v866
        %v1186 = vunpack.c.l.b16 %v867
        %v1187 = vunpack.c.l.b16 %v868
        %v1188 = vunpack.c.l.b16 %v869
        %v1189 = vunpack.c.l.b16 %v870
        %v1190 = vpack.c.b16 %v1159, %v1158
        %v1191 = vpack.c.b16 %v1161, %v1160
        %v1192 = vpack.c.b16 %v1163, %v1162
        %v1193 = vpack.c.b16 %v1165, %v1164
        %v1194 = vpack.c.b16 %v1167, %v1166
        %v1195 = vpack.c.b16 %v1169, %v1168
        %v1196 = vpack.c.b16 %v1171, %v1170
        %v1197 = vpack.c.b16 %v1173, %v1172
        %v1198 = vpack.c.b16 %v1175, %v1174
        %v1199 = vpack.c.b16 %v1177, %v1176
        %v1200 = vpack.c.b16 %v1179, %v1178
        %v1201 = vpack.c.b16 %v1181, %v1180
        %v1202 = vpack.c.b16 %v1183, %v1182
        %v1203 = vpack.c.b16 %v1185, %v1184
        %v1204 = vpack.c.b16 %v1187, %v1186
        %v1205 = vpack.c.b16 %v1189, %v1188
        %1222 = vmatpush.bf16.msra.mxu0 %v1197
        %1223 = vmatpush.bf16.msra.mxu0 %v1196
        %1224 = vmatpush.bf16.msra.mxu0 %v1195
        %1225 = vmatpush.bf16.msra.mxu0 %v1194
        %1226 = vmatpush.bf16.msra.mxu0 %v1193
        %1227 = vmatpush.bf16.msra.mxu0 %v1192
        %1228 = vmatpush.bf16.msra.mxu0 %v1191
        %1229 = vmatpush.bf16.msra.mxu0 %v1190
        %1230 = vmatmul.bf16.gmra.mxu0 %v1110
        %v1231 = vpop.f32.mrf.mxu0
        %v1232 = vadd.f32 0.0, %v1231
        %v1233 = vpop.f32.mrf.mxu0
        %v1234 = vadd.f32 0.0, %v1233
        %1235 = vmatmul.bf16.gmra.mxu0 %v1112
        %v1236 = vpop.f32.mrf.mxu0
        %v1237 = vadd.f32 0.0, %v1236
        %v1238 = vpop.f32.mrf.mxu0
        %v1239 = vadd.f32 0.0, %v1238
        %1240 = vmatmul.bf16.gmra.mxu0 %v1114
        %v1241 = vpop.f32.mrf.mxu0
        %v1242 = vadd.f32 0.0, %v1241
        %v1243 = vpop.f32.mrf.mxu0
        %v1244 = vadd.f32 0.0, %v1243
        %1245 = vmatmul.bf16.gmra.mxu0 %v1116
        %v1246 = vpop.f32.mrf.mxu0
        %v1247 = vadd.f32 0.0, %v1246
        %v1248 = vpop.f32.mrf.mxu0
        %v1249 = vadd.f32 0.0, %v1248
        %1250 = vmatmul.bf16.gmra.mxu0 %v1118
        %v1251 = vpop.f32.mrf.mxu0
        %v1252 = vadd.f32 0.0, %v1251
        %v1253 = vpop.f32.mrf.mxu0
        %v1254 = vadd.f32 0.0, %v1253
        %1255 = vmatmul.bf16.gmra.mxu0 %v1120
        %v1256 = vpop.f32.mrf.mxu0
        %v1257 = vadd.f32 0.0, %v1256
        %v1258 = vpop.f32.mrf.mxu0
        %v1259 = vadd.f32 0.0, %v1258
        %1260 = vmatmul.bf16.gmra.mxu0 %v1122
        %v1261 = vpop.f32.mrf.mxu0
        %v1262 = vadd.f32 0.0, %v1261
        %v1263 = vpop.f32.mrf.mxu0
        %v1264 = vadd.f32 0.0, %v1263
        %1265 = vmatmul.bf16.gmra.mxu0 %v1124
        %v1266 = vpop.f32.mrf.mxu0
        %v1267 = vadd.f32 0.0, %v1266
        %v1268 = vpop.f32.mrf.mxu0
        %v1269 = vadd.f32 0.0, %v1268
        %1270 = vdwg.mxu0
        %1271 = vmatpush.bf16.msra.mxu0 %v1205
        %1272 = vmatpush.bf16.msra.mxu0 %v1204
        %1273 = vmatpush.bf16.msra.mxu0 %v1203
        %1274 = vmatpush.bf16.msra.mxu0 %v1202
        %1275 = vmatpush.bf16.msra.mxu0 %v1201
        %1276 = vmatpush.bf16.msra.mxu0 %v1200
        %1277 = vmatpush.bf16.msra.mxu0 %v1199
        %1278 = vmatpush.bf16.msra.mxu0 %v1198
        %1279 = vmatmul.bf16.gmra.mxu0 %v1111
        %v1280 = vpop.f32.mrf.mxu0
        %v1281 = vadd.f32 %v1232, %v1280
        %v1282 = vpop.f32.mrf.mxu0
        %v1283 = vadd.f32 %v1234, %v1282
        %1284 = vmatmul.bf16.gmra.mxu0 %v1113
        %v1285 = vpop.f32.mrf.mxu0
        %v1286 = vadd.f32 %v1237, %v1285
        %v1287 = vpop.f32.mrf.mxu0
        %v1288 = vadd.f32 %v1239, %v1287
        %1289 = vmatmul.bf16.gmra.mxu0 %v1115
        %v1290 = vpop.f32.mrf.mxu0
        %v1291 = vadd.f32 %v1242, %v1290
        %v1292 = vpop.f32.mrf.mxu0
        %v1293 = vadd.f32 %v1244, %v1292
        %1294 = vmatmul.bf16.gmra.mxu0 %v1117
        %v1295 = vpop.f32.mrf.mxu0
        %v1296 = vadd.f32 %v1247, %v1295
        %v1297 = vpop.f32.mrf.mxu0
        %v1298 = vadd.f32 %v1249, %v1297
        %1299 = vmatmul.bf16.gmra.mxu0 %v1119
        %v1300 = vpop.f32.mrf.mxu0
        %v1301 = vadd.f32 %v1252, %v1300
        %v1302 = vpop.f32.mrf.mxu0
        %v1303 = vadd.f32 %v1254, %v1302
        %1304 = vmatmul.bf16.gmra.mxu0 %v1121
        %v1305 = vpop.f32.mrf.mxu0
        %v1306 = vadd.f32 %v1257, %v1305
        %v1307 = vpop.f32.mrf.mxu0
        %v1308 = vadd.f32 %v1259, %v1307
        %1309 = vmatmul.bf16.gmra.mxu0 %v1123
        %v1310 = vpop.f32.mrf.mxu0
        %v1311 = vadd.f32 %v1262, %v1310
        %v1312 = vpop.f32.mrf.mxu0
        %v1313 = vadd.f32 %v1264, %v1312
        %1314 = vmatmul.bf16.gmra.mxu0 %v1125
        %v1315 = vpop.f32.mrf.mxu0
        %v1316 = vadd.f32 %v1267, %v1315
        %v1317 = vpop.f32.mrf.mxu0
        %v1318 = vadd.f32 %v1269, %v1317
        %1319 = vdwg.mxu0
        %v1320 = vmax.f32 %v1281, 0.0
        %v1321 = vmax.f32 %v1283, 0.0
        %v1322 = vmax.f32 %v1286, 0.0
        %v1323 = vmax.f32 %v1288, 0.0
        %v1324 = vmax.f32 %v1291, 0.0
        %v1325 = vmax.f32 %v1293, 0.0
        %v1326 = vmax.f32 %v1296, 0.0
        %v1327 = vmax.f32 %v1298, 0.0
        %v1328 = vmax.f32 %v1301, 0.0
        %v1329 = vmax.f32 %v1303, 0.0
        %v1330 = vmax.f32 %v1306, 0.0
        %v1331 = vmax.f32 %v1308, 0.0
        %v1332 = vmax.f32 %v1311, 0.0
        %v1333 = vmax.f32 %v1313, 0.0
        %v1334 = vmax.f32 %v1316, 0.0
        %v1335 = vmax.f32 %v1318, 0.0
        %v1336 = vpack.c.bf16 %v1321, %v1320
        %v1337 = vpack.c.bf16 %v1323, %v1322
        %v1338 = vpack.c.bf16 %v1325, %v1324
        %v1339 = vpack.c.bf16 %v1327, %v1326
        %v1340 = vpack.c.bf16 %v1329, %v1328
        %v1341 = vpack.c.bf16 %v1331, %v1330
        %v1342 = vpack.c.bf16 %v1333, %v1332
        %v1343 = vpack.c.bf16 %v1335, %v1334
        %v1360 = vunpack.c.l.b16 %v871
        %v1361 = vunpack.c.h.b16 %v871
        %v1362 = vunpack.c.l.b16 %v872
        %v1363 = vunpack.c.h.b16 %v872
        %v1364 = vunpack.c.l.b16 %v873
        %v1365 = vunpack.c.h.b16 %v873
        %v1366 = vunpack.c.l.b16 %v874
        %v1367 = vunpack.c.h.b16 %v874
        %v1368 = vunpack.c.l.b16 %v875
        %v1369 = vunpack.c.h.b16 %v875
        %v1370 = vunpack.c.l.b16 %v876
        %v1371 = vunpack.c.h.b16 %v876
        %v1372 = vunpack.c.l.b16 %v877
        %v1373 = vunpack.c.h.b16 %v877
        %v1374 = vunpack.c.l.b16 %v878
        %v1375 = vunpack.c.h.b16 %v878
        %v1376 = vunpack.c.l.b16 %v879
        %v1377 = vunpack.c.h.b16 %v879
        %v1378 = vunpack.c.l.b16 %v880
        %v1379 = vunpack.c.h.b16 %v880
        %v1380 = vunpack.c.l.b16 %v881
        %v1381 = vunpack.c.h.b16 %v881
        %v1382 = vunpack.c.l.b16 %v882
        %v1383 = vunpack.c.h.b16 %v882
        %v1384 = vunpack.c.l.b16 %v883
        %v1385 = vunpack.c.h.b16 %v883
        %v1386 = vunpack.c.l.b16 %v884
        %v1387 = vunpack.c.h.b16 %v884
        %v1388 = vunpack.c.l.b16 %v885
        %v1389 = vunpack.c.h.b16 %v885
        %v1390 = vunpack.c.l.b16 %v886
        %v1391 = vunpack.c.h.b16 %v886
        %v1392 = vpack.c.b16 %v1362, %v1360
        %v1393 = vpack.c.b16 %v1363, %v1361
        %v1394 = vpack.c.b16 %v1366, %v1364
        %v1395 = vpack.c.b16 %v1367, %v1365
        %v1396 = vpack.c.b16 %v1370, %v1368
        %v1397 = vpack.c.b16 %v1371, %v1369
        %v1398 = vpack.c.b16 %v1374, %v1372
        %v1399 = vpack.c.b16 %v1375, %v1373
        %v1400 = vpack.c.b16 %v1378, %v1376
        %v1401 = vpack.c.b16 %v1379, %v1377
        %v1402 = vpack.c.b16 %v1382, %v1380
        %v1403 = vpack.c.b16 %v1383, %v1381
        %v1404 = vpack.c.b16 %v1386, %v1384
        %v1405 = vpack.c.b16 %v1387, %v1385
        %v1406 = vpack.c.b16 %v1390, %v1388
        %v1407 = vpack.c.b16 %v1391, %v1389
        %1424 = vmatpush.bf16.msra.mxu0 %v1406
        %1425 = vmatpush.bf16.msra.mxu0 %v1404
        %1426 = vmatpush.bf16.msra.mxu0 %v1402
        %1427 = vmatpush.bf16.msra.mxu0 %v1400
        %1428 = vmatpush.bf16.msra.mxu0 %v1398
        %1429 = vmatpush.bf16.msra.mxu0 %v1396
        %1430 = vmatpush.bf16.msra.mxu0 %v1394
        %1431 = vmatpush.bf16.msra.mxu0 %v1392
        %1432 = vmatmul.bf16.gmra.mxu0 %v1336
        %v1433 = vpop.f32.mrf.mxu0
        %v1434 = vadd.f32 0.0, %v1433
        %v1435 = vpop.f32.mrf.mxu0
        %v1436 = vadd.f32 0.0, %v1435
        %1437 = vmatmul.bf16.gmra.mxu0 %v1337
        %v1438 = vpop.f32.mrf.mxu0
        %v1439 = vadd.f32 0.0, %v1438
        %v1440 = vpop.f32.mrf.mxu0
        %v1441 = vadd.f32 0.0, %v1440
        %1442 = vmatmul.bf16.gmra.mxu0 %v1338
        %v1443 = vpop.f32.mrf.mxu0
        %v1444 = vadd.f32 0.0, %v1443
        %v1445 = vpop.f32.mrf.mxu0
        %v1446 = vadd.f32 0.0, %v1445
        %1447 = vmatmul.bf16.gmra.mxu0 %v1339
        %v1448 = vpop.f32.mrf.mxu0
        %v1449 = vadd.f32 0.0, %v1448
        %v1450 = vpop.f32.mrf.mxu0
        %v1451 = vadd.f32 0.0, %v1450
        %1452 = vmatmul.bf16.gmra.mxu0 %v1340
        %v1453 = vpop.f32.mrf.mxu0
        %v1454 = vadd.f32 0.0, %v1453
        %v1455 = vpop.f32.mrf.mxu0
        %v1456 = vadd.f32 0.0, %v1455
        %1457 = vmatmul.bf16.gmra.mxu0 %v1341
        %v1458 = vpop.f32.mrf.mxu0
        %v1459 = vadd.f32 0.0, %v1458
        %v1460 = vpop.f32.mrf.mxu0
        %v1461 = vadd.f32 0.0, %v1460
        %1462 = vmatmul.bf16.gmra.mxu0 %v1342
        %v1463 = vpop.f32.mrf.mxu0
        %v1464 = vadd.f32 0.0, %v1463
        %v1465 = vpop.f32.mrf.mxu0
        %v1466 = vadd.f32 0.0, %v1465
        %1467 = vmatmul.bf16.gmra.mxu0 %v1343
        %v1468 = vpop.f32.mrf.mxu0
        %v1469 = vadd.f32 0.0, %v1468
        %v1470 = vpop.f32.mrf.mxu0
        %v1471 = vadd.f32 0.0, %v1470
        %1472 = vdwg.mxu0
        %1473 = vmatpush.bf16.msra.mxu0 %v1407
        %1474 = vmatpush.bf16.msra.mxu0 %v1405
        %1475 = vmatpush.bf16.msra.mxu0 %v1403
        %1476 = vmatpush.bf16.msra.mxu0 %v1401
        %1477 = vmatpush.bf16.msra.mxu0 %v1399
        %1478 = vmatpush.bf16.msra.mxu0 %v1397
        %1479 = vmatpush.bf16.msra.mxu0 %v1395
        %1480 = vmatpush.bf16.msra.mxu0 %v1393
        %1481 = vmatmul.bf16.gmra.mxu0 %v1336
        %v1482 = vpop.f32.mrf.mxu0
        %v1483 = vadd.f32 0.0, %v1482
        %v1484 = vpop.f32.mrf.mxu0
        %v1485 = vadd.f32 0.0, %v1484
        %1486 = vmatmul.bf16.gmra.mxu0 %v1337
        %v1487 = vpop.f32.mrf.mxu0
        %v1488 = vadd.f32 0.0, %v1487
        %v1489 = vpop.f32.mrf.mxu0
        %v1490 = vadd.f32 0.0, %v1489
        %1491 = vmatmul.bf16.gmra.mxu0 %v1338
        %v1492 = vpop.f32.mrf.mxu0
        %v1493 = vadd.f32 0.0, %v1492
        %v1494 = vpop.f32.mrf.mxu0
        %v1495 = vadd.f32 0.0, %v1494
        %1496 = vmatmul.bf16.gmra.mxu0 %v1339
        %v1497 = vpop.f32.mrf.mxu0
        %v1498 = vadd.f32 0.0, %v1497
        %v1499 = vpop.f32.mrf.mxu0
        %v1500 = vadd.f32 0.0, %v1499
        %1501 = vmatmul.bf16.gmra.mxu0 %v1340
        %v1502 = vpop.f32.mrf.mxu0
        %v1503 = vadd.f32 0.0, %v1502
        %v1504 = vpop.f32.mrf.mxu0
        %v1505 = vadd.f32 0.0, %v1504
        %1506 = vmatmul.bf16.gmra.mxu0 %v1341
        %v1507 = vpop.f32.mrf.mxu0
        %v1508 = vadd.f32 0.0, %v1507
        %v1509 = vpop.f32.mrf.mxu0
        %v1510 = vadd.f32 0.0, %v1509
        %1511 = vmatmul.bf16.gmra.mxu0 %v1342
        %v1512 = vpop.f32.mrf.mxu0
        %v1513 = vadd.f32 0.0, %v1512
        %v1514 = vpop.f32.mrf.mxu0
        %v1515 = vadd.f32 0.0, %v1514
        %1516 = vmatmul.bf16.gmra.mxu0 %v1343
        %v1517 = vpop.f32.mrf.mxu0
        %v1518 = vadd.f32 0.0, %v1517
        %v1519 = vpop.f32.mrf.mxu0
        %v1520 = vadd.f32 0.0, %v1519
        %1521 = vdwg.mxu0
        %v1522 = vxor.u32 %v1434, 2147483648
        %v1523 = vxor.u32 %v1483, 2147483648
        %v1524 = vxor.u32 %v1436, 2147483648
        %v1525 = vxor.u32 %v1485, 2147483648
        %v1526 = vxor.u32 %v1439, 2147483648
        %v1527 = vxor.u32 %v1488, 2147483648
        %v1528 = vxor.u32 %v1441, 2147483648
        %v1529 = vxor.u32 %v1490, 2147483648
        %v1530 = vxor.u32 %v1444, 2147483648
        %v1531 = vxor.u32 %v1493, 2147483648
        %v1532 = vxor.u32 %v1446, 2147483648
        %v1533 = vxor.u32 %v1495, 2147483648
        %v1534 = vxor.u32 %v1449, 2147483648
        %v1535 = vxor.u32 %v1498, 2147483648
        %v1536 = vxor.u32 %v1451, 2147483648
        %v1537 = vxor.u32 %v1500, 2147483648
        %v1538 = vxor.u32 %v1454, 2147483648
        %v1539 = vxor.u32 %v1503, 2147483648
        %v1540 = vxor.u32 %v1456, 2147483648
        %v1541 = vxor.u32 %v1505, 2147483648
        %v1542 = vxor.u32 %v1459, 2147483648
        %v1543 = vxor.u32 %v1508, 2147483648
        %v1544 = vxor.u32 %v1461, 2147483648
        %v1545 = vxor.u32 %v1510, 2147483648
        %v1546 = vxor.u32 %v1464, 2147483648
        %v1547 = vxor.u32 %v1513, 2147483648
        %v1548 = vxor.u32 %v1466, 2147483648
        %v1549 = vxor.u32 %v1515, 2147483648
        %v1550 = vxor.u32 %v1469, 2147483648
        %v1551 = vxor.u32 %v1518, 2147483648
        %v1552 = vxor.u32 %v1471, 2147483648
        %v1553 = vxor.u32 %v1520, 2147483648
        %v1554 = vmul.f32 %v1522, 1.442695
        %v1555 = vpow.pop %v1554
        %v1556 = vmul.f32 %v1523, 1.442695
        %v1557 = vpow.pop %v1556
        %v1558 = vmul.f32 %v1524, 1.442695
        %v1559 = vpow.pop %v1558
        %v1560 = vmul.f32 %v1525, 1.442695
        %v1561 = vpow.pop %v1560
        %v1562 = vmul.f32 %v1526, 1.442695
        %v1563 = vpow.pop %v1562
        %v1564 = vmul.f32 %v1527, 1.442695
        %v1565 = vpow.pop %v1564
        %v1566 = vmul.f32 %v1528, 1.442695
        %v1567 = vpow.pop %v1566
        %v1568 = vmul.f32 %v1529, 1.442695
        %v1569 = vpow.pop %v1568
        %v1570 = vmul.f32 %v1530, 1.442695
        %v1571 = vpow.pop %v1570
        %v1572 = vmul.f32 %v1531, 1.442695
        %v1573 = vpow.pop %v1572
        %v1574 = vmul.f32 %v1532, 1.442695
        %v1575 = vpow.pop %v1574
        %v1576 = vmul.f32 %v1533, 1.442695
        %v1577 = vpow.pop %v1576
        %v1578 = vmul.f32 %v1534, 1.442695
        %v1579 = vpow.pop %v1578
        %v1580 = vmul.f32 %v1535, 1.442695
        %v1581 = vpow.pop %v1580
        %v1582 = vmul.f32 %v1536, 1.442695
        %v1583 = vpow.pop %v1582
        %v1584 = vmul.f32 %v1537, 1.442695
        %v1585 = vpow.pop %v1584
        %v1586 = vmul.f32 %v1538, 1.442695
        %v1587 = vpow.pop %v1586
        %v1588 = vmul.f32 %v1539, 1.442695
        %v1589 = vpow.pop %v1588
        %v1590 = vmul.f32 %v1540, 1.442695
        %v1591 = vpow.pop %v1590
        %v1592 = vmul.f32 %v1541, 1.442695
        %v1593 = vpow.pop %v1592
        %v1594 = vmul.f32 %v1542, 1.442695
        %v1595 = vpow.pop %v1594
        %v1596 = vmul.f32 %v1543, 1.442695
        %v1597 = vpow.pop %v1596
        %v1598 = vmul.f32 %v1544, 1.442695
        %v1599 = vpow.pop %v1598
        %v1600 = vmul.f32 %v1545, 1.442695
        %v1601 = vpow.pop %v1600
        %v1602 = vmul.f32 %v1546, 1.442695
        %v1603 = vpow.pop %v1602
        %v1604 = vmul.f32 %v1547, 1.442695
        %v1605 = vpow.pop %v1604
        %v1606 = vmul.f32 %v1548, 1.442695
        %v1607 = vpow.pop %v1606
        %v1608 = vmul.f32 %v1549, 1.442695
        %v1609 = vpow.pop %v1608
        %v1610 = vmul.f32 %v1550, 1.442695
        %v1611 = vpow.pop %v1610
        %v1612 = vmul.f32 %v1551, 1.442695
        %v1613 = vpow.pop %v1612
        %v1614 = vmul.f32 %v1552, 1.442695
        %v1615 = vpow.pop %v1614
        %v1616 = vmul.f32 %v1553, 1.442695
        %v1617 = vpow.pop %v1616
        %v1618 = vadd.f32 %v1555, 1.0
        %v1619 = vadd.f32 %v1557, 1.0
        %v1620 = vadd.f32 %v1559, 1.0
        %v1621 = vadd.f32 %v1561, 1.0
        %v1622 = vadd.f32 %v1563, 1.0
        %v1623 = vadd.f32 %v1565, 1.0
        %v1624 = vadd.f32 %v1567, 1.0
        %v1625 = vadd.f32 %v1569, 1.0
        %v1626 = vadd.f32 %v1571, 1.0
        %v1627 = vadd.f32 %v1573, 1.0
        %v1628 = vadd.f32 %v1575, 1.0
        %v1629 = vadd.f32 %v1577, 1.0
        %v1630 = vadd.f32 %v1579, 1.0
        %v1631 = vadd.f32 %v1581, 1.0
        %v1632 = vadd.f32 %v1583, 1.0
        %v1633 = vadd.f32 %v1585, 1.0
        %v1634 = vadd.f32 %v1587, 1.0
        %v1635 = vadd.f32 %v1589, 1.0
        %v1636 = vadd.f32 %v1591, 1.0
        %v1637 = vadd.f32 %v1593, 1.0
        %v1638 = vadd.f32 %v1595, 1.0
        %v1639 = vadd.f32 %v1597, 1.0
        %v1640 = vadd.f32 %v1599, 1.0
        %v1641 = vadd.f32 %v1601, 1.0
        %v1642 = vadd.f32 %v1603, 1.0
        %v1643 = vadd.f32 %v1605, 1.0
        %v1644 = vadd.f32 %v1607, 1.0
        %v1645 = vadd.f32 %v1609, 1.0
        %v1646 = vadd.f32 %v1611, 1.0
        %v1647 = vadd.f32 %v1613, 1.0
        %v1648 = vadd.f32 %v1615, 1.0
        %v1649 = vadd.f32 %v1617, 1.0
        %v1650 = vrcp.pop %v1618
        %v1651 = vmul.f32 %v1618, %v1650
        %v1652 = vsub.f32 1.0, %v1651
        %v1653 = vmul.f32 %v1650, %v1652
        %v1654 = vadd.f32 %v1650, %v1653
        %vm1655 = vweird.f32 %v1618
        %vm1656 = vweird.f32 %v1650
        %vm1657 = vmor %vm1655, %vm1656
        %v1658 = vsel %vm1657, %v1650, %v1654
        %v1659 = vand.u32 2147483647, %v1618
        %vm1660 = vcmp.eq.f32.partialorder %v1659, 8.507059e+37
        %v1661 = vand.u32 %v1618, 2147483648
        %v1662 = vor.u32 1.1754944e-38, %v1661
        %v1663 = vsel %vm1660, %v1662, %v1658
        %v1664 = vmul.f32 1.0, %v1663
        %v1665 = vrcp.pop %v1619
        %v1666 = vmul.f32 %v1619, %v1665
        %v1667 = vsub.f32 1.0, %v1666
        %v1668 = vmul.f32 %v1665, %v1667
        %v1669 = vadd.f32 %v1665, %v1668
        %vm1670 = vweird.f32 %v1619
        %vm1671 = vweird.f32 %v1665
        %vm1672 = vmor %vm1670, %vm1671
        %v1673 = vsel %vm1672, %v1665, %v1669
        %v1674 = vand.u32 2147483647, %v1619
        %vm1675 = vcmp.eq.f32.partialorder %v1674, 8.507059e+37
        %v1676 = vand.u32 %v1619, 2147483648
        %v1677 = vor.u32 1.1754944e-38, %v1676
        %v1678 = vsel %vm1675, %v1677, %v1673
        %v1679 = vmul.f32 1.0, %v1678
        %v1680 = vrcp.pop %v1620
        %v1681 = vmul.f32 %v1620, %v1680
        %v1682 = vsub.f32 1.0, %v1681
        %v1683 = vmul.f32 %v1680, %v1682
        %v1684 = vadd.f32 %v1680, %v1683
        %vm1685 = vweird.f32 %v1620
        %vm1686 = vweird.f32 %v1680
        %vm1687 = vmor %vm1685, %vm1686
        %v1688 = vsel %vm1687, %v1680, %v1684
        %v1689 = vand.u32 2147483647, %v1620
        %vm1690 = vcmp.eq.f32.partialorder %v1689, 8.507059e+37
        %v1691 = vand.u32 %v1620, 2147483648
        %v1692 = vor.u32 1.1754944e-38, %v1691
        %v1693 = vsel %vm1690, %v1692, %v1688
        %v1694 = vmul.f32 1.0, %v1693
        %v1695 = vrcp.pop %v1621
        %v1696 = vmul.f32 %v1621, %v1695
        %v1697 = vsub.f32 1.0, %v1696
        %v1698 = vmul.f32 %v1695, %v1697
        %v1699 = vadd.f32 %v1695, %v1698
        %vm1700 = vweird.f32 %v1621
        %vm1701 = vweird.f32 %v1695
        %vm1702 = vmor %vm1700, %vm1701
        %v1703 = vsel %vm1702, %v1695, %v1699
        %v1704 = vand.u32 2147483647, %v1621
        %vm1705 = vcmp.eq.f32.partialorder %v1704, 8.507059e+37
        %v1706 = vand.u32 %v1621, 2147483648
        %v1707 = vor.u32 1.1754944e-38, %v1706
        %v1708 = vsel %vm1705, %v1707, %v1703
        %v1709 = vmul.f32 1.0, %v1708
        %v1710 = vrcp.pop %v1622
        %v1711 = vmul.f32 %v1622, %v1710
        %v1712 = vsub.f32 1.0, %v1711
        %v1713 = vmul.f32 %v1710, %v1712
        %v1714 = vadd.f32 %v1710, %v1713
        %vm1715 = vweird.f32 %v1622
        %vm1716 = vweird.f32 %v1710
        %vm1717 = vmor %vm1715, %vm1716
        %v1718 = vsel %vm1717, %v1710, %v1714
        %v1719 = vand.u32 2147483647, %v1622
        %vm1720 = vcmp.eq.f32.partialorder %v1719, 8.507059e+37
        %v1721 = vand.u32 %v1622, 2147483648
        %v1722 = vor.u32 1.1754944e-38, %v1721
        %v1723 = vsel %vm1720, %v1722, %v1718
        %v1724 = vmul.f32 1.0, %v1723
        %v1725 = vrcp.pop %v1623
        %v1726 = vmul.f32 %v1623, %v1725
        %v1727 = vsub.f32 1.0, %v1726
        %v1728 = vmul.f32 %v1725, %v1727
        %v1729 = vadd.f32 %v1725, %v1728
        %vm1730 = vweird.f32 %v1623
        %vm1731 = vweird.f32 %v1725
        %vm1732 = vmor %vm1730, %vm1731
        %v1733 = vsel %vm1732, %v1725, %v1729
        %v1734 = vand.u32 2147483647, %v1623
        %vm1735 = vcmp.eq.f32.partialorder %v1734, 8.507059e+37
        %v1736 = vand.u32 %v1623, 2147483648
        %v1737 = vor.u32 1.1754944e-38, %v1736
        %v1738 = vsel %vm1735, %v1737, %v1733
        %v1739 = vmul.f32 1.0, %v1738
        %v1740 = vrcp.pop %v1624
        %v1741 = vmul.f32 %v1624, %v1740
        %v1742 = vsub.f32 1.0, %v1741
        %v1743 = vmul.f32 %v1740, %v1742
        %v1744 = vadd.f32 %v1740, %v1743
        %vm1745 = vweird.f32 %v1624
        %vm1746 = vweird.f32 %v1740
        %vm1747 = vmor %vm1745, %vm1746
        %v1748 = vsel %vm1747, %v1740, %v1744
        %v1749 = vand.u32 2147483647, %v1624
        %vm1750 = vcmp.eq.f32.partialorder %v1749, 8.507059e+37
        %v1751 = vand.u32 %v1624, 2147483648
        %v1752 = vor.u32 1.1754944e-38, %v1751
        %v1753 = vsel %vm1750, %v1752, %v1748
        %v1754 = vmul.f32 1.0, %v1753
        %v1755 = vrcp.pop %v1625
        %v1756 = vmul.f32 %v1625, %v1755
        %v1757 = vsub.f32 1.0, %v1756
        %v1758 = vmul.f32 %v1755, %v1757
        %v1759 = vadd.f32 %v1755, %v1758
        %vm1760 = vweird.f32 %v1625
        %vm1761 = vweird.f32 %v1755
        %vm1762 = vmor %vm1760, %vm1761
        %v1763 = vsel %vm1762, %v1755, %v1759
        %v1764 = vand.u32 2147483647, %v1625
        %vm1765 = vcmp.eq.f32.partialorder %v1764, 8.507059e+37
        %v1766 = vand.u32 %v1625, 2147483648
        %v1767 = vor.u32 1.1754944e-38, %v1766
        %v1768 = vsel %vm1765, %v1767, %v1763
        %v1769 = vmul.f32 1.0, %v1768
        %v1770 = vrcp.pop %v1626
        %v1771 = vmul.f32 %v1626, %v1770
        %v1772 = vsub.f32 1.0, %v1771
        %v1773 = vmul.f32 %v1770, %v1772
        %v1774 = vadd.f32 %v1770, %v1773
        %vm1775 = vweird.f32 %v1626
        %vm1776 = vweird.f32 %v1770
        %vm1777 = vmor %vm1775, %vm1776
        %v1778 = vsel %vm1777, %v1770, %v1774
        %v1779 = vand.u32 2147483647, %v1626
        %vm1780 = vcmp.eq.f32.partialorder %v1779, 8.507059e+37
        %v1781 = vand.u32 %v1626, 2147483648
        %v1782 = vor.u32 1.1754944e-38, %v1781
        %v1783 = vsel %vm1780, %v1782, %v1778
        %v1784 = vmul.f32 1.0, %v1783
        %v1785 = vrcp.pop %v1627
        %v1786 = vmul.f32 %v1627, %v1785
        %v1787 = vsub.f32 1.0, %v1786
        %v1788 = vmul.f32 %v1785, %v1787
        %v1789 = vadd.f32 %v1785, %v1788
        %vm1790 = vweird.f32 %v1627
        %vm1791 = vweird.f32 %v1785
        %vm1792 = vmor %vm1790, %vm1791
        %v1793 = vsel %vm1792, %v1785, %v1789
        %v1794 = vand.u32 2147483647, %v1627
        %vm1795 = vcmp.eq.f32.partialorder %v1794, 8.507059e+37
        %v1796 = vand.u32 %v1627, 2147483648
        %v1797 = vor.u32 1.1754944e-38, %v1796
        %v1798 = vsel %vm1795, %v1797, %v1793
        %v1799 = vmul.f32 1.0, %v1798
        %v1800 = vrcp.pop %v1628
        %v1801 = vmul.f32 %v1628, %v1800
        %v1802 = vsub.f32 1.0, %v1801
        %v1803 = vmul.f32 %v1800, %v1802
        %v1804 = vadd.f32 %v1800, %v1803
        %vm1805 = vweird.f32 %v1628
        %vm1806 = vweird.f32 %v1800
        %vm1807 = vmor %vm1805, %vm1806
        %v1808 = vsel %vm1807, %v1800, %v1804
        %v1809 = vand.u32 2147483647, %v1628
        %vm1810 = vcmp.eq.f32.partialorder %v1809, 8.507059e+37
        %v1811 = vand.u32 %v1628, 2147483648
        %v1812 = vor.u32 1.1754944e-38, %v1811
        %v1813 = vsel %vm1810, %v1812, %v1808
        %v1814 = vmul.f32 1.0, %v1813
        %v1815 = vrcp.pop %v1629
        %v1816 = vmul.f32 %v1629, %v1815
        %v1817 = vsub.f32 1.0, %v1816
        %v1818 = vmul.f32 %v1815, %v1817
        %v1819 = vadd.f32 %v1815, %v1818
        %vm1820 = vweird.f32 %v1629
        %vm1821 = vweird.f32 %v1815
        %vm1822 = vmor %vm1820, %vm1821
        %v1823 = vsel %vm1822, %v1815, %v1819
        %v1824 = vand.u32 2147483647, %v1629
        %vm1825 = vcmp.eq.f32.partialorder %v1824, 8.507059e+37
        %v1826 = vand.u32 %v1629, 2147483648
        %v1827 = vor.u32 1.1754944e-38, %v1826
        %v1828 = vsel %vm1825, %v1827, %v1823
        %v1829 = vmul.f32 1.0, %v1828
        %v1830 = vrcp.pop %v1630
        %v1831 = vmul.f32 %v1630, %v1830
        %v1832 = vsub.f32 1.0, %v1831
        %v1833 = vmul.f32 %v1830, %v1832
        %v1834 = vadd.f32 %v1830, %v1833
        %vm1835 = vweird.f32 %v1630
        %vm1836 = vweird.f32 %v1830
        %vm1837 = vmor %vm1835, %vm1836
        %v1838 = vsel %vm1837, %v1830, %v1834
        %v1839 = vand.u32 2147483647, %v1630
        %vm1840 = vcmp.eq.f32.partialorder %v1839, 8.507059e+37
        %v1841 = vand.u32 %v1630, 2147483648
        %v1842 = vor.u32 1.1754944e-38, %v1841
        %v1843 = vsel %vm1840, %v1842, %v1838
        %v1844 = vmul.f32 1.0, %v1843
        %v1845 = vrcp.pop %v1631
        %v1846 = vmul.f32 %v1631, %v1845
        %v1847 = vsub.f32 1.0, %v1846
        %v1848 = vmul.f32 %v1845, %v1847
        %v1849 = vadd.f32 %v1845, %v1848
        %vm1850 = vweird.f32 %v1631
        %vm1851 = vweird.f32 %v1845
        %vm1852 = vmor %vm1850, %vm1851
        %v1853 = vsel %vm1852, %v1845, %v1849
        %v1854 = vand.u32 2147483647, %v1631
        %vm1855 = vcmp.eq.f32.partialorder %v1854, 8.507059e+37
        %v1856 = vand.u32 %v1631, 2147483648
        %v1857 = vor.u32 1.1754944e-38, %v1856
        %v1858 = vsel %vm1855, %v1857, %v1853
        %v1859 = vmul.f32 1.0, %v1858
        %v1860 = vrcp.pop %v1632
        %v1861 = vmul.f32 %v1632, %v1860
        %v1862 = vsub.f32 1.0, %v1861
        %v1863 = vmul.f32 %v1860, %v1862
        %v1864 = vadd.f32 %v1860, %v1863
        %vm1865 = vweird.f32 %v1632
        %vm1866 = vweird.f32 %v1860
        %vm1867 = vmor %vm1865, %vm1866
        %v1868 = vsel %vm1867, %v1860, %v1864
        %v1869 = vand.u32 2147483647, %v1632
        %vm1870 = vcmp.eq.f32.partialorder %v1869, 8.507059e+37
        %v1871 = vand.u32 %v1632, 2147483648
        %v1872 = vor.u32 1.1754944e-38, %v1871
        %v1873 = vsel %vm1870, %v1872, %v1868
        %v1874 = vmul.f32 1.0, %v1873
        %v1875 = vrcp.pop %v1633
        %v1876 = vmul.f32 %v1633, %v1875
        %v1877 = vsub.f32 1.0, %v1876
        %v1878 = vmul.f32 %v1875, %v1877
        %v1879 = vadd.f32 %v1875, %v1878
        %vm1880 = vweird.f32 %v1633
        %vm1881 = vweird.f32 %v1875
        %vm1882 = vmor %vm1880, %vm1881
        %v1883 = vsel %vm1882, %v1875, %v1879
        %v1884 = vand.u32 2147483647, %v1633
        %vm1885 = vcmp.eq.f32.partialorder %v1884, 8.507059e+37
        %v1886 = vand.u32 %v1633, 2147483648
        %v1887 = vor.u32 1.1754944e-38, %v1886
        %v1888 = vsel %vm1885, %v1887, %v1883
        %v1889 = vmul.f32 1.0, %v1888
        %v1890 = vrcp.pop %v1634
        %v1891 = vmul.f32 %v1634, %v1890
        %v1892 = vsub.f32 1.0, %v1891
        %v1893 = vmul.f32 %v1890, %v1892
        %v1894 = vadd.f32 %v1890, %v1893
        %vm1895 = vweird.f32 %v1634
        %vm1896 = vweird.f32 %v1890
        %vm1897 = vmor %vm1895, %vm1896
        %v1898 = vsel %vm1897, %v1890, %v1894
        %v1899 = vand.u32 2147483647, %v1634
        %vm1900 = vcmp.eq.f32.partialorder %v1899, 8.507059e+37
        %v1901 = vand.u32 %v1634, 2147483648
        %v1902 = vor.u32 1.1754944e-38, %v1901
        %v1903 = vsel %vm1900, %v1902, %v1898
        %v1904 = vmul.f32 1.0, %v1903
        %v1905 = vrcp.pop %v1635
        %v1906 = vmul.f32 %v1635, %v1905
        %v1907 = vsub.f32 1.0, %v1906
        %v1908 = vmul.f32 %v1905, %v1907
        %v1909 = vadd.f32 %v1905, %v1908
        %vm1910 = vweird.f32 %v1635
        %vm1911 = vweird.f32 %v1905
        %vm1912 = vmor %vm1910, %vm1911
        %v1913 = vsel %vm1912, %v1905, %v1909
        %v1914 = vand.u32 2147483647, %v1635
        %vm1915 = vcmp.eq.f32.partialorder %v1914, 8.507059e+37
        %v1916 = vand.u32 %v1635, 2147483648
        %v1917 = vor.u32 1.1754944e-38, %v1916
        %v1918 = vsel %vm1915, %v1917, %v1913
        %v1919 = vmul.f32 1.0, %v1918
        %v1920 = vrcp.pop %v1636
        %v1921 = vmul.f32 %v1636, %v1920
        %v1922 = vsub.f32 1.0, %v1921
        %v1923 = vmul.f32 %v1920, %v1922
        %v1924 = vadd.f32 %v1920, %v1923
        %vm1925 = vweird.f32 %v1636
        %vm1926 = vweird.f32 %v1920
        %vm1927 = vmor %vm1925, %vm1926
        %v1928 = vsel %vm1927, %v1920, %v1924
        %v1929 = vand.u32 2147483647, %v1636
        %vm1930 = vcmp.eq.f32.partialorder %v1929, 8.507059e+37
        %v1931 = vand.u32 %v1636, 2147483648
        %v1932 = vor.u32 1.1754944e-38, %v1931
        %v1933 = vsel %vm1930, %v1932, %v1928
        %v1934 = vmul.f32 1.0, %v1933
        %v1935 = vrcp.pop %v1637
        %v1936 = vmul.f32 %v1637, %v1935
        %v1937 = vsub.f32 1.0, %v1936
        %v1938 = vmul.f32 %v1935, %v1937
        %v1939 = vadd.f32 %v1935, %v1938
        %vm1940 = vweird.f32 %v1637
        %vm1941 = vweird.f32 %v1935
        %vm1942 = vmor %vm1940, %vm1941
        %v1943 = vsel %vm1942, %v1935, %v1939
        %v1944 = vand.u32 2147483647, %v1637
        %vm1945 = vcmp.eq.f32.partialorder %v1944, 8.507059e+37
        %v1946 = vand.u32 %v1637, 2147483648
        %v1947 = vor.u32 1.1754944e-38, %v1946
        %v1948 = vsel %vm1945, %v1947, %v1943
        %v1949 = vmul.f32 1.0, %v1948
        %v1950 = vrcp.pop %v1638
        %v1951 = vmul.f32 %v1638, %v1950
        %v1952 = vsub.f32 1.0, %v1951
        %v1953 = vmul.f32 %v1950, %v1952
        %v1954 = vadd.f32 %v1950, %v1953
        %vm1955 = vweird.f32 %v1638
        %vm1956 = vweird.f32 %v1950
        %vm1957 = vmor %vm1955, %vm1956
        %v1958 = vsel %vm1957, %v1950, %v1954
        %v1959 = vand.u32 2147483647, %v1638
        %vm1960 = vcmp.eq.f32.partialorder %v1959, 8.507059e+37
        %v1961 = vand.u32 %v1638, 2147483648
        %v1962 = vor.u32 1.1754944e-38, %v1961
        %v1963 = vsel %vm1960, %v1962, %v1958
        %v1964 = vmul.f32 1.0, %v1963
        %v1965 = vrcp.pop %v1639
        %v1966 = vmul.f32 %v1639, %v1965
        %v1967 = vsub.f32 1.0, %v1966
        %v1968 = vmul.f32 %v1965, %v1967
        %v1969 = vadd.f32 %v1965, %v1968
        %vm1970 = vweird.f32 %v1639
        %vm1971 = vweird.f32 %v1965
        %vm1972 = vmor %vm1970, %vm1971
        %v1973 = vsel %vm1972, %v1965, %v1969
        %v1974 = vand.u32 2147483647, %v1639
        %vm1975 = vcmp.eq.f32.partialorder %v1974, 8.507059e+37
        %v1976 = vand.u32 %v1639, 2147483648
        %v1977 = vor.u32 1.1754944e-38, %v1976
        %v1978 = vsel %vm1975, %v1977, %v1973
        %v1979 = vmul.f32 1.0, %v1978
        %v1980 = vrcp.pop %v1640
        %v1981 = vmul.f32 %v1640, %v1980
        %v1982 = vsub.f32 1.0, %v1981
        %v1983 = vmul.f32 %v1980, %v1982
        %v1984 = vadd.f32 %v1980, %v1983
        %vm1985 = vweird.f32 %v1640
        %vm1986 = vweird.f32 %v1980
        %vm1987 = vmor %vm1985, %vm1986
        %v1988 = vsel %vm1987, %v1980, %v1984
        %v1989 = vand.u32 2147483647, %v1640
        %vm1990 = vcmp.eq.f32.partialorder %v1989, 8.507059e+37
        %v1991 = vand.u32 %v1640, 2147483648
        %v1992 = vor.u32 1.1754944e-38, %v1991
        %v1993 = vsel %vm1990, %v1992, %v1988
        %v1994 = vmul.f32 1.0, %v1993
        %v1995 = vrcp.pop %v1641
        %v1996 = vmul.f32 %v1641, %v1995
        %v1997 = vsub.f32 1.0, %v1996
        %v1998 = vmul.f32 %v1995, %v1997
        %v1999 = vadd.f32 %v1995, %v1998
        %vm2000 = vweird.f32 %v1641
        %vm2001 = vweird.f32 %v1995
        %vm2002 = vmor %vm2000, %vm2001
        %v2003 = vsel %vm2002, %v1995, %v1999
        %v2004 = vand.u32 2147483647, %v1641
        %vm2005 = vcmp.eq.f32.partialorder %v2004, 8.507059e+37
        %v2006 = vand.u32 %v1641, 2147483648
        %v2007 = vor.u32 1.1754944e-38, %v2006
        %v2008 = vsel %vm2005, %v2007, %v2003
        %v2009 = vmul.f32 1.0, %v2008
        %v2010 = vrcp.pop %v1642
        %v2011 = vmul.f32 %v1642, %v2010
        %v2012 = vsub.f32 1.0, %v2011
        %v2013 = vmul.f32 %v2010, %v2012
        %v2014 = vadd.f32 %v2010, %v2013
        %vm2015 = vweird.f32 %v1642
        %vm2016 = vweird.f32 %v2010
        %vm2017 = vmor %vm2015, %vm2016
        %v2018 = vsel %vm2017, %v2010, %v2014
        %v2019 = vand.u32 2147483647, %v1642
        %vm2020 = vcmp.eq.f32.partialorder %v2019, 8.507059e+37
        %v2021 = vand.u32 %v1642, 2147483648
        %v2022 = vor.u32 1.1754944e-38, %v2021
        %v2023 = vsel %vm2020, %v2022, %v2018
        %v2024 = vmul.f32 1.0, %v2023
        %v2025 = vrcp.pop %v1643
        %v2026 = vmul.f32 %v1643, %v2025
        %v2027 = vsub.f32 1.0, %v2026
        %v2028 = vmul.f32 %v2025, %v2027
        %v2029 = vadd.f32 %v2025, %v2028
        %vm2030 = vweird.f32 %v1643
        %vm2031 = vweird.f32 %v2025
        %vm2032 = vmor %vm2030, %vm2031
        %v2033 = vsel %vm2032, %v2025, %v2029
        %v2034 = vand.u32 2147483647, %v1643
        %vm2035 = vcmp.eq.f32.partialorder %v2034, 8.507059e+37
        %v2036 = vand.u32 %v1643, 2147483648
        %v2037 = vor.u32 1.1754944e-38, %v2036
        %v2038 = vsel %vm2035, %v2037, %v2033
        %v2039 = vmul.f32 1.0, %v2038
        %v2040 = vrcp.pop %v1644
        %v2041 = vmul.f32 %v1644, %v2040
        %v2042 = vsub.f32 1.0, %v2041
        %v2043 = vmul.f32 %v2040, %v2042
        %v2044 = vadd.f32 %v2040, %v2043
        %vm2045 = vweird.f32 %v1644
        %vm2046 = vweird.f32 %v2040
        %vm2047 = vmor %vm2045, %vm2046
        %v2048 = vsel %vm2047, %v2040, %v2044
        %v2049 = vand.u32 2147483647, %v1644
        %vm2050 = vcmp.eq.f32.partialorder %v2049, 8.507059e+37
        %v2051 = vand.u32 %v1644, 2147483648
        %v2052 = vor.u32 1.1754944e-38, %v2051
        %v2053 = vsel %vm2050, %v2052, %v2048
        %v2054 = vmul.f32 1.0, %v2053
        %v2055 = vrcp.pop %v1645
        %v2056 = vmul.f32 %v1645, %v2055
        %v2057 = vsub.f32 1.0, %v2056
        %v2058 = vmul.f32 %v2055, %v2057
        %v2059 = vadd.f32 %v2055, %v2058
        %vm2060 = vweird.f32 %v1645
        %vm2061 = vweird.f32 %v2055
        %vm2062 = vmor %vm2060, %vm2061
        %v2063 = vsel %vm2062, %v2055, %v2059
        %v2064 = vand.u32 2147483647, %v1645
        %vm2065 = vcmp.eq.f32.partialorder %v2064, 8.507059e+37
        %v2066 = vand.u32 %v1645, 2147483648
        %v2067 = vor.u32 1.1754944e-38, %v2066
        %v2068 = vsel %vm2065, %v2067, %v2063
        %v2069 = vmul.f32 1.0, %v2068
        %v2070 = vrcp.pop %v1646
        %v2071 = vmul.f32 %v1646, %v2070
        %v2072 = vsub.f32 1.0, %v2071
        %v2073 = vmul.f32 %v2070, %v2072
        %v2074 = vadd.f32 %v2070, %v2073
        %vm2075 = vweird.f32 %v1646
        %vm2076 = vweird.f32 %v2070
        %vm2077 = vmor %vm2075, %vm2076
        %v2078 = vsel %vm2077, %v2070, %v2074
        %v2079 = vand.u32 2147483647, %v1646
        %vm2080 = vcmp.eq.f32.partialorder %v2079, 8.507059e+37
        %v2081 = vand.u32 %v1646, 2147483648
        %v2082 = vor.u32 1.1754944e-38, %v2081
        %v2083 = vsel %vm2080, %v2082, %v2078
        %v2084 = vmul.f32 1.0, %v2083
        %v2085 = vrcp.pop %v1647
        %v2086 = vmul.f32 %v1647, %v2085
        %v2087 = vsub.f32 1.0, %v2086
        %v2088 = vmul.f32 %v2085, %v2087
        %v2089 = vadd.f32 %v2085, %v2088
        %vm2090 = vweird.f32 %v1647
        %vm2091 = vweird.f32 %v2085
        %vm2092 = vmor %vm2090, %vm2091
        %v2093 = vsel %vm2092, %v2085, %v2089
        %v2094 = vand.u32 2147483647, %v1647
        %vm2095 = vcmp.eq.f32.partialorder %v2094, 8.507059e+37
        %v2096 = vand.u32 %v1647, 2147483648
        %v2097 = vor.u32 1.1754944e-38, %v2096
        %v2098 = vsel %vm2095, %v2097, %v2093
        %v2099 = vmul.f32 1.0, %v2098
        %v2100 = vrcp.pop %v1648
        %v2101 = vmul.f32 %v1648, %v2100
        %v2102 = vsub.f32 1.0, %v2101
        %v2103 = vmul.f32 %v2100, %v2102
        %v2104 = vadd.f32 %v2100, %v2103
        %vm2105 = vweird.f32 %v1648
        %vm2106 = vweird.f32 %v2100
        %vm2107 = vmor %vm2105, %vm2106
        %v2108 = vsel %vm2107, %v2100, %v2104
        %v2109 = vand.u32 2147483647, %v1648
        %vm2110 = vcmp.eq.f32.partialorder %v2109, 8.507059e+37
        %v2111 = vand.u32 %v1648, 2147483648
        %v2112 = vor.u32 1.1754944e-38, %v2111
        %v2113 = vsel %vm2110, %v2112, %v2108
        %v2114 = vmul.f32 1.0, %v2113
        %v2115 = vrcp.pop %v1649
        %v2116 = vmul.f32 %v1649, %v2115
        %v2117 = vsub.f32 1.0, %v2116
        %v2118 = vmul.f32 %v2115, %v2117
        %v2119 = vadd.f32 %v2115, %v2118
        %vm2120 = vweird.f32 %v1649
        %vm2121 = vweird.f32 %v2115
        %vm2122 = vmor %vm2120, %vm2121
        %v2123 = vsel %vm2122, %v2115, %v2119
        %v2124 = vand.u32 2147483647, %v1649
        %vm2125 = vcmp.eq.f32.partialorder %v2124, 8.507059e+37
        %v2126 = vand.u32 %v1649, 2147483648
        %v2127 = vor.u32 1.1754944e-38, %v2126
        %v2128 = vsel %vm2125, %v2127, %v2123
        %v2129 = vmul.f32 1.0, %v2128
        %v2130 = vmul.f32 %v1078, %v1664
        %v2131 = vmul.f32 %v1079, %v1679
        %v2132 = vmul.f32 %v1080, %v1694
        %v2133 = vmul.f32 %v1081, %v1709
        %v2134 = vmul.f32 %v1082, %v1724
        %v2135 = vmul.f32 %v1083, %v1739
        %v2136 = vmul.f32 %v1084, %v1754
        %v2137 = vmul.f32 %v1085, %v1769
        %v2138 = vmul.f32 %v1086, %v1784
        %v2139 = vmul.f32 %v1087, %v1799
        %v2140 = vmul.f32 %v1088, %v1814
        %v2141 = vmul.f32 %v1089, %v1829
        %v2142 = vmul.f32 %v1090, %v1844
        %v2143 = vmul.f32 %v1091, %v1859
        %v2144 = vmul.f32 %v1092, %v1874
        %v2145 = vmul.f32 %v1093, %v1889
        %v2146 = vmul.f32 %v1094, %v1904
        %v2147 = vmul.f32 %v1095, %v1919
        %v2148 = vmul.f32 %v1096, %v1934
        %v2149 = vmul.f32 %v1097, %v1949
        %v2150 = vmul.f32 %v1098, %v1964
        %v2151 = vmul.f32 %v1099, %v1979
        %v2152 = vmul.f32 %v1100, %v1994
        %v2153 = vmul.f32 %v1101, %v2009
        %v2154 = vmul.f32 %v1102, %v2024
        %v2155 = vmul.f32 %v1103, %v2039
        %v2156 = vmul.f32 %v1104, %v2054
        %v2157 = vmul.f32 %v1105, %v2069
        %v2158 = vmul.f32 %v1106, %v2084
        %v2159 = vmul.f32 %v1107, %v2099
        %v2160 = vmul.f32 %v1108, %v2114
        %v2161 = vmul.f32 %v1109, %v2129
        %v2162 = vld [vmem:[#allocation11] sm:$0xff]
        %v2163 = vld [vmem:[#allocation11 + $0x8] sm:$0xff]
        %v2164 = vld [vmem:[#allocation11 + $0x10] sm:$0xff]
        %v2165 = vld [vmem:[#allocation11 + $0x18] sm:$0xff]
        %v2166 = vld [vmem:[#allocation11 + $0x20] sm:$0xff]
        %v2167 = vld [vmem:[#allocation11 + $0x28] sm:$0xff]
        %v2168 = vld [vmem:[#allocation11 + $0x30] sm:$0xff]
        %v2169 = vld [vmem:[#allocation11 + $0x38] sm:$0xff]
        %v2170 = vld [vmem:[#allocation11 + $0x40] sm:$0xff]
        %v2171 = vld [vmem:[#allocation11 + $0x48] sm:$0xff]
        %v2172 = vld [vmem:[#allocation11 + $0x50] sm:$0xff]
        %v2173 = vld [vmem:[#allocation11 + $0x58] sm:$0xff]
        %v2174 = vld [vmem:[#allocation11 + $0x60] sm:$0xff]
        %v2175 = vld [vmem:[#allocation11 + $0x68] sm:$0xff]
        %v2176 = vld [vmem:[#allocation11 + $0x70] sm:$0xff]
        %v2177 = vld [vmem:[#allocation11 + $0x78] sm:$0xff]
        %v2178 = vld [vmem:[#allocation11 + $0x80] sm:$0xff]
        %v2179 = vld [vmem:[#allocation11 + $0x88] sm:$0xff]
        %v2180 = vld [vmem:[#allocation11 + $0x90] sm:$0xff]
        %v2181 = vld [vmem:[#allocation11 + $0x98] sm:$0xff]
        %v2182 = vld [vmem:[#allocation11 + $0xa0] sm:$0xff]
        %v2183 = vld [vmem:[#allocation11 + $0xa8] sm:$0xff]
        %v2184 = vld [vmem:[#allocation11 + $0xb0] sm:$0xff]
        %v2185 = vld [vmem:[#allocation11 + $0xb8] sm:$0xff]
        %v2186 = vld [vmem:[#allocation11 + $0xc0] sm:$0xff]
        %v2187 = vld [vmem:[#allocation11 + $0xc8] sm:$0xff]
        %v2188 = vld [vmem:[#allocation11 + $0xd0] sm:$0xff]
        %v2189 = vld [vmem:[#allocation11 + $0xd8] sm:$0xff]
        %v2190 = vld [vmem:[#allocation11 + $0xe0] sm:$0xff]
        %v2191 = vld [vmem:[#allocation11 + $0xe8] sm:$0xff]
        %v2192 = vld [vmem:[#allocation11 + $0xf0] sm:$0xff]
        %v2193 = vld [vmem:[#allocation11 + $0xf8] sm:$0xff]
        %v2194 = vld [vmem:[#allocation11 + $0x100] sm:$0xff]
        %v2195 = vld [vmem:[#allocation11 + $0x108] sm:$0xff]
        %v2196 = vld [vmem:[#allocation11 + $0x110] sm:$0xff]
        %v2197 = vld [vmem:[#allocation11 + $0x118] sm:$0xff]
        %v2198 = vld [vmem:[#allocation11 + $0x120] sm:$0xff]
        %v2199 = vld [vmem:[#allocation11 + $0x128] sm:$0xff]
        %v2200 = vld [vmem:[#allocation11 + $0x130] sm:$0xff]
        %v2201 = vld [vmem:[#allocation11 + $0x138] sm:$0xff]
        %v2202 = vld [vmem:[#allocation11 + $0x140] sm:$0xff]
        %v2203 = vld [vmem:[#allocation11 + $0x148] sm:$0xff]
        %v2204 = vld [vmem:[#allocation11 + $0x150] sm:$0xff]
        %v2205 = vld [vmem:[#allocation11 + $0x158] sm:$0xff]
        %v2206 = vld [vmem:[#allocation11 + $0x160] sm:$0xff]
        %v2207 = vld [vmem:[#allocation11 + $0x168] sm:$0xff]
        %v2208 = vld [vmem:[#allocation11 + $0x170] sm:$0xff]
        %v2209 = vld [vmem:[#allocation11 + $0x178] sm:$0xff]
        %v2210 = vld [vmem:[#allocation11 + $0x180] sm:$0xff]
        %v2211 = vld [vmem:[#allocation11 + $0x188] sm:$0xff]
        %v2212 = vld [vmem:[#allocation11 + $0x190] sm:$0xff]
        %v2213 = vld [vmem:[#allocation11 + $0x198] sm:$0xff]
        %v2214 = vld [vmem:[#allocation11 + $0x1a0] sm:$0xff]
        %v2215 = vld [vmem:[#allocation11 + $0x1a8] sm:$0xff]
        %v2216 = vld [vmem:[#allocation11 + $0x1b0] sm:$0xff]
        %v2217 = vld [vmem:[#allocation11 + $0x1b8] sm:$0xff]
        %v2218 = vld [vmem:[#allocation11 + $0x1c0] sm:$0xff]
        %v2219 = vld [vmem:[#allocation11 + $0x1c8] sm:$0xff]
        %v2220 = vld [vmem:[#allocation11 + $0x1d0] sm:$0xff]
        %v2221 = vld [vmem:[#allocation11 + $0x1d8] sm:$0xff]
        %v2222 = vld [vmem:[#allocation11 + $0x1e0] sm:$0xff]
        %v2223 = vld [vmem:[#allocation11 + $0x1e8] sm:$0xff]
        %v2224 = vld [vmem:[#allocation11 + $0x1f0] sm:$0xff]
        %v2225 = vld [vmem:[#allocation11 + $0x1f8] sm:$0xff]
        %v2226 = vld [vmem:[%s6] sm:$0xf]
        %v2227 = vld [vmem:[#allocation13] sm:$0xf]
        %v2228 = vld [vmem:[#allocation13 + $0x4] sm:$0xf]
        %v2229 = vld [vmem:[#allocation13 + $0x8] sm:$0xf]
        %v2230 = vld [vmem:[#allocation13 + $0xc] sm:$0xf]
        %v2231 = vld [vmem:[#allocation13 + $0x10] sm:$0xf]
        %v2232 = vld [vmem:[#allocation13 + $0x14] sm:$0xf]
        %v2233 = vld [vmem:[#allocation13 + $0x18] sm:$0xf]
        %v2234 = vld [vmem:[#allocation13 + $0x1c] sm:$0xf]
        %v2235 = vld [vmem:[#allocation13 + $0x20] sm:$0xf]
        %v2236 = vld [vmem:[#allocation13 + $0x24] sm:$0xf]
        %v2237 = vld [vmem:[#allocation13 + $0x28] sm:$0xf]
        %v2238 = vld [vmem:[#allocation13 + $0x2c] sm:$0xf]
        %v2239 = vld [vmem:[#allocation13 + $0x30] sm:$0xf]
        %v2240 = vld [vmem:[#allocation13 + $0x34] sm:$0xf]
        %v2241 = vld [vmem:[#allocation13 + $0x38] sm:$0xf]
        %v2242 = vld [vmem:[#allocation13 + $0x3c] sm:$0xf]
        %v2243 = vld [vmem:[#allocation13 + $0x40] sm:$0xf]
        %v2244 = vld [vmem:[#allocation13 + $0x44] sm:$0xf]
        %v2245 = vld [vmem:[#allocation13 + $0x48] sm:$0xf]
        %v2246 = vld [vmem:[#allocation13 + $0x4c] sm:$0xf]
        %v2247 = vld [vmem:[#allocation13 + $0x50] sm:$0xf]
        %v2248 = vld [vmem:[#allocation13 + $0x54] sm:$0xf]
        %v2249 = vld [vmem:[#allocation13 + $0x58] sm:$0xf]
        %v2250 = vld [vmem:[#allocation13 + $0x5c] sm:$0xf]
        %v2251 = vld [vmem:[#allocation13 + $0x60] sm:$0xf]
        %v2252 = vld [vmem:[#allocation13 + $0x64] sm:$0xf]
        %v2253 = vld [vmem:[#allocation13 + $0x68] sm:$0xf]
        %v2254 = vld [vmem:[#allocation13 + $0x6c] sm:$0xf]
        %v2255 = vld [vmem:[#allocation13 + $0x70] sm:$0xf]
        %v2256 = vld [vmem:[#allocation13 + $0x74] sm:$0xf]
        %v2257 = vld [vmem:[#allocation13 + $0x78] sm:$0xf]
        %v2258 = vld [vmem:[#allocation13 + $0x7c] sm:$0xf]
        %v2259 = vld [vmem:[#allocation13 + $0x80] sm:$0xf]
        %v2260 = vld [vmem:[#allocation13 + $0x84] sm:$0xf]
        %v2261 = vld [vmem:[#allocation13 + $0x88] sm:$0xf]
        %v2262 = vld [vmem:[#allocation13 + $0x8c] sm:$0xf]
        %v2263 = vld [vmem:[#allocation13 + $0x90] sm:$0xf]
        %v2264 = vld [vmem:[#allocation13 + $0x94] sm:$0xf]
        %v2265 = vld [vmem:[#allocation13 + $0x98] sm:$0xf]
        %v2266 = vld [vmem:[#allocation13 + $0x9c] sm:$0xf]
        %v2267 = vld [vmem:[#allocation13 + $0xa0] sm:$0xf]
        %v2268 = vld [vmem:[#allocation13 + $0xa4] sm:$0xf]
        %v2269 = vld [vmem:[#allocation13 + $0xa8] sm:$0xf]
        %v2270 = vld [vmem:[#allocation13 + $0xac] sm:$0xf]
        %v2271 = vld [vmem:[#allocation13 + $0xb0] sm:$0xf]
        %v2272 = vld [vmem:[#allocation13 + $0xb4] sm:$0xf]
        %v2273 = vld [vmem:[#allocation13 + $0xb8] sm:$0xf]
        %v2274 = vld [vmem:[#allocation13 + $0xbc] sm:$0xf]
        %v2275 = vld [vmem:[#allocation13 + $0xc0] sm:$0xf]
        %v2276 = vld [vmem:[#allocation13 + $0xc4] sm:$0xf]
        %v2277 = vld [vmem:[#allocation13 + $0xc8] sm:$0xf]
        %v2278 = vld [vmem:[#allocation13 + $0xcc] sm:$0xf]
        %v2279 = vld [vmem:[#allocation13 + $0xd0] sm:$0xf]
        %v2280 = vld [vmem:[#allocation13 + $0xd4] sm:$0xf]
        %v2281 = vld [vmem:[#allocation13 + $0xd8] sm:$0xf]
        %v2282 = vld [vmem:[#allocation13 + $0xdc] sm:$0xf]
        %v2283 = vld [vmem:[#allocation13 + $0xe0] sm:$0xf]
        %v2284 = vld [vmem:[#allocation13 + $0xe4] sm:$0xf]
        %v2285 = vld [vmem:[#allocation13 + $0xe8] sm:$0xf]
        %v2286 = vld [vmem:[#allocation13 + $0xec] sm:$0xf]
        %v2287 = vld [vmem:[#allocation13 + $0xf0] sm:$0xf]
        %v2288 = vld [vmem:[#allocation13 + $0xf4] sm:$0xf]
        %v2289 = vld [vmem:[#allocation13 + $0xf8] sm:$0xf]
        %v2290 = vld [vmem:[#allocation13 + $0xfc] sm:$0xf]
        %v2291 = vld [vmem:[#allocation14] sm:$0xff]
        %v2292 = vld [vmem:[#allocation14 + $0x8] sm:$0xff]
        %v2293 = vld [vmem:[#allocation14 + $0x10] sm:$0xff]
        %v2294 = vld [vmem:[#allocation14 + $0x18] sm:$0xff]
        %v2295 = vld [vmem:[#allocation14 + $0x20] sm:$0xff]
        %v2296 = vld [vmem:[#allocation14 + $0x28] sm:$0xff]
        %v2297 = vld [vmem:[#allocation14 + $0x30] sm:$0xff]
        %v2298 = vld [vmem:[#allocation14 + $0x38] sm:$0xff]
        %v2299 = vld [vmem:[#allocation14 + $0x40] sm:$0xff]
        %v2300 = vld [vmem:[#allocation14 + $0x48] sm:$0xff]
        %v2301 = vld [vmem:[#allocation14 + $0x50] sm:$0xff]
        %v2302 = vld [vmem:[#allocation14 + $0x58] sm:$0xff]
        %v2303 = vld [vmem:[#allocation14 + $0x60] sm:$0xff]
        %v2304 = vld [vmem:[#allocation14 + $0x68] sm:$0xff]
        %v2305 = vld [vmem:[#allocation14 + $0x70] sm:$0xff]
        %v2306 = vld [vmem:[#allocation14 + $0x78] sm:$0xff]
        %v2307 = vld [vmem:[#allocation14 + $0x80] sm:$0xff]
        %v2308 = vld [vmem:[#allocation14 + $0x88] sm:$0xff]
        %v2309 = vld [vmem:[#allocation14 + $0x90] sm:$0xff]
        %v2310 = vld [vmem:[#allocation14 + $0x98] sm:$0xff]
        %v2311 = vld [vmem:[#allocation14 + $0xa0] sm:$0xff]
        %v2312 = vld [vmem:[#allocation14 + $0xa8] sm:$0xff]
        %v2313 = vld [vmem:[#allocation14 + $0xb0] sm:$0xff]
        %v2314 = vld [vmem:[#allocation14 + $0xb8] sm:$0xff]
        %v2315 = vld [vmem:[#allocation14 + $0xc0] sm:$0xff]
        %v2316 = vld [vmem:[#allocation14 + $0xc8] sm:$0xff]
        %v2317 = vld [vmem:[#allocation14 + $0xd0] sm:$0xff]
        %v2318 = vld [vmem:[#allocation14 + $0xd8] sm:$0xff]
        %v2319 = vld [vmem:[#allocation14 + $0xe0] sm:$0xff]
        %v2320 = vld [vmem:[#allocation14 + $0xe8] sm:$0xff]
        %v2321 = vld [vmem:[#allocation14 + $0xf0] sm:$0xff]
        %v2322 = vld [vmem:[#allocation14 + $0xf8] sm:$0xff]
        %v2323 = vpack.c.bf16 %v2132, %v2130
        %v2324 = vpack.c.bf16 %v2133, %v2131
        %v2325 = vpack.c.bf16 %v2136, %v2134
        %v2326 = vpack.c.bf16 %v2137, %v2135
        %v2327 = vpack.c.bf16 %v2140, %v2138
        %v2328 = vpack.c.bf16 %v2141, %v2139
        %v2329 = vpack.c.bf16 %v2144, %v2142
        %v2330 = vpack.c.bf16 %v2145, %v2143
        %v2331 = vpack.c.bf16 %v2148, %v2146
        %v2332 = vpack.c.bf16 %v2149, %v2147
        %v2333 = vpack.c.bf16 %v2152, %v2150
        %v2334 = vpack.c.bf16 %v2153, %v2151
        %v2335 = vpack.c.bf16 %v2156, %v2154
        %v2336 = vpack.c.bf16 %v2157, %v2155
        %v2337 = vpack.c.bf16 %v2160, %v2158
        %v2338 = vpack.c.bf16 %v2161, %v2159
        %v2340 = vperm.slane %v2226, 0
        %v2341 = vperm.slane %v2226, 1
        %v2342 = vperm.slane %v2226, 2
        %v2343 = vperm.slane %v2226, 3
        %v2412 = vunpack.c.l.b16 %v2162
        %v2413 = vunpack.c.h.b16 %v2162
        %v2414 = vunpack.c.l.b16 %v2163
        %v2415 = vunpack.c.h.b16 %v2163
        %v2416 = vunpack.c.l.b16 %v2164
        %v2417 = vunpack.c.h.b16 %v2164
        %v2418 = vunpack.c.l.b16 %v2165
        %v2419 = vunpack.c.h.b16 %v2165
        %v2420 = vunpack.c.l.b16 %v2166
        %v2421 = vunpack.c.h.b16 %v2166
        %v2422 = vunpack.c.l.b16 %v2167
        %v2423 = vunpack.c.h.b16 %v2167
        %v2424 = vunpack.c.l.b16 %v2168
        %v2425 = vunpack.c.h.b16 %v2168
        %v2426 = vunpack.c.l.b16 %v2169
        %v2427 = vunpack.c.h.b16 %v2169
        %v2428 = vunpack.c.l.b16 %v2170
        %v2429 = vunpack.c.h.b16 %v2170
        %v2430 = vunpack.c.l.b16 %v2171
        %v2431 = vunpack.c.h.b16 %v2171
        %v2432 = vunpack.c.l.b16 %v2172
        %v2433 = vunpack.c.h.b16 %v2172
        %v2434 = vunpack.c.l.b16 %v2173
        %v2435 = vunpack.c.h.b16 %v2173
        %v2436 = vunpack.c.l.b16 %v2174
        %v2437 = vunpack.c.h.b16 %v2174
        %v2438 = vunpack.c.l.b16 %v2175
        %v2439 = vunpack.c.h.b16 %v2175
        %v2440 = vunpack.c.l.b16 %v2176
        %v2441 = vunpack.c.h.b16 %v2176
        %v2442 = vunpack.c.l.b16 %v2177
        %v2443 = vunpack.c.h.b16 %v2177
        %v2444 = vunpack.c.l.b16 %v2178
        %v2445 = vunpack.c.h.b16 %v2178
        %v2446 = vunpack.c.l.b16 %v2179
        %v2447 = vunpack.c.h.b16 %v2179
        %v2448 = vunpack.c.l.b16 %v2180
        %v2449 = vunpack.c.h.b16 %v2180
        %v2450 = vunpack.c.l.b16 %v2181
        %v2451 = vunpack.c.h.b16 %v2181
        %v2452 = vunpack.c.l.b16 %v2182
        %v2453 = vunpack.c.h.b16 %v2182
        %v2454 = vunpack.c.l.b16 %v2183
        %v2455 = vunpack.c.h.b16 %v2183
        %v2456 = vunpack.c.l.b16 %v2184
        %v2457 = vunpack.c.h.b16 %v2184
        %v2458 = vunpack.c.l.b16 %v2185
        %v2459 = vunpack.c.h.b16 %v2185
        %v2460 = vunpack.c.l.b16 %v2186
        %v2461 = vunpack.c.h.b16 %v2186
        %v2462 = vunpack.c.l.b16 %v2187
        %v2463 = vunpack.c.h.b16 %v2187
        %v2464 = vunpack.c.l.b16 %v2188
        %v2465 = vunpack.c.h.b16 %v2188
        %v2466 = vunpack.c.l.b16 %v2189
        %v2467 = vunpack.c.h.b16 %v2189
        %v2468 = vunpack.c.l.b16 %v2190
        %v2469 = vunpack.c.h.b16 %v2190
        %v2470 = vunpack.c.l.b16 %v2191
        %v2471 = vunpack.c.h.b16 %v2191
        %v2472 = vunpack.c.l.b16 %v2192
        %v2473 = vunpack.c.h.b16 %v2192
        %v2474 = vunpack.c.l.b16 %v2193
        %v2475 = vunpack.c.h.b16 %v2193
        %v2476 = vunpack.c.l.b16 %v2194
        %v2477 = vunpack.c.h.b16 %v2194
        %v2478 = vunpack.c.l.b16 %v2195
        %v2479 = vunpack.c.h.b16 %v2195
        %v2480 = vunpack.c.l.b16 %v2196
        %v2481 = vunpack.c.h.b16 %v2196
        %v2482 = vunpack.c.l.b16 %v2197
        %v2483 = vunpack.c.h.b16 %v2197
        %v2484 = vunpack.c.l.b16 %v2198
        %v2485 = vunpack.c.h.b16 %v2198
        %v2486 = vunpack.c.l.b16 %v2199
        %v2487 = vunpack.c.h.b16 %v2199
        %v2488 = vunpack.c.l.b16 %v2200
        %v2489 = vunpack.c.h.b16 %v2200
        %v2490 = vunpack.c.l.b16 %v2201
        %v2491 = vunpack.c.h.b16 %v2201
        %v2492 = vunpack.c.l.b16 %v2202
        %v2493 = vunpack.c.h.b16 %v2202
        %v2494 = vunpack.c.l.b16 %v2203
        %v2495 = vunpack.c.h.b16 %v2203
        %v2496 = vunpack.c.l.b16 %v2204
        %v2497 = vunpack.c.h.b16 %v2204
        %v2498 = vunpack.c.l.b16 %v2205
        %v2499 = vunpack.c.h.b16 %v2205
        %v2500 = vunpack.c.l.b16 %v2206
        %v2501 = vunpack.c.h.b16 %v2206
        %v2502 = vunpack.c.l.b16 %v2207
        %v2503 = vunpack.c.h.b16 %v2207
        %v2504 = vunpack.c.l.b16 %v2208
        %v2505 = vunpack.c.h.b16 %v2208
        %v2506 = vunpack.c.l.b16 %v2209
        %v2507 = vunpack.c.h.b16 %v2209
        %v2508 = vunpack.c.l.b16 %v2210
        %v2509 = vunpack.c.h.b16 %v2210
        %v2510 = vunpack.c.l.b16 %v2211
        %v2511 = vunpack.c.h.b16 %v2211
        %v2512 = vunpack.c.l.b16 %v2212
        %v2513 = vunpack.c.h.b16 %v2212
        %v2514 = vunpack.c.l.b16 %v2213
        %v2515 = vunpack.c.h.b16 %v2213
        %v2516 = vunpack.c.l.b16 %v2214
        %v2517 = vunpack.c.h.b16 %v2214
        %v2518 = vunpack.c.l.b16 %v2215
        %v2519 = vunpack.c.h.b16 %v2215
        %v2520 = vunpack.c.l.b16 %v2216
        %v2521 = vunpack.c.h.b16 %v2216
        %v2522 = vunpack.c.l.b16 %v2217
        %v2523 = vunpack.c.h.b16 %v2217
        %v2524 = vunpack.c.l.b16 %v2218
        %v2525 = vunpack.c.h.b16 %v2218
        %v2526 = vunpack.c.l.b16 %v2219
        %v2527 = vunpack.c.h.b16 %v2219
        %v2528 = vunpack.c.l.b16 %v2220
        %v2529 = vunpack.c.h.b16 %v2220
        %v2530 = vunpack.c.l.b16 %v2221
        %v2531 = vunpack.c.h.b16 %v2221
        %v2532 = vunpack.c.l.b16 %v2222
        %v2533 = vunpack.c.h.b16 %v2222
        %v2534 = vunpack.c.l.b16 %v2223
        %v2535 = vunpack.c.h.b16 %v2223
        %v2536 = vunpack.c.l.b16 %v2224
        %v2537 = vunpack.c.h.b16 %v2224
        %v2538 = vunpack.c.l.b16 %v2225
        %v2539 = vunpack.c.h.b16 %v2225
        %v2540 = vpack.c.b16 %v2416, %v2412
        %v2541 = vpack.c.b16 %v2417, %v2413
        %v2542 = vpack.c.b16 %v2418, %v2414
        %v2543 = vpack.c.b16 %v2419, %v2415
        %v2544 = vpack.c.b16 %v2424, %v2420
        %v2545 = vpack.c.b16 %v2425, %v2421
        %v2546 = vpack.c.b16 %v2426, %v2422
        %v2547 = vpack.c.b16 %v2427, %v2423
        %v2548 = vpack.c.b16 %v2432, %v2428
        %v2549 = vpack.c.b16 %v2433, %v2429
        %v2550 = vpack.c.b16 %v2434, %v2430
        %v2551 = vpack.c.b16 %v2435, %v2431
        %v2552 = vpack.c.b16 %v2440, %v2436
        %v2553 = vpack.c.b16 %v2441, %v2437
        %v2554 = vpack.c.b16 %v2442, %v2438
        %v2555 = vpack.c.b16 %v2443, %v2439
        %v2556 = vpack.c.b16 %v2448, %v2444
        %v2557 = vpack.c.b16 %v2449, %v2445
        %v2558 = vpack.c.b16 %v2450, %v2446
        %v2559 = vpack.c.b16 %v2451, %v2447
        %v2560 = vpack.c.b16 %v2456, %v2452
        %v2561 = vpack.c.b16 %v2457, %v2453
        %v2562 = vpack.c.b16 %v2458, %v2454
        %v2563 = vpack.c.b16 %v2459, %v2455
        %v2564 = vpack.c.b16 %v2464, %v2460
        %v2565 = vpack.c.b16 %v2465, %v2461
        %v2566 = vpack.c.b16 %v2466, %v2462
        %v2567 = vpack.c.b16 %v2467, %v2463
        %v2568 = vpack.c.b16 %v2472, %v2468
        %v2569 = vpack.c.b16 %v2473, %v2469
        %v2570 = vpack.c.b16 %v2474, %v2470
        %v2571 = vpack.c.b16 %v2475, %v2471
        %v2572 = vpack.c.b16 %v2480, %v2476
        %v2573 = vpack.c.b16 %v2481, %v2477
        %v2574 = vpack.c.b16 %v2482, %v2478
        %v2575 = vpack.c.b16 %v2483, %v2479
        %v2576 = vpack.c.b16 %v2488, %v2484
        %v2577 = vpack.c.b16 %v2489, %v2485
        %v2578 = vpack.c.b16 %v2490, %v2486
        %v2579 = vpack.c.b16 %v2491, %v2487
        %v2580 = vpack.c.b16 %v2496, %v2492
        %v2581 = vpack.c.b16 %v2497, %v2493
        %v2582 = vpack.c.b16 %v2498, %v2494
        %v2583 = vpack.c.b16 %v2499, %v2495
        %v2584 = vpack.c.b16 %v2504, %v2500
        %v2585 = vpack.c.b16 %v2505, %v2501
        %v2586 = vpack.c.b16 %v2506, %v2502
        %v2587 = vpack.c.b16 %v2507, %v2503
        %v2588 = vpack.c.b16 %v2512, %v2508
        %v2589 = vpack.c.b16 %v2513, %v2509
        %v2590 = vpack.c.b16 %v2514, %v2510
        %v2591 = vpack.c.b16 %v2515, %v2511
        %v2592 = vpack.c.b16 %v2520, %v2516
        %v2593 = vpack.c.b16 %v2521, %v2517
        %v2594 = vpack.c.b16 %v2522, %v2518
        %v2595 = vpack.c.b16 %v2523, %v2519
        %v2596 = vpack.c.b16 %v2528, %v2524
        %v2597 = vpack.c.b16 %v2529, %v2525
        %v2598 = vpack.c.b16 %v2530, %v2526
        %v2599 = vpack.c.b16 %v2531, %v2527
        %v2600 = vpack.c.b16 %v2536, %v2532
        %v2601 = vpack.c.b16 %v2537, %v2533
        %v2602 = vpack.c.b16 %v2538, %v2534
        %v2603 = vpack.c.b16 %v2539, %v2535
        %2668 = vmatpush.bf16.msra.mxu0 %v2568
        %2669 = vmatpush.bf16.msra.mxu0 %v2564
        %2670 = vmatpush.bf16.msra.mxu0 %v2560
        %2671 = vmatpush.bf16.msra.mxu0 %v2556
        %2672 = vmatpush.bf16.msra.mxu0 %v2552
        %2673 = vmatpush.bf16.msra.mxu0 %v2548
        %2674 = vmatpush.bf16.msra.mxu0 %v2544
        %2675 = vmatpush.bf16.msra.mxu0 %v2540
        %2676 = vmatmul.bf16.gmra.mxu0 %v2323
        %v2677 = vpop.f32.mrf.mxu0
        %v2678 = vadd.f32 %v2340, %v2677
        %v2679 = vpop.f32.mrf.mxu0
        %v2680 = vadd.f32 %v2340, %v2679
        %2681 = vmatmul.bf16.gmra.mxu0 %v2325
        %v2682 = vpop.f32.mrf.mxu0
        %v2683 = vadd.f32 %v2340, %v2682
        %v2684 = vpop.f32.mrf.mxu0
        %v2685 = vadd.f32 %v2340, %v2684
        %2686 = vmatmul.bf16.gmra.mxu0 %v2327
        %v2687 = vpop.f32.mrf.mxu0
        %v2688 = vadd.f32 %v2340, %v2687
        %v2689 = vpop.f32.mrf.mxu0
        %v2690 = vadd.f32 %v2340, %v2689
        %2691 = vmatmul.bf16.gmra.mxu0 %v2329
        %v2692 = vpop.f32.mrf.mxu0
        %v2693 = vadd.f32 %v2340, %v2692
        %v2694 = vpop.f32.mrf.mxu0
        %v2695 = vadd.f32 %v2340, %v2694
        %2696 = vmatmul.bf16.gmra.mxu0 %v2331
        %v2697 = vpop.f32.mrf.mxu0
        %v2698 = vadd.f32 %v2340, %v2697
        %v2699 = vpop.f32.mrf.mxu0
        %v2700 = vadd.f32 %v2340, %v2699
        %2701 = vmatmul.bf16.gmra.mxu0 %v2333
        %v2702 = vpop.f32.mrf.mxu0
        %v2703 = vadd.f32 %v2340, %v2702
        %v2704 = vpop.f32.mrf.mxu0
        %v2705 = vadd.f32 %v2340, %v2704
        %2706 = vmatmul.bf16.gmra.mxu0 %v2335
        %v2707 = vpop.f32.mrf.mxu0
        %v2708 = vadd.f32 %v2340, %v2707
        %v2709 = vpop.f32.mrf.mxu0
        %v2710 = vadd.f32 %v2340, %v2709
        %2711 = vmatmul.bf16.gmra.mxu0 %v2337
        %v2712 = vpop.f32.mrf.mxu0
        %v2713 = vadd.f32 %v2340, %v2712
        %v2714 = vpop.f32.mrf.mxu0
        %v2715 = vadd.f32 %v2340, %v2714
        %2716 = vdwg.mxu0
        %2717 = vmatpush.bf16.msra.mxu0 %v2600
        %2718 = vmatpush.bf16.msra.mxu0 %v2596
        %2719 = vmatpush.bf16.msra.mxu0 %v2592
        %2720 = vmatpush.bf16.msra.mxu0 %v2588
        %2721 = vmatpush.bf16.msra.mxu0 %v2584
        %2722 = vmatpush.bf16.msra.mxu0 %v2580
        %2723 = vmatpush.bf16.msra.mxu0 %v2576
        %2724 = vmatpush.bf16.msra.mxu0 %v2572
        %2725 = vmatmul.bf16.gmra.mxu0 %v2324
        %v2726 = vpop.f32.mrf.mxu0
        %v2727 = vadd.f32 %v2678, %v2726
        %v2728 = vpop.f32.mrf.mxu0
        %v2729 = vadd.f32 %v2680, %v2728
        %2730 = vmatmul.bf16.gmra.mxu0 %v2326
        %v2731 = vpop.f32.mrf.mxu0
        %v2732 = vadd.f32 %v2683, %v2731
        %v2733 = vpop.f32.mrf.mxu0
        %v2734 = vadd.f32 %v2685, %v2733
        %2735 = vmatmul.bf16.gmra.mxu0 %v2328
        %v2736 = vpop.f32.mrf.mxu0
        %v2737 = vadd.f32 %v2688, %v2736
        %v2738 = vpop.f32.mrf.mxu0
        %v2739 = vadd.f32 %v2690, %v2738
        %2740 = vmatmul.bf16.gmra.mxu0 %v2330
        %v2741 = vpop.f32.mrf.mxu0
        %v2742 = vadd.f32 %v2693, %v2741
        %v2743 = vpop.f32.mrf.mxu0
        %v2744 = vadd.f32 %v2695, %v2743
        %2745 = vmatmul.bf16.gmra.mxu0 %v2332
        %v2746 = vpop.f32.mrf.mxu0
        %v2747 = vadd.f32 %v2698, %v2746
        %v2748 = vpop.f32.mrf.mxu0
        %v2749 = vadd.f32 %v2700, %v2748
        %2750 = vmatmul.bf16.gmra.mxu0 %v2334
        %v2751 = vpop.f32.mrf.mxu0
        %v2752 = vadd.f32 %v2703, %v2751
        %v2753 = vpop.f32.mrf.mxu0
        %v2754 = vadd.f32 %v2705, %v2753
        %2755 = vmatmul.bf16.gmra.mxu0 %v2336
        %v2756 = vpop.f32.mrf.mxu0
        %v2757 = vadd.f32 %v2708, %v2756
        %v2758 = vpop.f32.mrf.mxu0
        %v2759 = vadd.f32 %v2710, %v2758
        %2760 = vmatmul.bf16.gmra.mxu0 %v2338
        %v2761 = vpop.f32.mrf.mxu0
        %v2762 = vadd.f32 %v2713, %v2761
        %v2763 = vpop.f32.mrf.mxu0
        %v2764 = vadd.f32 %v2715, %v2763
        %2765 = vdwg.mxu0
        %2766 = vmatpush.bf16.msra.mxu0 %v2569
        %2767 = vmatpush.bf16.msra.mxu0 %v2565
        %2768 = vmatpush.bf16.msra.mxu0 %v2561
        %2769 = vmatpush.bf16.msra.mxu0 %v2557
        %2770 = vmatpush.bf16.msra.mxu0 %v2553
        %2771 = vmatpush.bf16.msra.mxu0 %v2549
        %2772 = vmatpush.bf16.msra.mxu0 %v2545
        %2773 = vmatpush.bf16.msra.mxu0 %v2541
        %2774 = vmatmul.bf16.gmra.mxu0 %v2323
        %v2775 = vpop.f32.mrf.mxu0
        %v2776 = vadd.f32 %v2341, %v2775
        %v2777 = vpop.f32.mrf.mxu0
        %v2778 = vadd.f32 %v2341, %v2777
        %2779 = vmatmul.bf16.gmra.mxu0 %v2325
        %v2780 = vpop.f32.mrf.mxu0
        %v2781 = vadd.f32 %v2341, %v2780
        %v2782 = vpop.f32.mrf.mxu0
        %v2783 = vadd.f32 %v2341, %v2782
        %2784 = vmatmul.bf16.gmra.mxu0 %v2327
        %v2785 = vpop.f32.mrf.mxu0
        %v2786 = vadd.f32 %v2341, %v2785
        %v2787 = vpop.f32.mrf.mxu0
        %v2788 = vadd.f32 %v2341, %v2787
        %2789 = vmatmul.bf16.gmra.mxu0 %v2329
        %v2790 = vpop.f32.mrf.mxu0
        %v2791 = vadd.f32 %v2341, %v2790
        %v2792 = vpop.f32.mrf.mxu0
        %v2793 = vadd.f32 %v2341, %v2792
        %2794 = vmatmul.bf16.gmra.mxu0 %v2331
        %v2795 = vpop.f32.mrf.mxu0
        %v2796 = vadd.f32 %v2341, %v2795
        %v2797 = vpop.f32.mrf.mxu0
        %v2798 = vadd.f32 %v2341, %v2797
        %2799 = vmatmul.bf16.gmra.mxu0 %v2333
        %v2800 = vpop.f32.mrf.mxu0
        %v2801 = vadd.f32 %v2341, %v2800
        %v2802 = vpop.f32.mrf.mxu0
        %v2803 = vadd.f32 %v2341, %v2802
        %2804 = vmatmul.bf16.gmra.mxu0 %v2335
        %v2805 = vpop.f32.mrf.mxu0
        %v2806 = vadd.f32 %v2341, %v2805
        %v2807 = vpop.f32.mrf.mxu0
        %v2808 = vadd.f32 %v2341, %v2807
        %2809 = vmatmul.bf16.gmra.mxu0 %v2337
        %v2810 = vpop.f32.mrf.mxu0
        %v2811 = vadd.f32 %v2341, %v2810
        %v2812 = vpop.f32.mrf.mxu0
        %v2813 = vadd.f32 %v2341, %v2812
        %2814 = vdwg.mxu0
        %2815 = vmatpush.bf16.msra.mxu0 %v2601
        %2816 = vmatpush.bf16.msra.mxu0 %v2597
        %2817 = vmatpush.bf16.msra.mxu0 %v2593
        %2818 = vmatpush.bf16.msra.mxu0 %v2589
        %2819 = vmatpush.bf16.msra.mxu0 %v2585
        %2820 = vmatpush.bf16.msra.mxu0 %v2581
        %2821 = vmatpush.bf16.msra.mxu0 %v2577
        %2822 = vmatpush.bf16.msra.mxu0 %v2573
        %2823 = vmatmul.bf16.gmra.mxu0 %v2324
        %v2824 = vpop.f32.mrf.mxu0
        %v2825 = vadd.f32 %v2776, %v2824
        %v2826 = vpop.f32.mrf.mxu0
        %v2827 = vadd.f32 %v2778, %v2826
        %2828 = vmatmul.bf16.gmra.mxu0 %v2326
        %v2829 = vpop.f32.mrf.mxu0
        %v2830 = vadd.f32 %v2781, %v2829
        %v2831 = vpop.f32.mrf.mxu0
        %v2832 = vadd.f32 %v2783, %v2831
        %2833 = vmatmul.bf16.gmra.mxu0 %v2328
        %v2834 = vpop.f32.mrf.mxu0
        %v2835 = vadd.f32 %v2786, %v2834
        %v2836 = vpop.f32.mrf.mxu0
        %v2837 = vadd.f32 %v2788, %v2836
        %2838 = vmatmul.bf16.gmra.mxu0 %v2330
        %v2839 = vpop.f32.mrf.mxu0
        %v2840 = vadd.f32 %v2791, %v2839
        %v2841 = vpop.f32.mrf.mxu0
        %v2842 = vadd.f32 %v2793, %v2841
        %2843 = vmatmul.bf16.gmra.mxu0 %v2332
        %v2844 = vpop.f32.mrf.mxu0
        %v2845 = vadd.f32 %v2796, %v2844
        %v2846 = vpop.f32.mrf.mxu0
        %v2847 = vadd.f32 %v2798, %v2846
        %2848 = vmatmul.bf16.gmra.mxu0 %v2334
        %v2849 = vpop.f32.mrf.mxu0
        %v2850 = vadd.f32 %v2801, %v2849
        %v2851 = vpop.f32.mrf.mxu0
        %v2852 = vadd.f32 %v2803, %v2851
        %2853 = vmatmul.bf16.gmra.mxu0 %v2336
        %v2854 = vpop.f32.mrf.mxu0
        %v2855 = vadd.f32 %v2806, %v2854
        %v2856 = vpop.f32.mrf.mxu0
        %v2857 = vadd.f32 %v2808, %v2856
        %2858 = vmatmul.bf16.gmra.mxu0 %v2338
        %v2859 = vpop.f32.mrf.mxu0
        %v2860 = vadd.f32 %v2811, %v2859
        %v2861 = vpop.f32.mrf.mxu0
        %v2862 = vadd.f32 %v2813, %v2861
        %2863 = vdwg.mxu0
        %2864 = vmatpush.bf16.msra.mxu0 %v2570
        %2865 = vmatpush.bf16.msra.mxu0 %v2566
        %2866 = vmatpush.bf16.msra.mxu0 %v2562
        %2867 = vmatpush.bf16.msra.mxu0 %v2558
        %2868 = vmatpush.bf16.msra.mxu0 %v2554
        %2869 = vmatpush.bf16.msra.mxu0 %v2550
        %2870 = vmatpush.bf16.msra.mxu0 %v2546
        %2871 = vmatpush.bf16.msra.mxu0 %v2542
        %2872 = vmatmul.bf16.gmra.mxu0 %v2323
        %v2873 = vpop.f32.mrf.mxu0
        %v2874 = vadd.f32 %v2342, %v2873
        %v2875 = vpop.f32.mrf.mxu0
        %v2876 = vadd.f32 %v2342, %v2875
        %2877 = vmatmul.bf16.gmra.mxu0 %v2325
        %v2878 = vpop.f32.mrf.mxu0
        %v2879 = vadd.f32 %v2342, %v2878
        %v2880 = vpop.f32.mrf.mxu0
        %v2881 = vadd.f32 %v2342, %v2880
        %2882 = vmatmul.bf16.gmra.mxu0 %v2327
        %v2883 = vpop.f32.mrf.mxu0
        %v2884 = vadd.f32 %v2342, %v2883
        %v2885 = vpop.f32.mrf.mxu0
        %v2886 = vadd.f32 %v2342, %v2885
        %2887 = vmatmul.bf16.gmra.mxu0 %v2329
        %v2888 = vpop.f32.mrf.mxu0
        %v2889 = vadd.f32 %v2342, %v2888
        %v2890 = vpop.f32.mrf.mxu0
        %v2891 = vadd.f32 %v2342, %v2890
        %2892 = vmatmul.bf16.gmra.mxu0 %v2331
        %v2893 = vpop.f32.mrf.mxu0
        %v2894 = vadd.f32 %v2342, %v2893
        %v2895 = vpop.f32.mrf.mxu0
        %v2896 = vadd.f32 %v2342, %v2895
        %2897 = vmatmul.bf16.gmra.mxu0 %v2333
        %v2898 = vpop.f32.mrf.mxu0
        %v2899 = vadd.f32 %v2342, %v2898
        %v2900 = vpop.f32.mrf.mxu0
        %v2901 = vadd.f32 %v2342, %v2900
        %2902 = vmatmul.bf16.gmra.mxu0 %v2335
        %v2903 = vpop.f32.mrf.mxu0
        %v2904 = vadd.f32 %v2342, %v2903
        %v2905 = vpop.f32.mrf.mxu0
        %v2906 = vadd.f32 %v2342, %v2905
        %2907 = vmatmul.bf16.gmra.mxu0 %v2337
        %v2908 = vpop.f32.mrf.mxu0
        %v2909 = vadd.f32 %v2342, %v2908
        %v2910 = vpop.f32.mrf.mxu0
        %v2911 = vadd.f32 %v2342, %v2910
        %2912 = vdwg.mxu0
        %2913 = vmatpush.bf16.msra.mxu0 %v2602
        %2914 = vmatpush.bf16.msra.mxu0 %v2598
        %2915 = vmatpush.bf16.msra.mxu0 %v2594
        %2916 = vmatpush.bf16.msra.mxu0 %v2590
        %2917 = vmatpush.bf16.msra.mxu0 %v2586
        %2918 = vmatpush.bf16.msra.mxu0 %v2582
        %2919 = vmatpush.bf16.msra.mxu0 %v2578
        %2920 = vmatpush.bf16.msra.mxu0 %v2574
        %2921 = vmatmul.bf16.gmra.mxu0 %v2324
        %v2922 = vpop.f32.mrf.mxu0
        %v2923 = vadd.f32 %v2874, %v2922
        %v2924 = vpop.f32.mrf.mxu0
        %v2925 = vadd.f32 %v2876, %v2924
        %2926 = vmatmul.bf16.gmra.mxu0 %v2326
        %v2927 = vpop.f32.mrf.mxu0
        %v2928 = vadd.f32 %v2879, %v2927
        %v2929 = vpop.f32.mrf.mxu0
        %v2930 = vadd.f32 %v2881, %v2929
        %2931 = vmatmul.bf16.gmra.mxu0 %v2328
        %v2932 = vpop.f32.mrf.mxu0
        %v2933 = vadd.f32 %v2884, %v2932
        %v2934 = vpop.f32.mrf.mxu0
        %v2935 = vadd.f32 %v2886, %v2934
        %2936 = vmatmul.bf16.gmra.mxu0 %v2330
        %v2937 = vpop.f32.mrf.mxu0
        %v2938 = vadd.f32 %v2889, %v2937
        %v2939 = vpop.f32.mrf.mxu0
        %v2940 = vadd.f32 %v2891, %v2939
        %2941 = vmatmul.bf16.gmra.mxu0 %v2332
        %v2942 = vpop.f32.mrf.mxu0
        %v2943 = vadd.f32 %v2894, %v2942
        %v2944 = vpop.f32.mrf.mxu0
        %v2945 = vadd.f32 %v2896, %v2944
        %2946 = vmatmul.bf16.gmra.mxu0 %v2334
        %v2947 = vpop.f32.mrf.mxu0
        %v2948 = vadd.f32 %v2899, %v2947
        %v2949 = vpop.f32.mrf.mxu0
        %v2950 = vadd.f32 %v2901, %v2949
        %2951 = vmatmul.bf16.gmra.mxu0 %v2336
        %v2952 = vpop.f32.mrf.mxu0
        %v2953 = vadd.f32 %v2904, %v2952
        %v2954 = vpop.f32.mrf.mxu0
        %v2955 = vadd.f32 %v2906, %v2954
        %2956 = vmatmul.bf16.gmra.mxu0 %v2338
        %v2957 = vpop.f32.mrf.mxu0
        %v2958 = vadd.f32 %v2909, %v2957
        %v2959 = vpop.f32.mrf.mxu0
        %v2960 = vadd.f32 %v2911, %v2959
        %2961 = vdwg.mxu0
        %2962 = vmatpush.bf16.msra.mxu0 %v2571
        %2963 = vmatpush.bf16.msra.mxu0 %v2567
        %2964 = vmatpush.bf16.msra.mxu0 %v2563
        %2965 = vmatpush.bf16.msra.mxu0 %v2559
        %2966 = vmatpush.bf16.msra.mxu0 %v2555
        %2967 = vmatpush.bf16.msra.mxu0 %v2551
        %2968 = vmatpush.bf16.msra.mxu0 %v2547
        %2969 = vmatpush.bf16.msra.mxu0 %v2543
        %2970 = vmatmul.bf16.gmra.mxu0 %v2323
        %v2971 = vpop.f32.mrf.mxu0
        %v2972 = vadd.f32 %v2343, %v2971
        %v2973 = vpop.f32.mrf.mxu0
        %v2974 = vadd.f32 %v2343, %v2973
        %2975 = vmatmul.bf16.gmra.mxu0 %v2325
        %v2976 = vpop.f32.mrf.mxu0
        %v2977 = vadd.f32 %v2343, %v2976
        %v2978 = vpop.f32.mrf.mxu0
        %v2979 = vadd.f32 %v2343, %v2978
        %2980 = vmatmul.bf16.gmra.mxu0 %v2327
        %v2981 = vpop.f32.mrf.mxu0
        %v2982 = vadd.f32 %v2343, %v2981
        %v2983 = vpop.f32.mrf.mxu0
        %v2984 = vadd.f32 %v2343, %v2983
        %2985 = vmatmul.bf16.gmra.mxu0 %v2329
        %v2986 = vpop.f32.mrf.mxu0
        %v2987 = vadd.f32 %v2343, %v2986
        %v2988 = vpop.f32.mrf.mxu0
        %v2989 = vadd.f32 %v2343, %v2988
        %2990 = vmatmul.bf16.gmra.mxu0 %v2331
        %v2991 = vpop.f32.mrf.mxu0
        %v2992 = vadd.f32 %v2343, %v2991
        %v2993 = vpop.f32.mrf.mxu0
        %v2994 = vadd.f32 %v2343, %v2993
        %2995 = vmatmul.bf16.gmra.mxu0 %v2333
        %v2996 = vpop.f32.mrf.mxu0
        %v2997 = vadd.f32 %v2343, %v2996
        %v2998 = vpop.f32.mrf.mxu0
        %v2999 = vadd.f32 %v2343, %v2998
        %3000 = vmatmul.bf16.gmra.mxu0 %v2335
        %v3001 = vpop.f32.mrf.mxu0
        %v3002 = vadd.f32 %v2343, %v3001
        %v3003 = vpop.f32.mrf.mxu0
        %v3004 = vadd.f32 %v2343, %v3003
        %3005 = vmatmul.bf16.gmra.mxu0 %v2337
        %v3006 = vpop.f32.mrf.mxu0
        %v3007 = vadd.f32 %v2343, %v3006
        %v3008 = vpop.f32.mrf.mxu0
        %v3009 = vadd.f32 %v2343, %v3008
        %3010 = vdwg.mxu0
        %3011 = vmatpush.bf16.msra.mxu0 %v2603
        %3012 = vmatpush.bf16.msra.mxu0 %v2599
        %3013 = vmatpush.bf16.msra.mxu0 %v2595
        %3014 = vmatpush.bf16.msra.mxu0 %v2591
        %3015 = vmatpush.bf16.msra.mxu0 %v2587
        %3016 = vmatpush.bf16.msra.mxu0 %v2583
        %3017 = vmatpush.bf16.msra.mxu0 %v2579
        %3018 = vmatpush.bf16.msra.mxu0 %v2575
        %3019 = vmatmul.bf16.gmra.mxu0 %v2324
        %v3020 = vpop.f32.mrf.mxu0
        %v3021 = vadd.f32 %v2972, %v3020
        %v3022 = vpop.f32.mrf.mxu0
        %v3023 = vadd.f32 %v2974, %v3022
        %3024 = vmatmul.bf16.gmra.mxu0 %v2326
        %v3025 = vpop.f32.mrf.mxu0
        %v3026 = vadd.f32 %v2977, %v3025
        %v3027 = vpop.f32.mrf.mxu0
        %v3028 = vadd.f32 %v2979, %v3027
        %3029 = vmatmul.bf16.gmra.mxu0 %v2328
        %v3030 = vpop.f32.mrf.mxu0
        %v3031 = vadd.f32 %v2982, %v3030
        %v3032 = vpop.f32.mrf.mxu0
        %v3033 = vadd.f32 %v2984, %v3032
        %3034 = vmatmul.bf16.gmra.mxu0 %v2330
        %v3035 = vpop.f32.mrf.mxu0
        %v3036 = vadd.f32 %v2987, %v3035
        %v3037 = vpop.f32.mrf.mxu0
        %v3038 = vadd.f32 %v2989, %v3037
        %3039 = vmatmul.bf16.gmra.mxu0 %v2332
        %v3040 = vpop.f32.mrf.mxu0
        %v3041 = vadd.f32 %v2992, %v3040
        %v3042 = vpop.f32.mrf.mxu0
        %v3043 = vadd.f32 %v2994, %v3042
        %3044 = vmatmul.bf16.gmra.mxu0 %v2334
        %v3045 = vpop.f32.mrf.mxu0
        %v3046 = vadd.f32 %v2997, %v3045
        %v3047 = vpop.f32.mrf.mxu0
        %v3048 = vadd.f32 %v2999, %v3047
        %3049 = vmatmul.bf16.gmra.mxu0 %v2336
        %v3050 = vpop.f32.mrf.mxu0
        %v3051 = vadd.f32 %v3002, %v3050
        %v3052 = vpop.f32.mrf.mxu0
        %v3053 = vadd.f32 %v3004, %v3052
        %3054 = vmatmul.bf16.gmra.mxu0 %v2338
        %v3055 = vpop.f32.mrf.mxu0
        %v3056 = vadd.f32 %v3007, %v3055
        %v3057 = vpop.f32.mrf.mxu0
        %v3058 = vadd.f32 %v3009, %v3057
        %3059 = vdwg.mxu0
        %v3060 = vmax.f32 %v2727, 0.0
        %v3061 = vmax.f32 %v2825, 0.0
        %v3062 = vmax.f32 %v2923, 0.0
        %v3063 = vmax.f32 %v3021, 0.0
        %v3064 = vmax.f32 %v2729, 0.0
        %v3065 = vmax.f32 %v2827, 0.0
        %v3066 = vmax.f32 %v2925, 0.0
        %v3067 = vmax.f32 %v3023, 0.0
        %v3068 = vmax.f32 %v2732, 0.0
        %v3069 = vmax.f32 %v2830, 0.0
        %v3070 = vmax.f32 %v2928, 0.0
        %v3071 = vmax.f32 %v3026, 0.0
        %v3072 = vmax.f32 %v2734, 0.0
        %v3073 = vmax.f32 %v2832, 0.0
        %v3074 = vmax.f32 %v2930, 0.0
        %v3075 = vmax.f32 %v3028, 0.0
        %v3076 = vmax.f32 %v2737, 0.0
        %v3077 = vmax.f32 %v2835, 0.0
        %v3078 = vmax.f32 %v2933, 0.0
        %v3079 = vmax.f32 %v3031, 0.0
        %v3080 = vmax.f32 %v2739, 0.0
        %v3081 = vmax.f32 %v2837, 0.0
        %v3082 = vmax.f32 %v2935, 0.0
        %v3083 = vmax.f32 %v3033, 0.0
        %v3084 = vmax.f32 %v2742, 0.0
        %v3085 = vmax.f32 %v2840, 0.0
        %v3086 = vmax.f32 %v2938, 0.0
        %v3087 = vmax.f32 %v3036, 0.0
        %v3088 = vmax.f32 %v2744, 0.0
        %v3089 = vmax.f32 %v2842, 0.0
        %v3090 = vmax.f32 %v2940, 0.0
        %v3091 = vmax.f32 %v3038, 0.0
        %v3092 = vmax.f32 %v2747, 0.0
        %v3093 = vmax.f32 %v2845, 0.0
        %v3094 = vmax.f32 %v2943, 0.0
        %v3095 = vmax.f32 %v3041, 0.0
        %v3096 = vmax.f32 %v2749, 0.0
        %v3097 = vmax.f32 %v2847, 0.0
        %v3098 = vmax.f32 %v2945, 0.0
        %v3099 = vmax.f32 %v3043, 0.0
        %v3100 = vmax.f32 %v2752, 0.0
        %v3101 = vmax.f32 %v2850, 0.0
        %v3102 = vmax.f32 %v2948, 0.0
        %v3103 = vmax.f32 %v3046, 0.0
        %v3104 = vmax.f32 %v2754, 0.0
        %v3105 = vmax.f32 %v2852, 0.0
        %v3106 = vmax.f32 %v2950, 0.0
        %v3107 = vmax.f32 %v3048, 0.0
        %v3108 = vmax.f32 %v2757, 0.0
        %v3109 = vmax.f32 %v2855, 0.0
        %v3110 = vmax.f32 %v2953, 0.0
        %v3111 = vmax.f32 %v3051, 0.0
        %v3112 = vmax.f32 %v2759, 0.0
        %v3113 = vmax.f32 %v2857, 0.0
        %v3114 = vmax.f32 %v2955, 0.0
        %v3115 = vmax.f32 %v3053, 0.0
        %v3116 = vmax.f32 %v2762, 0.0
        %v3117 = vmax.f32 %v2860, 0.0
        %v3118 = vmax.f32 %v2958, 0.0
        %v3119 = vmax.f32 %v3056, 0.0
        %v3120 = vmax.f32 %v2764, 0.0
        %v3121 = vmax.f32 %v2862, 0.0
        %v3122 = vmax.f32 %v2960, 0.0
        %v3123 = vmax.f32 %v3058, 0.0
        %v3124 = vpack.c.bf16 %v3064, %v3060
        %v3125 = vpack.c.bf16 %v3065, %v3061
        %v3126 = vpack.c.bf16 %v3066, %v3062
        %v3127 = vpack.c.bf16 %v3067, %v3063
        %v3128 = vpack.c.bf16 %v3072, %v3068
        %v3129 = vpack.c.bf16 %v3073, %v3069
        %v3130 = vpack.c.bf16 %v3074, %v3070
        %v3131 = vpack.c.bf16 %v3075, %v3071
        %v3132 = vpack.c.bf16 %v3080, %v3076
        %v3133 = vpack.c.bf16 %v3081, %v3077
        %v3134 = vpack.c.bf16 %v3082, %v3078
        %v3135 = vpack.c.bf16 %v3083, %v3079
        %v3136 = vpack.c.bf16 %v3088, %v3084
        %v3137 = vpack.c.bf16 %v3089, %v3085
        %v3138 = vpack.c.bf16 %v3090, %v3086
        %v3139 = vpack.c.bf16 %v3091, %v3087
        %v3140 = vpack.c.bf16 %v3096, %v3092
        %v3141 = vpack.c.bf16 %v3097, %v3093
        %v3142 = vpack.c.bf16 %v3098, %v3094
        %v3143 = vpack.c.bf16 %v3099, %v3095
        %v3144 = vpack.c.bf16 %v3104, %v3100
        %v3145 = vpack.c.bf16 %v3105, %v3101
        %v3146 = vpack.c.bf16 %v3106, %v3102
        %v3147 = vpack.c.bf16 %v3107, %v3103
        %v3148 = vpack.c.bf16 %v3112, %v3108
        %v3149 = vpack.c.bf16 %v3113, %v3109
        %v3150 = vpack.c.bf16 %v3114, %v3110
        %v3151 = vpack.c.bf16 %v3115, %v3111
        %v3152 = vpack.c.bf16 %v3120, %v3116
        %v3153 = vpack.c.bf16 %v3121, %v3117
        %v3154 = vpack.c.bf16 %v3122, %v3118
        %v3155 = vpack.c.bf16 %v3123, %v3119
        %v3220 = vunpack.c.l.b16 %v2227
        %v3221 = vunpack.c.l.b16 %v2228
        %v3222 = vunpack.c.l.b16 %v2229
        %v3223 = vunpack.c.l.b16 %v2230
        %v3224 = vunpack.c.l.b16 %v2231
        %v3225 = vunpack.c.l.b16 %v2232
        %v3226 = vunpack.c.l.b16 %v2233
        %v3227 = vunpack.c.l.b16 %v2234
        %v3228 = vunpack.c.l.b16 %v2235
        %v3229 = vunpack.c.l.b16 %v2236
        %v3230 = vunpack.c.l.b16 %v2237
        %v3231 = vunpack.c.l.b16 %v2238
        %v3232 = vunpack.c.l.b16 %v2239
        %v3233 = vunpack.c.l.b16 %v2240
        %v3234 = vunpack.c.l.b16 %v2241
        %v3235 = vunpack.c.l.b16 %v2242
        %v3236 = vunpack.c.l.b16 %v2243
        %v3237 = vunpack.c.l.b16 %v2244
        %v3238 = vunpack.c.l.b16 %v2245
        %v3239 = vunpack.c.l.b16 %v2246
        %v3240 = vunpack.c.l.b16 %v2247
        %v3241 = vunpack.c.l.b16 %v2248
        %v3242 = vunpack.c.l.b16 %v2249
        %v3243 = vunpack.c.l.b16 %v2250
        %v3244 = vunpack.c.l.b16 %v2251
        %v3245 = vunpack.c.l.b16 %v2252
        %v3246 = vunpack.c.l.b16 %v2253
        %v3247 = vunpack.c.l.b16 %v2254
        %v3248 = vunpack.c.l.b16 %v2255
        %v3249 = vunpack.c.l.b16 %v2256
        %v3250 = vunpack.c.l.b16 %v2257
        %v3251 = vunpack.c.l.b16 %v2258
        %v3252 = vunpack.c.l.b16 %v2259
        %v3253 = vunpack.c.l.b16 %v2260
        %v3254 = vunpack.c.l.b16 %v2261
        %v3255 = vunpack.c.l.b16 %v2262
        %v3256 = vunpack.c.l.b16 %v2263
        %v3257 = vunpack.c.l.b16 %v2264
        %v3258 = vunpack.c.l.b16 %v2265
        %v3259 = vunpack.c.l.b16 %v2266
        %v3260 = vunpack.c.l.b16 %v2267
        %v3261 = vunpack.c.l.b16 %v2268
        %v3262 = vunpack.c.l.b16 %v2269
        %v3263 = vunpack.c.l.b16 %v2270
        %v3264 = vunpack.c.l.b16 %v2271
        %v3265 = vunpack.c.l.b16 %v2272
        %v3266 = vunpack.c.l.b16 %v2273
        %v3267 = vunpack.c.l.b16 %v2274
        %v3268 = vunpack.c.l.b16 %v2275
        %v3269 = vunpack.c.l.b16 %v2276
        %v3270 = vunpack.c.l.b16 %v2277
        %v3271 = vunpack.c.l.b16 %v2278
        %v3272 = vunpack.c.l.b16 %v2279
        %v3273 = vunpack.c.l.b16 %v2280
        %v3274 = vunpack.c.l.b16 %v2281
        %v3275 = vunpack.c.l.b16 %v2282
        %v3276 = vunpack.c.l.b16 %v2283
        %v3277 = vunpack.c.l.b16 %v2284
        %v3278 = vunpack.c.l.b16 %v2285
        %v3279 = vunpack.c.l.b16 %v2286
        %v3280 = vunpack.c.l.b16 %v2287
        %v3281 = vunpack.c.l.b16 %v2288
        %v3282 = vunpack.c.l.b16 %v2289
        %v3283 = vunpack.c.l.b16 %v2290
        %v3284 = vpack.c.b16 %v3221, %v3220
        %v3285 = vpack.c.b16 %v3223, %v3222
        %v3286 = vpack.c.b16 %v3225, %v3224
        %v3287 = vpack.c.b16 %v3227, %v3226
        %v3288 = vpack.c.b16 %v3229, %v3228
        %v3289 = vpack.c.b16 %v3231, %v3230
        %v3290 = vpack.c.b16 %v3233, %v3232
        %v3291 = vpack.c.b16 %v3235, %v3234
        %v3292 = vpack.c.b16 %v3237, %v3236
        %v3293 = vpack.c.b16 %v3239, %v3238
        %v3294 = vpack.c.b16 %v3241, %v3240
        %v3295 = vpack.c.b16 %v3243, %v3242
        %v3296 = vpack.c.b16 %v3245, %v3244
        %v3297 = vpack.c.b16 %v3247, %v3246
        %v3298 = vpack.c.b16 %v3249, %v3248
        %v3299 = vpack.c.b16 %v3251, %v3250
        %v3300 = vpack.c.b16 %v3253, %v3252
        %v3301 = vpack.c.b16 %v3255, %v3254
        %v3302 = vpack.c.b16 %v3257, %v3256
        %v3303 = vpack.c.b16 %v3259, %v3258
        %v3304 = vpack.c.b16 %v3261, %v3260
        %v3305 = vpack.c.b16 %v3263, %v3262
        %v3306 = vpack.c.b16 %v3265, %v3264
        %v3307 = vpack.c.b16 %v3267, %v3266
        %v3308 = vpack.c.b16 %v3269, %v3268
        %v3309 = vpack.c.b16 %v3271, %v3270
        %v3310 = vpack.c.b16 %v3273, %v3272
        %v3311 = vpack.c.b16 %v3275, %v3274
        %v3312 = vpack.c.b16 %v3277, %v3276
        %v3313 = vpack.c.b16 %v3279, %v3278
        %v3314 = vpack.c.b16 %v3281, %v3280
        %v3315 = vpack.c.b16 %v3283, %v3282
        %3348 = vmatpush.bf16.msra.mxu0 %v3291
        %3349 = vmatpush.bf16.msra.mxu0 %v3290
        %3350 = vmatpush.bf16.msra.mxu0 %v3289
        %3351 = vmatpush.bf16.msra.mxu0 %v3288
        %3352 = vmatpush.bf16.msra.mxu0 %v3287
        %3353 = vmatpush.bf16.msra.mxu0 %v3286
        %3354 = vmatpush.bf16.msra.mxu0 %v3285
        %3355 = vmatpush.bf16.msra.mxu0 %v3284
        %3356 = vmatmul.bf16.gmra.mxu0 %v3124
        %v3357 = vpop.f32.mrf.mxu0
        %v3358 = vadd.f32 0.0, %v3357
        %v3359 = vpop.f32.mrf.mxu0
        %v3360 = vadd.f32 0.0, %v3359
        %3361 = vmatmul.bf16.gmra.mxu0 %v3128
        %v3362 = vpop.f32.mrf.mxu0
        %v3363 = vadd.f32 0.0, %v3362
        %v3364 = vpop.f32.mrf.mxu0
        %v3365 = vadd.f32 0.0, %v3364
        %3366 = vmatmul.bf16.gmra.mxu0 %v3132
        %v3367 = vpop.f32.mrf.mxu0
        %v3368 = vadd.f32 0.0, %v3367
        %v3369 = vpop.f32.mrf.mxu0
        %v3370 = vadd.f32 0.0, %v3369
        %3371 = vmatmul.bf16.gmra.mxu0 %v3136
        %v3372 = vpop.f32.mrf.mxu0
        %v3373 = vadd.f32 0.0, %v3372
        %v3374 = vpop.f32.mrf.mxu0
        %v3375 = vadd.f32 0.0, %v3374
        %3376 = vmatmul.bf16.gmra.mxu0 %v3140
        %v3377 = vpop.f32.mrf.mxu0
        %v3378 = vadd.f32 0.0, %v3377
        %v3379 = vpop.f32.mrf.mxu0
        %v3380 = vadd.f32 0.0, %v3379
        %3381 = vmatmul.bf16.gmra.mxu0 %v3144
        %v3382 = vpop.f32.mrf.mxu0
        %v3383 = vadd.f32 0.0, %v3382
        %v3384 = vpop.f32.mrf.mxu0
        %v3385 = vadd.f32 0.0, %v3384
        %3386 = vmatmul.bf16.gmra.mxu0 %v3148
        %v3387 = vpop.f32.mrf.mxu0
        %v3388 = vadd.f32 0.0, %v3387
        %v3389 = vpop.f32.mrf.mxu0
        %v3390 = vadd.f32 0.0, %v3389
        %3391 = vmatmul.bf16.gmra.mxu0 %v3152
        %v3392 = vpop.f32.mrf.mxu0
        %v3393 = vadd.f32 0.0, %v3392
        %v3394 = vpop.f32.mrf.mxu0
        %v3395 = vadd.f32 0.0, %v3394
        %3396 = vdwg.mxu0
        %3397 = vmatpush.bf16.msra.mxu0 %v3299
        %3398 = vmatpush.bf16.msra.mxu0 %v3298
        %3399 = vmatpush.bf16.msra.mxu0 %v3297
        %3400 = vmatpush.bf16.msra.mxu0 %v3296
        %3401 = vmatpush.bf16.msra.mxu0 %v3295
        %3402 = vmatpush.bf16.msra.mxu0 %v3294
        %3403 = vmatpush.bf16.msra.mxu0 %v3293
        %3404 = vmatpush.bf16.msra.mxu0 %v3292
        %3405 = vmatmul.bf16.gmra.mxu0 %v3125
        %v3406 = vpop.f32.mrf.mxu0
        %v3407 = vadd.f32 %v3358, %v3406
        %v3408 = vpop.f32.mrf.mxu0
        %v3409 = vadd.f32 %v3360, %v3408
        %3410 = vmatmul.bf16.gmra.mxu0 %v3129
        %v3411 = vpop.f32.mrf.mxu0
        %v3412 = vadd.f32 %v3363, %v3411
        %v3413 = vpop.f32.mrf.mxu0
        %v3414 = vadd.f32 %v3365, %v3413
        %3415 = vmatmul.bf16.gmra.mxu0 %v3133
        %v3416 = vpop.f32.mrf.mxu0
        %v3417 = vadd.f32 %v3368, %v3416
        %v3418 = vpop.f32.mrf.mxu0
        %v3419 = vadd.f32 %v3370, %v3418
        %3420 = vmatmul.bf16.gmra.mxu0 %v3137
        %v3421 = vpop.f32.mrf.mxu0
        %v3422 = vadd.f32 %v3373, %v3421
        %v3423 = vpop.f32.mrf.mxu0
        %v3424 = vadd.f32 %v3375, %v3423
        %3425 = vmatmul.bf16.gmra.mxu0 %v3141
        %v3426 = vpop.f32.mrf.mxu0
        %v3427 = vadd.f32 %v3378, %v3426
        %v3428 = vpop.f32.mrf.mxu0
        %v3429 = vadd.f32 %v3380, %v3428
        %3430 = vmatmul.bf16.gmra.mxu0 %v3145
        %v3431 = vpop.f32.mrf.mxu0
        %v3432 = vadd.f32 %v3383, %v3431
        %v3433 = vpop.f32.mrf.mxu0
        %v3434 = vadd.f32 %v3385, %v3433
        %3435 = vmatmul.bf16.gmra.mxu0 %v3149
        %v3436 = vpop.f32.mrf.mxu0
        %v3437 = vadd.f32 %v3388, %v3436
        %v3438 = vpop.f32.mrf.mxu0
        %v3439 = vadd.f32 %v3390, %v3438
        %3440 = vmatmul.bf16.gmra.mxu0 %v3153
        %v3441 = vpop.f32.mrf.mxu0
        %v3442 = vadd.f32 %v3393, %v3441
        %v3443 = vpop.f32.mrf.mxu0
        %v3444 = vadd.f32 %v3395, %v3443
        %3445 = vdwg.mxu0
        %3446 = vmatpush.bf16.msra.mxu0 %v3307
        %3447 = vmatpush.bf16.msra.mxu0 %v3306
        %3448 = vmatpush.bf16.msra.mxu0 %v3305
        %3449 = vmatpush.bf16.msra.mxu0 %v3304
        %3450 = vmatpush.bf16.msra.mxu0 %v3303
        %3451 = vmatpush.bf16.msra.mxu0 %v3302
        %3452 = vmatpush.bf16.msra.mxu0 %v3301
        %3453 = vmatpush.bf16.msra.mxu0 %v3300
        %3454 = vmatmul.bf16.gmra.mxu0 %v3126
        %v3455 = vpop.f32.mrf.mxu0
        %v3456 = vadd.f32 %v3407, %v3455
        %v3457 = vpop.f32.mrf.mxu0
        %v3458 = vadd.f32 %v3409, %v3457
        %3459 = vmatmul.bf16.gmra.mxu0 %v3130
        %v3460 = vpop.f32.mrf.mxu0
        %v3461 = vadd.f32 %v3412, %v3460
        %v3462 = vpop.f32.mrf.mxu0
        %v3463 = vadd.f32 %v3414, %v3462
        %3464 = vmatmul.bf16.gmra.mxu0 %v3134
        %v3465 = vpop.f32.mrf.mxu0
        %v3466 = vadd.f32 %v3417, %v3465
        %v3467 = vpop.f32.mrf.mxu0
        %v3468 = vadd.f32 %v3419, %v3467
        %3469 = vmatmul.bf16.gmra.mxu0 %v3138
        %v3470 = vpop.f32.mrf.mxu0
        %v3471 = vadd.f32 %v3422, %v3470
        %v3472 = vpop.f32.mrf.mxu0
        %v3473 = vadd.f32 %v3424, %v3472
        %3474 = vmatmul.bf16.gmra.mxu0 %v3142
        %v3475 = vpop.f32.mrf.mxu0
        %v3476 = vadd.f32 %v3427, %v3475
        %v3477 = vpop.f32.mrf.mxu0
        %v3478 = vadd.f32 %v3429, %v3477
        %3479 = vmatmul.bf16.gmra.mxu0 %v3146
        %v3480 = vpop.f32.mrf.mxu0
        %v3481 = vadd.f32 %v3432, %v3480
        %v3482 = vpop.f32.mrf.mxu0
        %v3483 = vadd.f32 %v3434, %v3482
        %3484 = vmatmul.bf16.gmra.mxu0 %v3150
        %v3485 = vpop.f32.mrf.mxu0
        %v3486 = vadd.f32 %v3437, %v3485
        %v3487 = vpop.f32.mrf.mxu0
        %v3488 = vadd.f32 %v3439, %v3487
        %3489 = vmatmul.bf16.gmra.mxu0 %v3154
        %v3490 = vpop.f32.mrf.mxu0
        %v3491 = vadd.f32 %v3442, %v3490
        %v3492 = vpop.f32.mrf.mxu0
        %v3493 = vadd.f32 %v3444, %v3492
        %3494 = vdwg.mxu0
        %3495 = vmatpush.bf16.msra.mxu0 %v3315
        %3496 = vmatpush.bf16.msra.mxu0 %v3314
        %3497 = vmatpush.bf16.msra.mxu0 %v3313
        %3498 = vmatpush.bf16.msra.mxu0 %v3312
        %3499 = vmatpush.bf16.msra.mxu0 %v3311
        %3500 = vmatpush.bf16.msra.mxu0 %v3310
        %3501 = vmatpush.bf16.msra.mxu0 %v3309
        %3502 = vmatpush.bf16.msra.mxu0 %v3308
        %3503 = vmatmul.bf16.gmra.mxu0 %v3127
        %v3504 = vpop.f32.mrf.mxu0
        %v3505 = vadd.f32 %v3456, %v3504
        %v3506 = vpop.f32.mrf.mxu0
        %v3507 = vadd.f32 %v3458, %v3506
        %3508 = vmatmul.bf16.gmra.mxu0 %v3131
        %v3509 = vpop.f32.mrf.mxu0
        %v3510 = vadd.f32 %v3461, %v3509
        %v3511 = vpop.f32.mrf.mxu0
        %v3512 = vadd.f32 %v3463, %v3511
        %3513 = vmatmul.bf16.gmra.mxu0 %v3135
        %v3514 = vpop.f32.mrf.mxu0
        %v3515 = vadd.f32 %v3466, %v3514
        %v3516 = vpop.f32.mrf.mxu0
        %v3517 = vadd.f32 %v3468, %v3516
        %3518 = vmatmul.bf16.gmra.mxu0 %v3139
        %v3519 = vpop.f32.mrf.mxu0
        %v3520 = vadd.f32 %v3471, %v3519
        %v3521 = vpop.f32.mrf.mxu0
        %v3522 = vadd.f32 %v3473, %v3521
        %3523 = vmatmul.bf16.gmra.mxu0 %v3143
        %v3524 = vpop.f32.mrf.mxu0
        %v3525 = vadd.f32 %v3476, %v3524
        %v3526 = vpop.f32.mrf.mxu0
        %v3527 = vadd.f32 %v3478, %v3526
        %3528 = vmatmul.bf16.gmra.mxu0 %v3147
        %v3529 = vpop.f32.mrf.mxu0
        %v3530 = vadd.f32 %v3481, %v3529
        %v3531 = vpop.f32.mrf.mxu0
        %v3532 = vadd.f32 %v3483, %v3531
        %3533 = vmatmul.bf16.gmra.mxu0 %v3151
        %v3534 = vpop.f32.mrf.mxu0
        %v3535 = vadd.f32 %v3486, %v3534
        %v3536 = vpop.f32.mrf.mxu0
        %v3537 = vadd.f32 %v3488, %v3536
        %3538 = vmatmul.bf16.gmra.mxu0 %v3155
        %v3539 = vpop.f32.mrf.mxu0
        %v3540 = vadd.f32 %v3491, %v3539
        %v3541 = vpop.f32.mrf.mxu0
        %v3542 = vadd.f32 %v3493, %v3541
        %3543 = vdwg.mxu0
        %v3544 = vmax.f32 %v3505, 0.0
        %v3545 = vmax.f32 %v3507, 0.0
        %v3546 = vmax.f32 %v3510, 0.0
        %v3547 = vmax.f32 %v3512, 0.0
        %v3548 = vmax.f32 %v3515, 0.0
        %v3549 = vmax.f32 %v3517, 0.0
        %v3550 = vmax.f32 %v3520, 0.0
        %v3551 = vmax.f32 %v3522, 0.0
        %v3552 = vmax.f32 %v3525, 0.0
        %v3553 = vmax.f32 %v3527, 0.0
        %v3554 = vmax.f32 %v3530, 0.0
        %v3555 = vmax.f32 %v3532, 0.0
        %v3556 = vmax.f32 %v3535, 0.0
        %v3557 = vmax.f32 %v3537, 0.0
        %v3558 = vmax.f32 %v3540, 0.0
        %v3559 = vmax.f32 %v3542, 0.0
        %v3560 = vpack.c.bf16 %v3545, %v3544
        %v3561 = vpack.c.bf16 %v3547, %v3546
        %v3562 = vpack.c.bf16 %v3549, %v3548
        %v3563 = vpack.c.bf16 %v3551, %v3550
        %v3564 = vpack.c.bf16 %v3553, %v3552
        %v3565 = vpack.c.bf16 %v3555, %v3554
        %v3566 = vpack.c.bf16 %v3557, %v3556
        %v3567 = vpack.c.bf16 %v3559, %v3558
        %v3600 = vunpack.c.l.b16 %v2291
        %v3601 = vunpack.c.h.b16 %v2291
        %v3602 = vunpack.c.l.b16 %v2292
        %v3603 = vunpack.c.h.b16 %v2292
        %v3604 = vunpack.c.l.b16 %v2293
        %v3605 = vunpack.c.h.b16 %v2293
        %v3606 = vunpack.c.l.b16 %v2294
        %v3607 = vunpack.c.h.b16 %v2294
        %v3608 = vunpack.c.l.b16 %v2295
        %v3609 = vunpack.c.h.b16 %v2295
        %v3610 = vunpack.c.l.b16 %v2296
        %v3611 = vunpack.c.h.b16 %v2296
        %v3612 = vunpack.c.l.b16 %v2297
        %v3613 = vunpack.c.h.b16 %v2297
        %v3614 = vunpack.c.l.b16 %v2298
        %v3615 = vunpack.c.h.b16 %v2298
        %v3616 = vunpack.c.l.b16 %v2299
        %v3617 = vunpack.c.h.b16 %v2299
        %v3618 = vunpack.c.l.b16 %v2300
        %v3619 = vunpack.c.h.b16 %v2300
        %v3620 = vunpack.c.l.b16 %v2301
        %v3621 = vunpack.c.h.b16 %v2301
        %v3622 = vunpack.c.l.b16 %v2302
        %v3623 = vunpack.c.h.b16 %v2302
        %v3624 = vunpack.c.l.b16 %v2303
        %v3625 = vunpack.c.h.b16 %v2303
        %v3626 = vunpack.c.l.b16 %v2304
        %v3627 = vunpack.c.h.b16 %v2304
        %v3628 = vunpack.c.l.b16 %v2305
        %v3629 = vunpack.c.h.b16 %v2305
        %v3630 = vunpack.c.l.b16 %v2306
        %v3631 = vunpack.c.h.b16 %v2306
        %v3632 = vunpack.c.l.b16 %v2307
        %v3633 = vunpack.c.h.b16 %v2307
        %v3634 = vunpack.c.l.b16 %v2308
        %v3635 = vunpack.c.h.b16 %v2308
        %v3636 = vunpack.c.l.b16 %v2309
        %v3637 = vunpack.c.h.b16 %v2309
        %v3638 = vunpack.c.l.b16 %v2310
        %v3639 = vunpack.c.h.b16 %v2310
        %v3640 = vunpack.c.l.b16 %v2311
        %v3641 = vunpack.c.h.b16 %v2311
        %v3642 = vunpack.c.l.b16 %v2312
        %v3643 = vunpack.c.h.b16 %v2312
        %v3644 = vunpack.c.l.b16 %v2313
        %v3645 = vunpack.c.h.b16 %v2313
        %v3646 = vunpack.c.l.b16 %v2314
        %v3647 = vunpack.c.h.b16 %v2314
        %v3648 = vunpack.c.l.b16 %v2315
        %v3649 = vunpack.c.h.b16 %v2315
        %v3650 = vunpack.c.l.b16 %v2316
        %v3651 = vunpack.c.h.b16 %v2316
        %v3652 = vunpack.c.l.b16 %v2317
        %v3653 = vunpack.c.h.b16 %v2317
        %v3654 = vunpack.c.l.b16 %v2318
        %v3655 = vunpack.c.h.b16 %v2318
        %v3656 = vunpack.c.l.b16 %v2319
        %v3657 = vunpack.c.h.b16 %v2319
        %v3658 = vunpack.c.l.b16 %v2320
        %v3659 = vunpack.c.h.b16 %v2320
        %v3660 = vunpack.c.l.b16 %v2321
        %v3661 = vunpack.c.h.b16 %v2321
        %v3662 = vunpack.c.l.b16 %v2322
        %v3663 = vunpack.c.h.b16 %v2322
        %v3664 = vpack.c.b16 %v3604, %v3600
        %v3665 = vpack.c.b16 %v3605, %v3601
        %v3666 = vpack.c.b16 %v3606, %v3602
        %v3667 = vpack.c.b16 %v3607, %v3603
        %v3668 = vpack.c.b16 %v3612, %v3608
        %v3669 = vpack.c.b16 %v3613, %v3609
        %v3670 = vpack.c.b16 %v3614, %v3610
        %v3671 = vpack.c.b16 %v3615, %v3611
        %v3672 = vpack.c.b16 %v3620, %v3616
        %v3673 = vpack.c.b16 %v3621, %v3617
        %v3674 = vpack.c.b16 %v3622, %v3618
        %v3675 = vpack.c.b16 %v3623, %v3619
        %v3676 = vpack.c.b16 %v3628, %v3624
        %v3677 = vpack.c.b16 %v3629, %v3625
        %v3678 = vpack.c.b16 %v3630, %v3626
        %v3679 = vpack.c.b16 %v3631, %v3627
        %v3680 = vpack.c.b16 %v3636, %v3632
        %v3681 = vpack.c.b16 %v3637, %v3633
        %v3682 = vpack.c.b16 %v3638, %v3634
        %v3683 = vpack.c.b16 %v3639, %v3635
        %v3684 = vpack.c.b16 %v3644, %v3640
        %v3685 = vpack.c.b16 %v3645, %v3641
        %v3686 = vpack.c.b16 %v3646, %v3642
        %v3687 = vpack.c.b16 %v3647, %v3643
        %v3688 = vpack.c.b16 %v3652, %v3648
        %v3689 = vpack.c.b16 %v3653, %v3649
        %v3690 = vpack.c.b16 %v3654, %v3650
        %v3691 = vpack.c.b16 %v3655, %v3651
        %v3692 = vpack.c.b16 %v3660, %v3656
        %v3693 = vpack.c.b16 %v3661, %v3657
        %v3694 = vpack.c.b16 %v3662, %v3658
        %v3695 = vpack.c.b16 %v3663, %v3659
        %3728 = vmatpush.bf16.msra.mxu0 %v3692
        %3729 = vmatpush.bf16.msra.mxu0 %v3688
        %3730 = vmatpush.bf16.msra.mxu0 %v3684
        %3731 = vmatpush.bf16.msra.mxu0 %v3680
        %3732 = vmatpush.bf16.msra.mxu0 %v3676
        %3733 = vmatpush.bf16.msra.mxu0 %v3672
        %3734 = vmatpush.bf16.msra.mxu0 %v3668
        %3735 = vmatpush.bf16.msra.mxu0 %v3664
        %3736 = vmatmul.bf16.gmra.mxu0 %v3560
        %v3737 = vpop.f32.mrf.mxu0
        %v3738 = vadd.f32 0.0, %v3737
        %v3739 = vpop.f32.mrf.mxu0
        %v3740 = vadd.f32 0.0, %v3739
        %3741 = vmatmul.bf16.gmra.mxu0 %v3561
        %v3742 = vpop.f32.mrf.mxu0
        %v3743 = vadd.f32 0.0, %v3742
        %v3744 = vpop.f32.mrf.mxu0
        %v3745 = vadd.f32 0.0, %v3744
        %3746 = vmatmul.bf16.gmra.mxu0 %v3562
        %v3747 = vpop.f32.mrf.mxu0
        %v3748 = vadd.f32 0.0, %v3747
        %v3749 = vpop.f32.mrf.mxu0
        %v3750 = vadd.f32 0.0, %v3749
        %3751 = vmatmul.bf16.gmra.mxu0 %v3563
        %v3752 = vpop.f32.mrf.mxu0
        %v3753 = vadd.f32 0.0, %v3752
        %v3754 = vpop.f32.mrf.mxu0
        %v3755 = vadd.f32 0.0, %v3754
        %3756 = vmatmul.bf16.gmra.mxu0 %v3564
        %v3757 = vpop.f32.mrf.mxu0
        %v3758 = vadd.f32 0.0, %v3757
        %v3759 = vpop.f32.mrf.mxu0
        %v3760 = vadd.f32 0.0, %v3759
        %3761 = vmatmul.bf16.gmra.mxu0 %v3565
        %v3762 = vpop.f32.mrf.mxu0
        %v3763 = vadd.f32 0.0, %v3762
        %v3764 = vpop.f32.mrf.mxu0
        %v3765 = vadd.f32 0.0, %v3764
        %3766 = vmatmul.bf16.gmra.mxu0 %v3566
        %v3767 = vpop.f32.mrf.mxu0
        %v3768 = vadd.f32 0.0, %v3767
        %v3769 = vpop.f32.mrf.mxu0
        %v3770 = vadd.f32 0.0, %v3769
        %3771 = vmatmul.bf16.gmra.mxu0 %v3567
        %v3772 = vpop.f32.mrf.mxu0
        %v3773 = vadd.f32 0.0, %v3772
        %v3774 = vpop.f32.mrf.mxu0
        %v3775 = vadd.f32 0.0, %v3774
        %3776 = vdwg.mxu0
        %3777 = vmatpush.bf16.msra.mxu0 %v3693
        %3778 = vmatpush.bf16.msra.mxu0 %v3689
        %3779 = vmatpush.bf16.msra.mxu0 %v3685
        %3780 = vmatpush.bf16.msra.mxu0 %v3681
        %3781 = vmatpush.bf16.msra.mxu0 %v3677
        %3782 = vmatpush.bf16.msra.mxu0 %v3673
        %3783 = vmatpush.bf16.msra.mxu0 %v3669
        %3784 = vmatpush.bf16.msra.mxu0 %v3665
        %3785 = vmatmul.bf16.gmra.mxu0 %v3560
        %v3786 = vpop.f32.mrf.mxu0
        %v3787 = vadd.f32 0.0, %v3786
        %v3788 = vpop.f32.mrf.mxu0
        %v3789 = vadd.f32 0.0, %v3788
        %3790 = vmatmul.bf16.gmra.mxu0 %v3561
        %v3791 = vpop.f32.mrf.mxu0
        %v3792 = vadd.f32 0.0, %v3791
        %v3793 = vpop.f32.mrf.mxu0
        %v3794 = vadd.f32 0.0, %v3793
        %3795 = vmatmul.bf16.gmra.mxu0 %v3562
        %v3796 = vpop.f32.mrf.mxu0
        %v3797 = vadd.f32 0.0, %v3796
        %v3798 = vpop.f32.mrf.mxu0
        %v3799 = vadd.f32 0.0, %v3798
        %3800 = vmatmul.bf16.gmra.mxu0 %v3563
        %v3801 = vpop.f32.mrf.mxu0
        %v3802 = vadd.f32 0.0, %v3801
        %v3803 = vpop.f32.mrf.mxu0
        %v3804 = vadd.f32 0.0, %v3803
        %3805 = vmatmul.bf16.gmra.mxu0 %v3564
        %v3806 = vpop.f32.mrf.mxu0
        %v3807 = vadd.f32 0.0, %v3806
        %v3808 = vpop.f32.mrf.mxu0
        %v3809 = vadd.f32 0.0, %v3808
        %3810 = vmatmul.bf16.gmra.mxu0 %v3565
        %v3811 = vpop.f32.mrf.mxu0
        %v3812 = vadd.f32 0.0, %v3811
        %v3813 = vpop.f32.mrf.mxu0
        %v3814 = vadd.f32 0.0, %v3813
        %3815 = vmatmul.bf16.gmra.mxu0 %v3566
        %v3816 = vpop.f32.mrf.mxu0
        %v3817 = vadd.f32 0.0, %v3816
        %v3818 = vpop.f32.mrf.mxu0
        %v3819 = vadd.f32 0.0, %v3818
        %3820 = vmatmul.bf16.gmra.mxu0 %v3567
        %v3821 = vpop.f32.mrf.mxu0
        %v3822 = vadd.f32 0.0, %v3821
        %v3823 = vpop.f32.mrf.mxu0
        %v3824 = vadd.f32 0.0, %v3823
        %3825 = vdwg.mxu0
        %3826 = vmatpush.bf16.msra.mxu0 %v3694
        %3827 = vmatpush.bf16.msra.mxu0 %v3690
        %3828 = vmatpush.bf16.msra.mxu0 %v3686
        %3829 = vmatpush.bf16.msra.mxu0 %v3682
        %3830 = vmatpush.bf16.msra.mxu0 %v3678
        %3831 = vmatpush.bf16.msra.mxu0 %v3674
        %3832 = vmatpush.bf16.msra.mxu0 %v3670
        %3833 = vmatpush.bf16.msra.mxu0 %v3666
        %3834 = vmatmul.bf16.gmra.mxu0 %v3560
        %v3835 = vpop.f32.mrf.mxu0
        %v3836 = vadd.f32 0.0, %v3835
        %v3837 = vpop.f32.mrf.mxu0
        %v3838 = vadd.f32 0.0, %v3837
        %3839 = vmatmul.bf16.gmra.mxu0 %v3561
        %v3840 = vpop.f32.mrf.mxu0
        %v3841 = vadd.f32 0.0, %v3840
        %v3842 = vpop.f32.mrf.mxu0
        %v3843 = vadd.f32 0.0, %v3842
        %3844 = vmatmul.bf16.gmra.mxu0 %v3562
        %v3845 = vpop.f32.mrf.mxu0
        %v3846 = vadd.f32 0.0, %v3845
        %v3847 = vpop.f32.mrf.mxu0
        %v3848 = vadd.f32 0.0, %v3847
        %3849 = vmatmul.bf16.gmra.mxu0 %v3563
        %v3850 = vpop.f32.mrf.mxu0
        %v3851 = vadd.f32 0.0, %v3850
        %v3852 = vpop.f32.mrf.mxu0
        %v3853 = vadd.f32 0.0, %v3852
        %3854 = vmatmul.bf16.gmra.mxu0 %v3564
        %v3855 = vpop.f32.mrf.mxu0
        %v3856 = vadd.f32 0.0, %v3855
        %v3857 = vpop.f32.mrf.mxu0
        %v3858 = vadd.f32 0.0, %v3857
        %3859 = vmatmul.bf16.gmra.mxu0 %v3565
        %v3860 = vpop.f32.mrf.mxu0
        %v3861 = vadd.f32 0.0, %v3860
        %v3862 = vpop.f32.mrf.mxu0
        %v3863 = vadd.f32 0.0, %v3862
        %3864 = vmatmul.bf16.gmra.mxu0 %v3566
        %v3865 = vpop.f32.mrf.mxu0
        %v3866 = vadd.f32 0.0, %v3865
        %v3867 = vpop.f32.mrf.mxu0
        %v3868 = vadd.f32 0.0, %v3867
        %3869 = vmatmul.bf16.gmra.mxu0 %v3567
        %v3870 = vpop.f32.mrf.mxu0
        %v3871 = vadd.f32 0.0, %v3870
        %v3872 = vpop.f32.mrf.mxu0
        %v3873 = vadd.f32 0.0, %v3872
        %3874 = vdwg.mxu0
        %3875 = vmatpush.bf16.msra.mxu0 %v3695
        %3876 = vmatpush.bf16.msra.mxu0 %v3691
        %3877 = vmatpush.bf16.msra.mxu0 %v3687
        %3878 = vmatpush.bf16.msra.mxu0 %v3683
        %3879 = vmatpush.bf16.msra.mxu0 %v3679
        %3880 = vmatpush.bf16.msra.mxu0 %v3675
        %3881 = vmatpush.bf16.msra.mxu0 %v3671
        %3882 = vmatpush.bf16.msra.mxu0 %v3667
        %3883 = vmatmul.bf16.gmra.mxu0 %v3560
        %v3884 = vpop.f32.mrf.mxu0
        %v3885 = vadd.f32 0.0, %v3884
        %v3886 = vpop.f32.mrf.mxu0
        %v3887 = vadd.f32 0.0, %v3886
        %3888 = vmatmul.bf16.gmra.mxu0 %v3561
        %v3889 = vpop.f32.mrf.mxu0
        %v3890 = vadd.f32 0.0, %v3889
        %v3891 = vpop.f32.mrf.mxu0
        %v3892 = vadd.f32 0.0, %v3891
        %3893 = vmatmul.bf16.gmra.mxu0 %v3562
        %v3894 = vpop.f32.mrf.mxu0
        %v3895 = vadd.f32 0.0, %v3894
        %v3896 = vpop.f32.mrf.mxu0
        %v3897 = vadd.f32 0.0, %v3896
        %3898 = vmatmul.bf16.gmra.mxu0 %v3563
        %v3899 = vpop.f32.mrf.mxu0
        %v3900 = vadd.f32 0.0, %v3899
        %v3901 = vpop.f32.mrf.mxu0
        %v3902 = vadd.f32 0.0, %v3901
        %3903 = vmatmul.bf16.gmra.mxu0 %v3564
        %v3904 = vpop.f32.mrf.mxu0
        %v3905 = vadd.f32 0.0, %v3904
        %v3906 = vpop.f32.mrf.mxu0
        %v3907 = vadd.f32 0.0, %v3906
        %3908 = vmatmul.bf16.gmra.mxu0 %v3565
        %v3909 = vpop.f32.mrf.mxu0
        %v3910 = vadd.f32 0.0, %v3909
        %v3911 = vpop.f32.mrf.mxu0
        %v3912 = vadd.f32 0.0, %v3911
        %3913 = vmatmul.bf16.gmra.mxu0 %v3566
        %v3914 = vpop.f32.mrf.mxu0
        %v3915 = vadd.f32 0.0, %v3914
        %v3916 = vpop.f32.mrf.mxu0
        %v3917 = vadd.f32 0.0, %v3916
        %3918 = vmatmul.bf16.gmra.mxu0 %v3567
        %v3919 = vpop.f32.mrf.mxu0
        %v3920 = vadd.f32 0.0, %v3919
        %v3921 = vpop.f32.mrf.mxu0
        %v3922 = vadd.f32 0.0, %v3921
        %3923 = vdwg.mxu0
        %v3924 = vxor.u32 %v3738, 2147483648
        %v3925 = vxor.u32 %v3787, 2147483648
        %v3926 = vxor.u32 %v3836, 2147483648
        %v3927 = vxor.u32 %v3885, 2147483648
        %v3928 = vxor.u32 %v3740, 2147483648
        %v3929 = vxor.u32 %v3789, 2147483648
        %v3930 = vxor.u32 %v3838, 2147483648
        %v3931 = vxor.u32 %v3887, 2147483648
        %v3932 = vxor.u32 %v3743, 2147483648
        %v3933 = vxor.u32 %v3792, 2147483648
        %v3934 = vxor.u32 %v3841, 2147483648
        %v3935 = vxor.u32 %v3890, 2147483648
        %v3936 = vxor.u32 %v3745, 2147483648
        %v3937 = vxor.u32 %v3794, 2147483648
        %v3938 = vxor.u32 %v3843, 2147483648
        %v3939 = vxor.u32 %v3892, 2147483648
        %v3940 = vxor.u32 %v3748, 2147483648
        %v3941 = vxor.u32 %v3797, 2147483648
        %v3942 = vxor.u32 %v3846, 2147483648
        %v3943 = vxor.u32 %v3895, 2147483648
        %v3944 = vxor.u32 %v3750, 2147483648
        %v3945 = vxor.u32 %v3799, 2147483648
        %v3946 = vxor.u32 %v3848, 2147483648
        %v3947 = vxor.u32 %v3897, 2147483648
        %v3948 = vxor.u32 %v3753, 2147483648
        %v3949 = vxor.u32 %v3802, 2147483648
        %v3950 = vxor.u32 %v3851, 2147483648
        %v3951 = vxor.u32 %v3900, 2147483648
        %v3952 = vxor.u32 %v3755, 2147483648
        %v3953 = vxor.u32 %v3804, 2147483648
        %v3954 = vxor.u32 %v3853, 2147483648
        %v3955 = vxor.u32 %v3902, 2147483648
        %v3956 = vxor.u32 %v3758, 2147483648
        %v3957 = vxor.u32 %v3807, 2147483648
        %v3958 = vxor.u32 %v3856, 2147483648
        %v3959 = vxor.u32 %v3905, 2147483648
        %v3960 = vxor.u32 %v3760, 2147483648
        %v3961 = vxor.u32 %v3809, 2147483648
        %v3962 = vxor.u32 %v3858, 2147483648
        %v3963 = vxor.u32 %v3907, 2147483648
        %v3964 = vxor.u32 %v3763, 2147483648
        %v3965 = vxor.u32 %v3812, 2147483648
        %v3966 = vxor.u32 %v3861, 2147483648
        %v3967 = vxor.u32 %v3910, 2147483648
        %v3968 = vxor.u32 %v3765, 2147483648
        %v3969 = vxor.u32 %v3814, 2147483648
        %v3970 = vxor.u32 %v3863, 2147483648
        %v3971 = vxor.u32 %v3912, 2147483648
        %v3972 = vxor.u32 %v3768, 2147483648
        %v3973 = vxor.u32 %v3817, 2147483648
        %v3974 = vxor.u32 %v3866, 2147483648
        %v3975 = vxor.u32 %v3915, 2147483648
        %v3976 = vxor.u32 %v3770, 2147483648
        %v3977 = vxor.u32 %v3819, 2147483648
        %v3978 = vxor.u32 %v3868, 2147483648
        %v3979 = vxor.u32 %v3917, 2147483648
        %v3980 = vxor.u32 %v3773, 2147483648
        %v3981 = vxor.u32 %v3822, 2147483648
        %v3982 = vxor.u32 %v3871, 2147483648
        %v3983 = vxor.u32 %v3920, 2147483648
        %v3984 = vxor.u32 %v3775, 2147483648
        %v3985 = vxor.u32 %v3824, 2147483648
        %v3986 = vxor.u32 %v3873, 2147483648
        %v3987 = vxor.u32 %v3922, 2147483648
        %v3988 = vmul.f32 %v3924, 1.442695
        %v3989 = vpow.pop %v3988
        %v3990 = vmul.f32 %v3925, 1.442695
        %v3991 = vpow.pop %v3990
        %v3992 = vmul.f32 %v3926, 1.442695
        %v3993 = vpow.pop %v3992
        %v3994 = vmul.f32 %v3927, 1.442695
        %v3995 = vpow.pop %v3994
        %v3996 = vmul.f32 %v3928, 1.442695
        %v3997 = vpow.pop %v3996
        %v3998 = vmul.f32 %v3929, 1.442695
        %v3999 = vpow.pop %v3998
        %v4000 = vmul.f32 %v3930, 1.442695
        %v4001 = vpow.pop %v4000
        %v4002 = vmul.f32 %v3931, 1.442695
        %v4003 = vpow.pop %v4002
        %v4004 = vmul.f32 %v3932, 1.442695
        %v4005 = vpow.pop %v4004
        %v4006 = vmul.f32 %v3933, 1.442695
        %v4007 = vpow.pop %v4006
        %v4008 = vmul.f32 %v3934, 1.442695
        %v4009 = vpow.pop %v4008
        %v4010 = vmul.f32 %v3935, 1.442695
        %v4011 = vpow.pop %v4010
        %v4012 = vmul.f32 %v3936, 1.442695
        %v4013 = vpow.pop %v4012
        %v4014 = vmul.f32 %v3937, 1.442695
        %v4015 = vpow.pop %v4014
        %v4016 = vmul.f32 %v3938, 1.442695
        %v4017 = vpow.pop %v4016
        %v4018 = vmul.f32 %v3939, 1.442695
        %v4019 = vpow.pop %v4018
        %v4020 = vmul.f32 %v3940, 1.442695
        %v4021 = vpow.pop %v4020
        %v4022 = vmul.f32 %v3941, 1.442695
        %v4023 = vpow.pop %v4022
        %v4024 = vmul.f32 %v3942, 1.442695
        %v4025 = vpow.pop %v4024
        %v4026 = vmul.f32 %v3943, 1.442695
        %v4027 = vpow.pop %v4026
        %v4028 = vmul.f32 %v3944, 1.442695
        %v4029 = vpow.pop %v4028
        %v4030 = vmul.f32 %v3945, 1.442695
        %v4031 = vpow.pop %v4030
        %v4032 = vmul.f32 %v3946, 1.442695
        %v4033 = vpow.pop %v4032
        %v4034 = vmul.f32 %v3947, 1.442695
        %v4035 = vpow.pop %v4034
        %v4036 = vmul.f32 %v3948, 1.442695
        %v4037 = vpow.pop %v4036
        %v4038 = vmul.f32 %v3949, 1.442695
        %v4039 = vpow.pop %v4038
        %v4040 = vmul.f32 %v3950, 1.442695
        %v4041 = vpow.pop %v4040
        %v4042 = vmul.f32 %v3951, 1.442695
        %v4043 = vpow.pop %v4042
        %v4044 = vmul.f32 %v3952, 1.442695
        %v4045 = vpow.pop %v4044
        %v4046 = vmul.f32 %v3953, 1.442695
        %v4047 = vpow.pop %v4046
        %v4048 = vmul.f32 %v3954, 1.442695
        %v4049 = vpow.pop %v4048
        %v4050 = vmul.f32 %v3955, 1.442695
        %v4051 = vpow.pop %v4050
        %v4052 = vmul.f32 %v3956, 1.442695
        %v4053 = vpow.pop %v4052
        %v4054 = vmul.f32 %v3957, 1.442695
        %v4055 = vpow.pop %v4054
        %v4056 = vmul.f32 %v3958, 1.442695
        %v4057 = vpow.pop %v4056
        %v4058 = vmul.f32 %v3959, 1.442695
        %v4059 = vpow.pop %v4058
        %v4060 = vmul.f32 %v3960, 1.442695
        %v4061 = vpow.pop %v4060
        %v4062 = vmul.f32 %v3961, 1.442695
        %v4063 = vpow.pop %v4062
        %v4064 = vmul.f32 %v3962, 1.442695
        %v4065 = vpow.pop %v4064
        %v4066 = vmul.f32 %v3963, 1.442695
        %v4067 = vpow.pop %v4066
        %v4068 = vmul.f32 %v3964, 1.442695
        %v4069 = vpow.pop %v4068
        %v4070 = vmul.f32 %v3965, 1.442695
        %v4071 = vpow.pop %v4070
        %v4072 = vmul.f32 %v3966, 1.442695
        %v4073 = vpow.pop %v4072
        %v4074 = vmul.f32 %v3967, 1.442695
        %v4075 = vpow.pop %v4074
        %v4076 = vmul.f32 %v3968, 1.442695
        %v4077 = vpow.pop %v4076
        %v4078 = vmul.f32 %v3969, 1.442695
        %v4079 = vpow.pop %v4078
        %v4080 = vmul.f32 %v3970, 1.442695
        %v4081 = vpow.pop %v4080
        %v4082 = vmul.f32 %v3971, 1.442695
        %v4083 = vpow.pop %v4082
        %v4084 = vmul.f32 %v3972, 1.442695
        %v4085 = vpow.pop %v4084
        %v4086 = vmul.f32 %v3973, 1.442695
        %v4087 = vpow.pop %v4086
        %v4088 = vmul.f32 %v3974, 1.442695
        %v4089 = vpow.pop %v4088
        %v4090 = vmul.f32 %v3975, 1.442695
        %v4091 = vpow.pop %v4090
        %v4092 = vmul.f32 %v3976, 1.442695
        %v4093 = vpow.pop %v4092
        %v4094 = vmul.f32 %v3977, 1.442695
        %v4095 = vpow.pop %v4094
        %v4096 = vmul.f32 %v3978, 1.442695
        %v4097 = vpow.pop %v4096
        %v4098 = vmul.f32 %v3979, 1.442695
        %v4099 = vpow.pop %v4098
        %v4100 = vmul.f32 %v3980, 1.442695
        %v4101 = vpow.pop %v4100
        %v4102 = vmul.f32 %v3981, 1.442695
        %v4103 = vpow.pop %v4102
        %v4104 = vmul.f32 %v3982, 1.442695
        %v4105 = vpow.pop %v4104
        %v4106 = vmul.f32 %v3983, 1.442695
        %v4107 = vpow.pop %v4106
        %v4108 = vmul.f32 %v3984, 1.442695
        %v4109 = vpow.pop %v4108
        %v4110 = vmul.f32 %v3985, 1.442695
        %v4111 = vpow.pop %v4110
        %v4112 = vmul.f32 %v3986, 1.442695
        %v4113 = vpow.pop %v4112
        %v4114 = vmul.f32 %v3987, 1.442695
        %v4115 = vpow.pop %v4114
        %v4116 = vadd.f32 %v3989, 1.0
        %v4117 = vadd.f32 %v3991, 1.0
        %v4118 = vadd.f32 %v3993, 1.0
        %v4119 = vadd.f32 %v3995, 1.0
        %v4120 = vadd.f32 %v3997, 1.0
        %v4121 = vadd.f32 %v3999, 1.0
        %v4122 = vadd.f32 %v4001, 1.0
        %v4123 = vadd.f32 %v4003, 1.0
        %v4124 = vadd.f32 %v4005, 1.0
        %v4125 = vadd.f32 %v4007, 1.0
        %v4126 = vadd.f32 %v4009, 1.0
        %v4127 = vadd.f32 %v4011, 1.0
        %v4128 = vadd.f32 %v4013, 1.0
        %v4129 = vadd.f32 %v4015, 1.0
        %v4130 = vadd.f32 %v4017, 1.0
        %v4131 = vadd.f32 %v4019, 1.0
        %v4132 = vadd.f32 %v4021, 1.0
        %v4133 = vadd.f32 %v4023, 1.0
        %v4134 = vadd.f32 %v4025, 1.0
        %v4135 = vadd.f32 %v4027, 1.0
        %v4136 = vadd.f32 %v4029, 1.0
        %v4137 = vadd.f32 %v4031, 1.0
        %v4138 = vadd.f32 %v4033, 1.0
        %v4139 = vadd.f32 %v4035, 1.0
        %v4140 = vadd.f32 %v4037, 1.0
        %v4141 = vadd.f32 %v4039, 1.0
        %v4142 = vadd.f32 %v4041, 1.0
        %v4143 = vadd.f32 %v4043, 1.0
        %v4144 = vadd.f32 %v4045, 1.0
        %v4145 = vadd.f32 %v4047, 1.0
        %v4146 = vadd.f32 %v4049, 1.0
        %v4147 = vadd.f32 %v4051, 1.0
        %v4148 = vadd.f32 %v4053, 1.0
        %v4149 = vadd.f32 %v4055, 1.0
        %v4150 = vadd.f32 %v4057, 1.0
        %v4151 = vadd.f32 %v4059, 1.0
        %v4152 = vadd.f32 %v4061, 1.0
        %v4153 = vadd.f32 %v4063, 1.0
        %v4154 = vadd.f32 %v4065, 1.0
        %v4155 = vadd.f32 %v4067, 1.0
        %v4156 = vadd.f32 %v4069, 1.0
        %v4157 = vadd.f32 %v4071, 1.0
        %v4158 = vadd.f32 %v4073, 1.0
        %v4159 = vadd.f32 %v4075, 1.0
        %v4160 = vadd.f32 %v4077, 1.0
        %v4161 = vadd.f32 %v4079, 1.0
        %v4162 = vadd.f32 %v4081, 1.0
        %v4163 = vadd.f32 %v4083, 1.0
        %v4164 = vadd.f32 %v4085, 1.0
        %v4165 = vadd.f32 %v4087, 1.0
        %v4166 = vadd.f32 %v4089, 1.0
        %v4167 = vadd.f32 %v4091, 1.0
        %v4168 = vadd.f32 %v4093, 1.0
        %v4169 = vadd.f32 %v4095, 1.0
        %v4170 = vadd.f32 %v4097, 1.0
        %v4171 = vadd.f32 %v4099, 1.0
        %v4172 = vadd.f32 %v4101, 1.0
        %v4173 = vadd.f32 %v4103, 1.0
        %v4174 = vadd.f32 %v4105, 1.0
        %v4175 = vadd.f32 %v4107, 1.0
        %v4176 = vadd.f32 %v4109, 1.0
        %v4177 = vadd.f32 %v4111, 1.0
        %v4178 = vadd.f32 %v4113, 1.0
        %v4179 = vadd.f32 %v4115, 1.0
        %v4180 = vrcp.pop %v4116
        %v4181 = vmul.f32 %v4116, %v4180
        %v4182 = vsub.f32 1.0, %v4181
        %v4183 = vmul.f32 %v4180, %v4182
        %v4184 = vadd.f32 %v4180, %v4183
        %vm4185 = vweird.f32 %v4116
        %vm4186 = vweird.f32 %v4180
        %vm4187 = vmor %vm4185, %vm4186
        %v4188 = vsel %vm4187, %v4180, %v4184
        %v4189 = vand.u32 2147483647, %v4116
        %vm4190 = vcmp.eq.f32.partialorder %v4189, 8.507059e+37
        %v4191 = vand.u32 %v4116, 2147483648
        %v4192 = vor.u32 1.1754944e-38, %v4191
        %v4193 = vsel %vm4190, %v4192, %v4188
        %v4194 = vmul.f32 1.0, %v4193
        %v4195 = vrcp.pop %v4117
        %v4196 = vmul.f32 %v4117, %v4195
        %v4197 = vsub.f32 1.0, %v4196
        %v4198 = vmul.f32 %v4195, %v4197
        %v4199 = vadd.f32 %v4195, %v4198
        %vm4200 = vweird.f32 %v4117
        %vm4201 = vweird.f32 %v4195
        %vm4202 = vmor %vm4200, %vm4201
        %v4203 = vsel %vm4202, %v4195, %v4199
        %v4204 = vand.u32 2147483647, %v4117
        %vm4205 = vcmp.eq.f32.partialorder %v4204, 8.507059e+37
        %v4206 = vand.u32 %v4117, 2147483648
        %v4207 = vor.u32 1.1754944e-38, %v4206
        %v4208 = vsel %vm4205, %v4207, %v4203
        %v4209 = vmul.f32 1.0, %v4208
        %v4210 = vrcp.pop %v4118
        %v4211 = vmul.f32 %v4118, %v4210
        %v4212 = vsub.f32 1.0, %v4211
        %v4213 = vmul.f32 %v4210, %v4212
        %v4214 = vadd.f32 %v4210, %v4213
        %vm4215 = vweird.f32 %v4118
        %vm4216 = vweird.f32 %v4210
        %vm4217 = vmor %vm4215, %vm4216
        %v4218 = vsel %vm4217, %v4210, %v4214
        %v4219 = vand.u32 2147483647, %v4118
        %vm4220 = vcmp.eq.f32.partialorder %v4219, 8.507059e+37
        %v4221 = vand.u32 %v4118, 2147483648
        %v4222 = vor.u32 1.1754944e-38, %v4221
        %v4223 = vsel %vm4220, %v4222, %v4218
        %v4224 = vmul.f32 1.0, %v4223
        %v4225 = vrcp.pop %v4119
        %v4226 = vmul.f32 %v4119, %v4225
        %v4227 = vsub.f32 1.0, %v4226
        %v4228 = vmul.f32 %v4225, %v4227
        %v4229 = vadd.f32 %v4225, %v4228
        %vm4230 = vweird.f32 %v4119
        %vm4231 = vweird.f32 %v4225
        %vm4232 = vmor %vm4230, %vm4231
        %v4233 = vsel %vm4232, %v4225, %v4229
        %v4234 = vand.u32 2147483647, %v4119
        %vm4235 = vcmp.eq.f32.partialorder %v4234, 8.507059e+37
        %v4236 = vand.u32 %v4119, 2147483648
        %v4237 = vor.u32 1.1754944e-38, %v4236
        %v4238 = vsel %vm4235, %v4237, %v4233
        %v4239 = vmul.f32 1.0, %v4238
        %v4240 = vrcp.pop %v4120
        %v4241 = vmul.f32 %v4120, %v4240
        %v4242 = vsub.f32 1.0, %v4241
        %v4243 = vmul.f32 %v4240, %v4242
        %v4244 = vadd.f32 %v4240, %v4243
        %vm4245 = vweird.f32 %v4120
        %vm4246 = vweird.f32 %v4240
        %vm4247 = vmor %vm4245, %vm4246
        %v4248 = vsel %vm4247, %v4240, %v4244
        %v4249 = vand.u32 2147483647, %v4120
        %vm4250 = vcmp.eq.f32.partialorder %v4249, 8.507059e+37
        %v4251 = vand.u32 %v4120, 2147483648
        %v4252 = vor.u32 1.1754944e-38, %v4251
        %v4253 = vsel %vm4250, %v4252, %v4248
        %v4254 = vmul.f32 1.0, %v4253
        %v4255 = vrcp.pop %v4121
        %v4256 = vmul.f32 %v4121, %v4255
        %v4257 = vsub.f32 1.0, %v4256
        %v4258 = vmul.f32 %v4255, %v4257
        %v4259 = vadd.f32 %v4255, %v4258
        %vm4260 = vweird.f32 %v4121
        %vm4261 = vweird.f32 %v4255
        %vm4262 = vmor %vm4260, %vm4261
        %v4263 = vsel %vm4262, %v4255, %v4259
        %v4264 = vand.u32 2147483647, %v4121
        %vm4265 = vcmp.eq.f32.partialorder %v4264, 8.507059e+37
        %v4266 = vand.u32 %v4121, 2147483648
        %v4267 = vor.u32 1.1754944e-38, %v4266
        %v4268 = vsel %vm4265, %v4267, %v4263
        %v4269 = vmul.f32 1.0, %v4268
        %v4270 = vrcp.pop %v4122
        %v4271 = vmul.f32 %v4122, %v4270
        %v4272 = vsub.f32 1.0, %v4271
        %v4273 = vmul.f32 %v4270, %v4272
        %v4274 = vadd.f32 %v4270, %v4273
        %vm4275 = vweird.f32 %v4122
        %vm4276 = vweird.f32 %v4270
        %vm4277 = vmor %vm4275, %vm4276
        %v4278 = vsel %vm4277, %v4270, %v4274
        %v4279 = vand.u32 2147483647, %v4122
        %vm4280 = vcmp.eq.f32.partialorder %v4279, 8.507059e+37
        %v4281 = vand.u32 %v4122, 2147483648
        %v4282 = vor.u32 1.1754944e-38, %v4281
        %v4283 = vsel %vm4280, %v4282, %v4278
        %v4284 = vmul.f32 1.0, %v4283
        %v4285 = vrcp.pop %v4123
        %v4286 = vmul.f32 %v4123, %v4285
        %v4287 = vsub.f32 1.0, %v4286
        %v4288 = vmul.f32 %v4285, %v4287
        %v4289 = vadd.f32 %v4285, %v4288
        %vm4290 = vweird.f32 %v4123
        %vm4291 = vweird.f32 %v4285
        %vm4292 = vmor %vm4290, %vm4291
        %v4293 = vsel %vm4292, %v4285, %v4289
        %v4294 = vand.u32 2147483647, %v4123
        %vm4295 = vcmp.eq.f32.partialorder %v4294, 8.507059e+37
        %v4296 = vand.u32 %v4123, 2147483648
        %v4297 = vor.u32 1.1754944e-38, %v4296
        %v4298 = vsel %vm4295, %v4297, %v4293
        %v4299 = vmul.f32 1.0, %v4298
        %v4300 = vrcp.pop %v4124
        %v4301 = vmul.f32 %v4124, %v4300
        %v4302 = vsub.f32 1.0, %v4301
        %v4303 = vmul.f32 %v4300, %v4302
        %v4304 = vadd.f32 %v4300, %v4303
        %vm4305 = vweird.f32 %v4124
        %vm4306 = vweird.f32 %v4300
        %vm4307 = vmor %vm4305, %vm4306
        %v4308 = vsel %vm4307, %v4300, %v4304
        %v4309 = vand.u32 2147483647, %v4124
        %vm4310 = vcmp.eq.f32.partialorder %v4309, 8.507059e+37
        %v4311 = vand.u32 %v4124, 2147483648
        %v4312 = vor.u32 1.1754944e-38, %v4311
        %v4313 = vsel %vm4310, %v4312, %v4308
        %v4314 = vmul.f32 1.0, %v4313
        %v4315 = vrcp.pop %v4125
        %v4316 = vmul.f32 %v4125, %v4315
        %v4317 = vsub.f32 1.0, %v4316
        %v4318 = vmul.f32 %v4315, %v4317
        %v4319 = vadd.f32 %v4315, %v4318
        %vm4320 = vweird.f32 %v4125
        %vm4321 = vweird.f32 %v4315
        %vm4322 = vmor %vm4320, %vm4321
        %v4323 = vsel %vm4322, %v4315, %v4319
        %v4324 = vand.u32 2147483647, %v4125
        %vm4325 = vcmp.eq.f32.partialorder %v4324, 8.507059e+37
        %v4326 = vand.u32 %v4125, 2147483648
        %v4327 = vor.u32 1.1754944e-38, %v4326
        %v4328 = vsel %vm4325, %v4327, %v4323
        %v4329 = vmul.f32 1.0, %v4328
        %v4330 = vrcp.pop %v4126
        %v4331 = vmul.f32 %v4126, %v4330
        %v4332 = vsub.f32 1.0, %v4331
        %v4333 = vmul.f32 %v4330, %v4332
        %v4334 = vadd.f32 %v4330, %v4333
        %vm4335 = vweird.f32 %v4126
        %vm4336 = vweird.f32 %v4330
        %vm4337 = vmor %vm4335, %vm4336
        %v4338 = vsel %vm4337, %v4330, %v4334
        %v4339 = vand.u32 2147483647, %v4126
        %vm4340 = vcmp.eq.f32.partialorder %v4339, 8.507059e+37
        %v4341 = vand.u32 %v4126, 2147483648
        %v4342 = vor.u32 1.1754944e-38, %v4341
        %v4343 = vsel %vm4340, %v4342, %v4338
        %v4344 = vmul.f32 1.0, %v4343
        %v4345 = vrcp.pop %v4127
        %v4346 = vmul.f32 %v4127, %v4345
        %v4347 = vsub.f32 1.0, %v4346
        %v4348 = vmul.f32 %v4345, %v4347
        %v4349 = vadd.f32 %v4345, %v4348
        %vm4350 = vweird.f32 %v4127
        %vm4351 = vweird.f32 %v4345
        %vm4352 = vmor %vm4350, %vm4351
        %v4353 = vsel %vm4352, %v4345, %v4349
        %v4354 = vand.u32 2147483647, %v4127
        %vm4355 = vcmp.eq.f32.partialorder %v4354, 8.507059e+37
        %v4356 = vand.u32 %v4127, 2147483648
        %v4357 = vor.u32 1.1754944e-38, %v4356
        %v4358 = vsel %vm4355, %v4357, %v4353
        %v4359 = vmul.f32 1.0, %v4358
        %v4360 = vrcp.pop %v4128
        %v4361 = vmul.f32 %v4128, %v4360
        %v4362 = vsub.f32 1.0, %v4361
        %v4363 = vmul.f32 %v4360, %v4362
        %v4364 = vadd.f32 %v4360, %v4363
        %vm4365 = vweird.f32 %v4128
        %vm4366 = vweird.f32 %v4360
        %vm4367 = vmor %vm4365, %vm4366
        %v4368 = vsel %vm4367, %v4360, %v4364
        %v4369 = vand.u32 2147483647, %v4128
        %vm4370 = vcmp.eq.f32.partialorder %v4369, 8.507059e+37
        %v4371 = vand.u32 %v4128, 2147483648
        %v4372 = vor.u32 1.1754944e-38, %v4371
        %v4373 = vsel %vm4370, %v4372, %v4368
        %v4374 = vmul.f32 1.0, %v4373
        %v4375 = vrcp.pop %v4129
        %v4376 = vmul.f32 %v4129, %v4375
        %v4377 = vsub.f32 1.0, %v4376
        %v4378 = vmul.f32 %v4375, %v4377
        %v4379 = vadd.f32 %v4375, %v4378
        %vm4380 = vweird.f32 %v4129
        %vm4381 = vweird.f32 %v4375
        %vm4382 = vmor %vm4380, %vm4381
        %v4383 = vsel %vm4382, %v4375, %v4379
        %v4384 = vand.u32 2147483647, %v4129
        %vm4385 = vcmp.eq.f32.partialorder %v4384, 8.507059e+37
        %v4386 = vand.u32 %v4129, 2147483648
        %v4387 = vor.u32 1.1754944e-38, %v4386
        %v4388 = vsel %vm4385, %v4387, %v4383
        %v4389 = vmul.f32 1.0, %v4388
        %v4390 = vrcp.pop %v4130
        %v4391 = vmul.f32 %v4130, %v4390
        %v4392 = vsub.f32 1.0, %v4391
        %v4393 = vmul.f32 %v4390, %v4392
        %v4394 = vadd.f32 %v4390, %v4393
        %vm4395 = vweird.f32 %v4130
        %vm4396 = vweird.f32 %v4390
        %vm4397 = vmor %vm4395, %vm4396
        %v4398 = vsel %vm4397, %v4390, %v4394
        %v4399 = vand.u32 2147483647, %v4130
        %vm4400 = vcmp.eq.f32.partialorder %v4399, 8.507059e+37
        %v4401 = vand.u32 %v4130, 2147483648
        %v4402 = vor.u32 1.1754944e-38, %v4401
        %v4403 = vsel %vm4400, %v4402, %v4398
        %v4404 = vmul.f32 1.0, %v4403
        %v4405 = vrcp.pop %v4131
        %v4406 = vmul.f32 %v4131, %v4405
        %v4407 = vsub.f32 1.0, %v4406
        %v4408 = vmul.f32 %v4405, %v4407
        %v4409 = vadd.f32 %v4405, %v4408
        %vm4410 = vweird.f32 %v4131
        %vm4411 = vweird.f32 %v4405
        %vm4412 = vmor %vm4410, %vm4411
        %v4413 = vsel %vm4412, %v4405, %v4409
        %v4414 = vand.u32 2147483647, %v4131
        %vm4415 = vcmp.eq.f32.partialorder %v4414, 8.507059e+37
        %v4416 = vand.u32 %v4131, 2147483648
        %v4417 = vor.u32 1.1754944e-38, %v4416
        %v4418 = vsel %vm4415, %v4417, %v4413
        %v4419 = vmul.f32 1.0, %v4418
        %v4420 = vrcp.pop %v4132
        %v4421 = vmul.f32 %v4132, %v4420
        %v4422 = vsub.f32 1.0, %v4421
        %v4423 = vmul.f32 %v4420, %v4422
        %v4424 = vadd.f32 %v4420, %v4423
        %vm4425 = vweird.f32 %v4132
        %vm4426 = vweird.f32 %v4420
        %vm4427 = vmor %vm4425, %vm4426
        %v4428 = vsel %vm4427, %v4420, %v4424
        %v4429 = vand.u32 2147483647, %v4132
        %vm4430 = vcmp.eq.f32.partialorder %v4429, 8.507059e+37
        %v4431 = vand.u32 %v4132, 2147483648
        %v4432 = vor.u32 1.1754944e-38, %v4431
        %v4433 = vsel %vm4430, %v4432, %v4428
        %v4434 = vmul.f32 1.0, %v4433
        %v4435 = vrcp.pop %v4133
        %v4436 = vmul.f32 %v4133, %v4435
        %v4437 = vsub.f32 1.0, %v4436
        %v4438 = vmul.f32 %v4435, %v4437
        %v4439 = vadd.f32 %v4435, %v4438
        %vm4440 = vweird.f32 %v4133
        %vm4441 = vweird.f32 %v4435
        %vm4442 = vmor %vm4440, %vm4441
        %v4443 = vsel %vm4442, %v4435, %v4439
        %v4444 = vand.u32 2147483647, %v4133
        %vm4445 = vcmp.eq.f32.partialorder %v4444, 8.507059e+37
        %v4446 = vand.u32 %v4133, 2147483648
        %v4447 = vor.u32 1.1754944e-38, %v4446
        %v4448 = vsel %vm4445, %v4447, %v4443
        %v4449 = vmul.f32 1.0, %v4448
        %v4450 = vrcp.pop %v4134
        %v4451 = vmul.f32 %v4134, %v4450
        %v4452 = vsub.f32 1.0, %v4451
        %v4453 = vmul.f32 %v4450, %v4452
        %v4454 = vadd.f32 %v4450, %v4453
        %vm4455 = vweird.f32 %v4134
        %vm4456 = vweird.f32 %v4450
        %vm4457 = vmor %vm4455, %vm4456
        %v4458 = vsel %vm4457, %v4450, %v4454
        %v4459 = vand.u32 2147483647, %v4134
        %vm4460 = vcmp.eq.f32.partialorder %v4459, 8.507059e+37
        %v4461 = vand.u32 %v4134, 2147483648
        %v4462 = vor.u32 1.1754944e-38, %v4461
        %v4463 = vsel %vm4460, %v4462, %v4458
        %v4464 = vmul.f32 1.0, %v4463
        %v4465 = vrcp.pop %v4135
        %v4466 = vmul.f32 %v4135, %v4465
        %v4467 = vsub.f32 1.0, %v4466
        %v4468 = vmul.f32 %v4465, %v4467
        %v4469 = vadd.f32 %v4465, %v4468
        %vm4470 = vweird.f32 %v4135
        %vm4471 = vweird.f32 %v4465
        %vm4472 = vmor %vm4470, %vm4471
        %v4473 = vsel %vm4472, %v4465, %v4469
        %v4474 = vand.u32 2147483647, %v4135
        %vm4475 = vcmp.eq.f32.partialorder %v4474, 8.507059e+37
        %v4476 = vand.u32 %v4135, 2147483648
        %v4477 = vor.u32 1.1754944e-38, %v4476
        %v4478 = vsel %vm4475, %v4477, %v4473
        %v4479 = vmul.f32 1.0, %v4478
        %v4480 = vrcp.pop %v4136
        %v4481 = vmul.f32 %v4136, %v4480
        %v4482 = vsub.f32 1.0, %v4481
        %v4483 = vmul.f32 %v4480, %v4482
        %v4484 = vadd.f32 %v4480, %v4483
        %vm4485 = vweird.f32 %v4136
        %vm4486 = vweird.f32 %v4480
        %vm4487 = vmor %vm4485, %vm4486
        %v4488 = vsel %vm4487, %v4480, %v4484
        %v4489 = vand.u32 2147483647, %v4136
        %vm4490 = vcmp.eq.f32.partialorder %v4489, 8.507059e+37
        %v4491 = vand.u32 %v4136, 2147483648
        %v4492 = vor.u32 1.1754944e-38, %v4491
        %v4493 = vsel %vm4490, %v4492, %v4488
        %v4494 = vmul.f32 1.0, %v4493
        %v4495 = vrcp.pop %v4137
        %v4496 = vmul.f32 %v4137, %v4495
        %v4497 = vsub.f32 1.0, %v4496
        %v4498 = vmul.f32 %v4495, %v4497
        %v4499 = vadd.f32 %v4495, %v4498
        %vm4500 = vweird.f32 %v4137
        %vm4501 = vweird.f32 %v4495
        %vm4502 = vmor %vm4500, %vm4501
        %v4503 = vsel %vm4502, %v4495, %v4499
        %v4504 = vand.u32 2147483647, %v4137
        %vm4505 = vcmp.eq.f32.partialorder %v4504, 8.507059e+37
        %v4506 = vand.u32 %v4137, 2147483648
        %v4507 = vor.u32 1.1754944e-38, %v4506
        %v4508 = vsel %vm4505, %v4507, %v4503
        %v4509 = vmul.f32 1.0, %v4508
        %v4510 = vrcp.pop %v4138
        %v4511 = vmul.f32 %v4138, %v4510
        %v4512 = vsub.f32 1.0, %v4511
        %v4513 = vmul.f32 %v4510, %v4512
        %v4514 = vadd.f32 %v4510, %v4513
        %vm4515 = vweird.f32 %v4138
        %vm4516 = vweird.f32 %v4510
        %vm4517 = vmor %vm4515, %vm4516
        %v4518 = vsel %vm4517, %v4510, %v4514
        %v4519 = vand.u32 2147483647, %v4138
        %vm4520 = vcmp.eq.f32.partialorder %v4519, 8.507059e+37
        %v4521 = vand.u32 %v4138, 2147483648
        %v4522 = vor.u32 1.1754944e-38, %v4521
        %v4523 = vsel %vm4520, %v4522, %v4518
        %v4524 = vmul.f32 1.0, %v4523
        %v4525 = vrcp.pop %v4139
        %v4526 = vmul.f32 %v4139, %v4525
        %v4527 = vsub.f32 1.0, %v4526
        %v4528 = vmul.f32 %v4525, %v4527
        %v4529 = vadd.f32 %v4525, %v4528
        %vm4530 = vweird.f32 %v4139
        %vm4531 = vweird.f32 %v4525
        %vm4532 = vmor %vm4530, %vm4531
        %v4533 = vsel %vm4532, %v4525, %v4529
        %v4534 = vand.u32 2147483647, %v4139
        %vm4535 = vcmp.eq.f32.partialorder %v4534, 8.507059e+37
        %v4536 = vand.u32 %v4139, 2147483648
        %v4537 = vor.u32 1.1754944e-38, %v4536
        %v4538 = vsel %vm4535, %v4537, %v4533
        %v4539 = vmul.f32 1.0, %v4538
        %v4540 = vrcp.pop %v4140
        %v4541 = vmul.f32 %v4140, %v4540
        %v4542 = vsub.f32 1.0, %v4541
        %v4543 = vmul.f32 %v4540, %v4542
        %v4544 = vadd.f32 %v4540, %v4543
        %vm4545 = vweird.f32 %v4140
        %vm4546 = vweird.f32 %v4540
        %vm4547 = vmor %vm4545, %vm4546
        %v4548 = vsel %vm4547, %v4540, %v4544
        %v4549 = vand.u32 2147483647, %v4140
        %vm4550 = vcmp.eq.f32.partialorder %v4549, 8.507059e+37
        %v4551 = vand.u32 %v4140, 2147483648
        %v4552 = vor.u32 1.1754944e-38, %v4551
        %v4553 = vsel %vm4550, %v4552, %v4548
        %v4554 = vmul.f32 1.0, %v4553
        %v4555 = vrcp.pop %v4141
        %v4556 = vmul.f32 %v4141, %v4555
        %v4557 = vsub.f32 1.0, %v4556
        %v4558 = vmul.f32 %v4555, %v4557
        %v4559 = vadd.f32 %v4555, %v4558
        %vm4560 = vweird.f32 %v4141
        %vm4561 = vweird.f32 %v4555
        %vm4562 = vmor %vm4560, %vm4561
        %v4563 = vsel %vm4562, %v4555, %v4559
        %v4564 = vand.u32 2147483647, %v4141
        %vm4565 = vcmp.eq.f32.partialorder %v4564, 8.507059e+37
        %v4566 = vand.u32 %v4141, 2147483648
        %v4567 = vor.u32 1.1754944e-38, %v4566
        %v4568 = vsel %vm4565, %v4567, %v4563
        %v4569 = vmul.f32 1.0, %v4568
        %v4570 = vrcp.pop %v4142
        %v4571 = vmul.f32 %v4142, %v4570
        %v4572 = vsub.f32 1.0, %v4571
        %v4573 = vmul.f32 %v4570, %v4572
        %v4574 = vadd.f32 %v4570, %v4573
        %vm4575 = vweird.f32 %v4142
        %vm4576 = vweird.f32 %v4570
        %vm4577 = vmor %vm4575, %vm4576
        %v4578 = vsel %vm4577, %v4570, %v4574
        %v4579 = vand.u32 2147483647, %v4142
        %vm4580 = vcmp.eq.f32.partialorder %v4579, 8.507059e+37
        %v4581 = vand.u32 %v4142, 2147483648
        %v4582 = vor.u32 1.1754944e-38, %v4581
        %v4583 = vsel %vm4580, %v4582, %v4578
        %v4584 = vmul.f32 1.0, %v4583
        %v4585 = vrcp.pop %v4143
        %v4586 = vmul.f32 %v4143, %v4585
        %v4587 = vsub.f32 1.0, %v4586
        %v4588 = vmul.f32 %v4585, %v4587
        %v4589 = vadd.f32 %v4585, %v4588
        %vm4590 = vweird.f32 %v4143
        %vm4591 = vweird.f32 %v4585
        %vm4592 = vmor %vm4590, %vm4591
        %v4593 = vsel %vm4592, %v4585, %v4589
        %v4594 = vand.u32 2147483647, %v4143
        %vm4595 = vcmp.eq.f32.partialorder %v4594, 8.507059e+37
        %v4596 = vand.u32 %v4143, 2147483648
        %v4597 = vor.u32 1.1754944e-38, %v4596
        %v4598 = vsel %vm4595, %v4597, %v4593
        %v4599 = vmul.f32 1.0, %v4598
        %v4600 = vrcp.pop %v4144
        %v4601 = vmul.f32 %v4144, %v4600
        %v4602 = vsub.f32 1.0, %v4601
        %v4603 = vmul.f32 %v4600, %v4602
        %v4604 = vadd.f32 %v4600, %v4603
        %vm4605 = vweird.f32 %v4144
        %vm4606 = vweird.f32 %v4600
        %vm4607 = vmor %vm4605, %vm4606
        %v4608 = vsel %vm4607, %v4600, %v4604
        %v4609 = vand.u32 2147483647, %v4144
        %vm4610 = vcmp.eq.f32.partialorder %v4609, 8.507059e+37
        %v4611 = vand.u32 %v4144, 2147483648
        %v4612 = vor.u32 1.1754944e-38, %v4611
        %v4613 = vsel %vm4610, %v4612, %v4608
        %v4614 = vmul.f32 1.0, %v4613
        %v4615 = vrcp.pop %v4145
        %v4616 = vmul.f32 %v4145, %v4615
        %v4617 = vsub.f32 1.0, %v4616
        %v4618 = vmul.f32 %v4615, %v4617
        %v4619 = vadd.f32 %v4615, %v4618
        %vm4620 = vweird.f32 %v4145
        %vm4621 = vweird.f32 %v4615
        %vm4622 = vmor %vm4620, %vm4621
        %v4623 = vsel %vm4622, %v4615, %v4619
        %v4624 = vand.u32 2147483647, %v4145
        %vm4625 = vcmp.eq.f32.partialorder %v4624, 8.507059e+37
        %v4626 = vand.u32 %v4145, 2147483648
        %v4627 = vor.u32 1.1754944e-38, %v4626
        %v4628 = vsel %vm4625, %v4627, %v4623
        %v4629 = vmul.f32 1.0, %v4628
        %v4630 = vrcp.pop %v4146
        %v4631 = vmul.f32 %v4146, %v4630
        %v4632 = vsub.f32 1.0, %v4631
        %v4633 = vmul.f32 %v4630, %v4632
        %v4634 = vadd.f32 %v4630, %v4633
        %vm4635 = vweird.f32 %v4146
        %vm4636 = vweird.f32 %v4630
        %vm4637 = vmor %vm4635, %vm4636
        %v4638 = vsel %vm4637, %v4630, %v4634
        %v4639 = vand.u32 2147483647, %v4146
        %vm4640 = vcmp.eq.f32.partialorder %v4639, 8.507059e+37
        %v4641 = vand.u32 %v4146, 2147483648
        %v4642 = vor.u32 1.1754944e-38, %v4641
        %v4643 = vsel %vm4640, %v4642, %v4638
        %v4644 = vmul.f32 1.0, %v4643
        %v4645 = vrcp.pop %v4147
        %v4646 = vmul.f32 %v4147, %v4645
        %v4647 = vsub.f32 1.0, %v4646
        %v4648 = vmul.f32 %v4645, %v4647
        %v4649 = vadd.f32 %v4645, %v4648
        %vm4650 = vweird.f32 %v4147
        %vm4651 = vweird.f32 %v4645
        %vm4652 = vmor %vm4650, %vm4651
        %v4653 = vsel %vm4652, %v4645, %v4649
        %v4654 = vand.u32 2147483647, %v4147
        %vm4655 = vcmp.eq.f32.partialorder %v4654, 8.507059e+37
        %v4656 = vand.u32 %v4147, 2147483648
        %v4657 = vor.u32 1.1754944e-38, %v4656
        %v4658 = vsel %vm4655, %v4657, %v4653
        %v4659 = vmul.f32 1.0, %v4658
        %v4660 = vrcp.pop %v4148
        %v4661 = vmul.f32 %v4148, %v4660
        %v4662 = vsub.f32 1.0, %v4661
        %v4663 = vmul.f32 %v4660, %v4662
        %v4664 = vadd.f32 %v4660, %v4663
        %vm4665 = vweird.f32 %v4148
        %vm4666 = vweird.f32 %v4660
        %vm4667 = vmor %vm4665, %vm4666
        %v4668 = vsel %vm4667, %v4660, %v4664
        %v4669 = vand.u32 2147483647, %v4148
        %vm4670 = vcmp.eq.f32.partialorder %v4669, 8.507059e+37
        %v4671 = vand.u32 %v4148, 2147483648
        %v4672 = vor.u32 1.1754944e-38, %v4671
        %v4673 = vsel %vm4670, %v4672, %v4668
        %v4674 = vmul.f32 1.0, %v4673
        %v4675 = vrcp.pop %v4149
        %v4676 = vmul.f32 %v4149, %v4675
        %v4677 = vsub.f32 1.0, %v4676
        %v4678 = vmul.f32 %v4675, %v4677
        %v4679 = vadd.f32 %v4675, %v4678
        %vm4680 = vweird.f32 %v4149
        %vm4681 = vweird.f32 %v4675
        %vm4682 = vmor %vm4680, %vm4681
        %v4683 = vsel %vm4682, %v4675, %v4679
        %v4684 = vand.u32 2147483647, %v4149
        %vm4685 = vcmp.eq.f32.partialorder %v4684, 8.507059e+37
        %v4686 = vand.u32 %v4149, 2147483648
        %v4687 = vor.u32 1.1754944e-38, %v4686
        %v4688 = vsel %vm4685, %v4687, %v4683
        %v4689 = vmul.f32 1.0, %v4688
        %v4690 = vrcp.pop %v4150
        %v4691 = vmul.f32 %v4150, %v4690
        %v4692 = vsub.f32 1.0, %v4691
        %v4693 = vmul.f32 %v4690, %v4692
        %v4694 = vadd.f32 %v4690, %v4693
        %vm4695 = vweird.f32 %v4150
        %vm4696 = vweird.f32 %v4690
        %vm4697 = vmor %vm4695, %vm4696
        %v4698 = vsel %vm4697, %v4690, %v4694
        %v4699 = vand.u32 2147483647, %v4150
        %vm4700 = vcmp.eq.f32.partialorder %v4699, 8.507059e+37
        %v4701 = vand.u32 %v4150, 2147483648
        %v4702 = vor.u32 1.1754944e-38, %v4701
        %v4703 = vsel %vm4700, %v4702, %v4698
        %v4704 = vmul.f32 1.0, %v4703
        %v4705 = vrcp.pop %v4151
        %v4706 = vmul.f32 %v4151, %v4705
        %v4707 = vsub.f32 1.0, %v4706
        %v4708 = vmul.f32 %v4705, %v4707
        %v4709 = vadd.f32 %v4705, %v4708
        %vm4710 = vweird.f32 %v4151
        %vm4711 = vweird.f32 %v4705
        %vm4712 = vmor %vm4710, %vm4711
        %v4713 = vsel %vm4712, %v4705, %v4709
        %v4714 = vand.u32 2147483647, %v4151
        %vm4715 = vcmp.eq.f32.partialorder %v4714, 8.507059e+37
        %v4716 = vand.u32 %v4151, 2147483648
        %v4717 = vor.u32 1.1754944e-38, %v4716
        %v4718 = vsel %vm4715, %v4717, %v4713
        %v4719 = vmul.f32 1.0, %v4718
        %v4720 = vrcp.pop %v4152
        %v4721 = vmul.f32 %v4152, %v4720
        %v4722 = vsub.f32 1.0, %v4721
        %v4723 = vmul.f32 %v4720, %v4722
        %v4724 = vadd.f32 %v4720, %v4723
        %vm4725 = vweird.f32 %v4152
        %vm4726 = vweird.f32 %v4720
        %vm4727 = vmor %vm4725, %vm4726
        %v4728 = vsel %vm4727, %v4720, %v4724
        %v4729 = vand.u32 2147483647, %v4152
        %vm4730 = vcmp.eq.f32.partialorder %v4729, 8.507059e+37
        %v4731 = vand.u32 %v4152, 2147483648
        %v4732 = vor.u32 1.1754944e-38, %v4731
        %v4733 = vsel %vm4730, %v4732, %v4728
        %v4734 = vmul.f32 1.0, %v4733
        %v4735 = vrcp.pop %v4153
        %v4736 = vmul.f32 %v4153, %v4735
        %v4737 = vsub.f32 1.0, %v4736
        %v4738 = vmul.f32 %v4735, %v4737
        %v4739 = vadd.f32 %v4735, %v4738
        %vm4740 = vweird.f32 %v4153
        %vm4741 = vweird.f32 %v4735
        %vm4742 = vmor %vm4740, %vm4741
        %v4743 = vsel %vm4742, %v4735, %v4739
        %v4744 = vand.u32 2147483647, %v4153
        %vm4745 = vcmp.eq.f32.partialorder %v4744, 8.507059e+37
        %v4746 = vand.u32 %v4153, 2147483648
        %v4747 = vor.u32 1.1754944e-38, %v4746
        %v4748 = vsel %vm4745, %v4747, %v4743
        %v4749 = vmul.f32 1.0, %v4748
        %v4750 = vrcp.pop %v4154
        %v4751 = vmul.f32 %v4154, %v4750
        %v4752 = vsub.f32 1.0, %v4751
        %v4753 = vmul.f32 %v4750, %v4752
        %v4754 = vadd.f32 %v4750, %v4753
        %vm4755 = vweird.f32 %v4154
        %vm4756 = vweird.f32 %v4750
        %vm4757 = vmor %vm4755, %vm4756
        %v4758 = vsel %vm4757, %v4750, %v4754
        %v4759 = vand.u32 2147483647, %v4154
        %vm4760 = vcmp.eq.f32.partialorder %v4759, 8.507059e+37
        %v4761 = vand.u32 %v4154, 2147483648
        %v4762 = vor.u32 1.1754944e-38, %v4761
        %v4763 = vsel %vm4760, %v4762, %v4758
        %v4764 = vmul.f32 1.0, %v4763
        %v4765 = vrcp.pop %v4155
        %v4766 = vmul.f32 %v4155, %v4765
        %v4767 = vsub.f32 1.0, %v4766
        %v4768 = vmul.f32 %v4765, %v4767
        %v4769 = vadd.f32 %v4765, %v4768
        %vm4770 = vweird.f32 %v4155
        %vm4771 = vweird.f32 %v4765
        %vm4772 = vmor %vm4770, %vm4771
        %v4773 = vsel %vm4772, %v4765, %v4769
        %v4774 = vand.u32 2147483647, %v4155
        %vm4775 = vcmp.eq.f32.partialorder %v4774, 8.507059e+37
        %v4776 = vand.u32 %v4155, 2147483648
        %v4777 = vor.u32 1.1754944e-38, %v4776
        %v4778 = vsel %vm4775, %v4777, %v4773
        %v4779 = vmul.f32 1.0, %v4778
        %v4780 = vrcp.pop %v4156
        %v4781 = vmul.f32 %v4156, %v4780
        %v4782 = vsub.f32 1.0, %v4781
        %v4783 = vmul.f32 %v4780, %v4782
        %v4784 = vadd.f32 %v4780, %v4783
        %vm4785 = vweird.f32 %v4156
        %vm4786 = vweird.f32 %v4780
        %vm4787 = vmor %vm4785, %vm4786
        %v4788 = vsel %vm4787, %v4780, %v4784
        %v4789 = vand.u32 2147483647, %v4156
        %vm4790 = vcmp.eq.f32.partialorder %v4789, 8.507059e+37
        %v4791 = vand.u32 %v4156, 2147483648
        %v4792 = vor.u32 1.1754944e-38, %v4791
        %v4793 = vsel %vm4790, %v4792, %v4788
        %v4794 = vmul.f32 1.0, %v4793
        %v4795 = vrcp.pop %v4157
        %v4796 = vmul.f32 %v4157, %v4795
        %v4797 = vsub.f32 1.0, %v4796
        %v4798 = vmul.f32 %v4795, %v4797
        %v4799 = vadd.f32 %v4795, %v4798
        %vm4800 = vweird.f32 %v4157
        %vm4801 = vweird.f32 %v4795
        %vm4802 = vmor %vm4800, %vm4801
        %v4803 = vsel %vm4802, %v4795, %v4799
        %v4804 = vand.u32 2147483647, %v4157
        %vm4805 = vcmp.eq.f32.partialorder %v4804, 8.507059e+37
        %v4806 = vand.u32 %v4157, 2147483648
        %v4807 = vor.u32 1.1754944e-38, %v4806
        %v4808 = vsel %vm4805, %v4807, %v4803
        %v4809 = vmul.f32 1.0, %v4808
        %v4810 = vrcp.pop %v4158
        %v4811 = vmul.f32 %v4158, %v4810
        %v4812 = vsub.f32 1.0, %v4811
        %v4813 = vmul.f32 %v4810, %v4812
        %v4814 = vadd.f32 %v4810, %v4813
        %vm4815 = vweird.f32 %v4158
        %vm4816 = vweird.f32 %v4810
        %vm4817 = vmor %vm4815, %vm4816
        %v4818 = vsel %vm4817, %v4810, %v4814
        %v4819 = vand.u32 2147483647, %v4158
        %vm4820 = vcmp.eq.f32.partialorder %v4819, 8.507059e+37
        %v4821 = vand.u32 %v4158, 2147483648
        %v4822 = vor.u32 1.1754944e-38, %v4821
        %v4823 = vsel %vm4820, %v4822, %v4818
        %v4824 = vmul.f32 1.0, %v4823
        %v4825 = vrcp.pop %v4159
        %v4826 = vmul.f32 %v4159, %v4825
        %v4827 = vsub.f32 1.0, %v4826
        %v4828 = vmul.f32 %v4825, %v4827
        %v4829 = vadd.f32 %v4825, %v4828
        %vm4830 = vweird.f32 %v4159
        %vm4831 = vweird.f32 %v4825
        %vm4832 = vmor %vm4830, %vm4831
        %v4833 = vsel %vm4832, %v4825, %v4829
        %v4834 = vand.u32 2147483647, %v4159
        %vm4835 = vcmp.eq.f32.partialorder %v4834, 8.507059e+37
        %v4836 = vand.u32 %v4159, 2147483648
        %v4837 = vor.u32 1.1754944e-38, %v4836
        %v4838 = vsel %vm4835, %v4837, %v4833
        %v4839 = vmul.f32 1.0, %v4838
        %v4840 = vrcp.pop %v4160
        %v4841 = vmul.f32 %v4160, %v4840
        %v4842 = vsub.f32 1.0, %v4841
        %v4843 = vmul.f32 %v4840, %v4842
        %v4844 = vadd.f32 %v4840, %v4843
        %vm4845 = vweird.f32 %v4160
        %vm4846 = vweird.f32 %v4840
        %vm4847 = vmor %vm4845, %vm4846
        %v4848 = vsel %vm4847, %v4840, %v4844
        %v4849 = vand.u32 2147483647, %v4160
        %vm4850 = vcmp.eq.f32.partialorder %v4849, 8.507059e+37
        %v4851 = vand.u32 %v4160, 2147483648
        %v4852 = vor.u32 1.1754944e-38, %v4851
        %v4853 = vsel %vm4850, %v4852, %v4848
        %v4854 = vmul.f32 1.0, %v4853
        %v4855 = vrcp.pop %v4161
        %v4856 = vmul.f32 %v4161, %v4855
        %v4857 = vsub.f32 1.0, %v4856
        %v4858 = vmul.f32 %v4855, %v4857
        %v4859 = vadd.f32 %v4855, %v4858
        %vm4860 = vweird.f32 %v4161
        %vm4861 = vweird.f32 %v4855
        %vm4862 = vmor %vm4860, %vm4861
        %v4863 = vsel %vm4862, %v4855, %v4859
        %v4864 = vand.u32 2147483647, %v4161
        %vm4865 = vcmp.eq.f32.partialorder %v4864, 8.507059e+37
        %v4866 = vand.u32 %v4161, 2147483648
        %v4867 = vor.u32 1.1754944e-38, %v4866
        %v4868 = vsel %vm4865, %v4867, %v4863
        %v4869 = vmul.f32 1.0, %v4868
        %v4870 = vrcp.pop %v4162
        %v4871 = vmul.f32 %v4162, %v4870
        %v4872 = vsub.f32 1.0, %v4871
        %v4873 = vmul.f32 %v4870, %v4872
        %v4874 = vadd.f32 %v4870, %v4873
        %vm4875 = vweird.f32 %v4162
        %vm4876 = vweird.f32 %v4870
        %vm4877 = vmor %vm4875, %vm4876
        %v4878 = vsel %vm4877, %v4870, %v4874
        %v4879 = vand.u32 2147483647, %v4162
        %vm4880 = vcmp.eq.f32.partialorder %v4879, 8.507059e+37
        %v4881 = vand.u32 %v4162, 2147483648
        %v4882 = vor.u32 1.1754944e-38, %v4881
        %v4883 = vsel %vm4880, %v4882, %v4878
        %v4884 = vmul.f32 1.0, %v4883
        %v4885 = vrcp.pop %v4163
        %v4886 = vmul.f32 %v4163, %v4885
        %v4887 = vsub.f32 1.0, %v4886
        %v4888 = vmul.f32 %v4885, %v4887
        %v4889 = vadd.f32 %v4885, %v4888
        %vm4890 = vweird.f32 %v4163
        %vm4891 = vweird.f32 %v4885
        %vm4892 = vmor %vm4890, %vm4891
        %v4893 = vsel %vm4892, %v4885, %v4889
        %v4894 = vand.u32 2147483647, %v4163
        %vm4895 = vcmp.eq.f32.partialorder %v4894, 8.507059e+37
        %v4896 = vand.u32 %v4163, 2147483648
        %v4897 = vor.u32 1.1754944e-38, %v4896
        %v4898 = vsel %vm4895, %v4897, %v4893
        %v4899 = vmul.f32 1.0, %v4898
        %v4900 = vrcp.pop %v4164
        %v4901 = vmul.f32 %v4164, %v4900
        %v4902 = vsub.f32 1.0, %v4901
        %v4903 = vmul.f32 %v4900, %v4902
        %v4904 = vadd.f32 %v4900, %v4903
        %vm4905 = vweird.f32 %v4164
        %vm4906 = vweird.f32 %v4900
        %vm4907 = vmor %vm4905, %vm4906
        %v4908 = vsel %vm4907, %v4900, %v4904
        %v4909 = vand.u32 2147483647, %v4164
        %vm4910 = vcmp.eq.f32.partialorder %v4909, 8.507059e+37
        %v4911 = vand.u32 %v4164, 2147483648
        %v4912 = vor.u32 1.1754944e-38, %v4911
        %v4913 = vsel %vm4910, %v4912, %v4908
        %v4914 = vmul.f32 1.0, %v4913
        %v4915 = vrcp.pop %v4165
        %v4916 = vmul.f32 %v4165, %v4915
        %v4917 = vsub.f32 1.0, %v4916
        %v4918 = vmul.f32 %v4915, %v4917
        %v4919 = vadd.f32 %v4915, %v4918
        %vm4920 = vweird.f32 %v4165
        %vm4921 = vweird.f32 %v4915
        %vm4922 = vmor %vm4920, %vm4921
        %v4923 = vsel %vm4922, %v4915, %v4919
        %v4924 = vand.u32 2147483647, %v4165
        %vm4925 = vcmp.eq.f32.partialorder %v4924, 8.507059e+37
        %v4926 = vand.u32 %v4165, 2147483648
        %v4927 = vor.u32 1.1754944e-38, %v4926
        %v4928 = vsel %vm4925, %v4927, %v4923
        %v4929 = vmul.f32 1.0, %v4928
        %v4930 = vrcp.pop %v4166
        %v4931 = vmul.f32 %v4166, %v4930
        %v4932 = vsub.f32 1.0, %v4931
        %v4933 = vmul.f32 %v4930, %v4932
        %v4934 = vadd.f32 %v4930, %v4933
        %vm4935 = vweird.f32 %v4166
        %vm4936 = vweird.f32 %v4930
        %vm4937 = vmor %vm4935, %vm4936
        %v4938 = vsel %vm4937, %v4930, %v4934
        %v4939 = vand.u32 2147483647, %v4166
        %vm4940 = vcmp.eq.f32.partialorder %v4939, 8.507059e+37
        %v4941 = vand.u32 %v4166, 2147483648
        %v4942 = vor.u32 1.1754944e-38, %v4941
        %v4943 = vsel %vm4940, %v4942, %v4938
        %v4944 = vmul.f32 1.0, %v4943
        %v4945 = vrcp.pop %v4167
        %v4946 = vmul.f32 %v4167, %v4945
        %v4947 = vsub.f32 1.0, %v4946
        %v4948 = vmul.f32 %v4945, %v4947
        %v4949 = vadd.f32 %v4945, %v4948
        %vm4950 = vweird.f32 %v4167
        %vm4951 = vweird.f32 %v4945
        %vm4952 = vmor %vm4950, %vm4951
        %v4953 = vsel %vm4952, %v4945, %v4949
        %v4954 = vand.u32 2147483647, %v4167
        %vm4955 = vcmp.eq.f32.partialorder %v4954, 8.507059e+37
        %v4956 = vand.u32 %v4167, 2147483648
        %v4957 = vor.u32 1.1754944e-38, %v4956
        %v4958 = vsel %vm4955, %v4957, %v4953
        %v4959 = vmul.f32 1.0, %v4958
        %v4960 = vrcp.pop %v4168
        %v4961 = vmul.f32 %v4168, %v4960
        %v4962 = vsub.f32 1.0, %v4961
        %v4963 = vmul.f32 %v4960, %v4962
        %v4964 = vadd.f32 %v4960, %v4963
        %vm4965 = vweird.f32 %v4168
        %vm4966 = vweird.f32 %v4960
        %vm4967 = vmor %vm4965, %vm4966
        %v4968 = vsel %vm4967, %v4960, %v4964
        %v4969 = vand.u32 2147483647, %v4168
        %vm4970 = vcmp.eq.f32.partialorder %v4969, 8.507059e+37
        %v4971 = vand.u32 %v4168, 2147483648
        %v4972 = vor.u32 1.1754944e-38, %v4971
        %v4973 = vsel %vm4970, %v4972, %v4968
        %v4974 = vmul.f32 1.0, %v4973
        %v4975 = vrcp.pop %v4169
        %v4976 = vmul.f32 %v4169, %v4975
        %v4977 = vsub.f32 1.0, %v4976
        %v4978 = vmul.f32 %v4975, %v4977
        %v4979 = vadd.f32 %v4975, %v4978
        %vm4980 = vweird.f32 %v4169
        %vm4981 = vweird.f32 %v4975
        %vm4982 = vmor %vm4980, %vm4981
        %v4983 = vsel %vm4982, %v4975, %v4979
        %v4984 = vand.u32 2147483647, %v4169
        %vm4985 = vcmp.eq.f32.partialorder %v4984, 8.507059e+37
        %v4986 = vand.u32 %v4169, 2147483648
        %v4987 = vor.u32 1.1754944e-38, %v4986
        %v4988 = vsel %vm4985, %v4987, %v4983
        %v4989 = vmul.f32 1.0, %v4988
        %v4990 = vrcp.pop %v4170
        %v4991 = vmul.f32 %v4170, %v4990
        %v4992 = vsub.f32 1.0, %v4991
        %v4993 = vmul.f32 %v4990, %v4992
        %v4994 = vadd.f32 %v4990, %v4993
        %vm4995 = vweird.f32 %v4170
        %vm4996 = vweird.f32 %v4990
        %vm4997 = vmor %vm4995, %vm4996
        %v4998 = vsel %vm4997, %v4990, %v4994
        %v4999 = vand.u32 2147483647, %v4170
        %vm5000 = vcmp.eq.f32.partialorder %v4999, 8.507059e+37
        %v5001 = vand.u32 %v4170, 2147483648
        %v5002 = vor.u32 1.1754944e-38, %v5001
        %v5003 = vsel %vm5000, %v5002, %v4998
        %v5004 = vmul.f32 1.0, %v5003
        %v5005 = vrcp.pop %v4171
        %v5006 = vmul.f32 %v4171, %v5005
        %v5007 = vsub.f32 1.0, %v5006
        %v5008 = vmul.f32 %v5005, %v5007
        %v5009 = vadd.f32 %v5005, %v5008
        %vm5010 = vweird.f32 %v4171
        %vm5011 = vweird.f32 %v5005
        %vm5012 = vmor %vm5010, %vm5011
        %v5013 = vsel %vm5012, %v5005, %v5009
        %v5014 = vand.u32 2147483647, %v4171
        %vm5015 = vcmp.eq.f32.partialorder %v5014, 8.507059e+37
        %v5016 = vand.u32 %v4171, 2147483648
        %v5017 = vor.u32 1.1754944e-38, %v5016
        %v5018 = vsel %vm5015, %v5017, %v5013
        %v5019 = vmul.f32 1.0, %v5018
        %v5020 = vrcp.pop %v4172
        %v5021 = vmul.f32 %v4172, %v5020
        %v5022 = vsub.f32 1.0, %v5021
        %v5023 = vmul.f32 %v5020, %v5022
        %v5024 = vadd.f32 %v5020, %v5023
        %vm5025 = vweird.f32 %v4172
        %vm5026 = vweird.f32 %v5020
        %vm5027 = vmor %vm5025, %vm5026
        %v5028 = vsel %vm5027, %v5020, %v5024
        %v5029 = vand.u32 2147483647, %v4172
        %vm5030 = vcmp.eq.f32.partialorder %v5029, 8.507059e+37
        %v5031 = vand.u32 %v4172, 2147483648
        %v5032 = vor.u32 1.1754944e-38, %v5031
        %v5033 = vsel %vm5030, %v5032, %v5028
        %v5034 = vmul.f32 1.0, %v5033
        %v5035 = vrcp.pop %v4173
        %v5036 = vmul.f32 %v4173, %v5035
        %v5037 = vsub.f32 1.0, %v5036
        %v5038 = vmul.f32 %v5035, %v5037
        %v5039 = vadd.f32 %v5035, %v5038
        %vm5040 = vweird.f32 %v4173
        %vm5041 = vweird.f32 %v5035
        %vm5042 = vmor %vm5040, %vm5041
        %v5043 = vsel %vm5042, %v5035, %v5039
        %v5044 = vand.u32 2147483647, %v4173
        %vm5045 = vcmp.eq.f32.partialorder %v5044, 8.507059e+37
        %v5046 = vand.u32 %v4173, 2147483648
        %v5047 = vor.u32 1.1754944e-38, %v5046
        %v5048 = vsel %vm5045, %v5047, %v5043
        %v5049 = vmul.f32 1.0, %v5048
        %v5050 = vrcp.pop %v4174
        %v5051 = vmul.f32 %v4174, %v5050
        %v5052 = vsub.f32 1.0, %v5051
        %v5053 = vmul.f32 %v5050, %v5052
        %v5054 = vadd.f32 %v5050, %v5053
        %vm5055 = vweird.f32 %v4174
        %vm5056 = vweird.f32 %v5050
        %vm5057 = vmor %vm5055, %vm5056
        %v5058 = vsel %vm5057, %v5050, %v5054
        %v5059 = vand.u32 2147483647, %v4174
        %vm5060 = vcmp.eq.f32.partialorder %v5059, 8.507059e+37
        %v5061 = vand.u32 %v4174, 2147483648
        %v5062 = vor.u32 1.1754944e-38, %v5061
        %v5063 = vsel %vm5060, %v5062, %v5058
        %v5064 = vmul.f32 1.0, %v5063
        %v5065 = vrcp.pop %v4175
        %v5066 = vmul.f32 %v4175, %v5065
        %v5067 = vsub.f32 1.0, %v5066
        %v5068 = vmul.f32 %v5065, %v5067
        %v5069 = vadd.f32 %v5065, %v5068
        %vm5070 = vweird.f32 %v4175
        %vm5071 = vweird.f32 %v5065
        %vm5072 = vmor %vm5070, %vm5071
        %v5073 = vsel %vm5072, %v5065, %v5069
        %v5074 = vand.u32 2147483647, %v4175
        %vm5075 = vcmp.eq.f32.partialorder %v5074, 8.507059e+37
        %v5076 = vand.u32 %v4175, 2147483648
        %v5077 = vor.u32 1.1754944e-38, %v5076
        %v5078 = vsel %vm5075, %v5077, %v5073
        %v5079 = vmul.f32 1.0, %v5078
        %v5080 = vrcp.pop %v4176
        %v5081 = vmul.f32 %v4176, %v5080
        %v5082 = vsub.f32 1.0, %v5081
        %v5083 = vmul.f32 %v5080, %v5082
        %v5084 = vadd.f32 %v5080, %v5083
        %vm5085 = vweird.f32 %v4176
        %vm5086 = vweird.f32 %v5080
        %vm5087 = vmor %vm5085, %vm5086
        %v5088 = vsel %vm5087, %v5080, %v5084
        %v5089 = vand.u32 2147483647, %v4176
        %vm5090 = vcmp.eq.f32.partialorder %v5089, 8.507059e+37
        %v5091 = vand.u32 %v4176, 2147483648
        %v5092 = vor.u32 1.1754944e-38, %v5091
        %v5093 = vsel %vm5090, %v5092, %v5088
        %v5094 = vmul.f32 1.0, %v5093
        %v5095 = vrcp.pop %v4177
        %v5096 = vmul.f32 %v4177, %v5095
        %v5097 = vsub.f32 1.0, %v5096
        %v5098 = vmul.f32 %v5095, %v5097
        %v5099 = vadd.f32 %v5095, %v5098
        %vm5100 = vweird.f32 %v4177
        %vm5101 = vweird.f32 %v5095
        %vm5102 = vmor %vm5100, %vm5101
        %v5103 = vsel %vm5102, %v5095, %v5099
        %v5104 = vand.u32 2147483647, %v4177
        %vm5105 = vcmp.eq.f32.partialorder %v5104, 8.507059e+37
        %v5106 = vand.u32 %v4177, 2147483648
        %v5107 = vor.u32 1.1754944e-38, %v5106
        %v5108 = vsel %vm5105, %v5107, %v5103
        %v5109 = vmul.f32 1.0, %v5108
        %v5110 = vrcp.pop %v4178
        %v5111 = vmul.f32 %v4178, %v5110
        %v5112 = vsub.f32 1.0, %v5111
        %v5113 = vmul.f32 %v5110, %v5112
        %v5114 = vadd.f32 %v5110, %v5113
        %vm5115 = vweird.f32 %v4178
        %vm5116 = vweird.f32 %v5110
        %vm5117 = vmor %vm5115, %vm5116
        %v5118 = vsel %vm5117, %v5110, %v5114
        %v5119 = vand.u32 2147483647, %v4178
        %vm5120 = vcmp.eq.f32.partialorder %v5119, 8.507059e+37
        %v5121 = vand.u32 %v4178, 2147483648
        %v5122 = vor.u32 1.1754944e-38, %v5121
        %v5123 = vsel %vm5120, %v5122, %v5118
        %v5124 = vmul.f32 1.0, %v5123
        %v5125 = vrcp.pop %v4179
        %v5126 = vmul.f32 %v4179, %v5125
        %v5127 = vsub.f32 1.0, %v5126
        %v5128 = vmul.f32 %v5125, %v5127
        %v5129 = vadd.f32 %v5125, %v5128
        %vm5130 = vweird.f32 %v4179
        %vm5131 = vweird.f32 %v5125
        %vm5132 = vmor %vm5130, %vm5131
        %v5133 = vsel %vm5132, %v5125, %v5129
        %v5134 = vand.u32 2147483647, %v4179
        %vm5135 = vcmp.eq.f32.partialorder %v5134, 8.507059e+37
        %v5136 = vand.u32 %v4179, 2147483648
        %v5137 = vor.u32 1.1754944e-38, %v5136
        %v5138 = vsel %vm5135, %v5137, %v5133
        %v5139 = vmul.f32 1.0, %v5138
        %v5140 = vmul.f32 %v3060, %v4194
        %v5141 = vmul.f32 %v3061, %v4209
        %v5142 = vmul.f32 %v3062, %v4224
        %v5143 = vmul.f32 %v3063, %v4239
        %v5144 = vmul.f32 %v3064, %v4254
        %v5145 = vmul.f32 %v3065, %v4269
        %v5146 = vmul.f32 %v3066, %v4284
        %v5147 = vmul.f32 %v3067, %v4299
        %v5148 = vmul.f32 %v3068, %v4314
        %v5149 = vmul.f32 %v3069, %v4329
        %v5150 = vmul.f32 %v3070, %v4344
        %v5151 = vmul.f32 %v3071, %v4359
        %v5152 = vmul.f32 %v3072, %v4374
        %v5153 = vmul.f32 %v3073, %v4389
        %v5154 = vmul.f32 %v3074, %v4404
        %v5155 = vmul.f32 %v3075, %v4419
        %v5156 = vmul.f32 %v3076, %v4434
        %v5157 = vmul.f32 %v3077, %v4449
        %v5158 = vmul.f32 %v3078, %v4464
        %v5159 = vmul.f32 %v3079, %v4479
        %v5160 = vmul.f32 %v3080, %v4494
        %v5161 = vmul.f32 %v3081, %v4509
        %v5162 = vmul.f32 %v3082, %v4524
        %v5163 = vmul.f32 %v3083, %v4539
        %v5164 = vmul.f32 %v3084, %v4554
        %v5165 = vmul.f32 %v3085, %v4569
        %v5166 = vmul.f32 %v3086, %v4584
        %v5167 = vmul.f32 %v3087, %v4599
        %v5168 = vmul.f32 %v3088, %v4614
        %v5169 = vmul.f32 %v3089, %v4629
        %v5170 = vmul.f32 %v3090, %v4644
        %v5171 = vmul.f32 %v3091, %v4659
        %v5172 = vmul.f32 %v3092, %v4674
        %v5173 = vmul.f32 %v3093, %v4689
        %v5174 = vmul.f32 %v3094, %v4704
        %v5175 = vmul.f32 %v3095, %v4719
        %v5176 = vmul.f32 %v3096, %v4734
        %v5177 = vmul.f32 %v3097, %v4749
        %v5178 = vmul.f32 %v3098, %v4764
        %v5179 = vmul.f32 %v3099, %v4779
        %v5180 = vmul.f32 %v3100, %v4794
        %v5181 = vmul.f32 %v3101, %v4809
        %v5182 = vmul.f32 %v3102, %v4824
        %v5183 = vmul.f32 %v3103, %v4839
        %v5184 = vmul.f32 %v3104, %v4854
        %v5185 = vmul.f32 %v3105, %v4869
        %v5186 = vmul.f32 %v3106, %v4884
        %v5187 = vmul.f32 %v3107, %v4899
        %v5188 = vmul.f32 %v3108, %v4914
        %v5189 = vmul.f32 %v3109, %v4929
        %v5190 = vmul.f32 %v3110, %v4944
        %v5191 = vmul.f32 %v3111, %v4959
        %v5192 = vmul.f32 %v3112, %v4974
        %v5193 = vmul.f32 %v3113, %v4989
        %v5194 = vmul.f32 %v3114, %v5004
        %v5195 = vmul.f32 %v3115, %v5019
        %v5196 = vmul.f32 %v3116, %v5034
        %v5197 = vmul.f32 %v3117, %v5049
        %v5198 = vmul.f32 %v3118, %v5064
        %v5199 = vmul.f32 %v3119, %v5079
        %v5200 = vmul.f32 %v3120, %v5094
        %v5201 = vmul.f32 %v3121, %v5109
        %v5202 = vmul.f32 %v3122, %v5124
        %v5203 = vmul.f32 %v3123, %v5139
        %v5204 = vld [vmem:[#allocation16] sm:$0xff]
        %v5205 = vld [vmem:[#allocation16 + $0x8] sm:$0xff]
        %v5206 = vld [vmem:[#allocation16 + $0x10] sm:$0xff]
        %v5207 = vld [vmem:[#allocation16 + $0x18] sm:$0xff]
        %v5208 = vld [vmem:[#allocation16 + $0x20] sm:$0xff]
        %v5209 = vld [vmem:[#allocation16 + $0x28] sm:$0xff]
        %v5210 = vld [vmem:[#allocation16 + $0x30] sm:$0xff]
        %v5211 = vld [vmem:[#allocation16 + $0x38] sm:$0xff]
        %v5212 = vld [vmem:[#allocation16 + $0x40] sm:$0xff]
        %v5213 = vld [vmem:[#allocation16 + $0x48] sm:$0xff]
        %v5214 = vld [vmem:[#allocation16 + $0x50] sm:$0xff]
        %v5215 = vld [vmem:[#allocation16 + $0x58] sm:$0xff]
        %v5216 = vld [vmem:[#allocation16 + $0x60] sm:$0xff]
        %v5217 = vld [vmem:[#allocation16 + $0x68] sm:$0xff]
        %v5218 = vld [vmem:[#allocation16 + $0x70] sm:$0xff]
        %v5219 = vld [vmem:[#allocation16 + $0x78] sm:$0xff]
        %v5220 = vld [vmem:[#allocation16 + $0x80] sm:$0xff]
        %v5221 = vld [vmem:[#allocation16 + $0x88] sm:$0xff]
        %v5222 = vld [vmem:[#allocation16 + $0x90] sm:$0xff]
        %v5223 = vld [vmem:[#allocation16 + $0x98] sm:$0xff]
        %v5224 = vld [vmem:[#allocation16 + $0xa0] sm:$0xff]
        %v5225 = vld [vmem:[#allocation16 + $0xa8] sm:$0xff]
        %v5226 = vld [vmem:[#allocation16 + $0xb0] sm:$0xff]
        %v5227 = vld [vmem:[#allocation16 + $0xb8] sm:$0xff]
        %v5228 = vld [vmem:[#allocation16 + $0xc0] sm:$0xff]
        %v5229 = vld [vmem:[#allocation16 + $0xc8] sm:$0xff]
        %v5230 = vld [vmem:[#allocation16 + $0xd0] sm:$0xff]
        %v5231 = vld [vmem:[#allocation16 + $0xd8] sm:$0xff]
        %v5232 = vld [vmem:[#allocation16 + $0xe0] sm:$0xff]
        %v5233 = vld [vmem:[#allocation16 + $0xe8] sm:$0xff]
        %v5234 = vld [vmem:[#allocation16 + $0xf0] sm:$0xff]
        %v5235 = vld [vmem:[#allocation16 + $0xf8] sm:$0xff]
        %v5236 = vld [vmem:[#allocation16 + $0x100] sm:$0xff]
        %v5237 = vld [vmem:[#allocation16 + $0x108] sm:$0xff]
        %v5238 = vld [vmem:[#allocation16 + $0x110] sm:$0xff]
        %v5239 = vld [vmem:[#allocation16 + $0x118] sm:$0xff]
        %v5240 = vld [vmem:[#allocation16 + $0x120] sm:$0xff]
        %v5241 = vld [vmem:[#allocation16 + $0x128] sm:$0xff]
        %v5242 = vld [vmem:[#allocation16 + $0x130] sm:$0xff]
        %v5243 = vld [vmem:[#allocation16 + $0x138] sm:$0xff]
        %v5244 = vld [vmem:[#allocation16 + $0x140] sm:$0xff]
        %v5245 = vld [vmem:[#allocation16 + $0x148] sm:$0xff]
        %v5246 = vld [vmem:[#allocation16 + $0x150] sm:$0xff]
        %v5247 = vld [vmem:[#allocation16 + $0x158] sm:$0xff]
        %v5248 = vld [vmem:[#allocation16 + $0x160] sm:$0xff]
        %v5249 = vld [vmem:[#allocation16 + $0x168] sm:$0xff]
        %v5250 = vld [vmem:[#allocation16 + $0x170] sm:$0xff]
        %v5251 = vld [vmem:[#allocation16 + $0x178] sm:$0xff]
        %v5252 = vld [vmem:[#allocation16 + $0x180] sm:$0xff]
        %v5253 = vld [vmem:[#allocation16 + $0x188] sm:$0xff]
        %v5254 = vld [vmem:[#allocation16 + $0x190] sm:$0xff]
        %v5255 = vld [vmem:[#allocation16 + $0x198] sm:$0xff]
        %v5256 = vld [vmem:[#allocation16 + $0x1a0] sm:$0xff]
        %v5257 = vld [vmem:[#allocation16 + $0x1a8] sm:$0xff]
        %v5258 = vld [vmem:[#allocation16 + $0x1b0] sm:$0xff]
        %v5259 = vld [vmem:[#allocation16 + $0x1b8] sm:$0xff]
        %v5260 = vld [vmem:[#allocation16 + $0x1c0] sm:$0xff]
        %v5261 = vld [vmem:[#allocation16 + $0x1c8] sm:$0xff]
        %v5262 = vld [vmem:[#allocation16 + $0x1d0] sm:$0xff]
        %v5263 = vld [vmem:[#allocation16 + $0x1d8] sm:$0xff]
        %v5264 = vld [vmem:[#allocation16 + $0x1e0] sm:$0xff]
        %v5265 = vld [vmem:[#allocation16 + $0x1e8] sm:$0xff]
        %v5266 = vld [vmem:[#allocation16 + $0x1f0] sm:$0xff]
        %v5267 = vld [vmem:[#allocation16 + $0x1f8] sm:$0xff]
        %v5268 = vld [vmem:[#allocation16 + $0x200] sm:$0xff]
        %v5269 = vld [vmem:[#allocation16 + $0x208] sm:$0xff]
        %v5270 = vld [vmem:[#allocation16 + $0x210] sm:$0xff]
        %v5271 = vld [vmem:[#allocation16 + $0x218] sm:$0xff]
        %v5272 = vld [vmem:[#allocation16 + $0x220] sm:$0xff]
        %v5273 = vld [vmem:[#allocation16 + $0x228] sm:$0xff]
        %v5274 = vld [vmem:[#allocation16 + $0x230] sm:$0xff]
        %v5275 = vld [vmem:[#allocation16 + $0x238] sm:$0xff]
        %v5276 = vld [vmem:[#allocation16 + $0x240] sm:$0xff]
        %v5277 = vld [vmem:[#allocation16 + $0x248] sm:$0xff]
        %v5278 = vld [vmem:[#allocation16 + $0x250] sm:$0xff]
        %v5279 = vld [vmem:[#allocation16 + $0x258] sm:$0xff]
        %v5280 = vld [vmem:[#allocation16 + $0x260] sm:$0xff]
        %v5281 = vld [vmem:[#allocation16 + $0x268] sm:$0xff]
        %v5282 = vld [vmem:[#allocation16 + $0x270] sm:$0xff]
        %v5283 = vld [vmem:[#allocation16 + $0x278] sm:$0xff]
        %v5284 = vld [vmem:[#allocation16 + $0x280] sm:$0xff]
        %v5285 = vld [vmem:[#allocation16 + $0x288] sm:$0xff]
        %v5286 = vld [vmem:[#allocation16 + $0x290] sm:$0xff]
        %v5287 = vld [vmem:[#allocation16 + $0x298] sm:$0xff]
        %v5288 = vld [vmem:[#allocation16 + $0x2a0] sm:$0xff]
        %v5289 = vld [vmem:[#allocation16 + $0x2a8] sm:$0xff]
        %v5290 = vld [vmem:[#allocation16 + $0x2b0] sm:$0xff]
        %v5291 = vld [vmem:[#allocation16 + $0x2b8] sm:$0xff]
        %v5292 = vld [vmem:[#allocation16 + $0x2c0] sm:$0xff]
        %v5293 = vld [vmem:[#allocation16 + $0x2c8] sm:$0xff]
        %v5294 = vld [vmem:[#allocation16 + $0x2d0] sm:$0xff]
        %v5295 = vld [vmem:[#allocation16 + $0x2d8] sm:$0xff]
        %v5296 = vld [vmem:[#allocation16 + $0x2e0] sm:$0xff]
        %v5297 = vld [vmem:[#allocation16 + $0x2e8] sm:$0xff]
        %v5298 = vld [vmem:[#allocation16 + $0x2f0] sm:$0xff]
        %v5299 = vld [vmem:[#allocation16 + $0x2f8] sm:$0xff]
        %v5300 = vld [vmem:[#allocation16 + $0x300] sm:$0xff]
        %v5301 = vld [vmem:[#allocation16 + $0x308] sm:$0xff]
        %v5302 = vld [vmem:[#allocation16 + $0x310] sm:$0xff]
        %v5303 = vld [vmem:[#allocation16 + $0x318] sm:$0xff]
        %v5304 = vld [vmem:[#allocation16 + $0x320] sm:$0xff]
        %v5305 = vld [vmem:[#allocation16 + $0x328] sm:$0xff]
        %v5306 = vld [vmem:[#allocation16 + $0x330] sm:$0xff]
        %v5307 = vld [vmem:[#allocation16 + $0x338] sm:$0xff]
        %v5308 = vld [vmem:[#allocation16 + $0x340] sm:$0xff]
        %v5309 = vld [vmem:[#allocation16 + $0x348] sm:$0xff]
        %v5310 = vld [vmem:[#allocation16 + $0x350] sm:$0xff]
        %v5311 = vld [vmem:[#allocation16 + $0x358] sm:$0xff]
        %v5312 = vld [vmem:[#allocation16 + $0x360] sm:$0xff]
        %v5313 = vld [vmem:[#allocation16 + $0x368] sm:$0xff]
        %v5314 = vld [vmem:[#allocation16 + $0x370] sm:$0xff]
        %v5315 = vld [vmem:[#allocation16 + $0x378] sm:$0xff]
        %v5316 = vld [vmem:[#allocation16 + $0x380] sm:$0xff]
        %v5317 = vld [vmem:[#allocation16 + $0x388] sm:$0xff]
        %v5318 = vld [vmem:[#allocation16 + $0x390] sm:$0xff]
        %v5319 = vld [vmem:[#allocation16 + $0x398] sm:$0xff]
        %v5320 = vld [vmem:[#allocation16 + $0x3a0] sm:$0xff]
        %v5321 = vld [vmem:[#allocation16 + $0x3a8] sm:$0xff]
        %v5322 = vld [vmem:[#allocation16 + $0x3b0] sm:$0xff]
        %v5323 = vld [vmem:[#allocation16 + $0x3b8] sm:$0xff]
        %v5324 = vld [vmem:[#allocation16 + $0x3c0] sm:$0xff]
        %v5325 = vld [vmem:[#allocation16 + $0x3c8] sm:$0xff]
        %v5326 = vld [vmem:[#allocation16 + $0x3d0] sm:$0xff]
        %v5327 = vld [vmem:[#allocation16 + $0x3d8] sm:$0xff]
        %v5328 = vld [vmem:[#allocation16 + $0x3e0] sm:$0xff]
        %v5329 = vld [vmem:[#allocation16 + $0x3e8] sm:$0xff]
        %v5330 = vld [vmem:[#allocation16 + $0x3f0] sm:$0xff]
        %v5331 = vld [vmem:[#allocation16 + $0x3f8] sm:$0xff]
        %v5332 = vld [vmem:[%s10] sm:$0xf]
        %v5333 = vld [vmem:[#allocation17] sm:$0xf]
        %v5334 = vld [vmem:[#allocation17 + $0x4] sm:$0xf]
        %v5335 = vld [vmem:[#allocation17 + $0x8] sm:$0xf]
        %v5336 = vld [vmem:[#allocation17 + $0xc] sm:$0xf]
        %v5337 = vld [vmem:[#allocation17 + $0x10] sm:$0xf]
        %v5338 = vld [vmem:[#allocation17 + $0x14] sm:$0xf]
        %v5339 = vld [vmem:[#allocation17 + $0x18] sm:$0xf]
        %v5340 = vld [vmem:[#allocation17 + $0x1c] sm:$0xf]
        %v5341 = vld [vmem:[#allocation17 + $0x20] sm:$0xf]
        %v5342 = vld [vmem:[#allocation17 + $0x24] sm:$0xf]
        %v5343 = vld [vmem:[#allocation17 + $0x28] sm:$0xf]
        %v5344 = vld [vmem:[#allocation17 + $0x2c] sm:$0xf]
        %v5345 = vld [vmem:[#allocation17 + $0x30] sm:$0xf]
        %v5346 = vld [vmem:[#allocation17 + $0x34] sm:$0xf]
        %v5347 = vld [vmem:[#allocation17 + $0x38] sm:$0xf]
        %v5348 = vld [vmem:[#allocation17 + $0x3c] sm:$0xf]
        %v5349 = vld [vmem:[#allocation17 + $0x40] sm:$0xf]
        %v5350 = vld [vmem:[#allocation17 + $0x44] sm:$0xf]
        %v5351 = vld [vmem:[#allocation17 + $0x48] sm:$0xf]
        %v5352 = vld [vmem:[#allocation17 + $0x4c] sm:$0xf]
        %v5353 = vld [vmem:[#allocation17 + $0x50] sm:$0xf]
        %v5354 = vld [vmem:[#allocation17 + $0x54] sm:$0xf]
        %v5355 = vld [vmem:[#allocation17 + $0x58] sm:$0xf]
        %v5356 = vld [vmem:[#allocation17 + $0x5c] sm:$0xf]
        %v5357 = vld [vmem:[#allocation17 + $0x60] sm:$0xf]
        %v5358 = vld [vmem:[#allocation17 + $0x64] sm:$0xf]
        %v5359 = vld [vmem:[#allocation17 + $0x68] sm:$0xf]
        %v5360 = vld [vmem:[#allocation17 + $0x6c] sm:$0xf]
        %v5361 = vld [vmem:[#allocation17 + $0x70] sm:$0xf]
        %v5362 = vld [vmem:[#allocation17 + $0x74] sm:$0xf]
        %v5363 = vld [vmem:[#allocation17 + $0x78] sm:$0xf]
        %v5364 = vld [vmem:[#allocation17 + $0x7c] sm:$0xf]
        %v5365 = vld [vmem:[#allocation17 + $0x80] sm:$0xf]
        %v5366 = vld [vmem:[#allocation17 + $0x84] sm:$0xf]
        %v5367 = vld [vmem:[#allocation17 + $0x88] sm:$0xf]
        %v5368 = vld [vmem:[#allocation17 + $0x8c] sm:$0xf]
        %v5369 = vld [vmem:[#allocation17 + $0x90] sm:$0xf]
        %v5370 = vld [vmem:[#allocation17 + $0x94] sm:$0xf]
        %v5371 = vld [vmem:[#allocation17 + $0x98] sm:$0xf]
        %v5372 = vld [vmem:[#allocation17 + $0x9c] sm:$0xf]
        %v5373 = vld [vmem:[#allocation17 + $0xa0] sm:$0xf]
        %v5374 = vld [vmem:[#allocation17 + $0xa4] sm:$0xf]
        %v5375 = vld [vmem:[#allocation17 + $0xa8] sm:$0xf]
        %v5376 = vld [vmem:[#allocation17 + $0xac] sm:$0xf]
        %v5377 = vld [vmem:[#allocation17 + $0xb0] sm:$0xf]
        %v5378 = vld [vmem:[#allocation17 + $0xb4] sm:$0xf]
        %v5379 = vld [vmem:[#allocation17 + $0xb8] sm:$0xf]
        %v5380 = vld [vmem:[#allocation17 + $0xbc] sm:$0xf]
        %v5381 = vld [vmem:[#allocation17 + $0xc0] sm:$0xf]
        %v5382 = vld [vmem:[#allocation17 + $0xc4] sm:$0xf]
        %v5383 = vld [vmem:[#allocation17 + $0xc8] sm:$0xf]
        %v5384 = vld [vmem:[#allocation17 + $0xcc] sm:$0xf]
        %v5385 = vld [vmem:[#allocation17 + $0xd0] sm:$0xf]
        %v5386 = vld [vmem:[#allocation17 + $0xd4] sm:$0xf]
        %v5387 = vld [vmem:[#allocation17 + $0xd8] sm:$0xf]
        %v5388 = vld [vmem:[#allocation17 + $0xdc] sm:$0xf]
        %v5389 = vld [vmem:[#allocation17 + $0xe0] sm:$0xf]
        %v5390 = vld [vmem:[#allocation17 + $0xe4] sm:$0xf]
        %v5391 = vld [vmem:[#allocation17 + $0xe8] sm:$0xf]
        %v5392 = vld [vmem:[#allocation17 + $0xec] sm:$0xf]
        %v5393 = vld [vmem:[#allocation17 + $0xf0] sm:$0xf]
        %v5394 = vld [vmem:[#allocation17 + $0xf4] sm:$0xf]
        %v5395 = vld [vmem:[#allocation17 + $0xf8] sm:$0xf]
        %v5396 = vld [vmem:[#allocation17 + $0xfc] sm:$0xf]
        %v5397 = vld [vmem:[#allocation19] sm:$0xff]
        %v5398 = vld [vmem:[#allocation19 + $0x8] sm:$0xff]
        %v5399 = vld [vmem:[#allocation19 + $0x10] sm:$0xff]
        %v5400 = vld [vmem:[#allocation19 + $0x18] sm:$0xff]
        %v5401 = vld [vmem:[#allocation19 + $0x20] sm:$0xff]
        %v5402 = vld [vmem:[#allocation19 + $0x28] sm:$0xff]
        %v5403 = vld [vmem:[#allocation19 + $0x30] sm:$0xff]
        %v5404 = vld [vmem:[#allocation19 + $0x38] sm:$0xff]
        %v5405 = vld [vmem:[#allocation19 + $0x40] sm:$0xff]
        %v5406 = vld [vmem:[#allocation19 + $0x48] sm:$0xff]
        %v5407 = vld [vmem:[#allocation19 + $0x50] sm:$0xff]
        %v5408 = vld [vmem:[#allocation19 + $0x58] sm:$0xff]
        %v5409 = vld [vmem:[#allocation19 + $0x60] sm:$0xff]
        %v5410 = vld [vmem:[#allocation19 + $0x68] sm:$0xff]
        %v5411 = vld [vmem:[#allocation19 + $0x70] sm:$0xff]
        %v5412 = vld [vmem:[#allocation19 + $0x78] sm:$0xff]
        %v5413 = vld [vmem:[#allocation19 + $0x80] sm:$0xff]
        %v5414 = vld [vmem:[#allocation19 + $0x88] sm:$0xff]
        %v5415 = vld [vmem:[#allocation19 + $0x90] sm:$0xff]
        %v5416 = vld [vmem:[#allocation19 + $0x98] sm:$0xff]
        %v5417 = vld [vmem:[#allocation19 + $0xa0] sm:$0xff]
        %v5418 = vld [vmem:[#allocation19 + $0xa8] sm:$0xff]
        %v5419 = vld [vmem:[#allocation19 + $0xb0] sm:$0xff]
        %v5420 = vld [vmem:[#allocation19 + $0xb8] sm:$0xff]
        %v5421 = vld [vmem:[#allocation19 + $0xc0] sm:$0xff]
        %v5422 = vld [vmem:[#allocation19 + $0xc8] sm:$0xff]
        %v5423 = vld [vmem:[#allocation19 + $0xd0] sm:$0xff]
        %v5424 = vld [vmem:[#allocation19 + $0xd8] sm:$0xff]
        %v5425 = vld [vmem:[#allocation19 + $0xe0] sm:$0xff]
        %v5426 = vld [vmem:[#allocation19 + $0xe8] sm:$0xff]
        %v5427 = vld [vmem:[#allocation19 + $0xf0] sm:$0xff]
        %v5428 = vld [vmem:[#allocation19 + $0xf8] sm:$0xff]
        %v5429 = vpack.c.bf16 %v5144, %v5140
        %v5430 = vpack.c.bf16 %v5145, %v5141
        %v5431 = vpack.c.bf16 %v5146, %v5142
        %v5432 = vpack.c.bf16 %v5147, %v5143
        %v5433 = vpack.c.bf16 %v5152, %v5148
        %v5434 = vpack.c.bf16 %v5153, %v5149
        %v5435 = vpack.c.bf16 %v5154, %v5150
        %v5436 = vpack.c.bf16 %v5155, %v5151
        %v5437 = vpack.c.bf16 %v5160, %v5156
        %v5438 = vpack.c.bf16 %v5161, %v5157
        %v5439 = vpack.c.bf16 %v5162, %v5158
        %v5440 = vpack.c.bf16 %v5163, %v5159
        %v5441 = vpack.c.bf16 %v5168, %v5164
        %v5442 = vpack.c.bf16 %v5169, %v5165
        %v5443 = vpack.c.bf16 %v5170, %v5166
        %v5444 = vpack.c.bf16 %v5171, %v5167
        %v5445 = vpack.c.bf16 %v5176, %v5172
        %v5446 = vpack.c.bf16 %v5177, %v5173
        %v5447 = vpack.c.bf16 %v5178, %v5174
        %v5448 = vpack.c.bf16 %v5179, %v5175
        %v5449 = vpack.c.bf16 %v5184, %v5180
        %v5450 = vpack.c.bf16 %v5185, %v5181
        %v5451 = vpack.c.bf16 %v5186, %v5182
        %v5452 = vpack.c.bf16 %v5187, %v5183
        %v5453 = vpack.c.bf16 %v5192, %v5188
        %v5454 = vpack.c.bf16 %v5193, %v5189
        %v5455 = vpack.c.bf16 %v5194, %v5190
        %v5456 = vpack.c.bf16 %v5195, %v5191
        %v5457 = vpack.c.bf16 %v5200, %v5196
        %v5458 = vpack.c.bf16 %v5201, %v5197
        %v5459 = vpack.c.bf16 %v5202, %v5198
        %v5460 = vpack.c.bf16 %v5203, %v5199
        %v5462 = vperm.slane %v5332, 0
        %v5463 = vperm.slane %v5332, 1
        %v5464 = vperm.slane %v5332, 2
        %v5465 = vperm.slane %v5332, 3
        %v5598 = vunpack.c.l.b16 %v5204
        %v5599 = vunpack.c.h.b16 %v5204
        %v5600 = vunpack.c.l.b16 %v5205
        %v5601 = vunpack.c.h.b16 %v5205
        %v5602 = vunpack.c.l.b16 %v5206
        %v5603 = vunpack.c.h.b16 %v5206
        %v5604 = vunpack.c.l.b16 %v5207
        %v5605 = vunpack.c.h.b16 %v5207
        %v5606 = vunpack.c.l.b16 %v5208
        %v5607 = vunpack.c.h.b16 %v5208
        %v5608 = vunpack.c.l.b16 %v5209
        %v5609 = vunpack.c.h.b16 %v5209
        %v5610 = vunpack.c.l.b16 %v5210
        %v5611 = vunpack.c.h.b16 %v5210
        %v5612 = vunpack.c.l.b16 %v5211
        %v5613 = vunpack.c.h.b16 %v5211
        %v5614 = vunpack.c.l.b16 %v5212
        %v5615 = vunpack.c.h.b16 %v5212
        %v5616 = vunpack.c.l.b16 %v5213
        %v5617 = vunpack.c.h.b16 %v5213
        %v5618 = vunpack.c.l.b16 %v5214
        %v5619 = vunpack.c.h.b16 %v5214
        %v5620 = vunpack.c.l.b16 %v5215
        %v5621 = vunpack.c.h.b16 %v5215
        %v5622 = vunpack.c.l.b16 %v5216
        %v5623 = vunpack.c.h.b16 %v5216
        %v5624 = vunpack.c.l.b16 %v5217
        %v5625 = vunpack.c.h.b16 %v5217
        %v5626 = vunpack.c.l.b16 %v5218
        %v5627 = vunpack.c.h.b16 %v5218
        %v5628 = vunpack.c.l.b16 %v5219
        %v5629 = vunpack.c.h.b16 %v5219
        %v5630 = vunpack.c.l.b16 %v5220
        %v5631 = vunpack.c.h.b16 %v5220
        %v5632 = vunpack.c.l.b16 %v5221
        %v5633 = vunpack.c.h.b16 %v5221
        %v5634 = vunpack.c.l.b16 %v5222
        %v5635 = vunpack.c.h.b16 %v5222
        %v5636 = vunpack.c.l.b16 %v5223
        %v5637 = vunpack.c.h.b16 %v5223
        %v5638 = vunpack.c.l.b16 %v5224
        %v5639 = vunpack.c.h.b16 %v5224
        %v5640 = vunpack.c.l.b16 %v5225
        %v5641 = vunpack.c.h.b16 %v5225
        %v5642 = vunpack.c.l.b16 %v5226
        %v5643 = vunpack.c.h.b16 %v5226
        %v5644 = vunpack.c.l.b16 %v5227
        %v5645 = vunpack.c.h.b16 %v5227
        %v5646 = vunpack.c.l.b16 %v5228
        %v5647 = vunpack.c.h.b16 %v5228
        %v5648 = vunpack.c.l.b16 %v5229
        %v5649 = vunpack.c.h.b16 %v5229
        %v5650 = vunpack.c.l.b16 %v5230
        %v5651 = vunpack.c.h.b16 %v5230
        %v5652 = vunpack.c.l.b16 %v5231
        %v5653 = vunpack.c.h.b16 %v5231
        %v5654 = vunpack.c.l.b16 %v5232
        %v5655 = vunpack.c.h.b16 %v5232
        %v5656 = vunpack.c.l.b16 %v5233
        %v5657 = vunpack.c.h.b16 %v5233
        %v5658 = vunpack.c.l.b16 %v5234
        %v5659 = vunpack.c.h.b16 %v5234
        %v5660 = vunpack.c.l.b16 %v5235
        %v5661 = vunpack.c.h.b16 %v5235
        %v5662 = vunpack.c.l.b16 %v5236
        %v5663 = vunpack.c.h.b16 %v5236
        %v5664 = vunpack.c.l.b16 %v5237
        %v5665 = vunpack.c.h.b16 %v5237
        %v5666 = vunpack.c.l.b16 %v5238
        %v5667 = vunpack.c.h.b16 %v5238
        %v5668 = vunpack.c.l.b16 %v5239
        %v5669 = vunpack.c.h.b16 %v5239
        %v5670 = vunpack.c.l.b16 %v5240
        %v5671 = vunpack.c.h.b16 %v5240
        %v5672 = vunpack.c.l.b16 %v5241
        %v5673 = vunpack.c.h.b16 %v5241
        %v5674 = vunpack.c.l.b16 %v5242
        %v5675 = vunpack.c.h.b16 %v5242
        %v5676 = vunpack.c.l.b16 %v5243
        %v5677 = vunpack.c.h.b16 %v5243
        %v5678 = vunpack.c.l.b16 %v5244
        %v5679 = vunpack.c.h.b16 %v5244
        %v5680 = vunpack.c.l.b16 %v5245
        %v5681 = vunpack.c.h.b16 %v5245
        %v5682 = vunpack.c.l.b16 %v5246
        %v5683 = vunpack.c.h.b16 %v5246
        %v5684 = vunpack.c.l.b16 %v5247
        %v5685 = vunpack.c.h.b16 %v5247
        %v5686 = vunpack.c.l.b16 %v5248
        %v5687 = vunpack.c.h.b16 %v5248
        %v5688 = vunpack.c.l.b16 %v5249
        %v5689 = vunpack.c.h.b16 %v5249
        %v5690 = vunpack.c.l.b16 %v5250
        %v5691 = vunpack.c.h.b16 %v5250
        %v5692 = vunpack.c.l.b16 %v5251
        %v5693 = vunpack.c.h.b16 %v5251
        %v5694 = vunpack.c.l.b16 %v5252
        %v5695 = vunpack.c.h.b16 %v5252
        %v5696 = vunpack.c.l.b16 %v5253
        %v5697 = vunpack.c.h.b16 %v5253
        %v5698 = vunpack.c.l.b16 %v5254
        %v5699 = vunpack.c.h.b16 %v5254
        %v5700 = vunpack.c.l.b16 %v5255
        %v5701 = vunpack.c.h.b16 %v5255
        %v5702 = vunpack.c.l.b16 %v5256
        %v5703 = vunpack.c.h.b16 %v5256
        %v5704 = vunpack.c.l.b16 %v5257
        %v5705 = vunpack.c.h.b16 %v5257
        %v5706 = vunpack.c.l.b16 %v5258
        %v5707 = vunpack.c.h.b16 %v5258
        %v5708 = vunpack.c.l.b16 %v5259
        %v5709 = vunpack.c.h.b16 %v5259
        %v5710 = vunpack.c.l.b16 %v5260
        %v5711 = vunpack.c.h.b16 %v5260
        %v5712 = vunpack.c.l.b16 %v5261
        %v5713 = vunpack.c.h.b16 %v5261
        %v5714 = vunpack.c.l.b16 %v5262
        %v5715 = vunpack.c.h.b16 %v5262
        %v5716 = vunpack.c.l.b16 %v5263
        %v5717 = vunpack.c.h.b16 %v5263
        %v5718 = vunpack.c.l.b16 %v5264
        %v5719 = vunpack.c.h.b16 %v5264
        %v5720 = vunpack.c.l.b16 %v5265
        %v5721 = vunpack.c.h.b16 %v5265
        %v5722 = vunpack.c.l.b16 %v5266
        %v5723 = vunpack.c.h.b16 %v5266
        %v5724 = vunpack.c.l.b16 %v5267
        %v5725 = vunpack.c.h.b16 %v5267
        %v5726 = vunpack.c.l.b16 %v5268
        %v5727 = vunpack.c.h.b16 %v5268
        %v5728 = vunpack.c.l.b16 %v5269
        %v5729 = vunpack.c.h.b16 %v5269
        %v5730 = vunpack.c.l.b16 %v5270
        %v5731 = vunpack.c.h.b16 %v5270
        %v5732 = vunpack.c.l.b16 %v5271
        %v5733 = vunpack.c.h.b16 %v5271
        %v5734 = vunpack.c.l.b16 %v5272
        %v5735 = vunpack.c.h.b16 %v5272
        %v5736 = vunpack.c.l.b16 %v5273
        %v5737 = vunpack.c.h.b16 %v5273
        %v5738 = vunpack.c.l.b16 %v5274
        %v5739 = vunpack.c.h.b16 %v5274
        %v5740 = vunpack.c.l.b16 %v5275
        %v5741 = vunpack.c.h.b16 %v5275
        %v5742 = vunpack.c.l.b16 %v5276
        %v5743 = vunpack.c.h.b16 %v5276
        %v5744 = vunpack.c.l.b16 %v5277
        %v5745 = vunpack.c.h.b16 %v5277
        %v5746 = vunpack.c.l.b16 %v5278
        %v5747 = vunpack.c.h.b16 %v5278
        %v5748 = vunpack.c.l.b16 %v5279
        %v5749 = vunpack.c.h.b16 %v5279
        %v5750 = vunpack.c.l.b16 %v5280
        %v5751 = vunpack.c.h.b16 %v5280
        %v5752 = vunpack.c.l.b16 %v5281
        %v5753 = vunpack.c.h.b16 %v5281
        %v5754 = vunpack.c.l.b16 %v5282
        %v5755 = vunpack.c.h.b16 %v5282
        %v5756 = vunpack.c.l.b16 %v5283
        %v5757 = vunpack.c.h.b16 %v5283
        %v5758 = vunpack.c.l.b16 %v5284
        %v5759 = vunpack.c.h.b16 %v5284
        %v5760 = vunpack.c.l.b16 %v5285
        %v5761 = vunpack.c.h.b16 %v5285
        %v5762 = vunpack.c.l.b16 %v5286
        %v5763 = vunpack.c.h.b16 %v5286
        %v5764 = vunpack.c.l.b16 %v5287
        %v5765 = vunpack.c.h.b16 %v5287
        %v5766 = vunpack.c.l.b16 %v5288
        %v5767 = vunpack.c.h.b16 %v5288
        %v5768 = vunpack.c.l.b16 %v5289
        %v5769 = vunpack.c.h.b16 %v5289
        %v5770 = vunpack.c.l.b16 %v5290
        %v5771 = vunpack.c.h.b16 %v5290
        %v5772 = vunpack.c.l.b16 %v5291
        %v5773 = vunpack.c.h.b16 %v5291
        %v5774 = vunpack.c.l.b16 %v5292
        %v5775 = vunpack.c.h.b16 %v5292
        %v5776 = vunpack.c.l.b16 %v5293
        %v5777 = vunpack.c.h.b16 %v5293
        %v5778 = vunpack.c.l.b16 %v5294
        %v5779 = vunpack.c.h.b16 %v5294
        %v5780 = vunpack.c.l.b16 %v5295
        %v5781 = vunpack.c.h.b16 %v5295
        %v5782 = vunpack.c.l.b16 %v5296
        %v5783 = vunpack.c.h.b16 %v5296
        %v5784 = vunpack.c.l.b16 %v5297
        %v5785 = vunpack.c.h.b16 %v5297
        %v5786 = vunpack.c.l.b16 %v5298
        %v5787 = vunpack.c.h.b16 %v5298
        %v5788 = vunpack.c.l.b16 %v5299
        %v5789 = vunpack.c.h.b16 %v5299
        %v5790 = vunpack.c.l.b16 %v5300
        %v5791 = vunpack.c.h.b16 %v5300
        %v5792 = vunpack.c.l.b16 %v5301
        %v5793 = vunpack.c.h.b16 %v5301
        %v5794 = vunpack.c.l.b16 %v5302
        %v5795 = vunpack.c.h.b16 %v5302
        %v5796 = vunpack.c.l.b16 %v5303
        %v5797 = vunpack.c.h.b16 %v5303
        %v5798 = vunpack.c.l.b16 %v5304
        %v5799 = vunpack.c.h.b16 %v5304
        %v5800 = vunpack.c.l.b16 %v5305
        %v5801 = vunpack.c.h.b16 %v5305
        %v5802 = vunpack.c.l.b16 %v5306
        %v5803 = vunpack.c.h.b16 %v5306
        %v5804 = vunpack.c.l.b16 %v5307
        %v5805 = vunpack.c.h.b16 %v5307
        %v5806 = vunpack.c.l.b16 %v5308
        %v5807 = vunpack.c.h.b16 %v5308
        %v5808 = vunpack.c.l.b16 %v5309
        %v5809 = vunpack.c.h.b16 %v5309
        %v5810 = vunpack.c.l.b16 %v5310
        %v5811 = vunpack.c.h.b16 %v5310
        %v5812 = vunpack.c.l.b16 %v5311
        %v5813 = vunpack.c.h.b16 %v5311
        %v5814 = vunpack.c.l.b16 %v5312
        %v5815 = vunpack.c.h.b16 %v5312
        %v5816 = vunpack.c.l.b16 %v5313
        %v5817 = vunpack.c.h.b16 %v5313
        %v5818 = vunpack.c.l.b16 %v5314
        %v5819 = vunpack.c.h.b16 %v5314
        %v5820 = vunpack.c.l.b16 %v5315
        %v5821 = vunpack.c.h.b16 %v5315
        %v5822 = vunpack.c.l.b16 %v5316
        %v5823 = vunpack.c.h.b16 %v5316
        %v5824 = vunpack.c.l.b16 %v5317
        %v5825 = vunpack.c.h.b16 %v5317
        %v5826 = vunpack.c.l.b16 %v5318
        %v5827 = vunpack.c.h.b16 %v5318
        %v5828 = vunpack.c.l.b16 %v5319
        %v5829 = vunpack.c.h.b16 %v5319
        %v5830 = vunpack.c.l.b16 %v5320
        %v5831 = vunpack.c.h.b16 %v5320
        %v5832 = vunpack.c.l.b16 %v5321
        %v5833 = vunpack.c.h.b16 %v5321
        %v5834 = vunpack.c.l.b16 %v5322
        %v5835 = vunpack.c.h.b16 %v5322
        %v5836 = vunpack.c.l.b16 %v5323
        %v5837 = vunpack.c.h.b16 %v5323
        %v5838 = vunpack.c.l.b16 %v5324
        %v5839 = vunpack.c.h.b16 %v5324
        %v5840 = vunpack.c.l.b16 %v5325
        %v5841 = vunpack.c.h.b16 %v5325
        %v5842 = vunpack.c.l.b16 %v5326
        %v5843 = vunpack.c.h.b16 %v5326
        %v5844 = vunpack.c.l.b16 %v5327
        %v5845 = vunpack.c.h.b16 %v5327
        %v5846 = vunpack.c.l.b16 %v5328
        %v5847 = vunpack.c.h.b16 %v5328
        %v5848 = vunpack.c.l.b16 %v5329
        %v5849 = vunpack.c.h.b16 %v5329
        %v5850 = vunpack.c.l.b16 %v5330
        %v5851 = vunpack.c.h.b16 %v5330
        %v5852 = vunpack.c.l.b16 %v5331
        %v5853 = vunpack.c.h.b16 %v5331
        %v5854 = vpack.c.b16 %v5602, %v5598
        %v5855 = vpack.c.b16 %v5603, %v5599
        %v5856 = vpack.c.b16 %v5604, %v5600
        %v5857 = vpack.c.b16 %v5605, %v5601
        %v5858 = vpack.c.b16 %v5610, %v5606
        %v5859 = vpack.c.b16 %v5611, %v5607
        %v5860 = vpack.c.b16 %v5612, %v5608
        %v5861 = vpack.c.b16 %v5613, %v5609
        %v5862 = vpack.c.b16 %v5618, %v5614
        %v5863 = vpack.c.b16 %v5619, %v5615
        %v5864 = vpack.c.b16 %v5620, %v5616
        %v5865 = vpack.c.b16 %v5621, %v5617
        %v5866 = vpack.c.b16 %v5626, %v5622
        %v5867 = vpack.c.b16 %v5627, %v5623
        %v5868 = vpack.c.b16 %v5628, %v5624
        %v5869 = vpack.c.b16 %v5629, %v5625
        %v5870 = vpack.c.b16 %v5634, %v5630
        %v5871 = vpack.c.b16 %v5635, %v5631
        %v5872 = vpack.c.b16 %v5636, %v5632
        %v5873 = vpack.c.b16 %v5637, %v5633
        %v5874 = vpack.c.b16 %v5642, %v5638
        %v5875 = vpack.c.b16 %v5643, %v5639
        %v5876 = vpack.c.b16 %v5644, %v5640
        %v5877 = vpack.c.b16 %v5645, %v5641
        %v5878 = vpack.c.b16 %v5650, %v5646
        %v5879 = vpack.c.b16 %v5651, %v5647
        %v5880 = vpack.c.b16 %v5652, %v5648
        %v5881 = vpack.c.b16 %v5653, %v5649
        %v5882 = vpack.c.b16 %v5658, %v5654
        %v5883 = vpack.c.b16 %v5659, %v5655
        %v5884 = vpack.c.b16 %v5660, %v5656
        %v5885 = vpack.c.b16 %v5661, %v5657
        %v5886 = vpack.c.b16 %v5666, %v5662
        %v5887 = vpack.c.b16 %v5667, %v5663
        %v5888 = vpack.c.b16 %v5668, %v5664
        %v5889 = vpack.c.b16 %v5669, %v5665
        %v5890 = vpack.c.b16 %v5674, %v5670
        %v5891 = vpack.c.b16 %v5675, %v5671
        %v5892 = vpack.c.b16 %v5676, %v5672
        %v5893 = vpack.c.b16 %v5677, %v5673
        %v5894 = vpack.c.b16 %v5682, %v5678
        %v5895 = vpack.c.b16 %v5683, %v5679
        %v5896 = vpack.c.b16 %v5684, %v5680
        %v5897 = vpack.c.b16 %v5685, %v5681
        %v5898 = vpack.c.b16 %v5690, %v5686
        %v5899 = vpack.c.b16 %v5691, %v5687
        %v5900 = vpack.c.b16 %v5692, %v5688
        %v5901 = vpack.c.b16 %v5693, %v5689
        %v5902 = vpack.c.b16 %v5698, %v5694
        %v5903 = vpack.c.b16 %v5699, %v5695
        %v5904 = vpack.c.b16 %v5700, %v5696
        %v5905 = vpack.c.b16 %v5701, %v5697
        %v5906 = vpack.c.b16 %v5706, %v5702
        %v5907 = vpack.c.b16 %v5707, %v5703
        %v5908 = vpack.c.b16 %v5708, %v5704
        %v5909 = vpack.c.b16 %v5709, %v5705
        %v5910 = vpack.c.b16 %v5714, %v5710
        %v5911 = vpack.c.b16 %v5715, %v5711
        %v5912 = vpack.c.b16 %v5716, %v5712
        %v5913 = vpack.c.b16 %v5717, %v5713
        %v5914 = vpack.c.b16 %v5722, %v5718
        %v5915 = vpack.c.b16 %v5723, %v5719
        %v5916 = vpack.c.b16 %v5724, %v5720
        %v5917 = vpack.c.b16 %v5725, %v5721
        %v5918 = vpack.c.b16 %v5730, %v5726
        %v5919 = vpack.c.b16 %v5731, %v5727
        %v5920 = vpack.c.b16 %v5732, %v5728
        %v5921 = vpack.c.b16 %v5733, %v5729
        %v5922 = vpack.c.b16 %v5738, %v5734
        %v5923 = vpack.c.b16 %v5739, %v5735
        %v5924 = vpack.c.b16 %v5740, %v5736
        %v5925 = vpack.c.b16 %v5741, %v5737
        %v5926 = vpack.c.b16 %v5746, %v5742
        %v5927 = vpack.c.b16 %v5747, %v5743
        %v5928 = vpack.c.b16 %v5748, %v5744
        %v5929 = vpack.c.b16 %v5749, %v5745
        %v5930 = vpack.c.b16 %v5754, %v5750
        %v5931 = vpack.c.b16 %v5755, %v5751
        %v5932 = vpack.c.b16 %v5756, %v5752
        %v5933 = vpack.c.b16 %v5757, %v5753
        %v5934 = vpack.c.b16 %v5762, %v5758
        %v5935 = vpack.c.b16 %v5763, %v5759
        %v5936 = vpack.c.b16 %v5764, %v5760
        %v5937 = vpack.c.b16 %v5765, %v5761
        %v5938 = vpack.c.b16 %v5770, %v5766
        %v5939 = vpack.c.b16 %v5771, %v5767
        %v5940 = vpack.c.b16 %v5772, %v5768
        %v5941 = vpack.c.b16 %v5773, %v5769
        %v5942 = vpack.c.b16 %v5778, %v5774
        %v5943 = vpack.c.b16 %v5779, %v5775
        %v5944 = vpack.c.b16 %v5780, %v5776
        %v5945 = vpack.c.b16 %v5781, %v5777
        %v5946 = vpack.c.b16 %v5786, %v5782
        %v5947 = vpack.c.b16 %v5787, %v5783
        %v5948 = vpack.c.b16 %v5788, %v5784
        %v5949 = vpack.c.b16 %v5789, %v5785
        %v5950 = vpack.c.b16 %v5794, %v5790
        %v5951 = vpack.c.b16 %v5795, %v5791
        %v5952 = vpack.c.b16 %v5796, %v5792
        %v5953 = vpack.c.b16 %v5797, %v5793
        %v5954 = vpack.c.b16 %v5802, %v5798
        %v5955 = vpack.c.b16 %v5803, %v5799
        %v5956 = vpack.c.b16 %v5804, %v5800
        %v5957 = vpack.c.b16 %v5805, %v5801
        %v5958 = vpack.c.b16 %v5810, %v5806
        %v5959 = vpack.c.b16 %v5811, %v5807
        %v5960 = vpack.c.b16 %v5812, %v5808
        %v5961 = vpack.c.b16 %v5813, %v5809
        %v5962 = vpack.c.b16 %v5818, %v5814
        %v5963 = vpack.c.b16 %v5819, %v5815
        %v5964 = vpack.c.b16 %v5820, %v5816
        %v5965 = vpack.c.b16 %v5821, %v5817
        %v5966 = vpack.c.b16 %v5826, %v5822
        %v5967 = vpack.c.b16 %v5827, %v5823
        %v5968 = vpack.c.b16 %v5828, %v5824
        %v5969 = vpack.c.b16 %v5829, %v5825
        %v5970 = vpack.c.b16 %v5834, %v5830
        %v5971 = vpack.c.b16 %v5835, %v5831
        %v5972 = vpack.c.b16 %v5836, %v5832
        %v5973 = vpack.c.b16 %v5837, %v5833
        %v5974 = vpack.c.b16 %v5842, %v5838
        %v5975 = vpack.c.b16 %v5843, %v5839
        %v5976 = vpack.c.b16 %v5844, %v5840
        %v5977 = vpack.c.b16 %v5845, %v5841
        %v5978 = vpack.c.b16 %v5850, %v5846
        %v5979 = vpack.c.b16 %v5851, %v5847
        %v5980 = vpack.c.b16 %v5852, %v5848
        %v5981 = vpack.c.b16 %v5853, %v5849
        %6110 = vmatpush.bf16.msra.mxu0 %v5882
        %6111 = vmatpush.bf16.msra.mxu0 %v5878
        %6112 = vmatpush.bf16.msra.mxu0 %v5874
        %6113 = vmatpush.bf16.msra.mxu0 %v5870
        %6114 = vmatpush.bf16.msra.mxu0 %v5866
        %6115 = vmatpush.bf16.msra.mxu0 %v5862
        %6116 = vmatpush.bf16.msra.mxu0 %v5858
        %6117 = vmatpush.bf16.msra.mxu0 %v5854
        %6118 = vmatmul.bf16.gmra.mxu0 %v5429
        %v6119 = vpop.f32.mrf.mxu0
        %v6120 = vadd.f32 %v5462, %v6119
        %v6121 = vpop.f32.mrf.mxu0
        %v6122 = vadd.f32 %v5462, %v6121
        %6123 = vmatmul.bf16.gmra.mxu0 %v5433
        %v6124 = vpop.f32.mrf.mxu0
        %v6125 = vadd.f32 %v5462, %v6124
        %v6126 = vpop.f32.mrf.mxu0
        %v6127 = vadd.f32 %v5462, %v6126
        %6128 = vmatmul.bf16.gmra.mxu0 %v5437
        %v6129 = vpop.f32.mrf.mxu0
        %v6130 = vadd.f32 %v5462, %v6129
        %v6131 = vpop.f32.mrf.mxu0
        %v6132 = vadd.f32 %v5462, %v6131
        %6133 = vmatmul.bf16.gmra.mxu0 %v5441
        %v6134 = vpop.f32.mrf.mxu0
        %v6135 = vadd.f32 %v5462, %v6134
        %v6136 = vpop.f32.mrf.mxu0
        %v6137 = vadd.f32 %v5462, %v6136
        %6138 = vmatmul.bf16.gmra.mxu0 %v5445
        %v6139 = vpop.f32.mrf.mxu0
        %v6140 = vadd.f32 %v5462, %v6139
        %v6141 = vpop.f32.mrf.mxu0
        %v6142 = vadd.f32 %v5462, %v6141
        %6143 = vmatmul.bf16.gmra.mxu0 %v5449
        %v6144 = vpop.f32.mrf.mxu0
        %v6145 = vadd.f32 %v5462, %v6144
        %v6146 = vpop.f32.mrf.mxu0
        %v6147 = vadd.f32 %v5462, %v6146
        %6148 = vmatmul.bf16.gmra.mxu0 %v5453
        %v6149 = vpop.f32.mrf.mxu0
        %v6150 = vadd.f32 %v5462, %v6149
        %v6151 = vpop.f32.mrf.mxu0
        %v6152 = vadd.f32 %v5462, %v6151
        %6153 = vmatmul.bf16.gmra.mxu0 %v5457
        %v6154 = vpop.f32.mrf.mxu0
        %v6155 = vadd.f32 %v5462, %v6154
        %v6156 = vpop.f32.mrf.mxu0
        %v6157 = vadd.f32 %v5462, %v6156
        %6158 = vdwg.mxu0
        %6159 = vmatpush.bf16.msra.mxu0 %v5914
        %6160 = vmatpush.bf16.msra.mxu0 %v5910
        %6161 = vmatpush.bf16.msra.mxu0 %v5906
        %6162 = vmatpush.bf16.msra.mxu0 %v5902
        %6163 = vmatpush.bf16.msra.mxu0 %v5898
        %6164 = vmatpush.bf16.msra.mxu0 %v5894
        %6165 = vmatpush.bf16.msra.mxu0 %v5890
        %6166 = vmatpush.bf16.msra.mxu0 %v5886
        %6167 = vmatmul.bf16.gmra.mxu0 %v5430
        %v6168 = vpop.f32.mrf.mxu0
        %v6169 = vadd.f32 %v6120, %v6168
        %v6170 = vpop.f32.mrf.mxu0
        %v6171 = vadd.f32 %v6122, %v6170
        %6172 = vmatmul.bf16.gmra.mxu0 %v5434
        %v6173 = vpop.f32.mrf.mxu0
        %v6174 = vadd.f32 %v6125, %v6173
        %v6175 = vpop.f32.mrf.mxu0
        %v6176 = vadd.f32 %v6127, %v6175
        %6177 = vmatmul.bf16.gmra.mxu0 %v5438
        %v6178 = vpop.f32.mrf.mxu0
        %v6179 = vadd.f32 %v6130, %v6178
        %v6180 = vpop.f32.mrf.mxu0
        %v6181 = vadd.f32 %v6132, %v6180
        %6182 = vmatmul.bf16.gmra.mxu0 %v5442
        %v6183 = vpop.f32.mrf.mxu0
        %v6184 = vadd.f32 %v6135, %v6183
        %v6185 = vpop.f32.mrf.mxu0
        %v6186 = vadd.f32 %v6137, %v6185
        %6187 = vmatmul.bf16.gmra.mxu0 %v5446
        %v6188 = vpop.f32.mrf.mxu0
        %v6189 = vadd.f32 %v6140, %v6188
        %v6190 = vpop.f32.mrf.mxu0
        %v6191 = vadd.f32 %v6142, %v6190
        %6192 = vmatmul.bf16.gmra.mxu0 %v5450
        %v6193 = vpop.f32.mrf.mxu0
        %v6194 = vadd.f32 %v6145, %v6193
        %v6195 = vpop.f32.mrf.mxu0
        %v6196 = vadd.f32 %v6147, %v6195
        %6197 = vmatmul.bf16.gmra.mxu0 %v5454
        %v6198 = vpop.f32.mrf.mxu0
        %v6199 = vadd.f32 %v6150, %v6198
        %v6200 = vpop.f32.mrf.mxu0
        %v6201 = vadd.f32 %v6152, %v6200
        %6202 = vmatmul.bf16.gmra.mxu0 %v5458
        %v6203 = vpop.f32.mrf.mxu0
        %v6204 = vadd.f32 %v6155, %v6203
        %v6205 = vpop.f32.mrf.mxu0
        %v6206 = vadd.f32 %v6157, %v6205
        %6207 = vdwg.mxu0
        %6208 = vmatpush.bf16.msra.mxu0 %v5946
        %6209 = vmatpush.bf16.msra.mxu0 %v5942
        %6210 = vmatpush.bf16.msra.mxu0 %v5938
        %6211 = vmatpush.bf16.msra.mxu0 %v5934
        %6212 = vmatpush.bf16.msra.mxu0 %v5930
        %6213 = vmatpush.bf16.msra.mxu0 %v5926
        %6214 = vmatpush.bf16.msra.mxu0 %v5922
        %6215 = vmatpush.bf16.msra.mxu0 %v5918
        %6216 = vmatmul.bf16.gmra.mxu0 %v5431
        %v6217 = vpop.f32.mrf.mxu0
        %v6218 = vadd.f32 %v6169, %v6217
        %v6219 = vpop.f32.mrf.mxu0
        %v6220 = vadd.f32 %v6171, %v6219
        %6221 = vmatmul.bf16.gmra.mxu0 %v5435
        %v6222 = vpop.f32.mrf.mxu0
        %v6223 = vadd.f32 %v6174, %v6222
        %v6224 = vpop.f32.mrf.mxu0
        %v6225 = vadd.f32 %v6176, %v6224
        %6226 = vmatmul.bf16.gmra.mxu0 %v5439
        %v6227 = vpop.f32.mrf.mxu0
        %v6228 = vadd.f32 %v6179, %v6227
        %v6229 = vpop.f32.mrf.mxu0
        %v6230 = vadd.f32 %v6181, %v6229
        %6231 = vmatmul.bf16.gmra.mxu0 %v5443
        %v6232 = vpop.f32.mrf.mxu0
        %v6233 = vadd.f32 %v6184, %v6232
        %v6234 = vpop.f32.mrf.mxu0
        %v6235 = vadd.f32 %v6186, %v6234
        %6236 = vmatmul.bf16.gmra.mxu0 %v5447
        %v6237 = vpop.f32.mrf.mxu0
        %v6238 = vadd.f32 %v6189, %v6237
        %v6239 = vpop.f32.mrf.mxu0
        %v6240 = vadd.f32 %v6191, %v6239
        %6241 = vmatmul.bf16.gmra.mxu0 %v5451
        %v6242 = vpop.f32.mrf.mxu0
        %v6243 = vadd.f32 %v6194, %v6242
        %v6244 = vpop.f32.mrf.mxu0
        %v6245 = vadd.f32 %v6196, %v6244
        %6246 = vmatmul.bf16.gmra.mxu0 %v5455
        %v6247 = vpop.f32.mrf.mxu0
        %v6248 = vadd.f32 %v6199, %v6247
        %v6249 = vpop.f32.mrf.mxu0
        %v6250 = vadd.f32 %v6201, %v6249
        %6251 = vmatmul.bf16.gmra.mxu0 %v5459
        %v6252 = vpop.f32.mrf.mxu0
        %v6253 = vadd.f32 %v6204, %v6252
        %v6254 = vpop.f32.mrf.mxu0
        %v6255 = vadd.f32 %v6206, %v6254
        %6256 = vdwg.mxu0
        %6257 = vmatpush.bf16.msra.mxu0 %v5978
        %6258 = vmatpush.bf16.msra.mxu0 %v5974
        %6259 = vmatpush.bf16.msra.mxu0 %v5970
        %6260 = vmatpush.bf16.msra.mxu0 %v5966
        %6261 = vmatpush.bf16.msra.mxu0 %v5962
        %6262 = vmatpush.bf16.msra.mxu0 %v5958
        %6263 = vmatpush.bf16.msra.mxu0 %v5954
        %6264 = vmatpush.bf16.msra.mxu0 %v5950
        %6265 = vmatmul.bf16.gmra.mxu0 %v5432
        %v6266 = vpop.f32.mrf.mxu0
        %v6267 = vadd.f32 %v6218, %v6266
        %v6268 = vpop.f32.mrf.mxu0
        %v6269 = vadd.f32 %v6220, %v6268
        %6270 = vmatmul.bf16.gmra.mxu0 %v5436
        %v6271 = vpop.f32.mrf.mxu0
        %v6272 = vadd.f32 %v6223, %v6271
        %v6273 = vpop.f32.mrf.mxu0
        %v6274 = vadd.f32 %v6225, %v6273
        %6275 = vmatmul.bf16.gmra.mxu0 %v5440
        %v6276 = vpop.f32.mrf.mxu0
        %v6277 = vadd.f32 %v6228, %v6276
        %v6278 = vpop.f32.mrf.mxu0
        %v6279 = vadd.f32 %v6230, %v6278
        %6280 = vmatmul.bf16.gmra.mxu0 %v5444
        %v6281 = vpop.f32.mrf.mxu0
        %v6282 = vadd.f32 %v6233, %v6281
        %v6283 = vpop.f32.mrf.mxu0
        %v6284 = vadd.f32 %v6235, %v6283
        %6285 = vmatmul.bf16.gmra.mxu0 %v5448
        %v6286 = vpop.f32.mrf.mxu0
        %v6287 = vadd.f32 %v6238, %v6286
        %v6288 = vpop.f32.mrf.mxu0
        %v6289 = vadd.f32 %v6240, %v6288
        %6290 = vmatmul.bf16.gmra.mxu0 %v5452
        %v6291 = vpop.f32.mrf.mxu0
        %v6292 = vadd.f32 %v6243, %v6291
        %v6293 = vpop.f32.mrf.mxu0
        %v6294 = vadd.f32 %v6245, %v6293
        %6295 = vmatmul.bf16.gmra.mxu0 %v5456
        %v6296 = vpop.f32.mrf.mxu0
        %v6297 = vadd.f32 %v6248, %v6296
        %v6298 = vpop.f32.mrf.mxu0
        %v6299 = vadd.f32 %v6250, %v6298
        %6300 = vmatmul.bf16.gmra.mxu0 %v5460
        %v6301 = vpop.f32.mrf.mxu0
        %v6302 = vadd.f32 %v6253, %v6301
        %v6303 = vpop.f32.mrf.mxu0
        %v6304 = vadd.f32 %v6255, %v6303
        %6305 = vdwg.mxu0
        %6306 = vmatpush.bf16.msra.mxu0 %v5883
        %6307 = vmatpush.bf16.msra.mxu0 %v5879
        %6308 = vmatpush.bf16.msra.mxu0 %v5875
        %6309 = vmatpush.bf16.msra.mxu0 %v5871
        %6310 = vmatpush.bf16.msra.mxu0 %v5867
        %6311 = vmatpush.bf16.msra.mxu0 %v5863
        %6312 = vmatpush.bf16.msra.mxu0 %v5859
        %6313 = vmatpush.bf16.msra.mxu0 %v5855
        %6314 = vmatmul.bf16.gmra.mxu0 %v5429
        %v6315 = vpop.f32.mrf.mxu0
        %v6316 = vadd.f32 %v5463, %v6315
        %v6317 = vpop.f32.mrf.mxu0
        %v6318 = vadd.f32 %v5463, %v6317
        %6319 = vmatmul.bf16.gmra.mxu0 %v5433
        %v6320 = vpop.f32.mrf.mxu0
        %v6321 = vadd.f32 %v5463, %v6320
        %v6322 = vpop.f32.mrf.mxu0
        %v6323 = vadd.f32 %v5463, %v6322
        %6324 = vmatmul.bf16.gmra.mxu0 %v5437
        %v6325 = vpop.f32.mrf.mxu0
        %v6326 = vadd.f32 %v5463, %v6325
        %v6327 = vpop.f32.mrf.mxu0
        %v6328 = vadd.f32 %v5463, %v6327
        %6329 = vmatmul.bf16.gmra.mxu0 %v5441
        %v6330 = vpop.f32.mrf.mxu0
        %v6331 = vadd.f32 %v5463, %v6330
        %v6332 = vpop.f32.mrf.mxu0
        %v6333 = vadd.f32 %v5463, %v6332
        %6334 = vmatmul.bf16.gmra.mxu0 %v5445
        %v6335 = vpop.f32.mrf.mxu0
        %v6336 = vadd.f32 %v5463, %v6335
        %v6337 = vpop.f32.mrf.mxu0
        %v6338 = vadd.f32 %v5463, %v6337
        %6339 = vmatmul.bf16.gmra.mxu0 %v5449
        %v6340 = vpop.f32.mrf.mxu0
        %v6341 = vadd.f32 %v5463, %v6340
        %v6342 = vpop.f32.mrf.mxu0
        %v6343 = vadd.f32 %v5463, %v6342
        %6344 = vmatmul.bf16.gmra.mxu0 %v5453
        %v6345 = vpop.f32.mrf.mxu0
        %v6346 = vadd.f32 %v5463, %v6345
        %v6347 = vpop.f32.mrf.mxu0
        %v6348 = vadd.f32 %v5463, %v6347
        %6349 = vmatmul.bf16.gmra.mxu0 %v5457
        %v6350 = vpop.f32.mrf.mxu0
        %v6351 = vadd.f32 %v5463, %v6350
        %v6352 = vpop.f32.mrf.mxu0
        %v6353 = vadd.f32 %v5463, %v6352
        %6354 = vdwg.mxu0
        %6355 = vmatpush.bf16.msra.mxu0 %v5915
        %6356 = vmatpush.bf16.msra.mxu0 %v5911
        %6357 = vmatpush.bf16.msra.mxu0 %v5907
        %6358 = vmatpush.bf16.msra.mxu0 %v5903
        %6359 = vmatpush.bf16.msra.mxu0 %v5899
        %6360 = vmatpush.bf16.msra.mxu0 %v5895
        %6361 = vmatpush.bf16.msra.mxu0 %v5891
        %6362 = vmatpush.bf16.msra.mxu0 %v5887
        %6363 = vmatmul.bf16.gmra.mxu0 %v5430
        %v6364 = vpop.f32.mrf.mxu0
        %v6365 = vadd.f32 %v6316, %v6364
        %v6366 = vpop.f32.mrf.mxu0
        %v6367 = vadd.f32 %v6318, %v6366
        %6368 = vmatmul.bf16.gmra.mxu0 %v5434
        %v6369 = vpop.f32.mrf.mxu0
        %v6370 = vadd.f32 %v6321, %v6369
        %v6371 = vpop.f32.mrf.mxu0
        %v6372 = vadd.f32 %v6323, %v6371
        %6373 = vmatmul.bf16.gmra.mxu0 %v5438
        %v6374 = vpop.f32.mrf.mxu0
        %v6375 = vadd.f32 %v6326, %v6374
        %v6376 = vpop.f32.mrf.mxu0
        %v6377 = vadd.f32 %v6328, %v6376
        %6378 = vmatmul.bf16.gmra.mxu0 %v5442
        %v6379 = vpop.f32.mrf.mxu0
        %v6380 = vadd.f32 %v6331, %v6379
        %v6381 = vpop.f32.mrf.mxu0
        %v6382 = vadd.f32 %v6333, %v6381
        %6383 = vmatmul.bf16.gmra.mxu0 %v5446
        %v6384 = vpop.f32.mrf.mxu0
        %v6385 = vadd.f32 %v6336, %v6384
        %v6386 = vpop.f32.mrf.mxu0
        %v6387 = vadd.f32 %v6338, %v6386
        %6388 = vmatmul.bf16.gmra.mxu0 %v5450
        %v6389 = vpop.f32.mrf.mxu0
        %v6390 = vadd.f32 %v6341, %v6389
        %v6391 = vpop.f32.mrf.mxu0
        %v6392 = vadd.f32 %v6343, %v6391
        %6393 = vmatmul.bf16.gmra.mxu0 %v5454
        %v6394 = vpop.f32.mrf.mxu0
        %v6395 = vadd.f32 %v6346, %v6394
        %v6396 = vpop.f32.mrf.mxu0
        %v6397 = vadd.f32 %v6348, %v6396
        %6398 = vmatmul.bf16.gmra.mxu0 %v5458
        %v6399 = vpop.f32.mrf.mxu0
        %v6400 = vadd.f32 %v6351, %v6399
        %v6401 = vpop.f32.mrf.mxu0
        %v6402 = vadd.f32 %v6353, %v6401
        %6403 = vdwg.mxu0
        %6404 = vmatpush.bf16.msra.mxu0 %v5947
        %6405 = vmatpush.bf16.msra.mxu0 %v5943
        %6406 = vmatpush.bf16.msra.mxu0 %v5939
        %6407 = vmatpush.bf16.msra.mxu0 %v5935
        %6408 = vmatpush.bf16.msra.mxu0 %v5931
        %6409 = vmatpush.bf16.msra.mxu0 %v5927
        %6410 = vmatpush.bf16.msra.mxu0 %v5923
        %6411 = vmatpush.bf16.msra.mxu0 %v5919
        %6412 = vmatmul.bf16.gmra.mxu0 %v5431
        %v6413 = vpop.f32.mrf.mxu0
        %v6414 = vadd.f32 %v6365, %v6413
        %v6415 = vpop.f32.mrf.mxu0
        %v6416 = vadd.f32 %v6367, %v6415
        %6417 = vmatmul.bf16.gmra.mxu0 %v5435
        %v6418 = vpop.f32.mrf.mxu0
        %v6419 = vadd.f32 %v6370, %v6418
        %v6420 = vpop.f32.mrf.mxu0
        %v6421 = vadd.f32 %v6372, %v6420
        %6422 = vmatmul.bf16.gmra.mxu0 %v5439
        %v6423 = vpop.f32.mrf.mxu0
        %v6424 = vadd.f32 %v6375, %v6423
        %v6425 = vpop.f32.mrf.mxu0
        %v6426 = vadd.f32 %v6377, %v6425
        %6427 = vmatmul.bf16.gmra.mxu0 %v5443
        %v6428 = vpop.f32.mrf.mxu0
        %v6429 = vadd.f32 %v6380, %v6428
        %v6430 = vpop.f32.mrf.mxu0
        %v6431 = vadd.f32 %v6382, %v6430
        %6432 = vmatmul.bf16.gmra.mxu0 %v5447
        %v6433 = vpop.f32.mrf.mxu0
        %v6434 = vadd.f32 %v6385, %v6433
        %v6435 = vpop.f32.mrf.mxu0
        %v6436 = vadd.f32 %v6387, %v6435
        %6437 = vmatmul.bf16.gmra.mxu0 %v5451
        %v6438 = vpop.f32.mrf.mxu0
        %v6439 = vadd.f32 %v6390, %v6438
        %v6440 = vpop.f32.mrf.mxu0
        %v6441 = vadd.f32 %v6392, %v6440
        %6442 = vmatmul.bf16.gmra.mxu0 %v5455
        %v6443 = vpop.f32.mrf.mxu0
        %v6444 = vadd.f32 %v6395, %v6443
        %v6445 = vpop.f32.mrf.mxu0
        %v6446 = vadd.f32 %v6397, %v6445
        %6447 = vmatmul.bf16.gmra.mxu0 %v5459
        %v6448 = vpop.f32.mrf.mxu0
        %v6449 = vadd.f32 %v6400, %v6448
        %v6450 = vpop.f32.mrf.mxu0
        %v6451 = vadd.f32 %v6402, %v6450
        %6452 = vdwg.mxu0
        %6453 = vmatpush.bf16.msra.mxu0 %v5979
        %6454 = vmatpush.bf16.msra.mxu0 %v5975
        %6455 = vmatpush.bf16.msra.mxu0 %v5971
        %6456 = vmatpush.bf16.msra.mxu0 %v5967
        %6457 = vmatpush.bf16.msra.mxu0 %v5963
        %6458 = vmatpush.bf16.msra.mxu0 %v5959
        %6459 = vmatpush.bf16.msra.mxu0 %v5955
        %6460 = vmatpush.bf16.msra.mxu0 %v5951
        %6461 = vmatmul.bf16.gmra.mxu0 %v5432
        %v6462 = vpop.f32.mrf.mxu0
        %v6463 = vadd.f32 %v6414, %v6462
        %v6464 = vpop.f32.mrf.mxu0
        %v6465 = vadd.f32 %v6416, %v6464
        %6466 = vmatmul.bf16.gmra.mxu0 %v5436
        %v6467 = vpop.f32.mrf.mxu0
        %v6468 = vadd.f32 %v6419, %v6467
        %v6469 = vpop.f32.mrf.mxu0
        %v6470 = vadd.f32 %v6421, %v6469
        %6471 = vmatmul.bf16.gmra.mxu0 %v5440
        %v6472 = vpop.f32.mrf.mxu0
        %v6473 = vadd.f32 %v6424, %v6472
        %v6474 = vpop.f32.mrf.mxu0
        %v6475 = vadd.f32 %v6426, %v6474
        %6476 = vmatmul.bf16.gmra.mxu0 %v5444
        %v6477 = vpop.f32.mrf.mxu0
        %v6478 = vadd.f32 %v6429, %v6477
        %v6479 = vpop.f32.mrf.mxu0
        %v6480 = vadd.f32 %v6431, %v6479
        %6481 = vmatmul.bf16.gmra.mxu0 %v5448
        %v6482 = vpop.f32.mrf.mxu0
        %v6483 = vadd.f32 %v6434, %v6482
        %v6484 = vpop.f32.mrf.mxu0
        %v6485 = vadd.f32 %v6436, %v6484
        %6486 = vmatmul.bf16.gmra.mxu0 %v5452
        %v6487 = vpop.f32.mrf.mxu0
        %v6488 = vadd.f32 %v6439, %v6487
        %v6489 = vpop.f32.mrf.mxu0
        %v6490 = vadd.f32 %v6441, %v6489
        %6491 = vmatmul.bf16.gmra.mxu0 %v5456
        %v6492 = vpop.f32.mrf.mxu0
        %v6493 = vadd.f32 %v6444, %v6492
        %v6494 = vpop.f32.mrf.mxu0
        %v6495 = vadd.f32 %v6446, %v6494
        %6496 = vmatmul.bf16.gmra.mxu0 %v5460
        %v6497 = vpop.f32.mrf.mxu0
        %v6498 = vadd.f32 %v6449, %v6497
        %v6499 = vpop.f32.mrf.mxu0
        %v6500 = vadd.f32 %v6451, %v6499
        %6501 = vdwg.mxu0
        %6502 = vmatpush.bf16.msra.mxu0 %v5884
        %6503 = vmatpush.bf16.msra.mxu0 %v5880
        %6504 = vmatpush.bf16.msra.mxu0 %v5876
        %6505 = vmatpush.bf16.msra.mxu0 %v5872
        %6506 = vmatpush.bf16.msra.mxu0 %v5868
        %6507 = vmatpush.bf16.msra.mxu0 %v5864
        %6508 = vmatpush.bf16.msra.mxu0 %v5860
        %6509 = vmatpush.bf16.msra.mxu0 %v5856
        %6510 = vmatmul.bf16.gmra.mxu0 %v5429
        %v6511 = vpop.f32.mrf.mxu0
        %v6512 = vadd.f32 %v5464, %v6511
        %v6513 = vpop.f32.mrf.mxu0
        %v6514 = vadd.f32 %v5464, %v6513
        %6515 = vmatmul.bf16.gmra.mxu0 %v5433
        %v6516 = vpop.f32.mrf.mxu0
        %v6517 = vadd.f32 %v5464, %v6516
        %v6518 = vpop.f32.mrf.mxu0
        %v6519 = vadd.f32 %v5464, %v6518
        %6520 = vmatmul.bf16.gmra.mxu0 %v5437
        %v6521 = vpop.f32.mrf.mxu0
        %v6522 = vadd.f32 %v5464, %v6521
        %v6523 = vpop.f32.mrf.mxu0
        %v6524 = vadd.f32 %v5464, %v6523
        %6525 = vmatmul.bf16.gmra.mxu0 %v5441
        %v6526 = vpop.f32.mrf.mxu0
        %v6527 = vadd.f32 %v5464, %v6526
        %v6528 = vpop.f32.mrf.mxu0
        %v6529 = vadd.f32 %v5464, %v6528
        %6530 = vmatmul.bf16.gmra.mxu0 %v5445
        %v6531 = vpop.f32.mrf.mxu0
        %v6532 = vadd.f32 %v5464, %v6531
        %v6533 = vpop.f32.mrf.mxu0
        %v6534 = vadd.f32 %v5464, %v6533
        %6535 = vmatmul.bf16.gmra.mxu0 %v5449
        %v6536 = vpop.f32.mrf.mxu0
        %v6537 = vadd.f32 %v5464, %v6536
        %v6538 = vpop.f32.mrf.mxu0
        %v6539 = vadd.f32 %v5464, %v6538
        %6540 = vmatmul.bf16.gmra.mxu0 %v5453
        %v6541 = vpop.f32.mrf.mxu0
        %v6542 = vadd.f32 %v5464, %v6541
        %v6543 = vpop.f32.mrf.mxu0
        %v6544 = vadd.f32 %v5464, %v6543
        %6545 = vmatmul.bf16.gmra.mxu0 %v5457
        %v6546 = vpop.f32.mrf.mxu0
        %v6547 = vadd.f32 %v5464, %v6546
        %v6548 = vpop.f32.mrf.mxu0
        %v6549 = vadd.f32 %v5464, %v6548
        %6550 = vdwg.mxu0
        %6551 = vmatpush.bf16.msra.mxu0 %v5916
        %6552 = vmatpush.bf16.msra.mxu0 %v5912
        %6553 = vmatpush.bf16.msra.mxu0 %v5908
        %6554 = vmatpush.bf16.msra.mxu0 %v5904
        %6555 = vmatpush.bf16.msra.mxu0 %v5900
        %6556 = vmatpush.bf16.msra.mxu0 %v5896
        %6557 = vmatpush.bf16.msra.mxu0 %v5892
        %6558 = vmatpush.bf16.msra.mxu0 %v5888
        %6559 = vmatmul.bf16.gmra.mxu0 %v5430
        %v6560 = vpop.f32.mrf.mxu0
        %v6561 = vadd.f32 %v6512, %v6560
        %v6562 = vpop.f32.mrf.mxu0
        %v6563 = vadd.f32 %v6514, %v6562
        %6564 = vmatmul.bf16.gmra.mxu0 %v5434
        %v6565 = vpop.f32.mrf.mxu0
        %v6566 = vadd.f32 %v6517, %v6565
        %v6567 = vpop.f32.mrf.mxu0
        %v6568 = vadd.f32 %v6519, %v6567
        %6569 = vmatmul.bf16.gmra.mxu0 %v5438
        %v6570 = vpop.f32.mrf.mxu0
        %v6571 = vadd.f32 %v6522, %v6570
        %v6572 = vpop.f32.mrf.mxu0
        %v6573 = vadd.f32 %v6524, %v6572
        %6574 = vmatmul.bf16.gmra.mxu0 %v5442
        %v6575 = vpop.f32.mrf.mxu0
        %v6576 = vadd.f32 %v6527, %v6575
        %v6577 = vpop.f32.mrf.mxu0
        %v6578 = vadd.f32 %v6529, %v6577
        %6579 = vmatmul.bf16.gmra.mxu0 %v5446
        %v6580 = vpop.f32.mrf.mxu0
        %v6581 = vadd.f32 %v6532, %v6580
        %v6582 = vpop.f32.mrf.mxu0
        %v6583 = vadd.f32 %v6534, %v6582
        %6584 = vmatmul.bf16.gmra.mxu0 %v5450
        %v6585 = vpop.f32.mrf.mxu0
        %v6586 = vadd.f32 %v6537, %v6585
        %v6587 = vpop.f32.mrf.mxu0
        %v6588 = vadd.f32 %v6539, %v6587
        %6589 = vmatmul.bf16.gmra.mxu0 %v5454
        %v6590 = vpop.f32.mrf.mxu0
        %v6591 = vadd.f32 %v6542, %v6590
        %v6592 = vpop.f32.mrf.mxu0
        %v6593 = vadd.f32 %v6544, %v6592
        %6594 = vmatmul.bf16.gmra.mxu0 %v5458
        %v6595 = vpop.f32.mrf.mxu0
        %v6596 = vadd.f32 %v6547, %v6595
        %v6597 = vpop.f32.mrf.mxu0
        %v6598 = vadd.f32 %v6549, %v6597
        %6599 = vdwg.mxu0
        %6600 = vmatpush.bf16.msra.mxu0 %v5948
        %6601 = vmatpush.bf16.msra.mxu0 %v5944
        %6602 = vmatpush.bf16.msra.mxu0 %v5940
        %6603 = vmatpush.bf16.msra.mxu0 %v5936
        %6604 = vmatpush.bf16.msra.mxu0 %v5932
        %6605 = vmatpush.bf16.msra.mxu0 %v5928
        %6606 = vmatpush.bf16.msra.mxu0 %v5924
        %6607 = vmatpush.bf16.msra.mxu0 %v5920
        %6608 = vmatmul.bf16.gmra.mxu0 %v5431
        %v6609 = vpop.f32.mrf.mxu0
        %v6610 = vadd.f32 %v6561, %v6609
        %v6611 = vpop.f32.mrf.mxu0
        %v6612 = vadd.f32 %v6563, %v6611
        %6613 = vmatmul.bf16.gmra.mxu0 %v5435
        %v6614 = vpop.f32.mrf.mxu0
        %v6615 = vadd.f32 %v6566, %v6614
        %v6616 = vpop.f32.mrf.mxu0
        %v6617 = vadd.f32 %v6568, %v6616
        %6618 = vmatmul.bf16.gmra.mxu0 %v5439
        %v6619 = vpop.f32.mrf.mxu0
        %v6620 = vadd.f32 %v6571, %v6619
        %v6621 = vpop.f32.mrf.mxu0
        %v6622 = vadd.f32 %v6573, %v6621
        %6623 = vmatmul.bf16.gmra.mxu0 %v5443
        %v6624 = vpop.f32.mrf.mxu0
        %v6625 = vadd.f32 %v6576, %v6624
        %v6626 = vpop.f32.mrf.mxu0
        %v6627 = vadd.f32 %v6578, %v6626
        %6628 = vmatmul.bf16.gmra.mxu0 %v5447
        %v6629 = vpop.f32.mrf.mxu0
        %v6630 = vadd.f32 %v6581, %v6629
        %v6631 = vpop.f32.mrf.mxu0
        %v6632 = vadd.f32 %v6583, %v6631
        %6633 = vmatmul.bf16.gmra.mxu0 %v5451
        %v6634 = vpop.f32.mrf.mxu0
        %v6635 = vadd.f32 %v6586, %v6634
        %v6636 = vpop.f32.mrf.mxu0
        %v6637 = vadd.f32 %v6588, %v6636
        %6638 = vmatmul.bf16.gmra.mxu0 %v5455
        %v6639 = vpop.f32.mrf.mxu0
        %v6640 = vadd.f32 %v6591, %v6639
        %v6641 = vpop.f32.mrf.mxu0
        %v6642 = vadd.f32 %v6593, %v6641
        %6643 = vmatmul.bf16.gmra.mxu0 %v5459
        %v6644 = vpop.f32.mrf.mxu0
        %v6645 = vadd.f32 %v6596, %v6644
        %v6646 = vpop.f32.mrf.mxu0
        %v6647 = vadd.f32 %v6598, %v6646
        %6648 = vdwg.mxu0
        %6649 = vmatpush.bf16.msra.mxu0 %v5980
        %6650 = vmatpush.bf16.msra.mxu0 %v5976
        %6651 = vmatpush.bf16.msra.mxu0 %v5972
        %6652 = vmatpush.bf16.msra.mxu0 %v5968
        %6653 = vmatpush.bf16.msra.mxu0 %v5964
        %6654 = vmatpush.bf16.msra.mxu0 %v5960
        %6655 = vmatpush.bf16.msra.mxu0 %v5956
        %6656 = vmatpush.bf16.msra.mxu0 %v5952
        %6657 = vmatmul.bf16.gmra.mxu0 %v5432
        %v6658 = vpop.f32.mrf.mxu0
        %v6659 = vadd.f32 %v6610, %v6658
        %v6660 = vpop.f32.mrf.mxu0
        %v6661 = vadd.f32 %v6612, %v6660
        %6662 = vmatmul.bf16.gmra.mxu0 %v5436
        %v6663 = vpop.f32.mrf.mxu0
        %v6664 = vadd.f32 %v6615, %v6663
        %v6665 = vpop.f32.mrf.mxu0
        %v6666 = vadd.f32 %v6617, %v6665
        %6667 = vmatmul.bf16.gmra.mxu0 %v5440
        %v6668 = vpop.f32.mrf.mxu0
        %v6669 = vadd.f32 %v6620, %v6668
        %v6670 = vpop.f32.mrf.mxu0
        %v6671 = vadd.f32 %v6622, %v6670
        %6672 = vmatmul.bf16.gmra.mxu0 %v5444
        %v6673 = vpop.f32.mrf.mxu0
        %v6674 = vadd.f32 %v6625, %v6673
        %v6675 = vpop.f32.mrf.mxu0
        %v6676 = vadd.f32 %v6627, %v6675
        %6677 = vmatmul.bf16.gmra.mxu0 %v5448
        %v6678 = vpop.f32.mrf.mxu0
        %v6679 = vadd.f32 %v6630, %v6678
        %v6680 = vpop.f32.mrf.mxu0
        %v6681 = vadd.f32 %v6632, %v6680
        %6682 = vmatmul.bf16.gmra.mxu0 %v5452
        %v6683 = vpop.f32.mrf.mxu0
        %v6684 = vadd.f32 %v6635, %v6683
        %v6685 = vpop.f32.mrf.mxu0
        %v6686 = vadd.f32 %v6637, %v6685
        %6687 = vmatmul.bf16.gmra.mxu0 %v5456
        %v6688 = vpop.f32.mrf.mxu0
        %v6689 = vadd.f32 %v6640, %v6688
        %v6690 = vpop.f32.mrf.mxu0
        %v6691 = vadd.f32 %v6642, %v6690
        %6692 = vmatmul.bf16.gmra.mxu0 %v5460
        %v6693 = vpop.f32.mrf.mxu0
        %v6694 = vadd.f32 %v6645, %v6693
        %v6695 = vpop.f32.mrf.mxu0
        %v6696 = vadd.f32 %v6647, %v6695
        %6697 = vdwg.mxu0
        %6698 = vmatpush.bf16.msra.mxu0 %v5885
        %6699 = vmatpush.bf16.msra.mxu0 %v5881
        %6700 = vmatpush.bf16.msra.mxu0 %v5877
        %6701 = vmatpush.bf16.msra.mxu0 %v5873
        %6702 = vmatpush.bf16.msra.mxu0 %v5869
        %6703 = vmatpush.bf16.msra.mxu0 %v5865
        %6704 = vmatpush.bf16.msra.mxu0 %v5861
        %6705 = vmatpush.bf16.msra.mxu0 %v5857
        %6706 = vmatmul.bf16.gmra.mxu0 %v5429
        %v6707 = vpop.f32.mrf.mxu0
        %v6708 = vadd.f32 %v5465, %v6707
        %v6709 = vpop.f32.mrf.mxu0
        %v6710 = vadd.f32 %v5465, %v6709
        %6711 = vmatmul.bf16.gmra.mxu0 %v5433
        %v6712 = vpop.f32.mrf.mxu0
        %v6713 = vadd.f32 %v5465, %v6712
        %v6714 = vpop.f32.mrf.mxu0
        %v6715 = vadd.f32 %v5465, %v6714
        %6716 = vmatmul.bf16.gmra.mxu0 %v5437
        %v6717 = vpop.f32.mrf.mxu0
        %v6718 = vadd.f32 %v5465, %v6717
        %v6719 = vpop.f32.mrf.mxu0
        %v6720 = vadd.f32 %v5465, %v6719
        %6721 = vmatmul.bf16.gmra.mxu0 %v5441
        %v6722 = vpop.f32.mrf.mxu0
        %v6723 = vadd.f32 %v5465, %v6722
        %v6724 = vpop.f32.mrf.mxu0
        %v6725 = vadd.f32 %v5465, %v6724
        %6726 = vmatmul.bf16.gmra.mxu0 %v5445
        %v6727 = vpop.f32.mrf.mxu0
        %v6728 = vadd.f32 %v5465, %v6727
        %v6729 = vpop.f32.mrf.mxu0
        %v6730 = vadd.f32 %v5465, %v6729
        %6731 = vmatmul.bf16.gmra.mxu0 %v5449
        %v6732 = vpop.f32.mrf.mxu0
        %v6733 = vadd.f32 %v5465, %v6732
        %v6734 = vpop.f32.mrf.mxu0
        %v6735 = vadd.f32 %v5465, %v6734
        %6736 = vmatmul.bf16.gmra.mxu0 %v5453
        %v6737 = vpop.f32.mrf.mxu0
        %v6738 = vadd.f32 %v5465, %v6737
        %v6739 = vpop.f32.mrf.mxu0
        %v6740 = vadd.f32 %v5465, %v6739
        %6741 = vmatmul.bf16.gmra.mxu0 %v5457
        %v6742 = vpop.f32.mrf.mxu0
        %v6743 = vadd.f32 %v5465, %v6742
        %v6744 = vpop.f32.mrf.mxu0
        %v6745 = vadd.f32 %v5465, %v6744
        %6746 = vdwg.mxu0
        %6747 = vmatpush.bf16.msra.mxu0 %v5917
        %6748 = vmatpush.bf16.msra.mxu0 %v5913
        %6749 = vmatpush.bf16.msra.mxu0 %v5909
        %6750 = vmatpush.bf16.msra.mxu0 %v5905
        %6751 = vmatpush.bf16.msra.mxu0 %v5901
        %6752 = vmatpush.bf16.msra.mxu0 %v5897
        %6753 = vmatpush.bf16.msra.mxu0 %v5893
        %6754 = vmatpush.bf16.msra.mxu0 %v5889
        %6755 = vmatmul.bf16.gmra.mxu0 %v5430
        %v6756 = vpop.f32.mrf.mxu0
        %v6757 = vadd.f32 %v6708, %v6756
        %v6758 = vpop.f32.mrf.mxu0
        %v6759 = vadd.f32 %v6710, %v6758
        %6760 = vmatmul.bf16.gmra.mxu0 %v5434
        %v6761 = vpop.f32.mrf.mxu0
        %v6762 = vadd.f32 %v6713, %v6761
        %v6763 = vpop.f32.mrf.mxu0
        %v6764 = vadd.f32 %v6715, %v6763
        %6765 = vmatmul.bf16.gmra.mxu0 %v5438
        %v6766 = vpop.f32.mrf.mxu0
        %v6767 = vadd.f32 %v6718, %v6766
        %v6768 = vpop.f32.mrf.mxu0
        %v6769 = vadd.f32 %v6720, %v6768
        %6770 = vmatmul.bf16.gmra.mxu0 %v5442
        %v6771 = vpop.f32.mrf.mxu0
        %v6772 = vadd.f32 %v6723, %v6771
        %v6773 = vpop.f32.mrf.mxu0
        %v6774 = vadd.f32 %v6725, %v6773
        %6775 = vmatmul.bf16.gmra.mxu0 %v5446
        %v6776 = vpop.f32.mrf.mxu0
        %v6777 = vadd.f32 %v6728, %v6776
        %v6778 = vpop.f32.mrf.mxu0
        %v6779 = vadd.f32 %v6730, %v6778
        %6780 = vmatmul.bf16.gmra.mxu0 %v5450
        %v6781 = vpop.f32.mrf.mxu0
        %v6782 = vadd.f32 %v6733, %v6781
        %v6783 = vpop.f32.mrf.mxu0
        %v6784 = vadd.f32 %v6735, %v6783
        %6785 = vmatmul.bf16.gmra.mxu0 %v5454
        %v6786 = vpop.f32.mrf.mxu0
        %v6787 = vadd.f32 %v6738, %v6786
        %v6788 = vpop.f32.mrf.mxu0
        %v6789 = vadd.f32 %v6740, %v6788
        %6790 = vmatmul.bf16.gmra.mxu0 %v5458
        %v6791 = vpop.f32.mrf.mxu0
        %v6792 = vadd.f32 %v6743, %v6791
        %v6793 = vpop.f32.mrf.mxu0
        %v6794 = vadd.f32 %v6745, %v6793
        %6795 = vdwg.mxu0
        %6796 = vmatpush.bf16.msra.mxu0 %v5949
        %6797 = vmatpush.bf16.msra.mxu0 %v5945
        %6798 = vmatpush.bf16.msra.mxu0 %v5941
        %6799 = vmatpush.bf16.msra.mxu0 %v5937
        %6800 = vmatpush.bf16.msra.mxu0 %v5933
        %6801 = vmatpush.bf16.msra.mxu0 %v5929
        %6802 = vmatpush.bf16.msra.mxu0 %v5925
        %6803 = vmatpush.bf16.msra.mxu0 %v5921
        %6804 = vmatmul.bf16.gmra.mxu0 %v5431
        %v6805 = vpop.f32.mrf.mxu0
        %v6806 = vadd.f32 %v6757, %v6805
        %v6807 = vpop.f32.mrf.mxu0
        %v6808 = vadd.f32 %v6759, %v6807
        %6809 = vmatmul.bf16.gmra.mxu0 %v5435
        %v6810 = vpop.f32.mrf.mxu0
        %v6811 = vadd.f32 %v6762, %v6810
        %v6812 = vpop.f32.mrf.mxu0
        %v6813 = vadd.f32 %v6764, %v6812
        %6814 = vmatmul.bf16.gmra.mxu0 %v5439
        %v6815 = vpop.f32.mrf.mxu0
        %v6816 = vadd.f32 %v6767, %v6815
        %v6817 = vpop.f32.mrf.mxu0
        %v6818 = vadd.f32 %v6769, %v6817
        %6819 = vmatmul.bf16.gmra.mxu0 %v5443
        %v6820 = vpop.f32.mrf.mxu0
        %v6821 = vadd.f32 %v6772, %v6820
        %v6822 = vpop.f32.mrf.mxu0
        %v6823 = vadd.f32 %v6774, %v6822
        %6824 = vmatmul.bf16.gmra.mxu0 %v5447
        %v6825 = vpop.f32.mrf.mxu0
        %v6826 = vadd.f32 %v6777, %v6825
        %v6827 = vpop.f32.mrf.mxu0
        %v6828 = vadd.f32 %v6779, %v6827
        %6829 = vmatmul.bf16.gmra.mxu0 %v5451
        %v6830 = vpop.f32.mrf.mxu0
        %v6831 = vadd.f32 %v6782, %v6830
        %v6832 = vpop.f32.mrf.mxu0
        %v6833 = vadd.f32 %v6784, %v6832
        %6834 = vmatmul.bf16.gmra.mxu0 %v5455
        %v6835 = vpop.f32.mrf.mxu0
        %v6836 = vadd.f32 %v6787, %v6835
        %v6837 = vpop.f32.mrf.mxu0
        %v6838 = vadd.f32 %v6789, %v6837
        %6839 = vmatmul.bf16.gmra.mxu0 %v5459
        %v6840 = vpop.f32.mrf.mxu0
        %v6841 = vadd.f32 %v6792, %v6840
        %v6842 = vpop.f32.mrf.mxu0
        %v6843 = vadd.f32 %v6794, %v6842
        %6844 = vdwg.mxu0
        %6845 = vmatpush.bf16.msra.mxu0 %v5981
        %6846 = vmatpush.bf16.msra.mxu0 %v5977
        %6847 = vmatpush.bf16.msra.mxu0 %v5973
        %6848 = vmatpush.bf16.msra.mxu0 %v5969
        %6849 = vmatpush.bf16.msra.mxu0 %v5965
        %6850 = vmatpush.bf16.msra.mxu0 %v5961
        %6851 = vmatpush.bf16.msra.mxu0 %v5957
        %6852 = vmatpush.bf16.msra.mxu0 %v5953
        %6853 = vmatmul.bf16.gmra.mxu0 %v5432
        %v6854 = vpop.f32.mrf.mxu0
        %v6855 = vadd.f32 %v6806, %v6854
        %v6856 = vpop.f32.mrf.mxu0
        %v6857 = vadd.f32 %v6808, %v6856
        %6858 = vmatmul.bf16.gmra.mxu0 %v5436
        %v6859 = vpop.f32.mrf.mxu0
        %v6860 = vadd.f32 %v6811, %v6859
        %v6861 = vpop.f32.mrf.mxu0
        %v6862 = vadd.f32 %v6813, %v6861
        %6863 = vmatmul.bf16.gmra.mxu0 %v5440
        %v6864 = vpop.f32.mrf.mxu0
        %v6865 = vadd.f32 %v6816, %v6864
        %v6866 = vpop.f32.mrf.mxu0
        %v6867 = vadd.f32 %v6818, %v6866
        %6868 = vmatmul.bf16.gmra.mxu0 %v5444
        %v6869 = vpop.f32.mrf.mxu0
        %v6870 = vadd.f32 %v6821, %v6869
        %v6871 = vpop.f32.mrf.mxu0
        %v6872 = vadd.f32 %v6823, %v6871
        %6873 = vmatmul.bf16.gmra.mxu0 %v5448
        %v6874 = vpop.f32.mrf.mxu0
        %v6875 = vadd.f32 %v6826, %v6874
        %v6876 = vpop.f32.mrf.mxu0
        %v6877 = vadd.f32 %v6828, %v6876
        %6878 = vmatmul.bf16.gmra.mxu0 %v5452
        %v6879 = vpop.f32.mrf.mxu0
        %v6880 = vadd.f32 %v6831, %v6879
        %v6881 = vpop.f32.mrf.mxu0
        %v6882 = vadd.f32 %v6833, %v6881
        %6883 = vmatmul.bf16.gmra.mxu0 %v5456
        %v6884 = vpop.f32.mrf.mxu0
        %v6885 = vadd.f32 %v6836, %v6884
        %v6886 = vpop.f32.mrf.mxu0
        %v6887 = vadd.f32 %v6838, %v6886
        %6888 = vmatmul.bf16.gmra.mxu0 %v5460
        %v6889 = vpop.f32.mrf.mxu0
        %v6890 = vadd.f32 %v6841, %v6889
        %v6891 = vpop.f32.mrf.mxu0
        %v6892 = vadd.f32 %v6843, %v6891
        %6893 = vdwg.mxu0
        %v6894 = vmax.f32 %v6267, 0.0
        %v6895 = vmax.f32 %v6463, 0.0
        %v6896 = vmax.f32 %v6659, 0.0
        %v6897 = vmax.f32 %v6855, 0.0
        %v6898 = vmax.f32 %v6269, 0.0
        %v6899 = vmax.f32 %v6465, 0.0
        %v6900 = vmax.f32 %v6661, 0.0
        %v6901 = vmax.f32 %v6857, 0.0
        %v6902 = vmax.f32 %v6272, 0.0
        %v6903 = vmax.f32 %v6468, 0.0
        %v6904 = vmax.f32 %v6664, 0.0
        %v6905 = vmax.f32 %v6860, 0.0
        %v6906 = vmax.f32 %v6274, 0.0
        %v6907 = vmax.f32 %v6470, 0.0
        %v6908 = vmax.f32 %v6666, 0.0
        %v6909 = vmax.f32 %v6862, 0.0
        %v6910 = vmax.f32 %v6277, 0.0
        %v6911 = vmax.f32 %v6473, 0.0
        %v6912 = vmax.f32 %v6669, 0.0
        %v6913 = vmax.f32 %v6865, 0.0
        %v6914 = vmax.f32 %v6279, 0.0
        %v6915 = vmax.f32 %v6475, 0.0
        %v6916 = vmax.f32 %v6671, 0.0
        %v6917 = vmax.f32 %v6867, 0.0
        %v6918 = vmax.f32 %v6282, 0.0
        %v6919 = vmax.f32 %v6478, 0.0
        %v6920 = vmax.f32 %v6674, 0.0
        %v6921 = vmax.f32 %v6870, 0.0
        %v6922 = vmax.f32 %v6284, 0.0
        %v6923 = vmax.f32 %v6480, 0.0
        %v6924 = vmax.f32 %v6676, 0.0
        %v6925 = vmax.f32 %v6872, 0.0
        %v6926 = vmax.f32 %v6287, 0.0
        %v6927 = vmax.f32 %v6483, 0.0
        %v6928 = vmax.f32 %v6679, 0.0
        %v6929 = vmax.f32 %v6875, 0.0
        %v6930 = vmax.f32 %v6289, 0.0
        %v6931 = vmax.f32 %v6485, 0.0
        %v6932 = vmax.f32 %v6681, 0.0
        %v6933 = vmax.f32 %v6877, 0.0
        %v6934 = vmax.f32 %v6292, 0.0
        %v6935 = vmax.f32 %v6488, 0.0
        %v6936 = vmax.f32 %v6684, 0.0
        %v6937 = vmax.f32 %v6880, 0.0
        %v6938 = vmax.f32 %v6294, 0.0
        %v6939 = vmax.f32 %v6490, 0.0
        %v6940 = vmax.f32 %v6686, 0.0
        %v6941 = vmax.f32 %v6882, 0.0
        %v6942 = vmax.f32 %v6297, 0.0
        %v6943 = vmax.f32 %v6493, 0.0
        %v6944 = vmax.f32 %v6689, 0.0
        %v6945 = vmax.f32 %v6885, 0.0
        %v6946 = vmax.f32 %v6299, 0.0
        %v6947 = vmax.f32 %v6495, 0.0
        %v6948 = vmax.f32 %v6691, 0.0
        %v6949 = vmax.f32 %v6887, 0.0
        %v6950 = vmax.f32 %v6302, 0.0
        %v6951 = vmax.f32 %v6498, 0.0
        %v6952 = vmax.f32 %v6694, 0.0
        %v6953 = vmax.f32 %v6890, 0.0
        %v6954 = vmax.f32 %v6304, 0.0
        %v6955 = vmax.f32 %v6500, 0.0
        %v6956 = vmax.f32 %v6696, 0.0
        %v6957 = vmax.f32 %v6892, 0.0
        %v6958 = vpack.c.bf16 %v6898, %v6894
        %v6959 = vpack.c.bf16 %v6899, %v6895
        %v6960 = vpack.c.bf16 %v6900, %v6896
        %v6961 = vpack.c.bf16 %v6901, %v6897
        %v6962 = vpack.c.bf16 %v6906, %v6902
        %v6963 = vpack.c.bf16 %v6907, %v6903
        %v6964 = vpack.c.bf16 %v6908, %v6904
        %v6965 = vpack.c.bf16 %v6909, %v6905
        %v6966 = vpack.c.bf16 %v6914, %v6910
        %v6967 = vpack.c.bf16 %v6915, %v6911
        %v6968 = vpack.c.bf16 %v6916, %v6912
        %v6969 = vpack.c.bf16 %v6917, %v6913
        %v6970 = vpack.c.bf16 %v6922, %v6918
        %v6971 = vpack.c.bf16 %v6923, %v6919
        %v6972 = vpack.c.bf16 %v6924, %v6920
        %v6973 = vpack.c.bf16 %v6925, %v6921
        %v6974 = vpack.c.bf16 %v6930, %v6926
        %v6975 = vpack.c.bf16 %v6931, %v6927
        %v6976 = vpack.c.bf16 %v6932, %v6928
        %v6977 = vpack.c.bf16 %v6933, %v6929
        %v6978 = vpack.c.bf16 %v6938, %v6934
        %v6979 = vpack.c.bf16 %v6939, %v6935
        %v6980 = vpack.c.bf16 %v6940, %v6936
        %v6981 = vpack.c.bf16 %v6941, %v6937
        %v6982 = vpack.c.bf16 %v6946, %v6942
        %v6983 = vpack.c.bf16 %v6947, %v6943
        %v6984 = vpack.c.bf16 %v6948, %v6944
        %v6985 = vpack.c.bf16 %v6949, %v6945
        %v6986 = vpack.c.bf16 %v6954, %v6950
        %v6987 = vpack.c.bf16 %v6955, %v6951
        %v6988 = vpack.c.bf16 %v6956, %v6952
        %v6989 = vpack.c.bf16 %v6957, %v6953
        %v7054 = vunpack.c.l.b16 %v5333
        %v7055 = vunpack.c.l.b16 %v5334
        %v7056 = vunpack.c.l.b16 %v5335
        %v7057 = vunpack.c.l.b16 %v5336
        %v7058 = vunpack.c.l.b16 %v5337
        %v7059 = vunpack.c.l.b16 %v5338
        %v7060 = vunpack.c.l.b16 %v5339
        %v7061 = vunpack.c.l.b16 %v5340
        %v7062 = vunpack.c.l.b16 %v5341
        %v7063 = vunpack.c.l.b16 %v5342
        %v7064 = vunpack.c.l.b16 %v5343
        %v7065 = vunpack.c.l.b16 %v5344
        %v7066 = vunpack.c.l.b16 %v5345
        %v7067 = vunpack.c.l.b16 %v5346
        %v7068 = vunpack.c.l.b16 %v5347
        %v7069 = vunpack.c.l.b16 %v5348
        %v7070 = vunpack.c.l.b16 %v5349
        %v7071 = vunpack.c.l.b16 %v5350
        %v7072 = vunpack.c.l.b16 %v5351
        %v7073 = vunpack.c.l.b16 %v5352
        %v7074 = vunpack.c.l.b16 %v5353
        %v7075 = vunpack.c.l.b16 %v5354
        %v7076 = vunpack.c.l.b16 %v5355
        %v7077 = vunpack.c.l.b16 %v5356
        %v7078 = vunpack.c.l.b16 %v5357
        %v7079 = vunpack.c.l.b16 %v5358
        %v7080 = vunpack.c.l.b16 %v5359
        %v7081 = vunpack.c.l.b16 %v5360
        %v7082 = vunpack.c.l.b16 %v5361
        %v7083 = vunpack.c.l.b16 %v5362
        %v7084 = vunpack.c.l.b16 %v5363
        %v7085 = vunpack.c.l.b16 %v5364
        %v7086 = vunpack.c.l.b16 %v5365
        %v7087 = vunpack.c.l.b16 %v5366
        %v7088 = vunpack.c.l.b16 %v5367
        %v7089 = vunpack.c.l.b16 %v5368
        %v7090 = vunpack.c.l.b16 %v5369
        %v7091 = vunpack.c.l.b16 %v5370
        %v7092 = vunpack.c.l.b16 %v5371
        %v7093 = vunpack.c.l.b16 %v5372
        %v7094 = vunpack.c.l.b16 %v5373
        %v7095 = vunpack.c.l.b16 %v5374
        %v7096 = vunpack.c.l.b16 %v5375
        %v7097 = vunpack.c.l.b16 %v5376
        %v7098 = vunpack.c.l.b16 %v5377
        %v7099 = vunpack.c.l.b16 %v5378
        %v7100 = vunpack.c.l.b16 %v5379
        %v7101 = vunpack.c.l.b16 %v5380
        %v7102 = vunpack.c.l.b16 %v5381
        %v7103 = vunpack.c.l.b16 %v5382
        %v7104 = vunpack.c.l.b16 %v5383
        %v7105 = vunpack.c.l.b16 %v5384
        %v7106 = vunpack.c.l.b16 %v5385
        %v7107 = vunpack.c.l.b16 %v5386
        %v7108 = vunpack.c.l.b16 %v5387
        %v7109 = vunpack.c.l.b16 %v5388
        %v7110 = vunpack.c.l.b16 %v5389
        %v7111 = vunpack.c.l.b16 %v5390
        %v7112 = vunpack.c.l.b16 %v5391
        %v7113 = vunpack.c.l.b16 %v5392
        %v7114 = vunpack.c.l.b16 %v5393
        %v7115 = vunpack.c.l.b16 %v5394
        %v7116 = vunpack.c.l.b16 %v5395
        %v7117 = vunpack.c.l.b16 %v5396
        %v7118 = vpack.c.b16 %v7055, %v7054
        %v7119 = vpack.c.b16 %v7057, %v7056
        %v7120 = vpack.c.b16 %v7059, %v7058
        %v7121 = vpack.c.b16 %v7061, %v7060
        %v7122 = vpack.c.b16 %v7063, %v7062
        %v7123 = vpack.c.b16 %v7065, %v7064
        %v7124 = vpack.c.b16 %v7067, %v7066
        %v7125 = vpack.c.b16 %v7069, %v7068
        %v7126 = vpack.c.b16 %v7071, %v7070
        %v7127 = vpack.c.b16 %v7073, %v7072
        %v7128 = vpack.c.b16 %v7075, %v7074
        %v7129 = vpack.c.b16 %v7077, %v7076
        %v7130 = vpack.c.b16 %v7079, %v7078
        %v7131 = vpack.c.b16 %v7081, %v7080
        %v7132 = vpack.c.b16 %v7083, %v7082
        %v7133 = vpack.c.b16 %v7085, %v7084
        %v7134 = vpack.c.b16 %v7087, %v7086
        %v7135 = vpack.c.b16 %v7089, %v7088
        %v7136 = vpack.c.b16 %v7091, %v7090
        %v7137 = vpack.c.b16 %v7093, %v7092
        %v7138 = vpack.c.b16 %v7095, %v7094
        %v7139 = vpack.c.b16 %v7097, %v7096
        %v7140 = vpack.c.b16 %v7099, %v7098
        %v7141 = vpack.c.b16 %v7101, %v7100
        %v7142 = vpack.c.b16 %v7103, %v7102
        %v7143 = vpack.c.b16 %v7105, %v7104
        %v7144 = vpack.c.b16 %v7107, %v7106
        %v7145 = vpack.c.b16 %v7109, %v7108
        %v7146 = vpack.c.b16 %v7111, %v7110
        %v7147 = vpack.c.b16 %v7113, %v7112
        %v7148 = vpack.c.b16 %v7115, %v7114
        %v7149 = vpack.c.b16 %v7117, %v7116
        %7182 = vmatpush.bf16.msra.mxu0 %v7125
        %7183 = vmatpush.bf16.msra.mxu0 %v7124
        %7184 = vmatpush.bf16.msra.mxu0 %v7123
        %7185 = vmatpush.bf16.msra.mxu0 %v7122
        %7186 = vmatpush.bf16.msra.mxu0 %v7121
        %7187 = vmatpush.bf16.msra.mxu0 %v7120
        %7188 = vmatpush.bf16.msra.mxu0 %v7119
        %7189 = vmatpush.bf16.msra.mxu0 %v7118
        %7190 = vmatmul.bf16.gmra.mxu0 %v6958
        %v7191 = vpop.f32.mrf.mxu0
        %v7192 = vadd.f32 0.0, %v7191
        %v7193 = vpop.f32.mrf.mxu0
        %v7194 = vadd.f32 0.0, %v7193
        %7195 = vmatmul.bf16.gmra.mxu0 %v6962
        %v7196 = vpop.f32.mrf.mxu0
        %v7197 = vadd.f32 0.0, %v7196
        %v7198 = vpop.f32.mrf.mxu0
        %v7199 = vadd.f32 0.0, %v7198
        %7200 = vmatmul.bf16.gmra.mxu0 %v6966
        %v7201 = vpop.f32.mrf.mxu0
        %v7202 = vadd.f32 0.0, %v7201
        %v7203 = vpop.f32.mrf.mxu0
        %v7204 = vadd.f32 0.0, %v7203
        %7205 = vmatmul.bf16.gmra.mxu0 %v6970
        %v7206 = vpop.f32.mrf.mxu0
        %v7207 = vadd.f32 0.0, %v7206
        %v7208 = vpop.f32.mrf.mxu0
        %v7209 = vadd.f32 0.0, %v7208
        %7210 = vmatmul.bf16.gmra.mxu0 %v6974
        %v7211 = vpop.f32.mrf.mxu0
        %v7212 = vadd.f32 0.0, %v7211
        %v7213 = vpop.f32.mrf.mxu0
        %v7214 = vadd.f32 0.0, %v7213
        %7215 = vmatmul.bf16.gmra.mxu0 %v6978
        %v7216 = vpop.f32.mrf.mxu0
        %v7217 = vadd.f32 0.0, %v7216
        %v7218 = vpop.f32.mrf.mxu0
        %v7219 = vadd.f32 0.0, %v7218
        %7220 = vmatmul.bf16.gmra.mxu0 %v6982
        %v7221 = vpop.f32.mrf.mxu0
        %v7222 = vadd.f32 0.0, %v7221
        %v7223 = vpop.f32.mrf.mxu0
        %v7224 = vadd.f32 0.0, %v7223
        %7225 = vmatmul.bf16.gmra.mxu0 %v6986
        %v7226 = vpop.f32.mrf.mxu0
        %v7227 = vadd.f32 0.0, %v7226
        %v7228 = vpop.f32.mrf.mxu0
        %v7229 = vadd.f32 0.0, %v7228
        %7230 = vdwg.mxu0
        %7231 = vmatpush.bf16.msra.mxu0 %v7133
        %7232 = vmatpush.bf16.msra.mxu0 %v7132
        %7233 = vmatpush.bf16.msra.mxu0 %v7131
        %7234 = vmatpush.bf16.msra.mxu0 %v7130
        %7235 = vmatpush.bf16.msra.mxu0 %v7129
        %7236 = vmatpush.bf16.msra.mxu0 %v7128
        %7237 = vmatpush.bf16.msra.mxu0 %v7127
        %7238 = vmatpush.bf16.msra.mxu0 %v7126
        %7239 = vmatmul.bf16.gmra.mxu0 %v6959
        %v7240 = vpop.f32.mrf.mxu0
        %v7241 = vadd.f32 %v7192, %v7240
        %v7242 = vpop.f32.mrf.mxu0
        %v7243 = vadd.f32 %v7194, %v7242
        %7244 = vmatmul.bf16.gmra.mxu0 %v6963
        %v7245 = vpop.f32.mrf.mxu0
        %v7246 = vadd.f32 %v7197, %v7245
        %v7247 = vpop.f32.mrf.mxu0
        %v7248 = vadd.f32 %v7199, %v7247
        %7249 = vmatmul.bf16.gmra.mxu0 %v6967
        %v7250 = vpop.f32.mrf.mxu0
        %v7251 = vadd.f32 %v7202, %v7250
        %v7252 = vpop.f32.mrf.mxu0
        %v7253 = vadd.f32 %v7204, %v7252
        %7254 = vmatmul.bf16.gmra.mxu0 %v6971
        %v7255 = vpop.f32.mrf.mxu0
        %v7256 = vadd.f32 %v7207, %v7255
        %v7257 = vpop.f32.mrf.mxu0
        %v7258 = vadd.f32 %v7209, %v7257
        %7259 = vmatmul.bf16.gmra.mxu0 %v6975
        %v7260 = vpop.f32.mrf.mxu0
        %v7261 = vadd.f32 %v7212, %v7260
        %v7262 = vpop.f32.mrf.mxu0
        %v7263 = vadd.f32 %v7214, %v7262
        %7264 = vmatmul.bf16.gmra.mxu0 %v6979
        %v7265 = vpop.f32.mrf.mxu0
        %v7266 = vadd.f32 %v7217, %v7265
        %v7267 = vpop.f32.mrf.mxu0
        %v7268 = vadd.f32 %v7219, %v7267
        %7269 = vmatmul.bf16.gmra.mxu0 %v6983
        %v7270 = vpop.f32.mrf.mxu0
        %v7271 = vadd.f32 %v7222, %v7270
        %v7272 = vpop.f32.mrf.mxu0
        %v7273 = vadd.f32 %v7224, %v7272
        %7274 = vmatmul.bf16.gmra.mxu0 %v6987
        %v7275 = vpop.f32.mrf.mxu0
        %v7276 = vadd.f32 %v7227, %v7275
        %v7277 = vpop.f32.mrf.mxu0
        %v7278 = vadd.f32 %v7229, %v7277
        %7279 = vdwg.mxu0
        %7280 = vmatpush.bf16.msra.mxu0 %v7141
        %7281 = vmatpush.bf16.msra.mxu0 %v7140
        %7282 = vmatpush.bf16.msra.mxu0 %v7139
        %7283 = vmatpush.bf16.msra.mxu0 %v7138
        %7284 = vmatpush.bf16.msra.mxu0 %v7137
        %7285 = vmatpush.bf16.msra.mxu0 %v7136
        %7286 = vmatpush.bf16.msra.mxu0 %v7135
        %7287 = vmatpush.bf16.msra.mxu0 %v7134
        %7288 = vmatmul.bf16.gmra.mxu0 %v6960
        %v7289 = vpop.f32.mrf.mxu0
        %v7290 = vadd.f32 %v7241, %v7289
        %v7291 = vpop.f32.mrf.mxu0
        %v7292 = vadd.f32 %v7243, %v7291
        %7293 = vmatmul.bf16.gmra.mxu0 %v6964
        %v7294 = vpop.f32.mrf.mxu0
        %v7295 = vadd.f32 %v7246, %v7294
        %v7296 = vpop.f32.mrf.mxu0
        %v7297 = vadd.f32 %v7248, %v7296
        %7298 = vmatmul.bf16.gmra.mxu0 %v6968
        %v7299 = vpop.f32.mrf.mxu0
        %v7300 = vadd.f32 %v7251, %v7299
        %v7301 = vpop.f32.mrf.mxu0
        %v7302 = vadd.f32 %v7253, %v7301
        %7303 = vmatmul.bf16.gmra.mxu0 %v6972
        %v7304 = vpop.f32.mrf.mxu0
        %v7305 = vadd.f32 %v7256, %v7304
        %v7306 = vpop.f32.mrf.mxu0
        %v7307 = vadd.f32 %v7258, %v7306
        %7308 = vmatmul.bf16.gmra.mxu0 %v6976
        %v7309 = vpop.f32.mrf.mxu0
        %v7310 = vadd.f32 %v7261, %v7309
        %v7311 = vpop.f32.mrf.mxu0
        %v7312 = vadd.f32 %v7263, %v7311
        %7313 = vmatmul.bf16.gmra.mxu0 %v6980
        %v7314 = vpop.f32.mrf.mxu0
        %v7315 = vadd.f32 %v7266, %v7314
        %v7316 = vpop.f32.mrf.mxu0
        %v7317 = vadd.f32 %v7268, %v7316
        %7318 = vmatmul.bf16.gmra.mxu0 %v6984
        %v7319 = vpop.f32.mrf.mxu0
        %v7320 = vadd.f32 %v7271, %v7319
        %v7321 = vpop.f32.mrf.mxu0
        %v7322 = vadd.f32 %v7273, %v7321
        %7323 = vmatmul.bf16.gmra.mxu0 %v6988
        %v7324 = vpop.f32.mrf.mxu0
        %v7325 = vadd.f32 %v7276, %v7324
        %v7326 = vpop.f32.mrf.mxu0
        %v7327 = vadd.f32 %v7278, %v7326
        %7328 = vdwg.mxu0
        %7329 = vmatpush.bf16.msra.mxu0 %v7149
        %7330 = vmatpush.bf16.msra.mxu0 %v7148
        %7331 = vmatpush.bf16.msra.mxu0 %v7147
        %7332 = vmatpush.bf16.msra.mxu0 %v7146
        %7333 = vmatpush.bf16.msra.mxu0 %v7145
        %7334 = vmatpush.bf16.msra.mxu0 %v7144
        %7335 = vmatpush.bf16.msra.mxu0 %v7143
        %7336 = vmatpush.bf16.msra.mxu0 %v7142
        %7337 = vmatmul.bf16.gmra.mxu0 %v6961
        %v7338 = vpop.f32.mrf.mxu0
        %v7339 = vadd.f32 %v7290, %v7338
        %v7340 = vpop.f32.mrf.mxu0
        %v7341 = vadd.f32 %v7292, %v7340
        %7342 = vmatmul.bf16.gmra.mxu0 %v6965
        %v7343 = vpop.f32.mrf.mxu0
        %v7344 = vadd.f32 %v7295, %v7343
        %v7345 = vpop.f32.mrf.mxu0
        %v7346 = vadd.f32 %v7297, %v7345
        %7347 = vmatmul.bf16.gmra.mxu0 %v6969
        %v7348 = vpop.f32.mrf.mxu0
        %v7349 = vadd.f32 %v7300, %v7348
        %v7350 = vpop.f32.mrf.mxu0
        %v7351 = vadd.f32 %v7302, %v7350
        %7352 = vmatmul.bf16.gmra.mxu0 %v6973
        %v7353 = vpop.f32.mrf.mxu0
        %v7354 = vadd.f32 %v7305, %v7353
        %v7355 = vpop.f32.mrf.mxu0
        %v7356 = vadd.f32 %v7307, %v7355
        %7357 = vmatmul.bf16.gmra.mxu0 %v6977
        %v7358 = vpop.f32.mrf.mxu0
        %v7359 = vadd.f32 %v7310, %v7358
        %v7360 = vpop.f32.mrf.mxu0
        %v7361 = vadd.f32 %v7312, %v7360
        %7362 = vmatmul.bf16.gmra.mxu0 %v6981
        %v7363 = vpop.f32.mrf.mxu0
        %v7364 = vadd.f32 %v7315, %v7363
        %v7365 = vpop.f32.mrf.mxu0
        %v7366 = vadd.f32 %v7317, %v7365
        %7367 = vmatmul.bf16.gmra.mxu0 %v6985
        %v7368 = vpop.f32.mrf.mxu0
        %v7369 = vadd.f32 %v7320, %v7368
        %v7370 = vpop.f32.mrf.mxu0
        %v7371 = vadd.f32 %v7322, %v7370
        %7372 = vmatmul.bf16.gmra.mxu0 %v6989
        %v7373 = vpop.f32.mrf.mxu0
        %v7374 = vadd.f32 %v7325, %v7373
        %v7375 = vpop.f32.mrf.mxu0
        %v7376 = vadd.f32 %v7327, %v7375
        %7377 = vdwg.mxu0
        %v7378 = vmax.f32 %v7339, 0.0
        %v7379 = vmax.f32 %v7341, 0.0
        %v7380 = vmax.f32 %v7344, 0.0
        %v7381 = vmax.f32 %v7346, 0.0
        %v7382 = vmax.f32 %v7349, 0.0
        %v7383 = vmax.f32 %v7351, 0.0
        %v7384 = vmax.f32 %v7354, 0.0
        %v7385 = vmax.f32 %v7356, 0.0
        %v7386 = vmax.f32 %v7359, 0.0
        %v7387 = vmax.f32 %v7361, 0.0
        %v7388 = vmax.f32 %v7364, 0.0
        %v7389 = vmax.f32 %v7366, 0.0
        %v7390 = vmax.f32 %v7369, 0.0
        %v7391 = vmax.f32 %v7371, 0.0
        %v7392 = vmax.f32 %v7374, 0.0
        %v7393 = vmax.f32 %v7376, 0.0
        %v7394 = vpack.c.bf16 %v7379, %v7378
        %v7395 = vpack.c.bf16 %v7381, %v7380
        %v7396 = vpack.c.bf16 %v7383, %v7382
        %v7397 = vpack.c.bf16 %v7385, %v7384
        %v7398 = vpack.c.bf16 %v7387, %v7386
        %v7399 = vpack.c.bf16 %v7389, %v7388
        %v7400 = vpack.c.bf16 %v7391, %v7390
        %v7401 = vpack.c.bf16 %v7393, %v7392
        %v7434 = vunpack.c.l.b16 %v5397
        %v7435 = vunpack.c.h.b16 %v5397
        %v7436 = vunpack.c.l.b16 %v5398
        %v7437 = vunpack.c.h.b16 %v5398
        %v7438 = vunpack.c.l.b16 %v5399
        %v7439 = vunpack.c.h.b16 %v5399
        %v7440 = vunpack.c.l.b16 %v5400
        %v7441 = vunpack.c.h.b16 %v5400
        %v7442 = vunpack.c.l.b16 %v5401
        %v7443 = vunpack.c.h.b16 %v5401
        %v7444 = vunpack.c.l.b16 %v5402
        %v7445 = vunpack.c.h.b16 %v5402
        %v7446 = vunpack.c.l.b16 %v5403
        %v7447 = vunpack.c.h.b16 %v5403
        %v7448 = vunpack.c.l.b16 %v5404
        %v7449 = vunpack.c.h.b16 %v5404
        %v7450 = vunpack.c.l.b16 %v5405
        %v7451 = vunpack.c.h.b16 %v5405
        %v7452 = vunpack.c.l.b16 %v5406
        %v7453 = vunpack.c.h.b16 %v5406
        %v7454 = vunpack.c.l.b16 %v5407
        %v7455 = vunpack.c.h.b16 %v5407
        %v7456 = vunpack.c.l.b16 %v5408
        %v7457 = vunpack.c.h.b16 %v5408
        %v7458 = vunpack.c.l.b16 %v5409
        %v7459 = vunpack.c.h.b16 %v5409
        %v7460 = vunpack.c.l.b16 %v5410
        %v7461 = vunpack.c.h.b16 %v5410
        %v7462 = vunpack.c.l.b16 %v5411
        %v7463 = vunpack.c.h.b16 %v5411
        %v7464 = vunpack.c.l.b16 %v5412
        %v7465 = vunpack.c.h.b16 %v5412
        %v7466 = vunpack.c.l.b16 %v5413
        %v7467 = vunpack.c.h.b16 %v5413
        %v7468 = vunpack.c.l.b16 %v5414
        %v7469 = vunpack.c.h.b16 %v5414
        %v7470 = vunpack.c.l.b16 %v5415
        %v7471 = vunpack.c.h.b16 %v5415
        %v7472 = vunpack.c.l.b16 %v5416
        %v7473 = vunpack.c.h.b16 %v5416
        %v7474 = vunpack.c.l.b16 %v5417
        %v7475 = vunpack.c.h.b16 %v5417
        %v7476 = vunpack.c.l.b16 %v5418
        %v7477 = vunpack.c.h.b16 %v5418
        %v7478 = vunpack.c.l.b16 %v5419
        %v7479 = vunpack.c.h.b16 %v5419
        %v7480 = vunpack.c.l.b16 %v5420
        %v7481 = vunpack.c.h.b16 %v5420
        %v7482 = vunpack.c.l.b16 %v5421
        %v7483 = vunpack.c.h.b16 %v5421
        %v7484 = vunpack.c.l.b16 %v5422
        %v7485 = vunpack.c.h.b16 %v5422
        %v7486 = vunpack.c.l.b16 %v5423
        %v7487 = vunpack.c.h.b16 %v5423
        %v7488 = vunpack.c.l.b16 %v5424
        %v7489 = vunpack.c.h.b16 %v5424
        %v7490 = vunpack.c.l.b16 %v5425
        %v7491 = vunpack.c.h.b16 %v5425
        %v7492 = vunpack.c.l.b16 %v5426
        %v7493 = vunpack.c.h.b16 %v5426
        %v7494 = vunpack.c.l.b16 %v5427
        %v7495 = vunpack.c.h.b16 %v5427
        %v7496 = vunpack.c.l.b16 %v5428
        %v7497 = vunpack.c.h.b16 %v5428
        %v7498 = vpack.c.b16 %v7438, %v7434
        %v7499 = vpack.c.b16 %v7439, %v7435
        %v7500 = vpack.c.b16 %v7440, %v7436
        %v7501 = vpack.c.b16 %v7441, %v7437
        %v7502 = vpack.c.b16 %v7446, %v7442
        %v7503 = vpack.c.b16 %v7447, %v7443
        %v7504 = vpack.c.b16 %v7448, %v7444
        %v7505 = vpack.c.b16 %v7449, %v7445
        %v7506 = vpack.c.b16 %v7454, %v7450
        %v7507 = vpack.c.b16 %v7455, %v7451
        %v7508 = vpack.c.b16 %v7456, %v7452
        %v7509 = vpack.c.b16 %v7457, %v7453
        %v7510 = vpack.c.b16 %v7462, %v7458
        %v7511 = vpack.c.b16 %v7463, %v7459
        %v7512 = vpack.c.b16 %v7464, %v7460
        %v7513 = vpack.c.b16 %v7465, %v7461
        %v7514 = vpack.c.b16 %v7470, %v7466
        %v7515 = vpack.c.b16 %v7471, %v7467
        %v7516 = vpack.c.b16 %v7472, %v7468
        %v7517 = vpack.c.b16 %v7473, %v7469
        %v7518 = vpack.c.b16 %v7478, %v7474
        %v7519 = vpack.c.b16 %v7479, %v7475
        %v7520 = vpack.c.b16 %v7480, %v7476
        %v7521 = vpack.c.b16 %v7481, %v7477
        %v7522 = vpack.c.b16 %v7486, %v7482
        %v7523 = vpack.c.b16 %v7487, %v7483
        %v7524 = vpack.c.b16 %v7488, %v7484
        %v7525 = vpack.c.b16 %v7489, %v7485
        %v7526 = vpack.c.b16 %v7494, %v7490
        %v7527 = vpack.c.b16 %v7495, %v7491
        %v7528 = vpack.c.b16 %v7496, %v7492
        %v7529 = vpack.c.b16 %v7497, %v7493
        %7562 = vmatpush.bf16.msra.mxu0 %v7526
        %7563 = vmatpush.bf16.msra.mxu0 %v7522
        %7564 = vmatpush.bf16.msra.mxu0 %v7518
        %7565 = vmatpush.bf16.msra.mxu0 %v7514
        %7566 = vmatpush.bf16.msra.mxu0 %v7510
        %7567 = vmatpush.bf16.msra.mxu0 %v7506
        %7568 = vmatpush.bf16.msra.mxu0 %v7502
        %7569 = vmatpush.bf16.msra.mxu0 %v7498
        %7570 = vmatmul.bf16.gmra.mxu0 %v7394
        %v7571 = vpop.f32.mrf.mxu0
        %v7572 = vadd.f32 0.0, %v7571
        %v7573 = vpop.f32.mrf.mxu0
        %v7574 = vadd.f32 0.0, %v7573
        %7575 = vmatmul.bf16.gmra.mxu0 %v7395
        %v7576 = vpop.f32.mrf.mxu0
        %v7577 = vadd.f32 0.0, %v7576
        %v7578 = vpop.f32.mrf.mxu0
        %v7579 = vadd.f32 0.0, %v7578
        %7580 = vmatmul.bf16.gmra.mxu0 %v7396
        %v7581 = vpop.f32.mrf.mxu0
        %v7582 = vadd.f32 0.0, %v7581
        %v7583 = vpop.f32.mrf.mxu0
        %v7584 = vadd.f32 0.0, %v7583
        %7585 = vmatmul.bf16.gmra.mxu0 %v7397
        %v7586 = vpop.f32.mrf.mxu0
        %v7587 = vadd.f32 0.0, %v7586
        %v7588 = vpop.f32.mrf.mxu0
        %v7589 = vadd.f32 0.0, %v7588
        %7590 = vmatmul.bf16.gmra.mxu0 %v7398
        %v7591 = vpop.f32.mrf.mxu0
        %v7592 = vadd.f32 0.0, %v7591
        %v7593 = vpop.f32.mrf.mxu0
        %v7594 = vadd.f32 0.0, %v7593
        %7595 = vmatmul.bf16.gmra.mxu0 %v7399
        %v7596 = vpop.f32.mrf.mxu0
        %v7597 = vadd.f32 0.0, %v7596
        %v7598 = vpop.f32.mrf.mxu0
        %v7599 = vadd.f32 0.0, %v7598
        %7600 = vmatmul.bf16.gmra.mxu0 %v7400
        %v7601 = vpop.f32.mrf.mxu0
        %v7602 = vadd.f32 0.0, %v7601
        %v7603 = vpop.f32.mrf.mxu0
        %v7604 = vadd.f32 0.0, %v7603
        %7605 = vmatmul.bf16.gmra.mxu0 %v7401
        %v7606 = vpop.f32.mrf.mxu0
        %v7607 = vadd.f32 0.0, %v7606
        %v7608 = vpop.f32.mrf.mxu0
        %v7609 = vadd.f32 0.0, %v7608
        %7610 = vdwg.mxu0
        %7611 = vmatpush.bf16.msra.mxu0 %v7527
        %7612 = vmatpush.bf16.msra.mxu0 %v7523
        %7613 = vmatpush.bf16.msra.mxu0 %v7519
        %7614 = vmatpush.bf16.msra.mxu0 %v7515
        %7615 = vmatpush.bf16.msra.mxu0 %v7511
        %7616 = vmatpush.bf16.msra.mxu0 %v7507
        %7617 = vmatpush.bf16.msra.mxu0 %v7503
        %7618 = vmatpush.bf16.msra.mxu0 %v7499
        %7619 = vmatmul.bf16.gmra.mxu0 %v7394
        %v7620 = vpop.f32.mrf.mxu0
        %v7621 = vadd.f32 0.0, %v7620
        %v7622 = vpop.f32.mrf.mxu0
        %v7623 = vadd.f32 0.0, %v7622
        %7624 = vmatmul.bf16.gmra.mxu0 %v7395
        %v7625 = vpop.f32.mrf.mxu0
        %v7626 = vadd.f32 0.0, %v7625
        %v7627 = vpop.f32.mrf.mxu0
        %v7628 = vadd.f32 0.0, %v7627
        %7629 = vmatmul.bf16.gmra.mxu0 %v7396
        %v7630 = vpop.f32.mrf.mxu0
        %v7631 = vadd.f32 0.0, %v7630
        %v7632 = vpop.f32.mrf.mxu0
        %v7633 = vadd.f32 0.0, %v7632
        %7634 = vmatmul.bf16.gmra.mxu0 %v7397
        %v7635 = vpop.f32.mrf.mxu0
        %v7636 = vadd.f32 0.0, %v7635
        %v7637 = vpop.f32.mrf.mxu0
        %v7638 = vadd.f32 0.0, %v7637
        %7639 = vmatmul.bf16.gmra.mxu0 %v7398
        %v7640 = vpop.f32.mrf.mxu0
        %v7641 = vadd.f32 0.0, %v7640
        %v7642 = vpop.f32.mrf.mxu0
        %v7643 = vadd.f32 0.0, %v7642
        %7644 = vmatmul.bf16.gmra.mxu0 %v7399
        %v7645 = vpop.f32.mrf.mxu0
        %v7646 = vadd.f32 0.0, %v7645
        %v7647 = vpop.f32.mrf.mxu0
        %v7648 = vadd.f32 0.0, %v7647
        %7649 = vmatmul.bf16.gmra.mxu0 %v7400
        %v7650 = vpop.f32.mrf.mxu0
        %v7651 = vadd.f32 0.0, %v7650
        %v7652 = vpop.f32.mrf.mxu0
        %v7653 = vadd.f32 0.0, %v7652
        %7654 = vmatmul.bf16.gmra.mxu0 %v7401
        %v7655 = vpop.f32.mrf.mxu0
        %v7656 = vadd.f32 0.0, %v7655
        %v7657 = vpop.f32.mrf.mxu0
        %v7658 = vadd.f32 0.0, %v7657
        %7659 = vdwg.mxu0
        %7660 = vmatpush.bf16.msra.mxu0 %v7528
        %7661 = vmatpush.bf16.msra.mxu0 %v7524
        %7662 = vmatpush.bf16.msra.mxu0 %v7520
        %7663 = vmatpush.bf16.msra.mxu0 %v7516
        %7664 = vmatpush.bf16.msra.mxu0 %v7512
        %7665 = vmatpush.bf16.msra.mxu0 %v7508
        %7666 = vmatpush.bf16.msra.mxu0 %v7504
        %7667 = vmatpush.bf16.msra.mxu0 %v7500
        %7668 = vmatmul.bf16.gmra.mxu0 %v7394
        %v7669 = vpop.f32.mrf.mxu0
        %v7670 = vadd.f32 0.0, %v7669
        %v7671 = vpop.f32.mrf.mxu0
        %v7672 = vadd.f32 0.0, %v7671
        %7673 = vmatmul.bf16.gmra.mxu0 %v7395
        %v7674 = vpop.f32.mrf.mxu0
        %v7675 = vadd.f32 0.0, %v7674
        %v7676 = vpop.f32.mrf.mxu0
        %v7677 = vadd.f32 0.0, %v7676
        %7678 = vmatmul.bf16.gmra.mxu0 %v7396
        %v7679 = vpop.f32.mrf.mxu0
        %v7680 = vadd.f32 0.0, %v7679
        %v7681 = vpop.f32.mrf.mxu0
        %v7682 = vadd.f32 0.0, %v7681
        %7683 = vmatmul.bf16.gmra.mxu0 %v7397
        %v7684 = vpop.f32.mrf.mxu0
        %v7685 = vadd.f32 0.0, %v7684
        %v7686 = vpop.f32.mrf.mxu0
        %v7687 = vadd.f32 0.0, %v7686
        %7688 = vmatmul.bf16.gmra.mxu0 %v7398
        %v7689 = vpop.f32.mrf.mxu0
        %v7690 = vadd.f32 0.0, %v7689
        %v7691 = vpop.f32.mrf.mxu0
        %v7692 = vadd.f32 0.0, %v7691
        %7693 = vmatmul.bf16.gmra.mxu0 %v7399
        %v7694 = vpop.f32.mrf.mxu0
        %v7695 = vadd.f32 0.0, %v7694
        %v7696 = vpop.f32.mrf.mxu0
        %v7697 = vadd.f32 0.0, %v7696
        %7698 = vmatmul.bf16.gmra.mxu0 %v7400
        %v7699 = vpop.f32.mrf.mxu0
        %v7700 = vadd.f32 0.0, %v7699
        %v7701 = vpop.f32.mrf.mxu0
        %v7702 = vadd.f32 0.0, %v7701
        %7703 = vmatmul.bf16.gmra.mxu0 %v7401
        %v7704 = vpop.f32.mrf.mxu0
        %v7705 = vadd.f32 0.0, %v7704
        %v7706 = vpop.f32.mrf.mxu0
        %v7707 = vadd.f32 0.0, %v7706
        %7708 = vdwg.mxu0
        %7709 = vmatpush.bf16.msra.mxu0 %v7529
        %7710 = vmatpush.bf16.msra.mxu0 %v7525
        %7711 = vmatpush.bf16.msra.mxu0 %v7521
        %7712 = vmatpush.bf16.msra.mxu0 %v7517
        %7713 = vmatpush.bf16.msra.mxu0 %v7513
        %7714 = vmatpush.bf16.msra.mxu0 %v7509
        %7715 = vmatpush.bf16.msra.mxu0 %v7505
        %7716 = vmatpush.bf16.msra.mxu0 %v7501
        %7717 = vmatmul.bf16.gmra.mxu0 %v7394
        %v7718 = vpop.f32.mrf.mxu0
        %v7719 = vadd.f32 0.0, %v7718
        %v7720 = vpop.f32.mrf.mxu0
        %v7721 = vadd.f32 0.0, %v7720
        %7722 = vmatmul.bf16.gmra.mxu0 %v7395
        %v7723 = vpop.f32.mrf.mxu0
        %v7724 = vadd.f32 0.0, %v7723
        %v7725 = vpop.f32.mrf.mxu0
        %v7726 = vadd.f32 0.0, %v7725
        %7727 = vmatmul.bf16.gmra.mxu0 %v7396
        %v7728 = vpop.f32.mrf.mxu0
        %v7729 = vadd.f32 0.0, %v7728
        %v7730 = vpop.f32.mrf.mxu0
        %v7731 = vadd.f32 0.0, %v7730
        %7732 = vmatmul.bf16.gmra.mxu0 %v7397
        %v7733 = vpop.f32.mrf.mxu0
        %v7734 = vadd.f32 0.0, %v7733
        %v7735 = vpop.f32.mrf.mxu0
        %v7736 = vadd.f32 0.0, %v7735
        %7737 = vmatmul.bf16.gmra.mxu0 %v7398
        %v7738 = vpop.f32.mrf.mxu0
        %v7739 = vadd.f32 0.0, %v7738
        %v7740 = vpop.f32.mrf.mxu0
        %v7741 = vadd.f32 0.0, %v7740
        %7742 = vmatmul.bf16.gmra.mxu0 %v7399
        %v7743 = vpop.f32.mrf.mxu0
        %v7744 = vadd.f32 0.0, %v7743
        %v7745 = vpop.f32.mrf.mxu0
        %v7746 = vadd.f32 0.0, %v7745
        %7747 = vmatmul.bf16.gmra.mxu0 %v7400
        %v7748 = vpop.f32.mrf.mxu0
        %v7749 = vadd.f32 0.0, %v7748
        %v7750 = vpop.f32.mrf.mxu0
        %v7751 = vadd.f32 0.0, %v7750
        %7752 = vmatmul.bf16.gmra.mxu0 %v7401
        %v7753 = vpop.f32.mrf.mxu0
        %v7754 = vadd.f32 0.0, %v7753
        %v7755 = vpop.f32.mrf.mxu0
        %v7756 = vadd.f32 0.0, %v7755
        %7757 = vdwg.mxu0
        %v7758 = vxor.u32 %v7572, 2147483648
        %v7759 = vxor.u32 %v7621, 2147483648
        %v7760 = vxor.u32 %v7670, 2147483648
        %v7761 = vxor.u32 %v7719, 2147483648
        %v7762 = vxor.u32 %v7574, 2147483648
        %v7763 = vxor.u32 %v7623, 2147483648
        %v7764 = vxor.u32 %v7672, 2147483648
        %v7765 = vxor.u32 %v7721, 2147483648
        %v7766 = vxor.u32 %v7577, 2147483648
        %v7767 = vxor.u32 %v7626, 2147483648
        %v7768 = vxor.u32 %v7675, 2147483648
        %v7769 = vxor.u32 %v7724, 2147483648
        %v7770 = vxor.u32 %v7579, 2147483648
        %v7771 = vxor.u32 %v7628, 2147483648
        %v7772 = vxor.u32 %v7677, 2147483648
        %v7773 = vxor.u32 %v7726, 2147483648
        %v7774 = vxor.u32 %v7582, 2147483648
        %v7775 = vxor.u32 %v7631, 2147483648
        %v7776 = vxor.u32 %v7680, 2147483648
        %v7777 = vxor.u32 %v7729, 2147483648
        %v7778 = vxor.u32 %v7584, 2147483648
        %v7779 = vxor.u32 %v7633, 2147483648
        %v7780 = vxor.u32 %v7682, 2147483648
        %v7781 = vxor.u32 %v7731, 2147483648
        %v7782 = vxor.u32 %v7587, 2147483648
        %v7783 = vxor.u32 %v7636, 2147483648
        %v7784 = vxor.u32 %v7685, 2147483648
        %v7785 = vxor.u32 %v7734, 2147483648
        %v7786 = vxor.u32 %v7589, 2147483648
        %v7787 = vxor.u32 %v7638, 2147483648
        %v7788 = vxor.u32 %v7687, 2147483648
        %v7789 = vxor.u32 %v7736, 2147483648
        %v7790 = vxor.u32 %v7592, 2147483648
        %v7791 = vxor.u32 %v7641, 2147483648
        %v7792 = vxor.u32 %v7690, 2147483648
        %v7793 = vxor.u32 %v7739, 2147483648
        %v7794 = vxor.u32 %v7594, 2147483648
        %v7795 = vxor.u32 %v7643, 2147483648
        %v7796 = vxor.u32 %v7692, 2147483648
        %v7797 = vxor.u32 %v7741, 2147483648
        %v7798 = vxor.u32 %v7597, 2147483648
        %v7799 = vxor.u32 %v7646, 2147483648
        %v7800 = vxor.u32 %v7695, 2147483648
        %v7801 = vxor.u32 %v7744, 2147483648
        %v7802 = vxor.u32 %v7599, 2147483648
        %v7803 = vxor.u32 %v7648, 2147483648
        %v7804 = vxor.u32 %v7697, 2147483648
        %v7805 = vxor.u32 %v7746, 2147483648
        %v7806 = vxor.u32 %v7602, 2147483648
        %v7807 = vxor.u32 %v7651, 2147483648
        %v7808 = vxor.u32 %v7700, 2147483648
        %v7809 = vxor.u32 %v7749, 2147483648
        %v7810 = vxor.u32 %v7604, 2147483648
        %v7811 = vxor.u32 %v7653, 2147483648
        %v7812 = vxor.u32 %v7702, 2147483648
        %v7813 = vxor.u32 %v7751, 2147483648
        %v7814 = vxor.u32 %v7607, 2147483648
        %v7815 = vxor.u32 %v7656, 2147483648
        %v7816 = vxor.u32 %v7705, 2147483648
        %v7817 = vxor.u32 %v7754, 2147483648
        %v7818 = vxor.u32 %v7609, 2147483648
        %v7819 = vxor.u32 %v7658, 2147483648
        %v7820 = vxor.u32 %v7707, 2147483648
        %v7821 = vxor.u32 %v7756, 2147483648
        %v7822 = vmul.f32 %v7758, 1.442695
        %v7823 = vpow.pop %v7822
        %v7824 = vmul.f32 %v7759, 1.442695
        %v7825 = vpow.pop %v7824
        %v7826 = vmul.f32 %v7760, 1.442695
        %v7827 = vpow.pop %v7826
        %v7828 = vmul.f32 %v7761, 1.442695
        %v7829 = vpow.pop %v7828
        %v7830 = vmul.f32 %v7762, 1.442695
        %v7831 = vpow.pop %v7830
        %v7832 = vmul.f32 %v7763, 1.442695
        %v7833 = vpow.pop %v7832
        %v7834 = vmul.f32 %v7764, 1.442695
        %v7835 = vpow.pop %v7834
        %v7836 = vmul.f32 %v7765, 1.442695
        %v7837 = vpow.pop %v7836
        %v7838 = vmul.f32 %v7766, 1.442695
        %v7839 = vpow.pop %v7838
        %v7840 = vmul.f32 %v7767, 1.442695
        %v7841 = vpow.pop %v7840
        %v7842 = vmul.f32 %v7768, 1.442695
        %v7843 = vpow.pop %v7842
        %v7844 = vmul.f32 %v7769, 1.442695
        %v7845 = vpow.pop %v7844
        %v7846 = vmul.f32 %v7770, 1.442695
        %v7847 = vpow.pop %v7846
        %v7848 = vmul.f32 %v7771, 1.442695
        %v7849 = vpow.pop %v7848
        %v7850 = vmul.f32 %v7772, 1.442695
        %v7851 = vpow.pop %v7850
        %v7852 = vmul.f32 %v7773, 1.442695
        %v7853 = vpow.pop %v7852
        %v7854 = vmul.f32 %v7774, 1.442695
        %v7855 = vpow.pop %v7854
        %v7856 = vmul.f32 %v7775, 1.442695
        %v7857 = vpow.pop %v7856
        %v7858 = vmul.f32 %v7776, 1.442695
        %v7859 = vpow.pop %v7858
        %v7860 = vmul.f32 %v7777, 1.442695
        %v7861 = vpow.pop %v7860
        %v7862 = vmul.f32 %v7778, 1.442695
        %v7863 = vpow.pop %v7862
        %v7864 = vmul.f32 %v7779, 1.442695
        %v7865 = vpow.pop %v7864
        %v7866 = vmul.f32 %v7780, 1.442695
        %v7867 = vpow.pop %v7866
        %v7868 = vmul.f32 %v7781, 1.442695
        %v7869 = vpow.pop %v7868
        %v7870 = vmul.f32 %v7782, 1.442695
        %v7871 = vpow.pop %v7870
        %v7872 = vmul.f32 %v7783, 1.442695
        %v7873 = vpow.pop %v7872
        %v7874 = vmul.f32 %v7784, 1.442695
        %v7875 = vpow.pop %v7874
        %v7876 = vmul.f32 %v7785, 1.442695
        %v7877 = vpow.pop %v7876
        %v7878 = vmul.f32 %v7786, 1.442695
        %v7879 = vpow.pop %v7878
        %v7880 = vmul.f32 %v7787, 1.442695
        %v7881 = vpow.pop %v7880
        %v7882 = vmul.f32 %v7788, 1.442695
        %v7883 = vpow.pop %v7882
        %v7884 = vmul.f32 %v7789, 1.442695
        %v7885 = vpow.pop %v7884
        %v7886 = vmul.f32 %v7790, 1.442695
        %v7887 = vpow.pop %v7886
        %v7888 = vmul.f32 %v7791, 1.442695
        %v7889 = vpow.pop %v7888
        %v7890 = vmul.f32 %v7792, 1.442695
        %v7891 = vpow.pop %v7890
        %v7892 = vmul.f32 %v7793, 1.442695
        %v7893 = vpow.pop %v7892
        %v7894 = vmul.f32 %v7794, 1.442695
        %v7895 = vpow.pop %v7894
        %v7896 = vmul.f32 %v7795, 1.442695
        %v7897 = vpow.pop %v7896
        %v7898 = vmul.f32 %v7796, 1.442695
        %v7899 = vpow.pop %v7898
        %v7900 = vmul.f32 %v7797, 1.442695
        %v7901 = vpow.pop %v7900
        %v7902 = vmul.f32 %v7798, 1.442695
        %v7903 = vpow.pop %v7902
        %v7904 = vmul.f32 %v7799, 1.442695
        %v7905 = vpow.pop %v7904
        %v7906 = vmul.f32 %v7800, 1.442695
        %v7907 = vpow.pop %v7906
        %v7908 = vmul.f32 %v7801, 1.442695
        %v7909 = vpow.pop %v7908
        %v7910 = vmul.f32 %v7802, 1.442695
        %v7911 = vpow.pop %v7910
        %v7912 = vmul.f32 %v7803, 1.442695
        %v7913 = vpow.pop %v7912
        %v7914 = vmul.f32 %v7804, 1.442695
        %v7915 = vpow.pop %v7914
        %v7916 = vmul.f32 %v7805, 1.442695
        %v7917 = vpow.pop %v7916
        %v7918 = vmul.f32 %v7806, 1.442695
        %v7919 = vpow.pop %v7918
        %v7920 = vmul.f32 %v7807, 1.442695
        %v7921 = vpow.pop %v7920
        %v7922 = vmul.f32 %v7808, 1.442695
        %v7923 = vpow.pop %v7922
        %v7924 = vmul.f32 %v7809, 1.442695
        %v7925 = vpow.pop %v7924
        %v7926 = vmul.f32 %v7810, 1.442695
        %v7927 = vpow.pop %v7926
        %v7928 = vmul.f32 %v7811, 1.442695
        %v7929 = vpow.pop %v7928
        %v7930 = vmul.f32 %v7812, 1.442695
        %v7931 = vpow.pop %v7930
        %v7932 = vmul.f32 %v7813, 1.442695
        %v7933 = vpow.pop %v7932
        %v7934 = vmul.f32 %v7814, 1.442695
        %v7935 = vpow.pop %v7934
        %v7936 = vmul.f32 %v7815, 1.442695
        %v7937 = vpow.pop %v7936
        %v7938 = vmul.f32 %v7816, 1.442695
        %v7939 = vpow.pop %v7938
        %v7940 = vmul.f32 %v7817, 1.442695
        %v7941 = vpow.pop %v7940
        %v7942 = vmul.f32 %v7818, 1.442695
        %v7943 = vpow.pop %v7942
        %v7944 = vmul.f32 %v7819, 1.442695
        %v7945 = vpow.pop %v7944
        %v7946 = vmul.f32 %v7820, 1.442695
        %v7947 = vpow.pop %v7946
        %v7948 = vmul.f32 %v7821, 1.442695
        %v7949 = vpow.pop %v7948
        %v7950 = vadd.f32 %v7823, 1.0
        %v7951 = vadd.f32 %v7825, 1.0
        %v7952 = vadd.f32 %v7827, 1.0
        %v7953 = vadd.f32 %v7829, 1.0
        %v7954 = vadd.f32 %v7831, 1.0
        %v7955 = vadd.f32 %v7833, 1.0
        %v7956 = vadd.f32 %v7835, 1.0
        %v7957 = vadd.f32 %v7837, 1.0
        %v7958 = vadd.f32 %v7839, 1.0
        %v7959 = vadd.f32 %v7841, 1.0
        %v7960 = vadd.f32 %v7843, 1.0
        %v7961 = vadd.f32 %v7845, 1.0
        %v7962 = vadd.f32 %v7847, 1.0
        %v7963 = vadd.f32 %v7849, 1.0
        %v7964 = vadd.f32 %v7851, 1.0
        %v7965 = vadd.f32 %v7853, 1.0
        %v7966 = vadd.f32 %v7855, 1.0
        %v7967 = vadd.f32 %v7857, 1.0
        %v7968 = vadd.f32 %v7859, 1.0
        %v7969 = vadd.f32 %v7861, 1.0
        %v7970 = vadd.f32 %v7863, 1.0
        %v7971 = vadd.f32 %v7865, 1.0
        %v7972 = vadd.f32 %v7867, 1.0
        %v7973 = vadd.f32 %v7869, 1.0
        %v7974 = vadd.f32 %v7871, 1.0
        %v7975 = vadd.f32 %v7873, 1.0
        %v7976 = vadd.f32 %v7875, 1.0
        %v7977 = vadd.f32 %v7877, 1.0
        %v7978 = vadd.f32 %v7879, 1.0
        %v7979 = vadd.f32 %v7881, 1.0
        %v7980 = vadd.f32 %v7883, 1.0
        %v7981 = vadd.f32 %v7885, 1.0
        %v7982 = vadd.f32 %v7887, 1.0
        %v7983 = vadd.f32 %v7889, 1.0
        %v7984 = vadd.f32 %v7891, 1.0
        %v7985 = vadd.f32 %v7893, 1.0
        %v7986 = vadd.f32 %v7895, 1.0
        %v7987 = vadd.f32 %v7897, 1.0
        %v7988 = vadd.f32 %v7899, 1.0
        %v7989 = vadd.f32 %v7901, 1.0
        %v7990 = vadd.f32 %v7903, 1.0
        %v7991 = vadd.f32 %v7905, 1.0
        %v7992 = vadd.f32 %v7907, 1.0
        %v7993 = vadd.f32 %v7909, 1.0
        %v7994 = vadd.f32 %v7911, 1.0
        %v7995 = vadd.f32 %v7913, 1.0
        %v7996 = vadd.f32 %v7915, 1.0
        %v7997 = vadd.f32 %v7917, 1.0
        %v7998 = vadd.f32 %v7919, 1.0
        %v7999 = vadd.f32 %v7921, 1.0
        %v8000 = vadd.f32 %v7923, 1.0
        %v8001 = vadd.f32 %v7925, 1.0
        %v8002 = vadd.f32 %v7927, 1.0
        %v8003 = vadd.f32 %v7929, 1.0
        %v8004 = vadd.f32 %v7931, 1.0
        %v8005 = vadd.f32 %v7933, 1.0
        %v8006 = vadd.f32 %v7935, 1.0
        %v8007 = vadd.f32 %v7937, 1.0
        %v8008 = vadd.f32 %v7939, 1.0
        %v8009 = vadd.f32 %v7941, 1.0
        %v8010 = vadd.f32 %v7943, 1.0
        %v8011 = vadd.f32 %v7945, 1.0
        %v8012 = vadd.f32 %v7947, 1.0
        %v8013 = vadd.f32 %v7949, 1.0
        %v8014 = vrcp.pop %v7950
        %v8015 = vmul.f32 %v7950, %v8014
        %v8016 = vsub.f32 1.0, %v8015
        %v8017 = vmul.f32 %v8014, %v8016
        %v8018 = vadd.f32 %v8014, %v8017
        %vm8019 = vweird.f32 %v7950
        %vm8020 = vweird.f32 %v8014
        %vm8021 = vmor %vm8019, %vm8020
        %v8022 = vsel %vm8021, %v8014, %v8018
        %v8023 = vand.u32 2147483647, %v7950
        %vm8024 = vcmp.eq.f32.partialorder %v8023, 8.507059e+37
        %v8025 = vand.u32 %v7950, 2147483648
        %v8026 = vor.u32 1.1754944e-38, %v8025
        %v8027 = vsel %vm8024, %v8026, %v8022
        %v8028 = vmul.f32 1.0, %v8027
        %v8029 = vrcp.pop %v7951
        %v8030 = vmul.f32 %v7951, %v8029
        %v8031 = vsub.f32 1.0, %v8030
        %v8032 = vmul.f32 %v8029, %v8031
        %v8033 = vadd.f32 %v8029, %v8032
        %vm8034 = vweird.f32 %v7951
        %vm8035 = vweird.f32 %v8029
        %vm8036 = vmor %vm8034, %vm8035
        %v8037 = vsel %vm8036, %v8029, %v8033
        %v8038 = vand.u32 2147483647, %v7951
        %vm8039 = vcmp.eq.f32.partialorder %v8038, 8.507059e+37
        %v8040 = vand.u32 %v7951, 2147483648
        %v8041 = vor.u32 1.1754944e-38, %v8040
        %v8042 = vsel %vm8039, %v8041, %v8037
        %v8043 = vmul.f32 1.0, %v8042
        %v8044 = vrcp.pop %v7952
        %v8045 = vmul.f32 %v7952, %v8044
        %v8046 = vsub.f32 1.0, %v8045
        %v8047 = vmul.f32 %v8044, %v8046
        %v8048 = vadd.f32 %v8044, %v8047
        %vm8049 = vweird.f32 %v7952
        %vm8050 = vweird.f32 %v8044
        %vm8051 = vmor %vm8049, %vm8050
        %v8052 = vsel %vm8051, %v8044, %v8048
        %v8053 = vand.u32 2147483647, %v7952
        %vm8054 = vcmp.eq.f32.partialorder %v8053, 8.507059e+37
        %v8055 = vand.u32 %v7952, 2147483648
        %v8056 = vor.u32 1.1754944e-38, %v8055
        %v8057 = vsel %vm8054, %v8056, %v8052
        %v8058 = vmul.f32 1.0, %v8057
        %v8059 = vrcp.pop %v7953
        %v8060 = vmul.f32 %v7953, %v8059
        %v8061 = vsub.f32 1.0, %v8060
        %v8062 = vmul.f32 %v8059, %v8061
        %v8063 = vadd.f32 %v8059, %v8062
        %vm8064 = vweird.f32 %v7953
        %vm8065 = vweird.f32 %v8059
        %vm8066 = vmor %vm8064, %vm8065
        %v8067 = vsel %vm8066, %v8059, %v8063
        %v8068 = vand.u32 2147483647, %v7953
        %vm8069 = vcmp.eq.f32.partialorder %v8068, 8.507059e+37
        %v8070 = vand.u32 %v7953, 2147483648
        %v8071 = vor.u32 1.1754944e-38, %v8070
        %v8072 = vsel %vm8069, %v8071, %v8067
        %v8073 = vmul.f32 1.0, %v8072
        %v8074 = vrcp.pop %v7954
        %v8075 = vmul.f32 %v7954, %v8074
        %v8076 = vsub.f32 1.0, %v8075
        %v8077 = vmul.f32 %v8074, %v8076
        %v8078 = vadd.f32 %v8074, %v8077
        %vm8079 = vweird.f32 %v7954
        %vm8080 = vweird.f32 %v8074
        %vm8081 = vmor %vm8079, %vm8080
        %v8082 = vsel %vm8081, %v8074, %v8078
        %v8083 = vand.u32 2147483647, %v7954
        %vm8084 = vcmp.eq.f32.partialorder %v8083, 8.507059e+37
        %v8085 = vand.u32 %v7954, 2147483648
        %v8086 = vor.u32 1.1754944e-38, %v8085
        %v8087 = vsel %vm8084, %v8086, %v8082
        %v8088 = vmul.f32 1.0, %v8087
        %v8089 = vrcp.pop %v7955
        %v8090 = vmul.f32 %v7955, %v8089
        %v8091 = vsub.f32 1.0, %v8090
        %v8092 = vmul.f32 %v8089, %v8091
        %v8093 = vadd.f32 %v8089, %v8092
        %vm8094 = vweird.f32 %v7955
        %vm8095 = vweird.f32 %v8089
        %vm8096 = vmor %vm8094, %vm8095
        %v8097 = vsel %vm8096, %v8089, %v8093
        %v8098 = vand.u32 2147483647, %v7955
        %vm8099 = vcmp.eq.f32.partialorder %v8098, 8.507059e+37
        %v8100 = vand.u32 %v7955, 2147483648
        %v8101 = vor.u32 1.1754944e-38, %v8100
        %v8102 = vsel %vm8099, %v8101, %v8097
        %v8103 = vmul.f32 1.0, %v8102
        %v8104 = vrcp.pop %v7956
        %v8105 = vmul.f32 %v7956, %v8104
        %v8106 = vsub.f32 1.0, %v8105
        %v8107 = vmul.f32 %v8104, %v8106
        %v8108 = vadd.f32 %v8104, %v8107
        %vm8109 = vweird.f32 %v7956
        %vm8110 = vweird.f32 %v8104
        %vm8111 = vmor %vm8109, %vm8110
        %v8112 = vsel %vm8111, %v8104, %v8108
        %v8113 = vand.u32 2147483647, %v7956
        %vm8114 = vcmp.eq.f32.partialorder %v8113, 8.507059e+37
        %v8115 = vand.u32 %v7956, 2147483648
        %v8116 = vor.u32 1.1754944e-38, %v8115
        %v8117 = vsel %vm8114, %v8116, %v8112
        %v8118 = vmul.f32 1.0, %v8117
        %v8119 = vrcp.pop %v7957
        %v8120 = vmul.f32 %v7957, %v8119
        %v8121 = vsub.f32 1.0, %v8120
        %v8122 = vmul.f32 %v8119, %v8121
        %v8123 = vadd.f32 %v8119, %v8122
        %vm8124 = vweird.f32 %v7957
        %vm8125 = vweird.f32 %v8119
        %vm8126 = vmor %vm8124, %vm8125
        %v8127 = vsel %vm8126, %v8119, %v8123
        %v8128 = vand.u32 2147483647, %v7957
        %vm8129 = vcmp.eq.f32.partialorder %v8128, 8.507059e+37
        %v8130 = vand.u32 %v7957, 2147483648
        %v8131 = vor.u32 1.1754944e-38, %v8130
        %v8132 = vsel %vm8129, %v8131, %v8127
        %v8133 = vmul.f32 1.0, %v8132
        %v8134 = vrcp.pop %v7958
        %v8135 = vmul.f32 %v7958, %v8134
        %v8136 = vsub.f32 1.0, %v8135
        %v8137 = vmul.f32 %v8134, %v8136
        %v8138 = vadd.f32 %v8134, %v8137
        %vm8139 = vweird.f32 %v7958
        %vm8140 = vweird.f32 %v8134
        %vm8141 = vmor %vm8139, %vm8140
        %v8142 = vsel %vm8141, %v8134, %v8138
        %v8143 = vand.u32 2147483647, %v7958
        %vm8144 = vcmp.eq.f32.partialorder %v8143, 8.507059e+37
        %v8145 = vand.u32 %v7958, 2147483648
        %v8146 = vor.u32 1.1754944e-38, %v8145
        %v8147 = vsel %vm8144, %v8146, %v8142
        %v8148 = vmul.f32 1.0, %v8147
        %v8149 = vrcp.pop %v7959
        %v8150 = vmul.f32 %v7959, %v8149
        %v8151 = vsub.f32 1.0, %v8150
        %v8152 = vmul.f32 %v8149, %v8151
        %v8153 = vadd.f32 %v8149, %v8152
        %vm8154 = vweird.f32 %v7959
        %vm8155 = vweird.f32 %v8149
        %vm8156 = vmor %vm8154, %vm8155
        %v8157 = vsel %vm8156, %v8149, %v8153
        %v8158 = vand.u32 2147483647, %v7959
        %vm8159 = vcmp.eq.f32.partialorder %v8158, 8.507059e+37
        %v8160 = vand.u32 %v7959, 2147483648
        %v8161 = vor.u32 1.1754944e-38, %v8160
        %v8162 = vsel %vm8159, %v8161, %v8157
        %v8163 = vmul.f32 1.0, %v8162
        %v8164 = vrcp.pop %v7960
        %v8165 = vmul.f32 %v7960, %v8164
        %v8166 = vsub.f32 1.0, %v8165
        %v8167 = vmul.f32 %v8164, %v8166
        %v8168 = vadd.f32 %v8164, %v8167
        %vm8169 = vweird.f32 %v7960
        %vm8170 = vweird.f32 %v8164
        %vm8171 = vmor %vm8169, %vm8170
        %v8172 = vsel %vm8171, %v8164, %v8168
        %v8173 = vand.u32 2147483647, %v7960
        %vm8174 = vcmp.eq.f32.partialorder %v8173, 8.507059e+37
        %v8175 = vand.u32 %v7960, 2147483648
        %v8176 = vor.u32 1.1754944e-38, %v8175
        %v8177 = vsel %vm8174, %v8176, %v8172
        %v8178 = vmul.f32 1.0, %v8177
        %v8179 = vrcp.pop %v7961
        %v8180 = vmul.f32 %v7961, %v8179
        %v8181 = vsub.f32 1.0, %v8180
        %v8182 = vmul.f32 %v8179, %v8181
        %v8183 = vadd.f32 %v8179, %v8182
        %vm8184 = vweird.f32 %v7961
        %vm8185 = vweird.f32 %v8179
        %vm8186 = vmor %vm8184, %vm8185
        %v8187 = vsel %vm8186, %v8179, %v8183
        %v8188 = vand.u32 2147483647, %v7961
        %vm8189 = vcmp.eq.f32.partialorder %v8188, 8.507059e+37
        %v8190 = vand.u32 %v7961, 2147483648
        %v8191 = vor.u32 1.1754944e-38, %v8190
        %v8192 = vsel %vm8189, %v8191, %v8187
        %v8193 = vmul.f32 1.0, %v8192
        %v8194 = vrcp.pop %v7962
        %v8195 = vmul.f32 %v7962, %v8194
        %v8196 = vsub.f32 1.0, %v8195
        %v8197 = vmul.f32 %v8194, %v8196
        %v8198 = vadd.f32 %v8194, %v8197
        %vm8199 = vweird.f32 %v7962
        %vm8200 = vweird.f32 %v8194
        %vm8201 = vmor %vm8199, %vm8200
        %v8202 = vsel %vm8201, %v8194, %v8198
        %v8203 = vand.u32 2147483647, %v7962
        %vm8204 = vcmp.eq.f32.partialorder %v8203, 8.507059e+37
        %v8205 = vand.u32 %v7962, 2147483648
        %v8206 = vor.u32 1.1754944e-38, %v8205
        %v8207 = vsel %vm8204, %v8206, %v8202
        %v8208 = vmul.f32 1.0, %v8207
        %v8209 = vrcp.pop %v7963
        %v8210 = vmul.f32 %v7963, %v8209
        %v8211 = vsub.f32 1.0, %v8210
        %v8212 = vmul.f32 %v8209, %v8211
        %v8213 = vadd.f32 %v8209, %v8212
        %vm8214 = vweird.f32 %v7963
        %vm8215 = vweird.f32 %v8209
        %vm8216 = vmor %vm8214, %vm8215
        %v8217 = vsel %vm8216, %v8209, %v8213
        %v8218 = vand.u32 2147483647, %v7963
        %vm8219 = vcmp.eq.f32.partialorder %v8218, 8.507059e+37
        %v8220 = vand.u32 %v7963, 2147483648
        %v8221 = vor.u32 1.1754944e-38, %v8220
        %v8222 = vsel %vm8219, %v8221, %v8217
        %v8223 = vmul.f32 1.0, %v8222
        %v8224 = vrcp.pop %v7964
        %v8225 = vmul.f32 %v7964, %v8224
        %v8226 = vsub.f32 1.0, %v8225
        %v8227 = vmul.f32 %v8224, %v8226
        %v8228 = vadd.f32 %v8224, %v8227
        %vm8229 = vweird.f32 %v7964
        %vm8230 = vweird.f32 %v8224
        %vm8231 = vmor %vm8229, %vm8230
        %v8232 = vsel %vm8231, %v8224, %v8228
        %v8233 = vand.u32 2147483647, %v7964
        %vm8234 = vcmp.eq.f32.partialorder %v8233, 8.507059e+37
        %v8235 = vand.u32 %v7964, 2147483648
        %v8236 = vor.u32 1.1754944e-38, %v8235
        %v8237 = vsel %vm8234, %v8236, %v8232
        %v8238 = vmul.f32 1.0, %v8237
        %v8239 = vrcp.pop %v7965
        %v8240 = vmul.f32 %v7965, %v8239
        %v8241 = vsub.f32 1.0, %v8240
        %v8242 = vmul.f32 %v8239, %v8241
        %v8243 = vadd.f32 %v8239, %v8242
        %vm8244 = vweird.f32 %v7965
        %vm8245 = vweird.f32 %v8239
        %vm8246 = vmor %vm8244, %vm8245
        %v8247 = vsel %vm8246, %v8239, %v8243
        %v8248 = vand.u32 2147483647, %v7965
        %vm8249 = vcmp.eq.f32.partialorder %v8248, 8.507059e+37
        %v8250 = vand.u32 %v7965, 2147483648
        %v8251 = vor.u32 1.1754944e-38, %v8250
        %v8252 = vsel %vm8249, %v8251, %v8247
        %v8253 = vmul.f32 1.0, %v8252
        %v8254 = vrcp.pop %v7966
        %v8255 = vmul.f32 %v7966, %v8254
        %v8256 = vsub.f32 1.0, %v8255
        %v8257 = vmul.f32 %v8254, %v8256
        %v8258 = vadd.f32 %v8254, %v8257
        %vm8259 = vweird.f32 %v7966
        %vm8260 = vweird.f32 %v8254
        %vm8261 = vmor %vm8259, %vm8260
        %v8262 = vsel %vm8261, %v8254, %v8258
        %v8263 = vand.u32 2147483647, %v7966
        %vm8264 = vcmp.eq.f32.partialorder %v8263, 8.507059e+37
        %v8265 = vand.u32 %v7966, 2147483648
        %v8266 = vor.u32 1.1754944e-38, %v8265
        %v8267 = vsel %vm8264, %v8266, %v8262
        %v8268 = vmul.f32 1.0, %v8267
        %v8269 = vrcp.pop %v7967
        %v8270 = vmul.f32 %v7967, %v8269
        %v8271 = vsub.f32 1.0, %v8270
        %v8272 = vmul.f32 %v8269, %v8271
        %v8273 = vadd.f32 %v8269, %v8272
        %vm8274 = vweird.f32 %v7967
        %vm8275 = vweird.f32 %v8269
        %vm8276 = vmor %vm8274, %vm8275
        %v8277 = vsel %vm8276, %v8269, %v8273
        %v8278 = vand.u32 2147483647, %v7967
        %vm8279 = vcmp.eq.f32.partialorder %v8278, 8.507059e+37
        %v8280 = vand.u32 %v7967, 2147483648
        %v8281 = vor.u32 1.1754944e-38, %v8280
        %v8282 = vsel %vm8279, %v8281, %v8277
        %v8283 = vmul.f32 1.0, %v8282
        %v8284 = vrcp.pop %v7968
        %v8285 = vmul.f32 %v7968, %v8284
        %v8286 = vsub.f32 1.0, %v8285
        %v8287 = vmul.f32 %v8284, %v8286
        %v8288 = vadd.f32 %v8284, %v8287
        %vm8289 = vweird.f32 %v7968
        %vm8290 = vweird.f32 %v8284
        %vm8291 = vmor %vm8289, %vm8290
        %v8292 = vsel %vm8291, %v8284, %v8288
        %v8293 = vand.u32 2147483647, %v7968
        %vm8294 = vcmp.eq.f32.partialorder %v8293, 8.507059e+37
        %v8295 = vand.u32 %v7968, 2147483648
        %v8296 = vor.u32 1.1754944e-38, %v8295
        %v8297 = vsel %vm8294, %v8296, %v8292
        %v8298 = vmul.f32 1.0, %v8297
        %v8299 = vrcp.pop %v7969
        %v8300 = vmul.f32 %v7969, %v8299
        %v8301 = vsub.f32 1.0, %v8300
        %v8302 = vmul.f32 %v8299, %v8301
        %v8303 = vadd.f32 %v8299, %v8302
        %vm8304 = vweird.f32 %v7969
        %vm8305 = vweird.f32 %v8299
        %vm8306 = vmor %vm8304, %vm8305
        %v8307 = vsel %vm8306, %v8299, %v8303
        %v8308 = vand.u32 2147483647, %v7969
        %vm8309 = vcmp.eq.f32.partialorder %v8308, 8.507059e+37
        %v8310 = vand.u32 %v7969, 2147483648
        %v8311 = vor.u32 1.1754944e-38, %v8310
        %v8312 = vsel %vm8309, %v8311, %v8307
        %v8313 = vmul.f32 1.0, %v8312
        %v8314 = vrcp.pop %v7970
        %v8315 = vmul.f32 %v7970, %v8314
        %v8316 = vsub.f32 1.0, %v8315
        %v8317 = vmul.f32 %v8314, %v8316
        %v8318 = vadd.f32 %v8314, %v8317
        %vm8319 = vweird.f32 %v7970
        %vm8320 = vweird.f32 %v8314
        %vm8321 = vmor %vm8319, %vm8320
        %v8322 = vsel %vm8321, %v8314, %v8318
        %v8323 = vand.u32 2147483647, %v7970
        %vm8324 = vcmp.eq.f32.partialorder %v8323, 8.507059e+37
        %v8325 = vand.u32 %v7970, 2147483648
        %v8326 = vor.u32 1.1754944e-38, %v8325
        %v8327 = vsel %vm8324, %v8326, %v8322
        %v8328 = vmul.f32 1.0, %v8327
        %v8329 = vrcp.pop %v7971
        %v8330 = vmul.f32 %v7971, %v8329
        %v8331 = vsub.f32 1.0, %v8330
        %v8332 = vmul.f32 %v8329, %v8331
        %v8333 = vadd.f32 %v8329, %v8332
        %vm8334 = vweird.f32 %v7971
        %vm8335 = vweird.f32 %v8329
        %vm8336 = vmor %vm8334, %vm8335
        %v8337 = vsel %vm8336, %v8329, %v8333
        %v8338 = vand.u32 2147483647, %v7971
        %vm8339 = vcmp.eq.f32.partialorder %v8338, 8.507059e+37
        %v8340 = vand.u32 %v7971, 2147483648
        %v8341 = vor.u32 1.1754944e-38, %v8340
        %v8342 = vsel %vm8339, %v8341, %v8337
        %v8343 = vmul.f32 1.0, %v8342
        %v8344 = vrcp.pop %v7972
        %v8345 = vmul.f32 %v7972, %v8344
        %v8346 = vsub.f32 1.0, %v8345
        %v8347 = vmul.f32 %v8344, %v8346
        %v8348 = vadd.f32 %v8344, %v8347
        %vm8349 = vweird.f32 %v7972
        %vm8350 = vweird.f32 %v8344
        %vm8351 = vmor %vm8349, %vm8350
        %v8352 = vsel %vm8351, %v8344, %v8348
        %v8353 = vand.u32 2147483647, %v7972
        %vm8354 = vcmp.eq.f32.partialorder %v8353, 8.507059e+37
        %v8355 = vand.u32 %v7972, 2147483648
        %v8356 = vor.u32 1.1754944e-38, %v8355
        %v8357 = vsel %vm8354, %v8356, %v8352
        %v8358 = vmul.f32 1.0, %v8357
        %v8359 = vrcp.pop %v7973
        %v8360 = vmul.f32 %v7973, %v8359
        %v8361 = vsub.f32 1.0, %v8360
        %v8362 = vmul.f32 %v8359, %v8361
        %v8363 = vadd.f32 %v8359, %v8362
        %vm8364 = vweird.f32 %v7973
        %vm8365 = vweird.f32 %v8359
        %vm8366 = vmor %vm8364, %vm8365
        %v8367 = vsel %vm8366, %v8359, %v8363
        %v8368 = vand.u32 2147483647, %v7973
        %vm8369 = vcmp.eq.f32.partialorder %v8368, 8.507059e+37
        %v8370 = vand.u32 %v7973, 2147483648
        %v8371 = vor.u32 1.1754944e-38, %v8370
        %v8372 = vsel %vm8369, %v8371, %v8367
        %v8373 = vmul.f32 1.0, %v8372
        %v8374 = vrcp.pop %v7974
        %v8375 = vmul.f32 %v7974, %v8374
        %v8376 = vsub.f32 1.0, %v8375
        %v8377 = vmul.f32 %v8374, %v8376
        %v8378 = vadd.f32 %v8374, %v8377
        %vm8379 = vweird.f32 %v7974
        %vm8380 = vweird.f32 %v8374
        %vm8381 = vmor %vm8379, %vm8380
        %v8382 = vsel %vm8381, %v8374, %v8378
        %v8383 = vand.u32 2147483647, %v7974
        %vm8384 = vcmp.eq.f32.partialorder %v8383, 8.507059e+37
        %v8385 = vand.u32 %v7974, 2147483648
        %v8386 = vor.u32 1.1754944e-38, %v8385
        %v8387 = vsel %vm8384, %v8386, %v8382
        %v8388 = vmul.f32 1.0, %v8387
        %v8389 = vrcp.pop %v7975
        %v8390 = vmul.f32 %v7975, %v8389
        %v8391 = vsub.f32 1.0, %v8390
        %v8392 = vmul.f32 %v8389, %v8391
        %v8393 = vadd.f32 %v8389, %v8392
        %vm8394 = vweird.f32 %v7975
        %vm8395 = vweird.f32 %v8389
        %vm8396 = vmor %vm8394, %vm8395
        %v8397 = vsel %vm8396, %v8389, %v8393
        %v8398 = vand.u32 2147483647, %v7975
        %vm8399 = vcmp.eq.f32.partialorder %v8398, 8.507059e+37
        %v8400 = vand.u32 %v7975, 2147483648
        %v8401 = vor.u32 1.1754944e-38, %v8400
        %v8402 = vsel %vm8399, %v8401, %v8397
        %v8403 = vmul.f32 1.0, %v8402
        %v8404 = vrcp.pop %v7976
        %v8405 = vmul.f32 %v7976, %v8404
        %v8406 = vsub.f32 1.0, %v8405
        %v8407 = vmul.f32 %v8404, %v8406
        %v8408 = vadd.f32 %v8404, %v8407
        %vm8409 = vweird.f32 %v7976
        %vm8410 = vweird.f32 %v8404
        %vm8411 = vmor %vm8409, %vm8410
        %v8412 = vsel %vm8411, %v8404, %v8408
        %v8413 = vand.u32 2147483647, %v7976
        %vm8414 = vcmp.eq.f32.partialorder %v8413, 8.507059e+37
        %v8415 = vand.u32 %v7976, 2147483648
        %v8416 = vor.u32 1.1754944e-38, %v8415
        %v8417 = vsel %vm8414, %v8416, %v8412
        %v8418 = vmul.f32 1.0, %v8417
        %v8419 = vrcp.pop %v7977
        %v8420 = vmul.f32 %v7977, %v8419
        %v8421 = vsub.f32 1.0, %v8420
        %v8422 = vmul.f32 %v8419, %v8421
        %v8423 = vadd.f32 %v8419, %v8422
        %vm8424 = vweird.f32 %v7977
        %vm8425 = vweird.f32 %v8419
        %vm8426 = vmor %vm8424, %vm8425
        %v8427 = vsel %vm8426, %v8419, %v8423
        %v8428 = vand.u32 2147483647, %v7977
        %vm8429 = vcmp.eq.f32.partialorder %v8428, 8.507059e+37
        %v8430 = vand.u32 %v7977, 2147483648
        %v8431 = vor.u32 1.1754944e-38, %v8430
        %v8432 = vsel %vm8429, %v8431, %v8427
        %v8433 = vmul.f32 1.0, %v8432
        %v8434 = vrcp.pop %v7978
        %v8435 = vmul.f32 %v7978, %v8434
        %v8436 = vsub.f32 1.0, %v8435
        %v8437 = vmul.f32 %v8434, %v8436
        %v8438 = vadd.f32 %v8434, %v8437
        %vm8439 = vweird.f32 %v7978
        %vm8440 = vweird.f32 %v8434
        %vm8441 = vmor %vm8439, %vm8440
        %v8442 = vsel %vm8441, %v8434, %v8438
        %v8443 = vand.u32 2147483647, %v7978
        %vm8444 = vcmp.eq.f32.partialorder %v8443, 8.507059e+37
        %v8445 = vand.u32 %v7978, 2147483648
        %v8446 = vor.u32 1.1754944e-38, %v8445
        %v8447 = vsel %vm8444, %v8446, %v8442
        %v8448 = vmul.f32 1.0, %v8447
        %v8449 = vrcp.pop %v7979
        %v8450 = vmul.f32 %v7979, %v8449
        %v8451 = vsub.f32 1.0, %v8450
        %v8452 = vmul.f32 %v8449, %v8451
        %v8453 = vadd.f32 %v8449, %v8452
        %vm8454 = vweird.f32 %v7979
        %vm8455 = vweird.f32 %v8449
        %vm8456 = vmor %vm8454, %vm8455
        %v8457 = vsel %vm8456, %v8449, %v8453
        %v8458 = vand.u32 2147483647, %v7979
        %vm8459 = vcmp.eq.f32.partialorder %v8458, 8.507059e+37
        %v8460 = vand.u32 %v7979, 2147483648
        %v8461 = vor.u32 1.1754944e-38, %v8460
        %v8462 = vsel %vm8459, %v8461, %v8457
        %v8463 = vmul.f32 1.0, %v8462
        %v8464 = vrcp.pop %v7980
        %v8465 = vmul.f32 %v7980, %v8464
        %v8466 = vsub.f32 1.0, %v8465
        %v8467 = vmul.f32 %v8464, %v8466
        %v8468 = vadd.f32 %v8464, %v8467
        %vm8469 = vweird.f32 %v7980
        %vm8470 = vweird.f32 %v8464
        %vm8471 = vmor %vm8469, %vm8470
        %v8472 = vsel %vm8471, %v8464, %v8468
        %v8473 = vand.u32 2147483647, %v7980
        %vm8474 = vcmp.eq.f32.partialorder %v8473, 8.507059e+37
        %v8475 = vand.u32 %v7980, 2147483648
        %v8476 = vor.u32 1.1754944e-38, %v8475
        %v8477 = vsel %vm8474, %v8476, %v8472
        %v8478 = vmul.f32 1.0, %v8477
        %v8479 = vrcp.pop %v7981
        %v8480 = vmul.f32 %v7981, %v8479
        %v8481 = vsub.f32 1.0, %v8480
        %v8482 = vmul.f32 %v8479, %v8481
        %v8483 = vadd.f32 %v8479, %v8482
        %vm8484 = vweird.f32 %v7981
        %vm8485 = vweird.f32 %v8479
        %vm8486 = vmor %vm8484, %vm8485
        %v8487 = vsel %vm8486, %v8479, %v8483
        %v8488 = vand.u32 2147483647, %v7981
        %vm8489 = vcmp.eq.f32.partialorder %v8488, 8.507059e+37
        %v8490 = vand.u32 %v7981, 2147483648
        %v8491 = vor.u32 1.1754944e-38, %v8490
        %v8492 = vsel %vm8489, %v8491, %v8487
        %v8493 = vmul.f32 1.0, %v8492
        %v8494 = vrcp.pop %v7982
        %v8495 = vmul.f32 %v7982, %v8494
        %v8496 = vsub.f32 1.0, %v8495
        %v8497 = vmul.f32 %v8494, %v8496
        %v8498 = vadd.f32 %v8494, %v8497
        %vm8499 = vweird.f32 %v7982
        %vm8500 = vweird.f32 %v8494
        %vm8501 = vmor %vm8499, %vm8500
        %v8502 = vsel %vm8501, %v8494, %v8498
        %v8503 = vand.u32 2147483647, %v7982
        %vm8504 = vcmp.eq.f32.partialorder %v8503, 8.507059e+37
        %v8505 = vand.u32 %v7982, 2147483648
        %v8506 = vor.u32 1.1754944e-38, %v8505
        %v8507 = vsel %vm8504, %v8506, %v8502
        %v8508 = vmul.f32 1.0, %v8507
        %v8509 = vrcp.pop %v7983
        %v8510 = vmul.f32 %v7983, %v8509
        %v8511 = vsub.f32 1.0, %v8510
        %v8512 = vmul.f32 %v8509, %v8511
        %v8513 = vadd.f32 %v8509, %v8512
        %vm8514 = vweird.f32 %v7983
        %vm8515 = vweird.f32 %v8509
        %vm8516 = vmor %vm8514, %vm8515
        %v8517 = vsel %vm8516, %v8509, %v8513
        %v8518 = vand.u32 2147483647, %v7983
        %vm8519 = vcmp.eq.f32.partialorder %v8518, 8.507059e+37
        %v8520 = vand.u32 %v7983, 2147483648
        %v8521 = vor.u32 1.1754944e-38, %v8520
        %v8522 = vsel %vm8519, %v8521, %v8517
        %v8523 = vmul.f32 1.0, %v8522
        %v8524 = vrcp.pop %v7984
        %v8525 = vmul.f32 %v7984, %v8524
        %v8526 = vsub.f32 1.0, %v8525
        %v8527 = vmul.f32 %v8524, %v8526
        %v8528 = vadd.f32 %v8524, %v8527
        %vm8529 = vweird.f32 %v7984
        %vm8530 = vweird.f32 %v8524
        %vm8531 = vmor %vm8529, %vm8530
        %v8532 = vsel %vm8531, %v8524, %v8528
        %v8533 = vand.u32 2147483647, %v7984
        %vm8534 = vcmp.eq.f32.partialorder %v8533, 8.507059e+37
        %v8535 = vand.u32 %v7984, 2147483648
        %v8536 = vor.u32 1.1754944e-38, %v8535
        %v8537 = vsel %vm8534, %v8536, %v8532
        %v8538 = vmul.f32 1.0, %v8537
        %v8539 = vrcp.pop %v7985
        %v8540 = vmul.f32 %v7985, %v8539
        %v8541 = vsub.f32 1.0, %v8540
        %v8542 = vmul.f32 %v8539, %v8541
        %v8543 = vadd.f32 %v8539, %v8542
        %vm8544 = vweird.f32 %v7985
        %vm8545 = vweird.f32 %v8539
        %vm8546 = vmor %vm8544, %vm8545
        %v8547 = vsel %vm8546, %v8539, %v8543
        %v8548 = vand.u32 2147483647, %v7985
        %vm8549 = vcmp.eq.f32.partialorder %v8548, 8.507059e+37
        %v8550 = vand.u32 %v7985, 2147483648
        %v8551 = vor.u32 1.1754944e-38, %v8550
        %v8552 = vsel %vm8549, %v8551, %v8547
        %v8553 = vmul.f32 1.0, %v8552
        %v8554 = vrcp.pop %v7986
        %v8555 = vmul.f32 %v7986, %v8554
        %v8556 = vsub.f32 1.0, %v8555
        %v8557 = vmul.f32 %v8554, %v8556
        %v8558 = vadd.f32 %v8554, %v8557
        %vm8559 = vweird.f32 %v7986
        %vm8560 = vweird.f32 %v8554
        %vm8561 = vmor %vm8559, %vm8560
        %v8562 = vsel %vm8561, %v8554, %v8558
        %v8563 = vand.u32 2147483647, %v7986
        %vm8564 = vcmp.eq.f32.partialorder %v8563, 8.507059e+37
        %v8565 = vand.u32 %v7986, 2147483648
        %v8566 = vor.u32 1.1754944e-38, %v8565
        %v8567 = vsel %vm8564, %v8566, %v8562
        %v8568 = vmul.f32 1.0, %v8567
        %v8569 = vrcp.pop %v7987
        %v8570 = vmul.f32 %v7987, %v8569
        %v8571 = vsub.f32 1.0, %v8570
        %v8572 = vmul.f32 %v8569, %v8571
        %v8573 = vadd.f32 %v8569, %v8572
        %vm8574 = vweird.f32 %v7987
        %vm8575 = vweird.f32 %v8569
        %vm8576 = vmor %vm8574, %vm8575
        %v8577 = vsel %vm8576, %v8569, %v8573
        %v8578 = vand.u32 2147483647, %v7987
        %vm8579 = vcmp.eq.f32.partialorder %v8578, 8.507059e+37
        %v8580 = vand.u32 %v7987, 2147483648
        %v8581 = vor.u32 1.1754944e-38, %v8580
        %v8582 = vsel %vm8579, %v8581, %v8577
        %v8583 = vmul.f32 1.0, %v8582
        %v8584 = vrcp.pop %v7988
        %v8585 = vmul.f32 %v7988, %v8584
        %v8586 = vsub.f32 1.0, %v8585
        %v8587 = vmul.f32 %v8584, %v8586
        %v8588 = vadd.f32 %v8584, %v8587
        %vm8589 = vweird.f32 %v7988
        %vm8590 = vweird.f32 %v8584
        %vm8591 = vmor %vm8589, %vm8590
        %v8592 = vsel %vm8591, %v8584, %v8588
        %v8593 = vand.u32 2147483647, %v7988
        %vm8594 = vcmp.eq.f32.partialorder %v8593, 8.507059e+37
        %v8595 = vand.u32 %v7988, 2147483648
        %v8596 = vor.u32 1.1754944e-38, %v8595
        %v8597 = vsel %vm8594, %v8596, %v8592
        %v8598 = vmul.f32 1.0, %v8597
        %v8599 = vrcp.pop %v7989
        %v8600 = vmul.f32 %v7989, %v8599
        %v8601 = vsub.f32 1.0, %v8600
        %v8602 = vmul.f32 %v8599, %v8601
        %v8603 = vadd.f32 %v8599, %v8602
        %vm8604 = vweird.f32 %v7989
        %vm8605 = vweird.f32 %v8599
        %vm8606 = vmor %vm8604, %vm8605
        %v8607 = vsel %vm8606, %v8599, %v8603
        %v8608 = vand.u32 2147483647, %v7989
        %vm8609 = vcmp.eq.f32.partialorder %v8608, 8.507059e+37
        %v8610 = vand.u32 %v7989, 2147483648
        %v8611 = vor.u32 1.1754944e-38, %v8610
        %v8612 = vsel %vm8609, %v8611, %v8607
        %v8613 = vmul.f32 1.0, %v8612
        %v8614 = vrcp.pop %v7990
        %v8615 = vmul.f32 %v7990, %v8614
        %v8616 = vsub.f32 1.0, %v8615
        %v8617 = vmul.f32 %v8614, %v8616
        %v8618 = vadd.f32 %v8614, %v8617
        %vm8619 = vweird.f32 %v7990
        %vm8620 = vweird.f32 %v8614
        %vm8621 = vmor %vm8619, %vm8620
        %v8622 = vsel %vm8621, %v8614, %v8618
        %v8623 = vand.u32 2147483647, %v7990
        %vm8624 = vcmp.eq.f32.partialorder %v8623, 8.507059e+37
        %v8625 = vand.u32 %v7990, 2147483648
        %v8626 = vor.u32 1.1754944e-38, %v8625
        %v8627 = vsel %vm8624, %v8626, %v8622
        %v8628 = vmul.f32 1.0, %v8627
        %v8629 = vrcp.pop %v7991
        %v8630 = vmul.f32 %v7991, %v8629
        %v8631 = vsub.f32 1.0, %v8630
        %v8632 = vmul.f32 %v8629, %v8631
        %v8633 = vadd.f32 %v8629, %v8632
        %vm8634 = vweird.f32 %v7991
        %vm8635 = vweird.f32 %v8629
        %vm8636 = vmor %vm8634, %vm8635
        %v8637 = vsel %vm8636, %v8629, %v8633
        %v8638 = vand.u32 2147483647, %v7991
        %vm8639 = vcmp.eq.f32.partialorder %v8638, 8.507059e+37
        %v8640 = vand.u32 %v7991, 2147483648
        %v8641 = vor.u32 1.1754944e-38, %v8640
        %v8642 = vsel %vm8639, %v8641, %v8637
        %v8643 = vmul.f32 1.0, %v8642
        %v8644 = vrcp.pop %v7992
        %v8645 = vmul.f32 %v7992, %v8644
        %v8646 = vsub.f32 1.0, %v8645
        %v8647 = vmul.f32 %v8644, %v8646
        %v8648 = vadd.f32 %v8644, %v8647
        %vm8649 = vweird.f32 %v7992
        %vm8650 = vweird.f32 %v8644
        %vm8651 = vmor %vm8649, %vm8650
        %v8652 = vsel %vm8651, %v8644, %v8648
        %v8653 = vand.u32 2147483647, %v7992
        %vm8654 = vcmp.eq.f32.partialorder %v8653, 8.507059e+37
        %v8655 = vand.u32 %v7992, 2147483648
        %v8656 = vor.u32 1.1754944e-38, %v8655
        %v8657 = vsel %vm8654, %v8656, %v8652
        %v8658 = vmul.f32 1.0, %v8657
        %v8659 = vrcp.pop %v7993
        %v8660 = vmul.f32 %v7993, %v8659
        %v8661 = vsub.f32 1.0, %v8660
        %v8662 = vmul.f32 %v8659, %v8661
        %v8663 = vadd.f32 %v8659, %v8662
        %vm8664 = vweird.f32 %v7993
        %vm8665 = vweird.f32 %v8659
        %vm8666 = vmor %vm8664, %vm8665
        %v8667 = vsel %vm8666, %v8659, %v8663
        %v8668 = vand.u32 2147483647, %v7993
        %vm8669 = vcmp.eq.f32.partialorder %v8668, 8.507059e+37
        %v8670 = vand.u32 %v7993, 2147483648
        %v8671 = vor.u32 1.1754944e-38, %v8670
        %v8672 = vsel %vm8669, %v8671, %v8667
        %v8673 = vmul.f32 1.0, %v8672
        %v8674 = vrcp.pop %v7994
        %v8675 = vmul.f32 %v7994, %v8674
        %v8676 = vsub.f32 1.0, %v8675
        %v8677 = vmul.f32 %v8674, %v8676
        %v8678 = vadd.f32 %v8674, %v8677
        %vm8679 = vweird.f32 %v7994
        %vm8680 = vweird.f32 %v8674
        %vm8681 = vmor %vm8679, %vm8680
        %v8682 = vsel %vm8681, %v8674, %v8678
        %v8683 = vand.u32 2147483647, %v7994
        %vm8684 = vcmp.eq.f32.partialorder %v8683, 8.507059e+37
        %v8685 = vand.u32 %v7994, 2147483648
        %v8686 = vor.u32 1.1754944e-38, %v8685
        %v8687 = vsel %vm8684, %v8686, %v8682
        %v8688 = vmul.f32 1.0, %v8687
        %v8689 = vrcp.pop %v7995
        %v8690 = vmul.f32 %v7995, %v8689
        %v8691 = vsub.f32 1.0, %v8690
        %v8692 = vmul.f32 %v8689, %v8691
        %v8693 = vadd.f32 %v8689, %v8692
        %vm8694 = vweird.f32 %v7995
        %vm8695 = vweird.f32 %v8689
        %vm8696 = vmor %vm8694, %vm8695
        %v8697 = vsel %vm8696, %v8689, %v8693
        %v8698 = vand.u32 2147483647, %v7995
        %vm8699 = vcmp.eq.f32.partialorder %v8698, 8.507059e+37
        %v8700 = vand.u32 %v7995, 2147483648
        %v8701 = vor.u32 1.1754944e-38, %v8700
        %v8702 = vsel %vm8699, %v8701, %v8697
        %v8703 = vmul.f32 1.0, %v8702
        %v8704 = vrcp.pop %v7996
        %v8705 = vmul.f32 %v7996, %v8704
        %v8706 = vsub.f32 1.0, %v8705
        %v8707 = vmul.f32 %v8704, %v8706
        %v8708 = vadd.f32 %v8704, %v8707
        %vm8709 = vweird.f32 %v7996
        %vm8710 = vweird.f32 %v8704
        %vm8711 = vmor %vm8709, %vm8710
        %v8712 = vsel %vm8711, %v8704, %v8708
        %v8713 = vand.u32 2147483647, %v7996
        %vm8714 = vcmp.eq.f32.partialorder %v8713, 8.507059e+37
        %v8715 = vand.u32 %v7996, 2147483648
        %v8716 = vor.u32 1.1754944e-38, %v8715
        %v8717 = vsel %vm8714, %v8716, %v8712
        %v8718 = vmul.f32 1.0, %v8717
        %v8719 = vrcp.pop %v7997
        %v8720 = vmul.f32 %v7997, %v8719
        %v8721 = vsub.f32 1.0, %v8720
        %v8722 = vmul.f32 %v8719, %v8721
        %v8723 = vadd.f32 %v8719, %v8722
        %vm8724 = vweird.f32 %v7997
        %vm8725 = vweird.f32 %v8719
        %vm8726 = vmor %vm8724, %vm8725
        %v8727 = vsel %vm8726, %v8719, %v8723
        %v8728 = vand.u32 2147483647, %v7997
        %vm8729 = vcmp.eq.f32.partialorder %v8728, 8.507059e+37
        %v8730 = vand.u32 %v7997, 2147483648
        %v8731 = vor.u32 1.1754944e-38, %v8730
        %v8732 = vsel %vm8729, %v8731, %v8727
        %v8733 = vmul.f32 1.0, %v8732
        %v8734 = vrcp.pop %v7998
        %v8735 = vmul.f32 %v7998, %v8734
        %v8736 = vsub.f32 1.0, %v8735
        %v8737 = vmul.f32 %v8734, %v8736
        %v8738 = vadd.f32 %v8734, %v8737
        %vm8739 = vweird.f32 %v7998
        %vm8740 = vweird.f32 %v8734
        %vm8741 = vmor %vm8739, %vm8740
        %v8742 = vsel %vm8741, %v8734, %v8738
        %v8743 = vand.u32 2147483647, %v7998
        %vm8744 = vcmp.eq.f32.partialorder %v8743, 8.507059e+37
        %v8745 = vand.u32 %v7998, 2147483648
        %v8746 = vor.u32 1.1754944e-38, %v8745
        %v8747 = vsel %vm8744, %v8746, %v8742
        %v8748 = vmul.f32 1.0, %v8747
        %v8749 = vrcp.pop %v7999
        %v8750 = vmul.f32 %v7999, %v8749
        %v8751 = vsub.f32 1.0, %v8750
        %v8752 = vmul.f32 %v8749, %v8751
        %v8753 = vadd.f32 %v8749, %v8752
        %vm8754 = vweird.f32 %v7999
        %vm8755 = vweird.f32 %v8749
        %vm8756 = vmor %vm8754, %vm8755
        %v8757 = vsel %vm8756, %v8749, %v8753
        %v8758 = vand.u32 2147483647, %v7999
        %vm8759 = vcmp.eq.f32.partialorder %v8758, 8.507059e+37
        %v8760 = vand.u32 %v7999, 2147483648
        %v8761 = vor.u32 1.1754944e-38, %v8760
        %v8762 = vsel %vm8759, %v8761, %v8757
        %v8763 = vmul.f32 1.0, %v8762
        %v8764 = vrcp.pop %v8000
        %v8765 = vmul.f32 %v8000, %v8764
        %v8766 = vsub.f32 1.0, %v8765
        %v8767 = vmul.f32 %v8764, %v8766
        %v8768 = vadd.f32 %v8764, %v8767
        %vm8769 = vweird.f32 %v8000
        %vm8770 = vweird.f32 %v8764
        %vm8771 = vmor %vm8769, %vm8770
        %v8772 = vsel %vm8771, %v8764, %v8768
        %v8773 = vand.u32 2147483647, %v8000
        %vm8774 = vcmp.eq.f32.partialorder %v8773, 8.507059e+37
        %v8775 = vand.u32 %v8000, 2147483648
        %v8776 = vor.u32 1.1754944e-38, %v8775
        %v8777 = vsel %vm8774, %v8776, %v8772
        %v8778 = vmul.f32 1.0, %v8777
        %v8779 = vrcp.pop %v8001
        %v8780 = vmul.f32 %v8001, %v8779
        %v8781 = vsub.f32 1.0, %v8780
        %v8782 = vmul.f32 %v8779, %v8781
        %v8783 = vadd.f32 %v8779, %v8782
        %vm8784 = vweird.f32 %v8001
        %vm8785 = vweird.f32 %v8779
        %vm8786 = vmor %vm8784, %vm8785
        %v8787 = vsel %vm8786, %v8779, %v8783
        %v8788 = vand.u32 2147483647, %v8001
        %vm8789 = vcmp.eq.f32.partialorder %v8788, 8.507059e+37
        %v8790 = vand.u32 %v8001, 2147483648
        %v8791 = vor.u32 1.1754944e-38, %v8790
        %v8792 = vsel %vm8789, %v8791, %v8787
        %v8793 = vmul.f32 1.0, %v8792
        %v8794 = vrcp.pop %v8002
        %v8795 = vmul.f32 %v8002, %v8794
        %v8796 = vsub.f32 1.0, %v8795
        %v8797 = vmul.f32 %v8794, %v8796
        %v8798 = vadd.f32 %v8794, %v8797
        %vm8799 = vweird.f32 %v8002
        %vm8800 = vweird.f32 %v8794
        %vm8801 = vmor %vm8799, %vm8800
        %v8802 = vsel %vm8801, %v8794, %v8798
        %v8803 = vand.u32 2147483647, %v8002
        %vm8804 = vcmp.eq.f32.partialorder %v8803, 8.507059e+37
        %v8805 = vand.u32 %v8002, 2147483648
        %v8806 = vor.u32 1.1754944e-38, %v8805
        %v8807 = vsel %vm8804, %v8806, %v8802
        %v8808 = vmul.f32 1.0, %v8807
        %v8809 = vrcp.pop %v8003
        %v8810 = vmul.f32 %v8003, %v8809
        %v8811 = vsub.f32 1.0, %v8810
        %v8812 = vmul.f32 %v8809, %v8811
        %v8813 = vadd.f32 %v8809, %v8812
        %vm8814 = vweird.f32 %v8003
        %vm8815 = vweird.f32 %v8809
        %vm8816 = vmor %vm8814, %vm8815
        %v8817 = vsel %vm8816, %v8809, %v8813
        %v8818 = vand.u32 2147483647, %v8003
        %vm8819 = vcmp.eq.f32.partialorder %v8818, 8.507059e+37
        %v8820 = vand.u32 %v8003, 2147483648
        %v8821 = vor.u32 1.1754944e-38, %v8820
        %v8822 = vsel %vm8819, %v8821, %v8817
        %v8823 = vmul.f32 1.0, %v8822
        %v8824 = vrcp.pop %v8004
        %v8825 = vmul.f32 %v8004, %v8824
        %v8826 = vsub.f32 1.0, %v8825
        %v8827 = vmul.f32 %v8824, %v8826
        %v8828 = vadd.f32 %v8824, %v8827
        %vm8829 = vweird.f32 %v8004
        %vm8830 = vweird.f32 %v8824
        %vm8831 = vmor %vm8829, %vm8830
        %v8832 = vsel %vm8831, %v8824, %v8828
        %v8833 = vand.u32 2147483647, %v8004
        %vm8834 = vcmp.eq.f32.partialorder %v8833, 8.507059e+37
        %v8835 = vand.u32 %v8004, 2147483648
        %v8836 = vor.u32 1.1754944e-38, %v8835
        %v8837 = vsel %vm8834, %v8836, %v8832
        %v8838 = vmul.f32 1.0, %v8837
        %v8839 = vrcp.pop %v8005
        %v8840 = vmul.f32 %v8005, %v8839
        %v8841 = vsub.f32 1.0, %v8840
        %v8842 = vmul.f32 %v8839, %v8841
        %v8843 = vadd.f32 %v8839, %v8842
        %vm8844 = vweird.f32 %v8005
        %vm8845 = vweird.f32 %v8839
        %vm8846 = vmor %vm8844, %vm8845
        %v8847 = vsel %vm8846, %v8839, %v8843
        %v8848 = vand.u32 2147483647, %v8005
        %vm8849 = vcmp.eq.f32.partialorder %v8848, 8.507059e+37
        %v8850 = vand.u32 %v8005, 2147483648
        %v8851 = vor.u32 1.1754944e-38, %v8850
        %v8852 = vsel %vm8849, %v8851, %v8847
        %v8853 = vmul.f32 1.0, %v8852
        %v8854 = vrcp.pop %v8006
        %v8855 = vmul.f32 %v8006, %v8854
        %v8856 = vsub.f32 1.0, %v8855
        %v8857 = vmul.f32 %v8854, %v8856
        %v8858 = vadd.f32 %v8854, %v8857
        %vm8859 = vweird.f32 %v8006
        %vm8860 = vweird.f32 %v8854
        %vm8861 = vmor %vm8859, %vm8860
        %v8862 = vsel %vm8861, %v8854, %v8858
        %v8863 = vand.u32 2147483647, %v8006
        %vm8864 = vcmp.eq.f32.partialorder %v8863, 8.507059e+37
        %v8865 = vand.u32 %v8006, 2147483648
        %v8866 = vor.u32 1.1754944e-38, %v8865
        %v8867 = vsel %vm8864, %v8866, %v8862
        %v8868 = vmul.f32 1.0, %v8867
        %v8869 = vrcp.pop %v8007
        %v8870 = vmul.f32 %v8007, %v8869
        %v8871 = vsub.f32 1.0, %v8870
        %v8872 = vmul.f32 %v8869, %v8871
        %v8873 = vadd.f32 %v8869, %v8872
        %vm8874 = vweird.f32 %v8007
        %vm8875 = vweird.f32 %v8869
        %vm8876 = vmor %vm8874, %vm8875
        %v8877 = vsel %vm8876, %v8869, %v8873
        %v8878 = vand.u32 2147483647, %v8007
        %vm8879 = vcmp.eq.f32.partialorder %v8878, 8.507059e+37
        %v8880 = vand.u32 %v8007, 2147483648
        %v8881 = vor.u32 1.1754944e-38, %v8880
        %v8882 = vsel %vm8879, %v8881, %v8877
        %v8883 = vmul.f32 1.0, %v8882
        %v8884 = vrcp.pop %v8008
        %v8885 = vmul.f32 %v8008, %v8884
        %v8886 = vsub.f32 1.0, %v8885
        %v8887 = vmul.f32 %v8884, %v8886
        %v8888 = vadd.f32 %v8884, %v8887
        %vm8889 = vweird.f32 %v8008
        %vm8890 = vweird.f32 %v8884
        %vm8891 = vmor %vm8889, %vm8890
        %v8892 = vsel %vm8891, %v8884, %v8888
        %v8893 = vand.u32 2147483647, %v8008
        %vm8894 = vcmp.eq.f32.partialorder %v8893, 8.507059e+37
        %v8895 = vand.u32 %v8008, 2147483648
        %v8896 = vor.u32 1.1754944e-38, %v8895
        %v8897 = vsel %vm8894, %v8896, %v8892
        %v8898 = vmul.f32 1.0, %v8897
        %v8899 = vrcp.pop %v8009
        %v8900 = vmul.f32 %v8009, %v8899
        %v8901 = vsub.f32 1.0, %v8900
        %v8902 = vmul.f32 %v8899, %v8901
        %v8903 = vadd.f32 %v8899, %v8902
        %vm8904 = vweird.f32 %v8009
        %vm8905 = vweird.f32 %v8899
        %vm8906 = vmor %vm8904, %vm8905
        %v8907 = vsel %vm8906, %v8899, %v8903
        %v8908 = vand.u32 2147483647, %v8009
        %vm8909 = vcmp.eq.f32.partialorder %v8908, 8.507059e+37
        %v8910 = vand.u32 %v8009, 2147483648
        %v8911 = vor.u32 1.1754944e-38, %v8910
        %v8912 = vsel %vm8909, %v8911, %v8907
        %v8913 = vmul.f32 1.0, %v8912
        %v8914 = vrcp.pop %v8010
        %v8915 = vmul.f32 %v8010, %v8914
        %v8916 = vsub.f32 1.0, %v8915
        %v8917 = vmul.f32 %v8914, %v8916
        %v8918 = vadd.f32 %v8914, %v8917
        %vm8919 = vweird.f32 %v8010
        %vm8920 = vweird.f32 %v8914
        %vm8921 = vmor %vm8919, %vm8920
        %v8922 = vsel %vm8921, %v8914, %v8918
        %v8923 = vand.u32 2147483647, %v8010
        %vm8924 = vcmp.eq.f32.partialorder %v8923, 8.507059e+37
        %v8925 = vand.u32 %v8010, 2147483648
        %v8926 = vor.u32 1.1754944e-38, %v8925
        %v8927 = vsel %vm8924, %v8926, %v8922
        %v8928 = vmul.f32 1.0, %v8927
        %v8929 = vrcp.pop %v8011
        %v8930 = vmul.f32 %v8011, %v8929
        %v8931 = vsub.f32 1.0, %v8930
        %v8932 = vmul.f32 %v8929, %v8931
        %v8933 = vadd.f32 %v8929, %v8932
        %vm8934 = vweird.f32 %v8011
        %vm8935 = vweird.f32 %v8929
        %vm8936 = vmor %vm8934, %vm8935
        %v8937 = vsel %vm8936, %v8929, %v8933
        %v8938 = vand.u32 2147483647, %v8011
        %vm8939 = vcmp.eq.f32.partialorder %v8938, 8.507059e+37
        %v8940 = vand.u32 %v8011, 2147483648
        %v8941 = vor.u32 1.1754944e-38, %v8940
        %v8942 = vsel %vm8939, %v8941, %v8937
        %v8943 = vmul.f32 1.0, %v8942
        %v8944 = vrcp.pop %v8012
        %v8945 = vmul.f32 %v8012, %v8944
        %v8946 = vsub.f32 1.0, %v8945
        %v8947 = vmul.f32 %v8944, %v8946
        %v8948 = vadd.f32 %v8944, %v8947
        %vm8949 = vweird.f32 %v8012
        %vm8950 = vweird.f32 %v8944
        %vm8951 = vmor %vm8949, %vm8950
        %v8952 = vsel %vm8951, %v8944, %v8948
        %v8953 = vand.u32 2147483647, %v8012
        %vm8954 = vcmp.eq.f32.partialorder %v8953, 8.507059e+37
        %v8955 = vand.u32 %v8012, 2147483648
        %v8956 = vor.u32 1.1754944e-38, %v8955
        %v8957 = vsel %vm8954, %v8956, %v8952
        %v8958 = vmul.f32 1.0, %v8957
        %v8959 = vrcp.pop %v8013
        %v8960 = vmul.f32 %v8013, %v8959
        %v8961 = vsub.f32 1.0, %v8960
        %v8962 = vmul.f32 %v8959, %v8961
        %v8963 = vadd.f32 %v8959, %v8962
        %vm8964 = vweird.f32 %v8013
        %vm8965 = vweird.f32 %v8959
        %vm8966 = vmor %vm8964, %vm8965
        %v8967 = vsel %vm8966, %v8959, %v8963
        %v8968 = vand.u32 2147483647, %v8013
        %vm8969 = vcmp.eq.f32.partialorder %v8968, 8.507059e+37
        %v8970 = vand.u32 %v8013, 2147483648
        %v8971 = vor.u32 1.1754944e-38, %v8970
        %v8972 = vsel %vm8969, %v8971, %v8967
        %v8973 = vmul.f32 1.0, %v8972
        %v8974 = vmul.f32 %v6894, %v8028
        %v8975 = vmul.f32 %v6895, %v8043
        %v8976 = vmul.f32 %v6896, %v8058
        %v8977 = vmul.f32 %v6897, %v8073
        %v8978 = vmul.f32 %v6898, %v8088
        %v8979 = vmul.f32 %v6899, %v8103
        %v8980 = vmul.f32 %v6900, %v8118
        %v8981 = vmul.f32 %v6901, %v8133
        %v8982 = vmul.f32 %v6902, %v8148
        %v8983 = vmul.f32 %v6903, %v8163
        %v8984 = vmul.f32 %v6904, %v8178
        %v8985 = vmul.f32 %v6905, %v8193
        %v8986 = vmul.f32 %v6906, %v8208
        %v8987 = vmul.f32 %v6907, %v8223
        %v8988 = vmul.f32 %v6908, %v8238
        %v8989 = vmul.f32 %v6909, %v8253
        %v8990 = vmul.f32 %v6910, %v8268
        %v8991 = vmul.f32 %v6911, %v8283
        %v8992 = vmul.f32 %v6912, %v8298
        %v8993 = vmul.f32 %v6913, %v8313
        %v8994 = vmul.f32 %v6914, %v8328
        %v8995 = vmul.f32 %v6915, %v8343
        %v8996 = vmul.f32 %v6916, %v8358
        %v8997 = vmul.f32 %v6917, %v8373
        %v8998 = vmul.f32 %v6918, %v8388
        %v8999 = vmul.f32 %v6919, %v8403
        %v9000 = vmul.f32 %v6920, %v8418
        %v9001 = vmul.f32 %v6921, %v8433
        %v9002 = vmul.f32 %v6922, %v8448
        %v9003 = vmul.f32 %v6923, %v8463
        %v9004 = vmul.f32 %v6924, %v8478
        %v9005 = vmul.f32 %v6925, %v8493
        %v9006 = vmul.f32 %v6926, %v8508
        %v9007 = vmul.f32 %v6927, %v8523
        %v9008 = vmul.f32 %v6928, %v8538
        %v9009 = vmul.f32 %v6929, %v8553
        %v9010 = vmul.f32 %v6930, %v8568
        %v9011 = vmul.f32 %v6931, %v8583
        %v9012 = vmul.f32 %v6932, %v8598
        %v9013 = vmul.f32 %v6933, %v8613
        %v9014 = vmul.f32 %v6934, %v8628
        %v9015 = vmul.f32 %v6935, %v8643
        %v9016 = vmul.f32 %v6936, %v8658
        %v9017 = vmul.f32 %v6937, %v8673
        %v9018 = vmul.f32 %v6938, %v8688
        %v9019 = vmul.f32 %v6939, %v8703
        %v9020 = vmul.f32 %v6940, %v8718
        %v9021 = vmul.f32 %v6941, %v8733
        %v9022 = vmul.f32 %v6942, %v8748
        %v9023 = vmul.f32 %v6943, %v8763
        %v9024 = vmul.f32 %v6944, %v8778
        %v9025 = vmul.f32 %v6945, %v8793
        %v9026 = vmul.f32 %v6946, %v8808
        %v9027 = vmul.f32 %v6947, %v8823
        %v9028 = vmul.f32 %v6948, %v8838
        %v9029 = vmul.f32 %v6949, %v8853
        %v9030 = vmul.f32 %v6950, %v8868
        %v9031 = vmul.f32 %v6951, %v8883
        %v9032 = vmul.f32 %v6952, %v8898
        %v9033 = vmul.f32 %v6953, %v8913
        %v9034 = vmul.f32 %v6954, %v8928
        %v9035 = vmul.f32 %v6955, %v8943
        %v9036 = vmul.f32 %v6956, %v8958
        %v9037 = vmul.f32 %v6957, %v8973
        %v9038 = vld [vmem:[#allocation20] sm:$0xff]
        %v9039 = vld [vmem:[#allocation20 + $0x8] sm:$0xff]
        %v9040 = vld [vmem:[#allocation20 + $0x10] sm:$0xff]
        %v9041 = vld [vmem:[#allocation20 + $0x18] sm:$0xff]
        %v9042 = vld [vmem:[#allocation20 + $0x20] sm:$0xff]
        %v9043 = vld [vmem:[#allocation20 + $0x28] sm:$0xff]
        %v9044 = vld [vmem:[#allocation20 + $0x30] sm:$0xff]
        %v9045 = vld [vmem:[#allocation20 + $0x38] sm:$0xff]
        %v9046 = vld [vmem:[#allocation20 + $0x40] sm:$0xff]
        %v9047 = vld [vmem:[#allocation20 + $0x48] sm:$0xff]
        %v9048 = vld [vmem:[#allocation20 + $0x50] sm:$0xff]
        %v9049 = vld [vmem:[#allocation20 + $0x58] sm:$0xff]
        %v9050 = vld [vmem:[#allocation20 + $0x60] sm:$0xff]
        %v9051 = vld [vmem:[#allocation20 + $0x68] sm:$0xff]
        %v9052 = vld [vmem:[#allocation20 + $0x70] sm:$0xff]
        %v9053 = vld [vmem:[#allocation20 + $0x78] sm:$0xff]
        %v9054 = vld [vmem:[#allocation20 + $0x80] sm:$0xff]
        %v9055 = vld [vmem:[#allocation20 + $0x88] sm:$0xff]
        %v9056 = vld [vmem:[#allocation20 + $0x90] sm:$0xff]
        %v9057 = vld [vmem:[#allocation20 + $0x98] sm:$0xff]
        %v9058 = vld [vmem:[#allocation20 + $0xa0] sm:$0xff]
        %v9059 = vld [vmem:[#allocation20 + $0xa8] sm:$0xff]
        %v9060 = vld [vmem:[#allocation20 + $0xb0] sm:$0xff]
        %v9061 = vld [vmem:[#allocation20 + $0xb8] sm:$0xff]
        %v9062 = vld [vmem:[#allocation20 + $0xc0] sm:$0xff]
        %v9063 = vld [vmem:[#allocation20 + $0xc8] sm:$0xff]
        %v9064 = vld [vmem:[#allocation20 + $0xd0] sm:$0xff]
        %v9065 = vld [vmem:[#allocation20 + $0xd8] sm:$0xff]
        %v9066 = vld [vmem:[#allocation20 + $0xe0] sm:$0xff]
        %v9067 = vld [vmem:[#allocation20 + $0xe8] sm:$0xff]
        %v9068 = vld [vmem:[#allocation20 + $0xf0] sm:$0xff]
        %v9069 = vld [vmem:[#allocation20 + $0xf8] sm:$0xff]
        %v9070 = vld [vmem:[#allocation20 + $0x100] sm:$0xff]
        %v9071 = vld [vmem:[#allocation20 + $0x108] sm:$0xff]
        %v9072 = vld [vmem:[#allocation20 + $0x110] sm:$0xff]
        %v9073 = vld [vmem:[#allocation20 + $0x118] sm:$0xff]
        %v9074 = vld [vmem:[#allocation20 + $0x120] sm:$0xff]
        %v9075 = vld [vmem:[#allocation20 + $0x128] sm:$0xff]
        %v9076 = vld [vmem:[#allocation20 + $0x130] sm:$0xff]
        %v9077 = vld [vmem:[#allocation20 + $0x138] sm:$0xff]
        %v9078 = vld [vmem:[#allocation20 + $0x140] sm:$0xff]
        %v9079 = vld [vmem:[#allocation20 + $0x148] sm:$0xff]
        %v9080 = vld [vmem:[#allocation20 + $0x150] sm:$0xff]
        %v9081 = vld [vmem:[#allocation20 + $0x158] sm:$0xff]
        %v9082 = vld [vmem:[#allocation20 + $0x160] sm:$0xff]
        %v9083 = vld [vmem:[#allocation20 + $0x168] sm:$0xff]
        %v9084 = vld [vmem:[#allocation20 + $0x170] sm:$0xff]
        %v9085 = vld [vmem:[#allocation20 + $0x178] sm:$0xff]
        %v9086 = vld [vmem:[#allocation20 + $0x180] sm:$0xff]
        %v9087 = vld [vmem:[#allocation20 + $0x188] sm:$0xff]
        %v9088 = vld [vmem:[#allocation20 + $0x190] sm:$0xff]
        %v9089 = vld [vmem:[#allocation20 + $0x198] sm:$0xff]
        %v9090 = vld [vmem:[#allocation20 + $0x1a0] sm:$0xff]
        %v9091 = vld [vmem:[#allocation20 + $0x1a8] sm:$0xff]
        %v9092 = vld [vmem:[#allocation20 + $0x1b0] sm:$0xff]
        %v9093 = vld [vmem:[#allocation20 + $0x1b8] sm:$0xff]
        %v9094 = vld [vmem:[#allocation20 + $0x1c0] sm:$0xff]
        %v9095 = vld [vmem:[#allocation20 + $0x1c8] sm:$0xff]
        %v9096 = vld [vmem:[#allocation20 + $0x1d0] sm:$0xff]
        %v9097 = vld [vmem:[#allocation20 + $0x1d8] sm:$0xff]
        %v9098 = vld [vmem:[#allocation20 + $0x1e0] sm:$0xff]
        %v9099 = vld [vmem:[#allocation20 + $0x1e8] sm:$0xff]
        %v9100 = vld [vmem:[#allocation20 + $0x1f0] sm:$0xff]
        %v9101 = vld [vmem:[#allocation20 + $0x1f8] sm:$0xff]
        %v9102 = vld [vmem:[#allocation20 + $0x200] sm:$0xff]
        %v9103 = vld [vmem:[#allocation20 + $0x208] sm:$0xff]
        %v9104 = vld [vmem:[#allocation20 + $0x210] sm:$0xff]
        %v9105 = vld [vmem:[#allocation20 + $0x218] sm:$0xff]
        %v9106 = vld [vmem:[#allocation20 + $0x220] sm:$0xff]
        %v9107 = vld [vmem:[#allocation20 + $0x228] sm:$0xff]
        %v9108 = vld [vmem:[#allocation20 + $0x230] sm:$0xff]
        %v9109 = vld [vmem:[#allocation20 + $0x238] sm:$0xff]
        %v9110 = vld [vmem:[#allocation20 + $0x240] sm:$0xff]
        %v9111 = vld [vmem:[#allocation20 + $0x248] sm:$0xff]
        %v9112 = vld [vmem:[#allocation20 + $0x250] sm:$0xff]
        %v9113 = vld [vmem:[#allocation20 + $0x258] sm:$0xff]
        %v9114 = vld [vmem:[#allocation20 + $0x260] sm:$0xff]
        %v9115 = vld [vmem:[#allocation20 + $0x268] sm:$0xff]
        %v9116 = vld [vmem:[#allocation20 + $0x270] sm:$0xff]
        %v9117 = vld [vmem:[#allocation20 + $0x278] sm:$0xff]
        %v9118 = vld [vmem:[#allocation20 + $0x280] sm:$0xff]
        %v9119 = vld [vmem:[#allocation20 + $0x288] sm:$0xff]
        %v9120 = vld [vmem:[#allocation20 + $0x290] sm:$0xff]
        %v9121 = vld [vmem:[#allocation20 + $0x298] sm:$0xff]
        %v9122 = vld [vmem:[#allocation20 + $0x2a0] sm:$0xff]
        %v9123 = vld [vmem:[#allocation20 + $0x2a8] sm:$0xff]
        %v9124 = vld [vmem:[#allocation20 + $0x2b0] sm:$0xff]
        %v9125 = vld [vmem:[#allocation20 + $0x2b8] sm:$0xff]
        %v9126 = vld [vmem:[#allocation20 + $0x2c0] sm:$0xff]
        %v9127 = vld [vmem:[#allocation20 + $0x2c8] sm:$0xff]
        %v9128 = vld [vmem:[#allocation20 + $0x2d0] sm:$0xff]
        %v9129 = vld [vmem:[#allocation20 + $0x2d8] sm:$0xff]
        %v9130 = vld [vmem:[#allocation20 + $0x2e0] sm:$0xff]
        %v9131 = vld [vmem:[#allocation20 + $0x2e8] sm:$0xff]
        %v9132 = vld [vmem:[#allocation20 + $0x2f0] sm:$0xff]
        %v9133 = vld [vmem:[#allocation20 + $0x2f8] sm:$0xff]
        %v9134 = vld [vmem:[#allocation20 + $0x300] sm:$0xff]
        %v9135 = vld [vmem:[#allocation20 + $0x308] sm:$0xff]
        %v9136 = vld [vmem:[#allocation20 + $0x310] sm:$0xff]
        %v9137 = vld [vmem:[#allocation20 + $0x318] sm:$0xff]
        %v9138 = vld [vmem:[#allocation20 + $0x320] sm:$0xff]
        %v9139 = vld [vmem:[#allocation20 + $0x328] sm:$0xff]
        %v9140 = vld [vmem:[#allocation20 + $0x330] sm:$0xff]
        %v9141 = vld [vmem:[#allocation20 + $0x338] sm:$0xff]
        %v9142 = vld [vmem:[#allocation20 + $0x340] sm:$0xff]
        %v9143 = vld [vmem:[#allocation20 + $0x348] sm:$0xff]
        %v9144 = vld [vmem:[#allocation20 + $0x350] sm:$0xff]
        %v9145 = vld [vmem:[#allocation20 + $0x358] sm:$0xff]
        %v9146 = vld [vmem:[#allocation20 + $0x360] sm:$0xff]
        %v9147 = vld [vmem:[#allocation20 + $0x368] sm:$0xff]
        %v9148 = vld [vmem:[#allocation20 + $0x370] sm:$0xff]
        %v9149 = vld [vmem:[#allocation20 + $0x378] sm:$0xff]
        %v9150 = vld [vmem:[#allocation20 + $0x380] sm:$0xff]
        %v9151 = vld [vmem:[#allocation20 + $0x388] sm:$0xff]
        %v9152 = vld [vmem:[#allocation20 + $0x390] sm:$0xff]
        %v9153 = vld [vmem:[#allocation20 + $0x398] sm:$0xff]
        %v9154 = vld [vmem:[#allocation20 + $0x3a0] sm:$0xff]
        %v9155 = vld [vmem:[#allocation20 + $0x3a8] sm:$0xff]
        %v9156 = vld [vmem:[#allocation20 + $0x3b0] sm:$0xff]
        %v9157 = vld [vmem:[#allocation20 + $0x3b8] sm:$0xff]
        %v9158 = vld [vmem:[#allocation20 + $0x3c0] sm:$0xff]
        %v9159 = vld [vmem:[#allocation20 + $0x3c8] sm:$0xff]
        %v9160 = vld [vmem:[#allocation20 + $0x3d0] sm:$0xff]
        %v9161 = vld [vmem:[#allocation20 + $0x3d8] sm:$0xff]
        %v9162 = vld [vmem:[#allocation20 + $0x3e0] sm:$0xff]
        %v9163 = vld [vmem:[#allocation20 + $0x3e8] sm:$0xff]
        %v9164 = vld [vmem:[#allocation20 + $0x3f0] sm:$0xff]
        %v9165 = vld [vmem:[#allocation20 + $0x3f8] sm:$0xff]
        %v9166 = vld [vmem:[%s14] sm:$0xf]
        %v9167 = vpack.c.bf16 %v8978, %v8974
        %v9168 = vpack.c.bf16 %v8979, %v8975
        %v9169 = vpack.c.bf16 %v8980, %v8976
        %v9170 = vpack.c.bf16 %v8981, %v8977
        %v9171 = vpack.c.bf16 %v8986, %v8982
        %v9172 = vpack.c.bf16 %v8987, %v8983
        %v9173 = vpack.c.bf16 %v8988, %v8984
        %v9174 = vpack.c.bf16 %v8989, %v8985
        %v9175 = vpack.c.bf16 %v8994, %v8990
        %v9176 = vpack.c.bf16 %v8995, %v8991
        %v9177 = vpack.c.bf16 %v8996, %v8992
        %v9178 = vpack.c.bf16 %v8997, %v8993
        %v9179 = vpack.c.bf16 %v9002, %v8998
        %v9180 = vpack.c.bf16 %v9003, %v8999
        %v9181 = vpack.c.bf16 %v9004, %v9000
        %v9182 = vpack.c.bf16 %v9005, %v9001
        %v9183 = vpack.c.bf16 %v9010, %v9006
        %v9184 = vpack.c.bf16 %v9011, %v9007
        %v9185 = vpack.c.bf16 %v9012, %v9008
        %v9186 = vpack.c.bf16 %v9013, %v9009
        %v9187 = vpack.c.bf16 %v9018, %v9014
        %v9188 = vpack.c.bf16 %v9019, %v9015
        %v9189 = vpack.c.bf16 %v9020, %v9016
        %v9190 = vpack.c.bf16 %v9021, %v9017
        %v9191 = vpack.c.bf16 %v9026, %v9022
        %v9192 = vpack.c.bf16 %v9027, %v9023
        %v9193 = vpack.c.bf16 %v9028, %v9024
        %v9194 = vpack.c.bf16 %v9029, %v9025
        %v9195 = vpack.c.bf16 %v9034, %v9030
        %v9196 = vpack.c.bf16 %v9035, %v9031
        %v9197 = vpack.c.bf16 %v9036, %v9032
        %v9198 = vpack.c.bf16 %v9037, %v9033
        %v9200 = vperm.slane %v9166, 0
        %v9201 = vperm.slane %v9166, 1
        %v9202 = vperm.slane %v9166, 2
        %v9203 = vperm.slane %v9166, 3
        %v9336 = vunpack.c.l.b16 %v9038
        %v9337 = vunpack.c.h.b16 %v9038
        %v9338 = vunpack.c.l.b16 %v9039
        %v9339 = vunpack.c.h.b16 %v9039
        %v9340 = vunpack.c.l.b16 %v9040
        %v9341 = vunpack.c.h.b16 %v9040
        %v9342 = vunpack.c.l.b16 %v9041
        %v9343 = vunpack.c.h.b16 %v9041
        %v9344 = vunpack.c.l.b16 %v9042
        %v9345 = vunpack.c.h.b16 %v9042
        %v9346 = vunpack.c.l.b16 %v9043
        %v9347 = vunpack.c.h.b16 %v9043
        %v9348 = vunpack.c.l.b16 %v9044
        %v9349 = vunpack.c.h.b16 %v9044
        %v9350 = vunpack.c.l.b16 %v9045
        %v9351 = vunpack.c.h.b16 %v9045
        %v9352 = vunpack.c.l.b16 %v9046
        %v9353 = vunpack.c.h.b16 %v9046
        %v9354 = vunpack.c.l.b16 %v9047
        %v9355 = vunpack.c.h.b16 %v9047
        %v9356 = vunpack.c.l.b16 %v9048
        %v9357 = vunpack.c.h.b16 %v9048
        %v9358 = vunpack.c.l.b16 %v9049
        %v9359 = vunpack.c.h.b16 %v9049
        %v9360 = vunpack.c.l.b16 %v9050
        %v9361 = vunpack.c.h.b16 %v9050
        %v9362 = vunpack.c.l.b16 %v9051
        %v9363 = vunpack.c.h.b16 %v9051
        %v9364 = vunpack.c.l.b16 %v9052
        %v9365 = vunpack.c.h.b16 %v9052
        %v9366 = vunpack.c.l.b16 %v9053
        %v9367 = vunpack.c.h.b16 %v9053
        %v9368 = vunpack.c.l.b16 %v9054
        %v9369 = vunpack.c.h.b16 %v9054
        %v9370 = vunpack.c.l.b16 %v9055
        %v9371 = vunpack.c.h.b16 %v9055
        %v9372 = vunpack.c.l.b16 %v9056
        %v9373 = vunpack.c.h.b16 %v9056
        %v9374 = vunpack.c.l.b16 %v9057
        %v9375 = vunpack.c.h.b16 %v9057
        %v9376 = vunpack.c.l.b16 %v9058
        %v9377 = vunpack.c.h.b16 %v9058
        %v9378 = vunpack.c.l.b16 %v9059
        %v9379 = vunpack.c.h.b16 %v9059
        %v9380 = vunpack.c.l.b16 %v9060
        %v9381 = vunpack.c.h.b16 %v9060
        %v9382 = vunpack.c.l.b16 %v9061
        %v9383 = vunpack.c.h.b16 %v9061
        %v9384 = vunpack.c.l.b16 %v9062
        %v9385 = vunpack.c.h.b16 %v9062
        %v9386 = vunpack.c.l.b16 %v9063
        %v9387 = vunpack.c.h.b16 %v9063
        %v9388 = vunpack.c.l.b16 %v9064
        %v9389 = vunpack.c.h.b16 %v9064
        %v9390 = vunpack.c.l.b16 %v9065
        %v9391 = vunpack.c.h.b16 %v9065
        %v9392 = vunpack.c.l.b16 %v9066
        %v9393 = vunpack.c.h.b16 %v9066
        %v9394 = vunpack.c.l.b16 %v9067
        %v9395 = vunpack.c.h.b16 %v9067
        %v9396 = vunpack.c.l.b16 %v9068
        %v9397 = vunpack.c.h.b16 %v9068
        %v9398 = vunpack.c.l.b16 %v9069
        %v9399 = vunpack.c.h.b16 %v9069
        %v9400 = vunpack.c.l.b16 %v9070
        %v9401 = vunpack.c.h.b16 %v9070
        %v9402 = vunpack.c.l.b16 %v9071
        %v9403 = vunpack.c.h.b16 %v9071
        %v9404 = vunpack.c.l.b16 %v9072
        %v9405 = vunpack.c.h.b16 %v9072
        %v9406 = vunpack.c.l.b16 %v9073
        %v9407 = vunpack.c.h.b16 %v9073
        %v9408 = vunpack.c.l.b16 %v9074
        %v9409 = vunpack.c.h.b16 %v9074
        %v9410 = vunpack.c.l.b16 %v9075
        %v9411 = vunpack.c.h.b16 %v9075
        %v9412 = vunpack.c.l.b16 %v9076
        %v9413 = vunpack.c.h.b16 %v9076
        %v9414 = vunpack.c.l.b16 %v9077
        %v9415 = vunpack.c.h.b16 %v9077
        %v9416 = vunpack.c.l.b16 %v9078
        %v9417 = vunpack.c.h.b16 %v9078
        %v9418 = vunpack.c.l.b16 %v9079
        %v9419 = vunpack.c.h.b16 %v9079
        %v9420 = vunpack.c.l.b16 %v9080
        %v9421 = vunpack.c.h.b16 %v9080
        %v9422 = vunpack.c.l.b16 %v9081
        %v9423 = vunpack.c.h.b16 %v9081
        %v9424 = vunpack.c.l.b16 %v9082
        %v9425 = vunpack.c.h.b16 %v9082
        %v9426 = vunpack.c.l.b16 %v9083
        %v9427 = vunpack.c.h.b16 %v9083
        %v9428 = vunpack.c.l.b16 %v9084
        %v9429 = vunpack.c.h.b16 %v9084
        %v9430 = vunpack.c.l.b16 %v9085
        %v9431 = vunpack.c.h.b16 %v9085
        %v9432 = vunpack.c.l.b16 %v9086
        %v9433 = vunpack.c.h.b16 %v9086
        %v9434 = vunpack.c.l.b16 %v9087
        %v9435 = vunpack.c.h.b16 %v9087
        %v9436 = vunpack.c.l.b16 %v9088
        %v9437 = vunpack.c.h.b16 %v9088
        %v9438 = vunpack.c.l.b16 %v9089
        %v9439 = vunpack.c.h.b16 %v9089
        %v9440 = vunpack.c.l.b16 %v9090
        %v9441 = vunpack.c.h.b16 %v9090
        %v9442 = vunpack.c.l.b16 %v9091
        %v9443 = vunpack.c.h.b16 %v9091
        %v9444 = vunpack.c.l.b16 %v9092
        %v9445 = vunpack.c.h.b16 %v9092
        %v9446 = vunpack.c.l.b16 %v9093
        %v9447 = vunpack.c.h.b16 %v9093
        %v9448 = vunpack.c.l.b16 %v9094
        %v9449 = vunpack.c.h.b16 %v9094
        %v9450 = vunpack.c.l.b16 %v9095
        %v9451 = vunpack.c.h.b16 %v9095
        %v9452 = vunpack.c.l.b16 %v9096
        %v9453 = vunpack.c.h.b16 %v9096
        %v9454 = vunpack.c.l.b16 %v9097
        %v9455 = vunpack.c.h.b16 %v9097
        %v9456 = vunpack.c.l.b16 %v9098
        %v9457 = vunpack.c.h.b16 %v9098
        %v9458 = vunpack.c.l.b16 %v9099
        %v9459 = vunpack.c.h.b16 %v9099
        %v9460 = vunpack.c.l.b16 %v9100
        %v9461 = vunpack.c.h.b16 %v9100
        %v9462 = vunpack.c.l.b16 %v9101
        %v9463 = vunpack.c.h.b16 %v9101
        %v9464 = vunpack.c.l.b16 %v9102
        %v9465 = vunpack.c.h.b16 %v9102
        %v9466 = vunpack.c.l.b16 %v9103
        %v9467 = vunpack.c.h.b16 %v9103
        %v9468 = vunpack.c.l.b16 %v9104
        %v9469 = vunpack.c.h.b16 %v9104
        %v9470 = vunpack.c.l.b16 %v9105
        %v9471 = vunpack.c.h.b16 %v9105
        %v9472 = vunpack.c.l.b16 %v9106
        %v9473 = vunpack.c.h.b16 %v9106
        %v9474 = vunpack.c.l.b16 %v9107
        %v9475 = vunpack.c.h.b16 %v9107
        %v9476 = vunpack.c.l.b16 %v9108
        %v9477 = vunpack.c.h.b16 %v9108
        %v9478 = vunpack.c.l.b16 %v9109
        %v9479 = vunpack.c.h.b16 %v9109
        %v9480 = vunpack.c.l.b16 %v9110
        %v9481 = vunpack.c.h.b16 %v9110
        %v9482 = vunpack.c.l.b16 %v9111
        %v9483 = vunpack.c.h.b16 %v9111
        %v9484 = vunpack.c.l.b16 %v9112
        %v9485 = vunpack.c.h.b16 %v9112
        %v9486 = vunpack.c.l.b16 %v9113
        %v9487 = vunpack.c.h.b16 %v9113
        %v9488 = vunpack.c.l.b16 %v9114
        %v9489 = vunpack.c.h.b16 %v9114
        %v9490 = vunpack.c.l.b16 %v9115
        %v9491 = vunpack.c.h.b16 %v9115
        %v9492 = vunpack.c.l.b16 %v9116
        %v9493 = vunpack.c.h.b16 %v9116
        %v9494 = vunpack.c.l.b16 %v9117
        %v9495 = vunpack.c.h.b16 %v9117
        %v9496 = vunpack.c.l.b16 %v9118
        %v9497 = vunpack.c.h.b16 %v9118
        %v9498 = vunpack.c.l.b16 %v9119
        %v9499 = vunpack.c.h.b16 %v9119
        %v9500 = vunpack.c.l.b16 %v9120
        %v9501 = vunpack.c.h.b16 %v9120
        %v9502 = vunpack.c.l.b16 %v9121
        %v9503 = vunpack.c.h.b16 %v9121
        %v9504 = vunpack.c.l.b16 %v9122
        %v9505 = vunpack.c.h.b16 %v9122
        %v9506 = vunpack.c.l.b16 %v9123
        %v9507 = vunpack.c.h.b16 %v9123
        %v9508 = vunpack.c.l.b16 %v9124
        %v9509 = vunpack.c.h.b16 %v9124
        %v9510 = vunpack.c.l.b16 %v9125
        %v9511 = vunpack.c.h.b16 %v9125
        %v9512 = vunpack.c.l.b16 %v9126
        %v9513 = vunpack.c.h.b16 %v9126
        %v9514 = vunpack.c.l.b16 %v9127
        %v9515 = vunpack.c.h.b16 %v9127
        %v9516 = vunpack.c.l.b16 %v9128
        %v9517 = vunpack.c.h.b16 %v9128
        %v9518 = vunpack.c.l.b16 %v9129
        %v9519 = vunpack.c.h.b16 %v9129
        %v9520 = vunpack.c.l.b16 %v9130
        %v9521 = vunpack.c.h.b16 %v9130
        %v9522 = vunpack.c.l.b16 %v9131
        %v9523 = vunpack.c.h.b16 %v9131
        %v9524 = vunpack.c.l.b16 %v9132
        %v9525 = vunpack.c.h.b16 %v9132
        %v9526 = vunpack.c.l.b16 %v9133
        %v9527 = vunpack.c.h.b16 %v9133
        %v9528 = vunpack.c.l.b16 %v9134
        %v9529 = vunpack.c.h.b16 %v9134
        %v9530 = vunpack.c.l.b16 %v9135
        %v9531 = vunpack.c.h.b16 %v9135
        %v9532 = vunpack.c.l.b16 %v9136
        %v9533 = vunpack.c.h.b16 %v9136
        %v9534 = vunpack.c.l.b16 %v9137
        %v9535 = vunpack.c.h.b16 %v9137
        %v9536 = vunpack.c.l.b16 %v9138
        %v9537 = vunpack.c.h.b16 %v9138
        %v9538 = vunpack.c.l.b16 %v9139
        %v9539 = vunpack.c.h.b16 %v9139
        %v9540 = vunpack.c.l.b16 %v9140
        %v9541 = vunpack.c.h.b16 %v9140
        %v9542 = vunpack.c.l.b16 %v9141
        %v9543 = vunpack.c.h.b16 %v9141
        %v9544 = vunpack.c.l.b16 %v9142
        %v9545 = vunpack.c.h.b16 %v9142
        %v9546 = vunpack.c.l.b16 %v9143
        %v9547 = vunpack.c.h.b16 %v9143
        %v9548 = vunpack.c.l.b16 %v9144
        %v9549 = vunpack.c.h.b16 %v9144
        %v9550 = vunpack.c.l.b16 %v9145
        %v9551 = vunpack.c.h.b16 %v9145
        %v9552 = vunpack.c.l.b16 %v9146
        %v9553 = vunpack.c.h.b16 %v9146
        %v9554 = vunpack.c.l.b16 %v9147
        %v9555 = vunpack.c.h.b16 %v9147
        %v9556 = vunpack.c.l.b16 %v9148
        %v9557 = vunpack.c.h.b16 %v9148
        %v9558 = vunpack.c.l.b16 %v9149
        %v9559 = vunpack.c.h.b16 %v9149
        %v9560 = vunpack.c.l.b16 %v9150
        %v9561 = vunpack.c.h.b16 %v9150
        %v9562 = vunpack.c.l.b16 %v9151
        %v9563 = vunpack.c.h.b16 %v9151
        %v9564 = vunpack.c.l.b16 %v9152
        %v9565 = vunpack.c.h.b16 %v9152
        %v9566 = vunpack.c.l.b16 %v9153
        %v9567 = vunpack.c.h.b16 %v9153
        %v9568 = vunpack.c.l.b16 %v9154
        %v9569 = vunpack.c.h.b16 %v9154
        %v9570 = vunpack.c.l.b16 %v9155
        %v9571 = vunpack.c.h.b16 %v9155
        %v9572 = vunpack.c.l.b16 %v9156
        %v9573 = vunpack.c.h.b16 %v9156
        %v9574 = vunpack.c.l.b16 %v9157
        %v9575 = vunpack.c.h.b16 %v9157
        %v9576 = vunpack.c.l.b16 %v9158
        %v9577 = vunpack.c.h.b16 %v9158
        %v9578 = vunpack.c.l.b16 %v9159
        %v9579 = vunpack.c.h.b16 %v9159
        %v9580 = vunpack.c.l.b16 %v9160
        %v9581 = vunpack.c.h.b16 %v9160
        %v9582 = vunpack.c.l.b16 %v9161
        %v9583 = vunpack.c.h.b16 %v9161
        %v9584 = vunpack.c.l.b16 %v9162
        %v9585 = vunpack.c.h.b16 %v9162
        %v9586 = vunpack.c.l.b16 %v9163
        %v9587 = vunpack.c.h.b16 %v9163
        %v9588 = vunpack.c.l.b16 %v9164
        %v9589 = vunpack.c.h.b16 %v9164
        %v9590 = vunpack.c.l.b16 %v9165
        %v9591 = vunpack.c.h.b16 %v9165
        %v9592 = vpack.c.b16 %v9340, %v9336
        %v9593 = vpack.c.b16 %v9341, %v9337
        %v9594 = vpack.c.b16 %v9342, %v9338
        %v9595 = vpack.c.b16 %v9343, %v9339
        %v9596 = vpack.c.b16 %v9348, %v9344
        %v9597 = vpack.c.b16 %v9349, %v9345
        %v9598 = vpack.c.b16 %v9350, %v9346
        %v9599 = vpack.c.b16 %v9351, %v9347
        %v9600 = vpack.c.b16 %v9356, %v9352
        %v9601 = vpack.c.b16 %v9357, %v9353
        %v9602 = vpack.c.b16 %v9358, %v9354
        %v9603 = vpack.c.b16 %v9359, %v9355
        %v9604 = vpack.c.b16 %v9364, %v9360
        %v9605 = vpack.c.b16 %v9365, %v9361
        %v9606 = vpack.c.b16 %v9366, %v9362
        %v9607 = vpack.c.b16 %v9367, %v9363
        %v9608 = vpack.c.b16 %v9372, %v9368
        %v9609 = vpack.c.b16 %v9373, %v9369
        %v9610 = vpack.c.b16 %v9374, %v9370
        %v9611 = vpack.c.b16 %v9375, %v9371
        %v9612 = vpack.c.b16 %v9380, %v9376
        %v9613 = vpack.c.b16 %v9381, %v9377
        %v9614 = vpack.c.b16 %v9382, %v9378
        %v9615 = vpack.c.b16 %v9383, %v9379
        %v9616 = vpack.c.b16 %v9388, %v9384
        %v9617 = vpack.c.b16 %v9389, %v9385
        %v9618 = vpack.c.b16 %v9390, %v9386
        %v9619 = vpack.c.b16 %v9391, %v9387
        %v9620 = vpack.c.b16 %v9396, %v9392
        %v9621 = vpack.c.b16 %v9397, %v9393
        %v9622 = vpack.c.b16 %v9398, %v9394
        %v9623 = vpack.c.b16 %v9399, %v9395
        %v9624 = vpack.c.b16 %v9404, %v9400
        %v9625 = vpack.c.b16 %v9405, %v9401
        %v9626 = vpack.c.b16 %v9406, %v9402
        %v9627 = vpack.c.b16 %v9407, %v9403
        %v9628 = vpack.c.b16 %v9412, %v9408
        %v9629 = vpack.c.b16 %v9413, %v9409
        %v9630 = vpack.c.b16 %v9414, %v9410
        %v9631 = vpack.c.b16 %v9415, %v9411
        %v9632 = vpack.c.b16 %v9420, %v9416
        %v9633 = vpack.c.b16 %v9421, %v9417
        %v9634 = vpack.c.b16 %v9422, %v9418
        %v9635 = vpack.c.b16 %v9423, %v9419
        %v9636 = vpack.c.b16 %v9428, %v9424
        %v9637 = vpack.c.b16 %v9429, %v9425
        %v9638 = vpack.c.b16 %v9430, %v9426
        %v9639 = vpack.c.b16 %v9431, %v9427
        %v9640 = vpack.c.b16 %v9436, %v9432
        %v9641 = vpack.c.b16 %v9437, %v9433
        %v9642 = vpack.c.b16 %v9438, %v9434
        %v9643 = vpack.c.b16 %v9439, %v9435
        %v9644 = vpack.c.b16 %v9444, %v9440
        %v9645 = vpack.c.b16 %v9445, %v9441
        %v9646 = vpack.c.b16 %v9446, %v9442
        %v9647 = vpack.c.b16 %v9447, %v9443
        %v9648 = vpack.c.b16 %v9452, %v9448
        %v9649 = vpack.c.b16 %v9453, %v9449
        %v9650 = vpack.c.b16 %v9454, %v9450
        %v9651 = vpack.c.b16 %v9455, %v9451
        %v9652 = vpack.c.b16 %v9460, %v9456
        %v9653 = vpack.c.b16 %v9461, %v9457
        %v9654 = vpack.c.b16 %v9462, %v9458
        %v9655 = vpack.c.b16 %v9463, %v9459
        %v9656 = vpack.c.b16 %v9468, %v9464
        %v9657 = vpack.c.b16 %v9469, %v9465
        %v9658 = vpack.c.b16 %v9470, %v9466
        %v9659 = vpack.c.b16 %v9471, %v9467
        %v9660 = vpack.c.b16 %v9476, %v9472
        %v9661 = vpack.c.b16 %v9477, %v9473
        %v9662 = vpack.c.b16 %v9478, %v9474
        %v9663 = vpack.c.b16 %v9479, %v9475
        %v9664 = vpack.c.b16 %v9484, %v9480
        %v9665 = vpack.c.b16 %v9485, %v9481
        %v9666 = vpack.c.b16 %v9486, %v9482
        %v9667 = vpack.c.b16 %v9487, %v9483
        %v9668 = vpack.c.b16 %v9492, %v9488
        %v9669 = vpack.c.b16 %v9493, %v9489
        %v9670 = vpack.c.b16 %v9494, %v9490
        %v9671 = vpack.c.b16 %v9495, %v9491
        %v9672 = vpack.c.b16 %v9500, %v9496
        %v9673 = vpack.c.b16 %v9501, %v9497
        %v9674 = vpack.c.b16 %v9502, %v9498
        %v9675 = vpack.c.b16 %v9503, %v9499
        %v9676 = vpack.c.b16 %v9508, %v9504
        %v9677 = vpack.c.b16 %v9509, %v9505
        %v9678 = vpack.c.b16 %v9510, %v9506
        %v9679 = vpack.c.b16 %v9511, %v9507
        %v9680 = vpack.c.b16 %v9516, %v9512
        %v9681 = vpack.c.b16 %v9517, %v9513
        %v9682 = vpack.c.b16 %v9518, %v9514
        %v9683 = vpack.c.b16 %v9519, %v9515
        %v9684 = vpack.c.b16 %v9524, %v9520
        %v9685 = vpack.c.b16 %v9525, %v9521
        %v9686 = vpack.c.b16 %v9526, %v9522
        %v9687 = vpack.c.b16 %v9527, %v9523
        %v9688 = vpack.c.b16 %v9532, %v9528
        %v9689 = vpack.c.b16 %v9533, %v9529
        %v9690 = vpack.c.b16 %v9534, %v9530
        %v9691 = vpack.c.b16 %v9535, %v9531
        %v9692 = vpack.c.b16 %v9540, %v9536
        %v9693 = vpack.c.b16 %v9541, %v9537
        %v9694 = vpack.c.b16 %v9542, %v9538
        %v9695 = vpack.c.b16 %v9543, %v9539
        %v9696 = vpack.c.b16 %v9548, %v9544
        %v9697 = vpack.c.b16 %v9549, %v9545
        %v9698 = vpack.c.b16 %v9550, %v9546
        %v9699 = vpack.c.b16 %v9551, %v9547
        %v9700 = vpack.c.b16 %v9556, %v9552
        %v9701 = vpack.c.b16 %v9557, %v9553
        %v9702 = vpack.c.b16 %v9558, %v9554
        %v9703 = vpack.c.b16 %v9559, %v9555
        %v9704 = vpack.c.b16 %v9564, %v9560
        %v9705 = vpack.c.b16 %v9565, %v9561
        %v9706 = vpack.c.b16 %v9566, %v9562
        %v9707 = vpack.c.b16 %v9567, %v9563
        %v9708 = vpack.c.b16 %v9572, %v9568
        %v9709 = vpack.c.b16 %v9573, %v9569
        %v9710 = vpack.c.b16 %v9574, %v9570
        %v9711 = vpack.c.b16 %v9575, %v9571
        %v9712 = vpack.c.b16 %v9580, %v9576
        %v9713 = vpack.c.b16 %v9581, %v9577
        %v9714 = vpack.c.b16 %v9582, %v9578
        %v9715 = vpack.c.b16 %v9583, %v9579
        %v9716 = vpack.c.b16 %v9588, %v9584
        %v9717 = vpack.c.b16 %v9589, %v9585
        %v9718 = vpack.c.b16 %v9590, %v9586
        %v9719 = vpack.c.b16 %v9591, %v9587
        %9848 = vmatpush.bf16.msra.mxu0 %v9620
        %9849 = vmatpush.bf16.msra.mxu0 %v9616
        %9850 = vmatpush.bf16.msra.mxu0 %v9612
        %9851 = vmatpush.bf16.msra.mxu0 %v9608
        %9852 = vmatpush.bf16.msra.mxu0 %v9604
        %9853 = vmatpush.bf16.msra.mxu0 %v9600
        %9854 = vmatpush.bf16.msra.mxu0 %v9596
        %9855 = vmatpush.bf16.msra.mxu0 %v9592
        %9856 = vmatmul.bf16.gmra.mxu0 %v9167
        %v9857 = vpop.f32.mrf.mxu0
        %v9858 = vadd.f32 %v9200, %v9857
        %v9859 = vpop.f32.mrf.mxu0
        %v9860 = vadd.f32 %v9200, %v9859
        %9861 = vmatmul.bf16.gmra.mxu0 %v9171
        %v9862 = vpop.f32.mrf.mxu0
        %v9863 = vadd.f32 %v9200, %v9862
        %v9864 = vpop.f32.mrf.mxu0
        %v9865 = vadd.f32 %v9200, %v9864
        %9866 = vmatmul.bf16.gmra.mxu0 %v9175
        %v9867 = vpop.f32.mrf.mxu0
        %v9868 = vadd.f32 %v9200, %v9867
        %v9869 = vpop.f32.mrf.mxu0
        %v9870 = vadd.f32 %v9200, %v9869
        %9871 = vmatmul.bf16.gmra.mxu0 %v9179
        %v9872 = vpop.f32.mrf.mxu0
        %v9873 = vadd.f32 %v9200, %v9872
        %v9874 = vpop.f32.mrf.mxu0
        %v9875 = vadd.f32 %v9200, %v9874
        %9876 = vmatmul.bf16.gmra.mxu0 %v9183
        %v9877 = vpop.f32.mrf.mxu0
        %v9878 = vadd.f32 %v9200, %v9877
        %v9879 = vpop.f32.mrf.mxu0
        %v9880 = vadd.f32 %v9200, %v9879
        %9881 = vmatmul.bf16.gmra.mxu0 %v9187
        %v9882 = vpop.f32.mrf.mxu0
        %v9883 = vadd.f32 %v9200, %v9882
        %v9884 = vpop.f32.mrf.mxu0
        %v9885 = vadd.f32 %v9200, %v9884
        %9886 = vmatmul.bf16.gmra.mxu0 %v9191
        %v9887 = vpop.f32.mrf.mxu0
        %v9888 = vadd.f32 %v9200, %v9887
        %v9889 = vpop.f32.mrf.mxu0
        %v9890 = vadd.f32 %v9200, %v9889
        %9891 = vmatmul.bf16.gmra.mxu0 %v9195
        %v9892 = vpop.f32.mrf.mxu0
        %v9893 = vadd.f32 %v9200, %v9892
        %v9894 = vpop.f32.mrf.mxu0
        %v9895 = vadd.f32 %v9200, %v9894
        %9896 = vdwg.mxu0
        %9897 = vmatpush.bf16.msra.mxu0 %v9652
        %9898 = vmatpush.bf16.msra.mxu0 %v9648
        %9899 = vmatpush.bf16.msra.mxu0 %v9644
        %9900 = vmatpush.bf16.msra.mxu0 %v9640
        %9901 = vmatpush.bf16.msra.mxu0 %v9636
        %9902 = vmatpush.bf16.msra.mxu0 %v9632
        %9903 = vmatpush.bf16.msra.mxu0 %v9628
        %9904 = vmatpush.bf16.msra.mxu0 %v9624
        %9905 = vmatmul.bf16.gmra.mxu0 %v9168
        %v9906 = vpop.f32.mrf.mxu0
        %v9907 = vadd.f32 %v9858, %v9906
        %v9908 = vpop.f32.mrf.mxu0
        %v9909 = vadd.f32 %v9860, %v9908
        %9910 = vmatmul.bf16.gmra.mxu0 %v9172
        %v9911 = vpop.f32.mrf.mxu0
        %v9912 = vadd.f32 %v9863, %v9911
        %v9913 = vpop.f32.mrf.mxu0
        %v9914 = vadd.f32 %v9865, %v9913
        %9915 = vmatmul.bf16.gmra.mxu0 %v9176
        %v9916 = vpop.f32.mrf.mxu0
        %v9917 = vadd.f32 %v9868, %v9916
        %v9918 = vpop.f32.mrf.mxu0
        %v9919 = vadd.f32 %v9870, %v9918
        %9920 = vmatmul.bf16.gmra.mxu0 %v9180
        %v9921 = vpop.f32.mrf.mxu0
        %v9922 = vadd.f32 %v9873, %v9921
        %v9923 = vpop.f32.mrf.mxu0
        %v9924 = vadd.f32 %v9875, %v9923
        %9925 = vmatmul.bf16.gmra.mxu0 %v9184
        %v9926 = vpop.f32.mrf.mxu0
        %v9927 = vadd.f32 %v9878, %v9926
        %v9928 = vpop.f32.mrf.mxu0
        %v9929 = vadd.f32 %v9880, %v9928
        %9930 = vmatmul.bf16.gmra.mxu0 %v9188
        %v9931 = vpop.f32.mrf.mxu0
        %v9932 = vadd.f32 %v9883, %v9931
        %v9933 = vpop.f32.mrf.mxu0
        %v9934 = vadd.f32 %v9885, %v9933
        %9935 = vmatmul.bf16.gmra.mxu0 %v9192
        %v9936 = vpop.f32.mrf.mxu0
        %v9937 = vadd.f32 %v9888, %v9936
        %v9938 = vpop.f32.mrf.mxu0
        %v9939 = vadd.f32 %v9890, %v9938
        %9940 = vmatmul.bf16.gmra.mxu0 %v9196
        %v9941 = vpop.f32.mrf.mxu0
        %v9942 = vadd.f32 %v9893, %v9941
        %v9943 = vpop.f32.mrf.mxu0
        %v9944 = vadd.f32 %v9895, %v9943
        %9945 = vdwg.mxu0
        %9946 = vmatpush.bf16.msra.mxu0 %v9684
        %9947 = vmatpush.bf16.msra.mxu0 %v9680
        %9948 = vmatpush.bf16.msra.mxu0 %v9676
        %9949 = vmatpush.bf16.msra.mxu0 %v9672
        %9950 = vmatpush.bf16.msra.mxu0 %v9668
        %9951 = vmatpush.bf16.msra.mxu0 %v9664
        %9952 = vmatpush.bf16.msra.mxu0 %v9660
        %9953 = vmatpush.bf16.msra.mxu0 %v9656
        %9954 = vmatmul.bf16.gmra.mxu0 %v9169
        %v9955 = vpop.f32.mrf.mxu0
        %v9956 = vadd.f32 %v9907, %v9955
        %v9957 = vpop.f32.mrf.mxu0
        %v9958 = vadd.f32 %v9909, %v9957
        %9959 = vmatmul.bf16.gmra.mxu0 %v9173
        %v9960 = vpop.f32.mrf.mxu0
        %v9961 = vadd.f32 %v9912, %v9960
        %v9962 = vpop.f32.mrf.mxu0
        %v9963 = vadd.f32 %v9914, %v9962
        %9964 = vmatmul.bf16.gmra.mxu0 %v9177
        %v9965 = vpop.f32.mrf.mxu0
        %v9966 = vadd.f32 %v9917, %v9965
        %v9967 = vpop.f32.mrf.mxu0
        %v9968 = vadd.f32 %v9919, %v9967
        %9969 = vmatmul.bf16.gmra.mxu0 %v9181
        %v9970 = vpop.f32.mrf.mxu0
        %v9971 = vadd.f32 %v9922, %v9970
        %v9972 = vpop.f32.mrf.mxu0
        %v9973 = vadd.f32 %v9924, %v9972
        %9974 = vmatmul.bf16.gmra.mxu0 %v9185
        %v9975 = vpop.f32.mrf.mxu0
        %v9976 = vadd.f32 %v9927, %v9975
        %v9977 = vpop.f32.mrf.mxu0
        %v9978 = vadd.f32 %v9929, %v9977
        %9979 = vmatmul.bf16.gmra.mxu0 %v9189
        %v9980 = vpop.f32.mrf.mxu0
        %v9981 = vadd.f32 %v9932, %v9980
        %v9982 = vpop.f32.mrf.mxu0
        %v9983 = vadd.f32 %v9934, %v9982
        %9984 = vmatmul.bf16.gmra.mxu0 %v9193
        %v9985 = vpop.f32.mrf.mxu0
        %v9986 = vadd.f32 %v9937, %v9985
        %v9987 = vpop.f32.mrf.mxu0
        %v9988 = vadd.f32 %v9939, %v9987
        %9989 = vmatmul.bf16.gmra.mxu0 %v9197
        %v9990 = vpop.f32.mrf.mxu0
        %v9991 = vadd.f32 %v9942, %v9990
        %v9992 = vpop.f32.mrf.mxu0
        %v9993 = vadd.f32 %v9944, %v9992
        %9994 = vdwg.mxu0
        %9995 = vmatpush.bf16.msra.mxu0 %v9716
        %9996 = vmatpush.bf16.msra.mxu0 %v9712
        %9997 = vmatpush.bf16.msra.mxu0 %v9708
        %9998 = vmatpush.bf16.msra.mxu0 %v9704
        %9999 = vmatpush.bf16.msra.mxu0 %v9700
        %10000 = vmatpush.bf16.msra.mxu0 %v9696
        %10001 = vmatpush.bf16.msra.mxu0 %v9692
        %10002 = vmatpush.bf16.msra.mxu0 %v9688
        %10003 = vmatmul.bf16.gmra.mxu0 %v9170
        %v10004 = vpop.f32.mrf.mxu0
        %v10005 = vadd.f32 %v9956, %v10004
        %v10006 = vpop.f32.mrf.mxu0
        %v10007 = vadd.f32 %v9958, %v10006
        %10008 = vmatmul.bf16.gmra.mxu0 %v9174
        %v10009 = vpop.f32.mrf.mxu0
        %v10010 = vadd.f32 %v9961, %v10009
        %v10011 = vpop.f32.mrf.mxu0
        %v10012 = vadd.f32 %v9963, %v10011
        %10013 = vmatmul.bf16.gmra.mxu0 %v9178
        %v10014 = vpop.f32.mrf.mxu0
        %v10015 = vadd.f32 %v9966, %v10014
        %v10016 = vpop.f32.mrf.mxu0
        %v10017 = vadd.f32 %v9968, %v10016
        %10018 = vmatmul.bf16.gmra.mxu0 %v9182
        %v10019 = vpop.f32.mrf.mxu0
        %v10020 = vadd.f32 %v9971, %v10019
        %v10021 = vpop.f32.mrf.mxu0
        %v10022 = vadd.f32 %v9973, %v10021
        %10023 = vmatmul.bf16.gmra.mxu0 %v9186
        %v10024 = vpop.f32.mrf.mxu0
        %v10025 = vadd.f32 %v9976, %v10024
        %v10026 = vpop.f32.mrf.mxu0
        %v10027 = vadd.f32 %v9978, %v10026
        %10028 = vmatmul.bf16.gmra.mxu0 %v9190
        %v10029 = vpop.f32.mrf.mxu0
        %v10030 = vadd.f32 %v9981, %v10029
        %v10031 = vpop.f32.mrf.mxu0
        %v10032 = vadd.f32 %v9983, %v10031
        %10033 = vmatmul.bf16.gmra.mxu0 %v9194
        %v10034 = vpop.f32.mrf.mxu0
        %v10035 = vadd.f32 %v9986, %v10034
        %v10036 = vpop.f32.mrf.mxu0
        %v10037 = vadd.f32 %v9988, %v10036
        %10038 = vmatmul.bf16.gmra.mxu0 %v9198
        %v10039 = vpop.f32.mrf.mxu0
        %v10040 = vadd.f32 %v9991, %v10039
        %v10041 = vpop.f32.mrf.mxu0
        %v10042 = vadd.f32 %v9993, %v10041
        %10043 = vdwg.mxu0
        %10044 = vmatpush.bf16.msra.mxu0 %v9621
        %10045 = vmatpush.bf16.msra.mxu0 %v9617
        %10046 = vmatpush.bf16.msra.mxu0 %v9613
        %10047 = vmatpush.bf16.msra.mxu0 %v9609
        %10048 = vmatpush.bf16.msra.mxu0 %v9605
        %10049 = vmatpush.bf16.msra.mxu0 %v9601
        %10050 = vmatpush.bf16.msra.mxu0 %v9597
        %10051 = vmatpush.bf16.msra.mxu0 %v9593
        %10052 = vmatmul.bf16.gmra.mxu0 %v9167
        %v10053 = vpop.f32.mrf.mxu0
        %v10054 = vadd.f32 %v9201, %v10053
        %v10055 = vpop.f32.mrf.mxu0
        %v10056 = vadd.f32 %v9201, %v10055
        %10057 = vmatmul.bf16.gmra.mxu0 %v9171
        %v10058 = vpop.f32.mrf.mxu0
        %v10059 = vadd.f32 %v9201, %v10058
        %v10060 = vpop.f32.mrf.mxu0
        %v10061 = vadd.f32 %v9201, %v10060
        %10062 = vmatmul.bf16.gmra.mxu0 %v9175
        %v10063 = vpop.f32.mrf.mxu0
        %v10064 = vadd.f32 %v9201, %v10063
        %v10065 = vpop.f32.mrf.mxu0
        %v10066 = vadd.f32 %v9201, %v10065
        %10067 = vmatmul.bf16.gmra.mxu0 %v9179
        %v10068 = vpop.f32.mrf.mxu0
        %v10069 = vadd.f32 %v9201, %v10068
        %v10070 = vpop.f32.mrf.mxu0
        %v10071 = vadd.f32 %v9201, %v10070
        %10072 = vmatmul.bf16.gmra.mxu0 %v9183
        %v10073 = vpop.f32.mrf.mxu0
        %v10074 = vadd.f32 %v9201, %v10073
        %v10075 = vpop.f32.mrf.mxu0
        %v10076 = vadd.f32 %v9201, %v10075
        %10077 = vmatmul.bf16.gmra.mxu0 %v9187
        %v10078 = vpop.f32.mrf.mxu0
        %v10079 = vadd.f32 %v9201, %v10078
        %v10080 = vpop.f32.mrf.mxu0
        %v10081 = vadd.f32 %v9201, %v10080
        %10082 = vmatmul.bf16.gmra.mxu0 %v9191
        %v10083 = vpop.f32.mrf.mxu0
        %v10084 = vadd.f32 %v9201, %v10083
        %v10085 = vpop.f32.mrf.mxu0
        %v10086 = vadd.f32 %v9201, %v10085
        %10087 = vmatmul.bf16.gmra.mxu0 %v9195
        %v10088 = vpop.f32.mrf.mxu0
        %v10089 = vadd.f32 %v9201, %v10088
        %v10090 = vpop.f32.mrf.mxu0
        %v10091 = vadd.f32 %v9201, %v10090
        %10092 = vdwg.mxu0
        %10093 = vmatpush.bf16.msra.mxu0 %v9653
        %10094 = vmatpush.bf16.msra.mxu0 %v9649
        %10095 = vmatpush.bf16.msra.mxu0 %v9645
        %10096 = vmatpush.bf16.msra.mxu0 %v9641
        %10097 = vmatpush.bf16.msra.mxu0 %v9637
        %10098 = vmatpush.bf16.msra.mxu0 %v9633
        %10099 = vmatpush.bf16.msra.mxu0 %v9629
        %10100 = vmatpush.bf16.msra.mxu0 %v9625
        %10101 = vmatmul.bf16.gmra.mxu0 %v9168
        %v10102 = vpop.f32.mrf.mxu0
        %v10103 = vadd.f32 %v10054, %v10102
        %v10104 = vpop.f32.mrf.mxu0
        %v10105 = vadd.f32 %v10056, %v10104
        %10106 = vmatmul.bf16.gmra.mxu0 %v9172
        %v10107 = vpop.f32.mrf.mxu0
        %v10108 = vadd.f32 %v10059, %v10107
        %v10109 = vpop.f32.mrf.mxu0
        %v10110 = vadd.f32 %v10061, %v10109
        %10111 = vmatmul.bf16.gmra.mxu0 %v9176
        %v10112 = vpop.f32.mrf.mxu0
        %v10113 = vadd.f32 %v10064, %v10112
        %v10114 = vpop.f32.mrf.mxu0
        %v10115 = vadd.f32 %v10066, %v10114
        %10116 = vmatmul.bf16.gmra.mxu0 %v9180
        %v10117 = vpop.f32.mrf.mxu0
        %v10118 = vadd.f32 %v10069, %v10117
        %v10119 = vpop.f32.mrf.mxu0
        %v10120 = vadd.f32 %v10071, %v10119
        %10121 = vmatmul.bf16.gmra.mxu0 %v9184
        %v10122 = vpop.f32.mrf.mxu0
        %v10123 = vadd.f32 %v10074, %v10122
        %v10124 = vpop.f32.mrf.mxu0
        %v10125 = vadd.f32 %v10076, %v10124
        %10126 = vmatmul.bf16.gmra.mxu0 %v9188
        %v10127 = vpop.f32.mrf.mxu0
        %v10128 = vadd.f32 %v10079, %v10127
        %v10129 = vpop.f32.mrf.mxu0
        %v10130 = vadd.f32 %v10081, %v10129
        %10131 = vmatmul.bf16.gmra.mxu0 %v9192
        %v10132 = vpop.f32.mrf.mxu0
        %v10133 = vadd.f32 %v10084, %v10132
        %v10134 = vpop.f32.mrf.mxu0
        %v10135 = vadd.f32 %v10086, %v10134
        %10136 = vmatmul.bf16.gmra.mxu0 %v9196
        %v10137 = vpop.f32.mrf.mxu0
        %v10138 = vadd.f32 %v10089, %v10137
        %v10139 = vpop.f32.mrf.mxu0
        %v10140 = vadd.f32 %v10091, %v10139
        %10141 = vdwg.mxu0
        %10142 = vmatpush.bf16.msra.mxu0 %v9685
        %10143 = vmatpush.bf16.msra.mxu0 %v9681
        %10144 = vmatpush.bf16.msra.mxu0 %v9677
        %10145 = vmatpush.bf16.msra.mxu0 %v9673
        %10146 = vmatpush.bf16.msra.mxu0 %v9669
        %10147 = vmatpush.bf16.msra.mxu0 %v9665
        %10148 = vmatpush.bf16.msra.mxu0 %v9661
        %10149 = vmatpush.bf16.msra.mxu0 %v9657
        %10150 = vmatmul.bf16.gmra.mxu0 %v9169
        %v10151 = vpop.f32.mrf.mxu0
        %v10152 = vadd.f32 %v10103, %v10151
        %v10153 = vpop.f32.mrf.mxu0
        %v10154 = vadd.f32 %v10105, %v10153
        %10155 = vmatmul.bf16.gmra.mxu0 %v9173
        %v10156 = vpop.f32.mrf.mxu0
        %v10157 = vadd.f32 %v10108, %v10156
        %v10158 = vpop.f32.mrf.mxu0
        %v10159 = vadd.f32 %v10110, %v10158
        %10160 = vmatmul.bf16.gmra.mxu0 %v9177
        %v10161 = vpop.f32.mrf.mxu0
        %v10162 = vadd.f32 %v10113, %v10161
        %v10163 = vpop.f32.mrf.mxu0
        %v10164 = vadd.f32 %v10115, %v10163
        %10165 = vmatmul.bf16.gmra.mxu0 %v9181
        %v10166 = vpop.f32.mrf.mxu0
        %v10167 = vadd.f32 %v10118, %v10166
        %v10168 = vpop.f32.mrf.mxu0
        %v10169 = vadd.f32 %v10120, %v10168
        %10170 = vmatmul.bf16.gmra.mxu0 %v9185
        %v10171 = vpop.f32.mrf.mxu0
        %v10172 = vadd.f32 %v10123, %v10171
        %v10173 = vpop.f32.mrf.mxu0
        %v10174 = vadd.f32 %v10125, %v10173
        %10175 = vmatmul.bf16.gmra.mxu0 %v9189
        %v10176 = vpop.f32.mrf.mxu0
        %v10177 = vadd.f32 %v10128, %v10176
        %v10178 = vpop.f32.mrf.mxu0
        %v10179 = vadd.f32 %v10130, %v10178
        %10180 = vmatmul.bf16.gmra.mxu0 %v9193
        %v10181 = vpop.f32.mrf.mxu0
        %v10182 = vadd.f32 %v10133, %v10181
        %v10183 = vpop.f32.mrf.mxu0
        %v10184 = vadd.f32 %v10135, %v10183
        %10185 = vmatmul.bf16.gmra.mxu0 %v9197
        %v10186 = vpop.f32.mrf.mxu0
        %v10187 = vadd.f32 %v10138, %v10186
        %v10188 = vpop.f32.mrf.mxu0
        %v10189 = vadd.f32 %v10140, %v10188
        %10190 = vdwg.mxu0
        %10191 = vmatpush.bf16.msra.mxu0 %v9717
        %10192 = vmatpush.bf16.msra.mxu0 %v9713
        %10193 = vmatpush.bf16.msra.mxu0 %v9709
        %10194 = vmatpush.bf16.msra.mxu0 %v9705
        %10195 = vmatpush.bf16.msra.mxu0 %v9701
        %10196 = vmatpush.bf16.msra.mxu0 %v9697
        %10197 = vmatpush.bf16.msra.mxu0 %v9693
        %10198 = vmatpush.bf16.msra.mxu0 %v9689
        %10199 = vmatmul.bf16.gmra.mxu0 %v9170
        %v10200 = vpop.f32.mrf.mxu0
        %v10201 = vadd.f32 %v10152, %v10200
        %v10202 = vpop.f32.mrf.mxu0
        %v10203 = vadd.f32 %v10154, %v10202
        %10204 = vmatmul.bf16.gmra.mxu0 %v9174
        %v10205 = vpop.f32.mrf.mxu0
        %v10206 = vadd.f32 %v10157, %v10205
        %v10207 = vpop.f32.mrf.mxu0
        %v10208 = vadd.f32 %v10159, %v10207
        %10209 = vmatmul.bf16.gmra.mxu0 %v9178
        %v10210 = vpop.f32.mrf.mxu0
        %v10211 = vadd.f32 %v10162, %v10210
        %v10212 = vpop.f32.mrf.mxu0
        %v10213 = vadd.f32 %v10164, %v10212
        %10214 = vmatmul.bf16.gmra.mxu0 %v9182
        %v10215 = vpop.f32.mrf.mxu0
        %v10216 = vadd.f32 %v10167, %v10215
        %v10217 = vpop.f32.mrf.mxu0
        %v10218 = vadd.f32 %v10169, %v10217
        %10219 = vmatmul.bf16.gmra.mxu0 %v9186
        %v10220 = vpop.f32.mrf.mxu0
        %v10221 = vadd.f32 %v10172, %v10220
        %v10222 = vpop.f32.mrf.mxu0
        %v10223 = vadd.f32 %v10174, %v10222
        %10224 = vmatmul.bf16.gmra.mxu0 %v9190
        %v10225 = vpop.f32.mrf.mxu0
        %v10226 = vadd.f32 %v10177, %v10225
        %v10227 = vpop.f32.mrf.mxu0
        %v10228 = vadd.f32 %v10179, %v10227
        %10229 = vmatmul.bf16.gmra.mxu0 %v9194
        %v10230 = vpop.f32.mrf.mxu0
        %v10231 = vadd.f32 %v10182, %v10230
        %v10232 = vpop.f32.mrf.mxu0
        %v10233 = vadd.f32 %v10184, %v10232
        %10234 = vmatmul.bf16.gmra.mxu0 %v9198
        %v10235 = vpop.f32.mrf.mxu0
        %v10236 = vadd.f32 %v10187, %v10235
        %v10237 = vpop.f32.mrf.mxu0
        %v10238 = vadd.f32 %v10189, %v10237
        %10239 = vdwg.mxu0
        %10240 = vmatpush.bf16.msra.mxu0 %v9622
        %10241 = vmatpush.bf16.msra.mxu0 %v9618
        %10242 = vmatpush.bf16.msra.mxu0 %v9614
        %10243 = vmatpush.bf16.msra.mxu0 %v9610
        %10244 = vmatpush.bf16.msra.mxu0 %v9606
        %10245 = vmatpush.bf16.msra.mxu0 %v9602
        %10246 = vmatpush.bf16.msra.mxu0 %v9598
        %10247 = vmatpush.bf16.msra.mxu0 %v9594
        %10248 = vmatmul.bf16.gmra.mxu0 %v9167
        %v10249 = vpop.f32.mrf.mxu0
        %v10250 = vadd.f32 %v9202, %v10249
        %v10251 = vpop.f32.mrf.mxu0
        %v10252 = vadd.f32 %v9202, %v10251
        %10253 = vmatmul.bf16.gmra.mxu0 %v9171
        %v10254 = vpop.f32.mrf.mxu0
        %v10255 = vadd.f32 %v9202, %v10254
        %v10256 = vpop.f32.mrf.mxu0
        %v10257 = vadd.f32 %v9202, %v10256
        %10258 = vmatmul.bf16.gmra.mxu0 %v9175
        %v10259 = vpop.f32.mrf.mxu0
        %v10260 = vadd.f32 %v9202, %v10259
        %v10261 = vpop.f32.mrf.mxu0
        %v10262 = vadd.f32 %v9202, %v10261
        %10263 = vmatmul.bf16.gmra.mxu0 %v9179
        %v10264 = vpop.f32.mrf.mxu0
        %v10265 = vadd.f32 %v9202, %v10264
        %v10266 = vpop.f32.mrf.mxu0
        %v10267 = vadd.f32 %v9202, %v10266
        %10268 = vmatmul.bf16.gmra.mxu0 %v9183
        %v10269 = vpop.f32.mrf.mxu0
        %v10270 = vadd.f32 %v9202, %v10269
        %v10271 = vpop.f32.mrf.mxu0
        %v10272 = vadd.f32 %v9202, %v10271
        %10273 = vmatmul.bf16.gmra.mxu0 %v9187
        %v10274 = vpop.f32.mrf.mxu0
        %v10275 = vadd.f32 %v9202, %v10274
        %v10276 = vpop.f32.mrf.mxu0
        %v10277 = vadd.f32 %v9202, %v10276
        %10278 = vmatmul.bf16.gmra.mxu0 %v9191
        %v10279 = vpop.f32.mrf.mxu0
        %v10280 = vadd.f32 %v9202, %v10279
        %v10281 = vpop.f32.mrf.mxu0
        %v10282 = vadd.f32 %v9202, %v10281
        %10283 = vmatmul.bf16.gmra.mxu0 %v9195
        %v10284 = vpop.f32.mrf.mxu0
        %v10285 = vadd.f32 %v9202, %v10284
        %v10286 = vpop.f32.mrf.mxu0
        %v10287 = vadd.f32 %v9202, %v10286
        %10288 = vdwg.mxu0
        %10289 = vmatpush.bf16.msra.mxu0 %v9654
        %10290 = vmatpush.bf16.msra.mxu0 %v9650
        %10291 = vmatpush.bf16.msra.mxu0 %v9646
        %10292 = vmatpush.bf16.msra.mxu0 %v9642
        %10293 = vmatpush.bf16.msra.mxu0 %v9638
        %10294 = vmatpush.bf16.msra.mxu0 %v9634
        %10295 = vmatpush.bf16.msra.mxu0 %v9630
        %10296 = vmatpush.bf16.msra.mxu0 %v9626
        %10297 = vmatmul.bf16.gmra.mxu0 %v9168
        %v10298 = vpop.f32.mrf.mxu0
        %v10299 = vadd.f32 %v10250, %v10298
        %v10300 = vpop.f32.mrf.mxu0
        %v10301 = vadd.f32 %v10252, %v10300
        %10302 = vmatmul.bf16.gmra.mxu0 %v9172
        %v10303 = vpop.f32.mrf.mxu0
        %v10304 = vadd.f32 %v10255, %v10303
        %v10305 = vpop.f32.mrf.mxu0
        %v10306 = vadd.f32 %v10257, %v10305
        %10307 = vmatmul.bf16.gmra.mxu0 %v9176
        %v10308 = vpop.f32.mrf.mxu0
        %v10309 = vadd.f32 %v10260, %v10308
        %v10310 = vpop.f32.mrf.mxu0
        %v10311 = vadd.f32 %v10262, %v10310
        %10312 = vmatmul.bf16.gmra.mxu0 %v9180
        %v10313 = vpop.f32.mrf.mxu0
        %v10314 = vadd.f32 %v10265, %v10313
        %v10315 = vpop.f32.mrf.mxu0
        %v10316 = vadd.f32 %v10267, %v10315
        %10317 = vmatmul.bf16.gmra.mxu0 %v9184
        %v10318 = vpop.f32.mrf.mxu0
        %v10319 = vadd.f32 %v10270, %v10318
        %v10320 = vpop.f32.mrf.mxu0
        %v10321 = vadd.f32 %v10272, %v10320
        %10322 = vmatmul.bf16.gmra.mxu0 %v9188
        %v10323 = vpop.f32.mrf.mxu0
        %v10324 = vadd.f32 %v10275, %v10323
        %v10325 = vpop.f32.mrf.mxu0
        %v10326 = vadd.f32 %v10277, %v10325
        %10327 = vmatmul.bf16.gmra.mxu0 %v9192
        %v10328 = vpop.f32.mrf.mxu0
        %v10329 = vadd.f32 %v10280, %v10328
        %v10330 = vpop.f32.mrf.mxu0
        %v10331 = vadd.f32 %v10282, %v10330
        %10332 = vmatmul.bf16.gmra.mxu0 %v9196
        %v10333 = vpop.f32.mrf.mxu0
        %v10334 = vadd.f32 %v10285, %v10333
        %v10335 = vpop.f32.mrf.mxu0
        %v10336 = vadd.f32 %v10287, %v10335
        %10337 = vdwg.mxu0
        %10338 = vmatpush.bf16.msra.mxu0 %v9686
        %10339 = vmatpush.bf16.msra.mxu0 %v9682
        %10340 = vmatpush.bf16.msra.mxu0 %v9678
        %10341 = vmatpush.bf16.msra.mxu0 %v9674
        %10342 = vmatpush.bf16.msra.mxu0 %v9670
        %10343 = vmatpush.bf16.msra.mxu0 %v9666
        %10344 = vmatpush.bf16.msra.mxu0 %v9662
        %10345 = vmatpush.bf16.msra.mxu0 %v9658
        %10346 = vmatmul.bf16.gmra.mxu0 %v9169
        %v10347 = vpop.f32.mrf.mxu0
        %v10348 = vadd.f32 %v10299, %v10347
        %v10349 = vpop.f32.mrf.mxu0
        %v10350 = vadd.f32 %v10301, %v10349
        %10351 = vmatmul.bf16.gmra.mxu0 %v9173
        %v10352 = vpop.f32.mrf.mxu0
        %v10353 = vadd.f32 %v10304, %v10352
        %v10354 = vpop.f32.mrf.mxu0
        %v10355 = vadd.f32 %v10306, %v10354
        %10356 = vmatmul.bf16.gmra.mxu0 %v9177
        %v10357 = vpop.f32.mrf.mxu0
        %v10358 = vadd.f32 %v10309, %v10357
        %v10359 = vpop.f32.mrf.mxu0
        %v10360 = vadd.f32 %v10311, %v10359
        %10361 = vmatmul.bf16.gmra.mxu0 %v9181
        %v10362 = vpop.f32.mrf.mxu0
        %v10363 = vadd.f32 %v10314, %v10362
        %v10364 = vpop.f32.mrf.mxu0
        %v10365 = vadd.f32 %v10316, %v10364
        %10366 = vmatmul.bf16.gmra.mxu0 %v9185
        %v10367 = vpop.f32.mrf.mxu0
        %v10368 = vadd.f32 %v10319, %v10367
        %v10369 = vpop.f32.mrf.mxu0
        %v10370 = vadd.f32 %v10321, %v10369
        %10371 = vmatmul.bf16.gmra.mxu0 %v9189
        %v10372 = vpop.f32.mrf.mxu0
        %v10373 = vadd.f32 %v10324, %v10372
        %v10374 = vpop.f32.mrf.mxu0
        %v10375 = vadd.f32 %v10326, %v10374
        %10376 = vmatmul.bf16.gmra.mxu0 %v9193
        %v10377 = vpop.f32.mrf.mxu0
        %v10378 = vadd.f32 %v10329, %v10377
        %v10379 = vpop.f32.mrf.mxu0
        %v10380 = vadd.f32 %v10331, %v10379
        %10381 = vmatmul.bf16.gmra.mxu0 %v9197
        %v10382 = vpop.f32.mrf.mxu0
        %v10383 = vadd.f32 %v10334, %v10382
        %v10384 = vpop.f32.mrf.mxu0
        %v10385 = vadd.f32 %v10336, %v10384
        %10386 = vdwg.mxu0
        %10387 = vmatpush.bf16.msra.mxu0 %v9718
        %10388 = vmatpush.bf16.msra.mxu0 %v9714
        %10389 = vmatpush.bf16.msra.mxu0 %v9710
        %10390 = vmatpush.bf16.msra.mxu0 %v9706
        %10391 = vmatpush.bf16.msra.mxu0 %v9702
        %10392 = vmatpush.bf16.msra.mxu0 %v9698
        %10393 = vmatpush.bf16.msra.mxu0 %v9694
        %10394 = vmatpush.bf16.msra.mxu0 %v9690
        %10395 = vmatmul.bf16.gmra.mxu0 %v9170
        %v10396 = vpop.f32.mrf.mxu0
        %v10397 = vadd.f32 %v10348, %v10396
        %v10398 = vpop.f32.mrf.mxu0
        %v10399 = vadd.f32 %v10350, %v10398
        %10400 = vmatmul.bf16.gmra.mxu0 %v9174
        %v10401 = vpop.f32.mrf.mxu0
        %v10402 = vadd.f32 %v10353, %v10401
        %v10403 = vpop.f32.mrf.mxu0
        %v10404 = vadd.f32 %v10355, %v10403
        %10405 = vmatmul.bf16.gmra.mxu0 %v9178
        %v10406 = vpop.f32.mrf.mxu0
        %v10407 = vadd.f32 %v10358, %v10406
        %v10408 = vpop.f32.mrf.mxu0
        %v10409 = vadd.f32 %v10360, %v10408
        %10410 = vmatmul.bf16.gmra.mxu0 %v9182
        %v10411 = vpop.f32.mrf.mxu0
        %v10412 = vadd.f32 %v10363, %v10411
        %v10413 = vpop.f32.mrf.mxu0
        %v10414 = vadd.f32 %v10365, %v10413
        %10415 = vmatmul.bf16.gmra.mxu0 %v9186
        %v10416 = vpop.f32.mrf.mxu0
        %v10417 = vadd.f32 %v10368, %v10416
        %v10418 = vpop.f32.mrf.mxu0
        %v10419 = vadd.f32 %v10370, %v10418
        %10420 = vmatmul.bf16.gmra.mxu0 %v9190
        %v10421 = vpop.f32.mrf.mxu0
        %v10422 = vadd.f32 %v10373, %v10421
        %v10423 = vpop.f32.mrf.mxu0
        %v10424 = vadd.f32 %v10375, %v10423
        %10425 = vmatmul.bf16.gmra.mxu0 %v9194
        %v10426 = vpop.f32.mrf.mxu0
        %v10427 = vadd.f32 %v10378, %v10426
        %v10428 = vpop.f32.mrf.mxu0
        %v10429 = vadd.f32 %v10380, %v10428
        %10430 = vmatmul.bf16.gmra.mxu0 %v9198
        %v10431 = vpop.f32.mrf.mxu0
        %v10432 = vadd.f32 %v10383, %v10431
        %v10433 = vpop.f32.mrf.mxu0
        %v10434 = vadd.f32 %v10385, %v10433
        %10435 = vdwg.mxu0
        %10436 = vmatpush.bf16.msra.mxu0 %v9623
        %10437 = vmatpush.bf16.msra.mxu0 %v9619
        %10438 = vmatpush.bf16.msra.mxu0 %v9615
        %10439 = vmatpush.bf16.msra.mxu0 %v9611
        %10440 = vmatpush.bf16.msra.mxu0 %v9607
        %10441 = vmatpush.bf16.msra.mxu0 %v9603
        %10442 = vmatpush.bf16.msra.mxu0 %v9599
        %10443 = vmatpush.bf16.msra.mxu0 %v9595
        %10444 = vmatmul.bf16.gmra.mxu0 %v9167
        %v10445 = vpop.f32.mrf.mxu0
        %v10446 = vadd.f32 %v9203, %v10445
        %v10447 = vpop.f32.mrf.mxu0
        %v10448 = vadd.f32 %v9203, %v10447
        %10449 = vmatmul.bf16.gmra.mxu0 %v9171
        %v10450 = vpop.f32.mrf.mxu0
        %v10451 = vadd.f32 %v9203, %v10450
        %v10452 = vpop.f32.mrf.mxu0
        %v10453 = vadd.f32 %v9203, %v10452
        %10454 = vmatmul.bf16.gmra.mxu0 %v9175
        %v10455 = vpop.f32.mrf.mxu0
        %v10456 = vadd.f32 %v9203, %v10455
        %v10457 = vpop.f32.mrf.mxu0
        %v10458 = vadd.f32 %v9203, %v10457
        %10459 = vmatmul.bf16.gmra.mxu0 %v9179
        %v10460 = vpop.f32.mrf.mxu0
        %v10461 = vadd.f32 %v9203, %v10460
        %v10462 = vpop.f32.mrf.mxu0
        %v10463 = vadd.f32 %v9203, %v10462
        %10464 = vmatmul.bf16.gmra.mxu0 %v9183
        %v10465 = vpop.f32.mrf.mxu0
        %v10466 = vadd.f32 %v9203, %v10465
        %v10467 = vpop.f32.mrf.mxu0
        %v10468 = vadd.f32 %v9203, %v10467
        %10469 = vmatmul.bf16.gmra.mxu0 %v9187
        %v10470 = vpop.f32.mrf.mxu0
        %v10471 = vadd.f32 %v9203, %v10470
        %v10472 = vpop.f32.mrf.mxu0
        %v10473 = vadd.f32 %v9203, %v10472
        %10474 = vmatmul.bf16.gmra.mxu0 %v9191
        %v10475 = vpop.f32.mrf.mxu0
        %v10476 = vadd.f32 %v9203, %v10475
        %v10477 = vpop.f32.mrf.mxu0
        %v10478 = vadd.f32 %v9203, %v10477
        %10479 = vmatmul.bf16.gmra.mxu0 %v9195
        %v10480 = vpop.f32.mrf.mxu0
        %v10481 = vadd.f32 %v9203, %v10480
        %v10482 = vpop.f32.mrf.mxu0
        %v10483 = vadd.f32 %v9203, %v10482
        %10484 = vdwg.mxu0
        %10485 = vmatpush.bf16.msra.mxu0 %v9655
        %10486 = vmatpush.bf16.msra.mxu0 %v9651
        %10487 = vmatpush.bf16.msra.mxu0 %v9647
        %10488 = vmatpush.bf16.msra.mxu0 %v9643
        %10489 = vmatpush.bf16.msra.mxu0 %v9639
        %10490 = vmatpush.bf16.msra.mxu0 %v9635
        %10491 = vmatpush.bf16.msra.mxu0 %v9631
        %10492 = vmatpush.bf16.msra.mxu0 %v9627
        %10493 = vmatmul.bf16.gmra.mxu0 %v9168
        %v10494 = vpop.f32.mrf.mxu0
        %v10495 = vadd.f32 %v10446, %v10494
        %v10496 = vpop.f32.mrf.mxu0
        %v10497 = vadd.f32 %v10448, %v10496
        %10498 = vmatmul.bf16.gmra.mxu0 %v9172
        %v10499 = vpop.f32.mrf.mxu0
        %v10500 = vadd.f32 %v10451, %v10499
        %v10501 = vpop.f32.mrf.mxu0
        %v10502 = vadd.f32 %v10453, %v10501
        %10503 = vmatmul.bf16.gmra.mxu0 %v9176
        %v10504 = vpop.f32.mrf.mxu0
        %v10505 = vadd.f32 %v10456, %v10504
        %v10506 = vpop.f32.mrf.mxu0
        %v10507 = vadd.f32 %v10458, %v10506
        %10508 = vmatmul.bf16.gmra.mxu0 %v9180
        %v10509 = vpop.f32.mrf.mxu0
        %v10510 = vadd.f32 %v10461, %v10509
        %v10511 = vpop.f32.mrf.mxu0
        %v10512 = vadd.f32 %v10463, %v10511
        %10513 = vmatmul.bf16.gmra.mxu0 %v9184
        %v10514 = vpop.f32.mrf.mxu0
        %v10515 = vadd.f32 %v10466, %v10514
        %v10516 = vpop.f32.mrf.mxu0
        %v10517 = vadd.f32 %v10468, %v10516
        %10518 = vmatmul.bf16.gmra.mxu0 %v9188
        %v10519 = vpop.f32.mrf.mxu0
        %v10520 = vadd.f32 %v10471, %v10519
        %v10521 = vpop.f32.mrf.mxu0
        %v10522 = vadd.f32 %v10473, %v10521
        %10523 = vmatmul.bf16.gmra.mxu0 %v9192
        %v10524 = vpop.f32.mrf.mxu0
        %v10525 = vadd.f32 %v10476, %v10524
        %v10526 = vpop.f32.mrf.mxu0
        %v10527 = vadd.f32 %v10478, %v10526
        %10528 = vmatmul.bf16.gmra.mxu0 %v9196
        %v10529 = vpop.f32.mrf.mxu0
        %v10530 = vadd.f32 %v10481, %v10529
        %v10531 = vpop.f32.mrf.mxu0
        %v10532 = vadd.f32 %v10483, %v10531
        %10533 = vdwg.mxu0
        %10534 = vmatpush.bf16.msra.mxu0 %v9687
        %10535 = vmatpush.bf16.msra.mxu0 %v9683
        %10536 = vmatpush.bf16.msra.mxu0 %v9679
        %10537 = vmatpush.bf16.msra.mxu0 %v9675
        %10538 = vmatpush.bf16.msra.mxu0 %v9671
        %10539 = vmatpush.bf16.msra.mxu0 %v9667
        %10540 = vmatpush.bf16.msra.mxu0 %v9663
        %10541 = vmatpush.bf16.msra.mxu0 %v9659
        %10542 = vmatmul.bf16.gmra.mxu0 %v9169
        %v10543 = vpop.f32.mrf.mxu0
        %v10544 = vadd.f32 %v10495, %v10543
        %v10545 = vpop.f32.mrf.mxu0
        %v10546 = vadd.f32 %v10497, %v10545
        %10547 = vmatmul.bf16.gmra.mxu0 %v9173
        %v10548 = vpop.f32.mrf.mxu0
        %v10549 = vadd.f32 %v10500, %v10548
        %v10550 = vpop.f32.mrf.mxu0
        %v10551 = vadd.f32 %v10502, %v10550
        %10552 = vmatmul.bf16.gmra.mxu0 %v9177
        %v10553 = vpop.f32.mrf.mxu0
        %v10554 = vadd.f32 %v10505, %v10553
        %v10555 = vpop.f32.mrf.mxu0
        %v10556 = vadd.f32 %v10507, %v10555
        %10557 = vmatmul.bf16.gmra.mxu0 %v9181
        %v10558 = vpop.f32.mrf.mxu0
        %v10559 = vadd.f32 %v10510, %v10558
        %v10560 = vpop.f32.mrf.mxu0
        %v10561 = vadd.f32 %v10512, %v10560
        %10562 = vmatmul.bf16.gmra.mxu0 %v9185
        %v10563 = vpop.f32.mrf.mxu0
        %v10564 = vadd.f32 %v10515, %v10563
        %v10565 = vpop.f32.mrf.mxu0
        %v10566 = vadd.f32 %v10517, %v10565
        %10567 = vmatmul.bf16.gmra.mxu0 %v9189
        %v10568 = vpop.f32.mrf.mxu0
        %v10569 = vadd.f32 %v10520, %v10568
        %v10570 = vpop.f32.mrf.mxu0
        %v10571 = vadd.f32 %v10522, %v10570
        %10572 = vmatmul.bf16.gmra.mxu0 %v9193
        %v10573 = vpop.f32.mrf.mxu0
        %v10574 = vadd.f32 %v10525, %v10573
        %v10575 = vpop.f32.mrf.mxu0
        %v10576 = vadd.f32 %v10527, %v10575
        %10577 = vmatmul.bf16.gmra.mxu0 %v9197
        %v10578 = vpop.f32.mrf.mxu0
        %v10579 = vadd.f32 %v10530, %v10578
        %v10580 = vpop.f32.mrf.mxu0
        %v10581 = vadd.f32 %v10532, %v10580
        %10582 = vdwg.mxu0
        %10583 = vmatpush.bf16.msra.mxu0 %v9719
        %10584 = vmatpush.bf16.msra.mxu0 %v9715
        %10585 = vmatpush.bf16.msra.mxu0 %v9711
        %10586 = vmatpush.bf16.msra.mxu0 %v9707
        %10587 = vmatpush.bf16.msra.mxu0 %v9703
        %10588 = vmatpush.bf16.msra.mxu0 %v9699
        %10589 = vmatpush.bf16.msra.mxu0 %v9695
        %10590 = vmatpush.bf16.msra.mxu0 %v9691
        %10591 = vmatmul.bf16.gmra.mxu0 %v9170
        %v10592 = vpop.f32.mrf.mxu0
        %v10593 = vadd.f32 %v10544, %v10592
        %v10594 = vpop.f32.mrf.mxu0
        %v10595 = vadd.f32 %v10546, %v10594
        %10596 = vmatmul.bf16.gmra.mxu0 %v9174
        %v10597 = vpop.f32.mrf.mxu0
        %v10598 = vadd.f32 %v10549, %v10597
        %v10599 = vpop.f32.mrf.mxu0
        %v10600 = vadd.f32 %v10551, %v10599
        %10601 = vmatmul.bf16.gmra.mxu0 %v9178
        %v10602 = vpop.f32.mrf.mxu0
        %v10603 = vadd.f32 %v10554, %v10602
        %v10604 = vpop.f32.mrf.mxu0
        %v10605 = vadd.f32 %v10556, %v10604
        %10606 = vmatmul.bf16.gmra.mxu0 %v9182
        %v10607 = vpop.f32.mrf.mxu0
        %v10608 = vadd.f32 %v10559, %v10607
        %v10609 = vpop.f32.mrf.mxu0
        %v10610 = vadd.f32 %v10561, %v10609
        %10611 = vmatmul.bf16.gmra.mxu0 %v9186
        %v10612 = vpop.f32.mrf.mxu0
        %v10613 = vadd.f32 %v10564, %v10612
        %v10614 = vpop.f32.mrf.mxu0
        %v10615 = vadd.f32 %v10566, %v10614
        %10616 = vmatmul.bf16.gmra.mxu0 %v9190
        %v10617 = vpop.f32.mrf.mxu0
        %v10618 = vadd.f32 %v10569, %v10617
        %v10619 = vpop.f32.mrf.mxu0
        %v10620 = vadd.f32 %v10571, %v10619
        %10621 = vmatmul.bf16.gmra.mxu0 %v9194
        %v10622 = vpop.f32.mrf.mxu0
        %v10623 = vadd.f32 %v10574, %v10622
        %v10624 = vpop.f32.mrf.mxu0
        %v10625 = vadd.f32 %v10576, %v10624
        %10626 = vmatmul.bf16.gmra.mxu0 %v9198
        %v10627 = vpop.f32.mrf.mxu0
        %v10628 = vadd.f32 %v10579, %v10627
        %v10629 = vpop.f32.mrf.mxu0
        %v10630 = vadd.f32 %v10581, %v10629
        %10631 = vdwg.mxu0
        %v10632 = vmax.f32 %v10005, 0.0
        %v10633 = vmax.f32 %v10201, 0.0
        %v10634 = vmax.f32 %v10397, 0.0
        %v10635 = vmax.f32 %v10593, 0.0
        %v10636 = vmax.f32 %v10007, 0.0
        %v10637 = vmax.f32 %v10203, 0.0
        %v10638 = vmax.f32 %v10399, 0.0
        %v10639 = vmax.f32 %v10595, 0.0
        %v10640 = vmax.f32 %v10010, 0.0
        %v10641 = vmax.f32 %v10206, 0.0
        %v10642 = vmax.f32 %v10402, 0.0
        %v10643 = vmax.f32 %v10598, 0.0
        %v10644 = vmax.f32 %v10012, 0.0
        %v10645 = vmax.f32 %v10208, 0.0
        %v10646 = vmax.f32 %v10404, 0.0
        %v10647 = vmax.f32 %v10600, 0.0
        %v10648 = vmax.f32 %v10015, 0.0
        %v10649 = vmax.f32 %v10211, 0.0
        %v10650 = vmax.f32 %v10407, 0.0
        %v10651 = vmax.f32 %v10603, 0.0
        %v10652 = vmax.f32 %v10017, 0.0
        %v10653 = vmax.f32 %v10213, 0.0
        %v10654 = vmax.f32 %v10409, 0.0
        %v10655 = vmax.f32 %v10605, 0.0
        %v10656 = vmax.f32 %v10020, 0.0
        %v10657 = vmax.f32 %v10216, 0.0
        %v10658 = vmax.f32 %v10412, 0.0
        %v10659 = vmax.f32 %v10608, 0.0
        %v10660 = vmax.f32 %v10022, 0.0
        %v10661 = vmax.f32 %v10218, 0.0
        %v10662 = vmax.f32 %v10414, 0.0
        %v10663 = vmax.f32 %v10610, 0.0
        %v10664 = vmax.f32 %v10025, 0.0
        %v10665 = vmax.f32 %v10221, 0.0
        %v10666 = vmax.f32 %v10417, 0.0
        %v10667 = vmax.f32 %v10613, 0.0
        %v10668 = vmax.f32 %v10027, 0.0
        %v10669 = vmax.f32 %v10223, 0.0
        %v10670 = vmax.f32 %v10419, 0.0
        %v10671 = vmax.f32 %v10615, 0.0
        %v10672 = vmax.f32 %v10030, 0.0
        %v10673 = vmax.f32 %v10226, 0.0
        %v10674 = vmax.f32 %v10422, 0.0
        %v10675 = vmax.f32 %v10618, 0.0
        %v10676 = vmax.f32 %v10032, 0.0
        %v10677 = vmax.f32 %v10228, 0.0
        %v10678 = vmax.f32 %v10424, 0.0
        %v10679 = vmax.f32 %v10620, 0.0
        %v10680 = vmax.f32 %v10035, 0.0
        %v10681 = vmax.f32 %v10231, 0.0
        %v10682 = vmax.f32 %v10427, 0.0
        %v10683 = vmax.f32 %v10623, 0.0
        %v10684 = vmax.f32 %v10037, 0.0
        %v10685 = vmax.f32 %v10233, 0.0
        %v10686 = vmax.f32 %v10429, 0.0
        %v10687 = vmax.f32 %v10625, 0.0
        %v10688 = vmax.f32 %v10040, 0.0
        %v10689 = vmax.f32 %v10236, 0.0
        %v10690 = vmax.f32 %v10432, 0.0
        %v10691 = vmax.f32 %v10628, 0.0
        %v10692 = vmax.f32 %v10042, 0.0
        %v10693 = vmax.f32 %v10238, 0.0
        %v10694 = vmax.f32 %v10434, 0.0
        %v10695 = vmax.f32 %v10630, 0.0
        %10696 = vst [vmem:[%s795] sm:$0xff] %v10632
        %10697 = vst [vmem:[%s795 + $0x8] sm:$0xff] %v10633
        %10698 = vst [vmem:[%s795 + $0x10] sm:$0xff] %v10634
        %10699 = vst [vmem:[%s795 + $0x18] sm:$0xff] %v10635
        %10700 = vst [vmem:[%s795 + $0x20] sm:$0xff] %v10636
        %10701 = vst [vmem:[%s795 + $0x28] sm:$0xff] %v10637
        %10702 = vst [vmem:[%s795 + $0x30] sm:$0xff] %v10638
        %10703 = vst [vmem:[%s795 + $0x38] sm:$0xff] %v10639
        %10704 = vst [vmem:[%s795 + $0x40] sm:$0xff] %v10640
        %10705 = vst [vmem:[%s795 + $0x48] sm:$0xff] %v10641
        %10706 = vst [vmem:[%s795 + $0x50] sm:$0xff] %v10642
        %10707 = vst [vmem:[%s795 + $0x58] sm:$0xff] %v10643
        %10708 = vst [vmem:[%s795 + $0x60] sm:$0xff] %v10644
        %10709 = vst [vmem:[%s795 + $0x68] sm:$0xff] %v10645
        %10710 = vst [vmem:[%s795 + $0x70] sm:$0xff] %v10646
        %10711 = vst [vmem:[%s795 + $0x78] sm:$0xff] %v10647
        %10712 = vst [vmem:[%s795 + $0x80] sm:$0xff] %v10648
        %10713 = vst [vmem:[%s795 + $0x88] sm:$0xff] %v10649
        %10714 = vst [vmem:[%s795 + $0x90] sm:$0xff] %v10650
        %10715 = vst [vmem:[%s795 + $0x98] sm:$0xff] %v10651
        %10716 = vst [vmem:[%s795 + $0xa0] sm:$0xff] %v10652
        %10717 = vst [vmem:[%s795 + $0xa8] sm:$0xff] %v10653
        %10718 = vst [vmem:[%s795 + $0xb0] sm:$0xff] %v10654
        %10719 = vst [vmem:[%s795 + $0xb8] sm:$0xff] %v10655
        %10720 = vst [vmem:[%s795 + $0xc0] sm:$0xff] %v10656
        %10721 = vst [vmem:[%s795 + $0xc8] sm:$0xff] %v10657
        %10722 = vst [vmem:[%s795 + $0xd0] sm:$0xff] %v10658
        %10723 = vst [vmem:[%s795 + $0xd8] sm:$0xff] %v10659
        %10724 = vst [vmem:[%s795 + $0xe0] sm:$0xff] %v10660
        %10725 = vst [vmem:[%s795 + $0xe8] sm:$0xff] %v10661
        %10726 = vst [vmem:[%s795 + $0xf0] sm:$0xff] %v10662
        %10727 = vst [vmem:[%s795 + $0xf8] sm:$0xff] %v10663
        %10728 = vst [vmem:[%s795 + $0x100] sm:$0xff] %v10664
        %10729 = vst [vmem:[%s795 + $0x108] sm:$0xff] %v10665
        %10730 = vst [vmem:[%s795 + $0x110] sm:$0xff] %v10666
        %10731 = vst [vmem:[%s795 + $0x118] sm:$0xff] %v10667
        %10732 = vst [vmem:[%s795 + $0x120] sm:$0xff] %v10668
        %10733 = vst [vmem:[%s795 + $0x128] sm:$0xff] %v10669
        %10734 = vst [vmem:[%s795 + $0x130] sm:$0xff] %v10670
        %10735 = vst [vmem:[%s795 + $0x138] sm:$0xff] %v10671
        %10736 = vst [vmem:[%s795 + $0x140] sm:$0xff] %v10672
        %10737 = vst [vmem:[%s795 + $0x148] sm:$0xff] %v10673
        %10738 = vst [vmem:[%s795 + $0x150] sm:$0xff] %v10674
        %10739 = vst [vmem:[%s795 + $0x158] sm:$0xff] %v10675
        %10740 = vst [vmem:[%s795 + $0x160] sm:$0xff] %v10676
        %10741 = vst [vmem:[%s795 + $0x168] sm:$0xff] %v10677
        %10742 = vst [vmem:[%s795 + $0x170] sm:$0xff] %v10678
        %10743 = vst [vmem:[%s795 + $0x178] sm:$0xff] %v10679
        %10744 = vst [vmem:[%s795 + $0x180] sm:$0xff] %v10680
        %10745 = vst [vmem:[%s795 + $0x188] sm:$0xff] %v10681
        %10746 = vst [vmem:[%s795 + $0x190] sm:$0xff] %v10682
        %10747 = vst [vmem:[%s795 + $0x198] sm:$0xff] %v10683
        %10748 = vst [vmem:[%s795 + $0x1a0] sm:$0xff] %v10684
        %10749 = vst [vmem:[%s795 + $0x1a8] sm:$0xff] %v10685
        %10750 = vst [vmem:[%s795 + $0x1b0] sm:$0xff] %v10686
        %10751 = vst [vmem:[%s795 + $0x1b8] sm:$0xff] %v10687
        %10752 = vst [vmem:[%s795 + $0x1c0] sm:$0xff] %v10688
        %10753 = vst [vmem:[%s795 + $0x1c8] sm:$0xff] %v10689
        %10754 = vst [vmem:[%s795 + $0x1d0] sm:$0xff] %v10690
        %10755 = vst [vmem:[%s795 + $0x1d8] sm:$0xff] %v10691
        %10756 = vst [vmem:[%s795 + $0x1e0] sm:$0xff] %v10692
        %10757 = vst [vmem:[%s795 + $0x1e8] sm:$0xff] %v10693
        %10758 = vst [vmem:[%s795 + $0x1f0] sm:$0xff] %v10694
        %10759 = vst [vmem:[%s795 + $0x1f8] sm:$0xff] %v10695
        %v10760 = vpack.c.bf16 %v10636, %v10632
        %v10761 = vpack.c.bf16 %v10637, %v10633
        %v10762 = vpack.c.bf16 %v10638, %v10634
        %v10763 = vpack.c.bf16 %v10639, %v10635
        %v10764 = vpack.c.bf16 %v10644, %v10640
        %v10765 = vpack.c.bf16 %v10645, %v10641
        %v10766 = vpack.c.bf16 %v10646, %v10642
        %v10767 = vpack.c.bf16 %v10647, %v10643
        %v10768 = vpack.c.bf16 %v10652, %v10648
        %v10769 = vpack.c.bf16 %v10653, %v10649
        %v10770 = vpack.c.bf16 %v10654, %v10650
        %v10771 = vpack.c.bf16 %v10655, %v10651
        %v10772 = vpack.c.bf16 %v10660, %v10656
        %v10773 = vpack.c.bf16 %v10661, %v10657
        %v10774 = vpack.c.bf16 %v10662, %v10658
        %v10775 = vpack.c.bf16 %v10663, %v10659
        %v10776 = vpack.c.bf16 %v10668, %v10664
        %v10777 = vpack.c.bf16 %v10669, %v10665
        %v10778 = vpack.c.bf16 %v10670, %v10666
        %v10779 = vpack.c.bf16 %v10671, %v10667
        %v10780 = vpack.c.bf16 %v10676, %v10672
        %v10781 = vpack.c.bf16 %v10677, %v10673
        %v10782 = vpack.c.bf16 %v10678, %v10674
        %v10783 = vpack.c.bf16 %v10679, %v10675
        %v10784 = vpack.c.bf16 %v10684, %v10680
        %v10785 = vpack.c.bf16 %v10685, %v10681
        %v10786 = vpack.c.bf16 %v10686, %v10682
        %v10787 = vpack.c.bf16 %v10687, %v10683
        %v10788 = vpack.c.bf16 %v10692, %v10688
        %v10789 = vpack.c.bf16 %v10693, %v10689
        %v10790 = vpack.c.bf16 %v10694, %v10690
        %v10791 = vpack.c.bf16 %v10695, %v10691
        %v10792 = vld [vmem:[#allocation22] sm:$0xf]
        %v10793 = vld [vmem:[#allocation22 + $0x4] sm:$0xf]
        %v10794 = vld [vmem:[#allocation22 + $0x8] sm:$0xf]
        %v10795 = vld [vmem:[#allocation22 + $0xc] sm:$0xf]
        %v10796 = vld [vmem:[#allocation22 + $0x10] sm:$0xf]
        %v10797 = vld [vmem:[#allocation22 + $0x14] sm:$0xf]
        %v10798 = vld [vmem:[#allocation22 + $0x18] sm:$0xf]
        %v10799 = vld [vmem:[#allocation22 + $0x1c] sm:$0xf]
        %v10800 = vld [vmem:[#allocation22 + $0x20] sm:$0xf]
        %v10801 = vld [vmem:[#allocation22 + $0x24] sm:$0xf]
        %v10802 = vld [vmem:[#allocation22 + $0x28] sm:$0xf]
        %v10803 = vld [vmem:[#allocation22 + $0x2c] sm:$0xf]
        %v10804 = vld [vmem:[#allocation22 + $0x30] sm:$0xf]
        %v10805 = vld [vmem:[#allocation22 + $0x34] sm:$0xf]
        %v10806 = vld [vmem:[#allocation22 + $0x38] sm:$0xf]
        %v10807 = vld [vmem:[#allocation22 + $0x3c] sm:$0xf]
        %v10808 = vld [vmem:[#allocation22 + $0x40] sm:$0xf]
        %v10809 = vld [vmem:[#allocation22 + $0x44] sm:$0xf]
        %v10810 = vld [vmem:[#allocation22 + $0x48] sm:$0xf]
        %v10811 = vld [vmem:[#allocation22 + $0x4c] sm:$0xf]
        %v10812 = vld [vmem:[#allocation22 + $0x50] sm:$0xf]
        %v10813 = vld [vmem:[#allocation22 + $0x54] sm:$0xf]
        %v10814 = vld [vmem:[#allocation22 + $0x58] sm:$0xf]
        %v10815 = vld [vmem:[#allocation22 + $0x5c] sm:$0xf]
        %v10816 = vld [vmem:[#allocation22 + $0x60] sm:$0xf]
        %v10817 = vld [vmem:[#allocation22 + $0x64] sm:$0xf]
        %v10818 = vld [vmem:[#allocation22 + $0x68] sm:$0xf]
        %v10819 = vld [vmem:[#allocation22 + $0x6c] sm:$0xf]
        %v10820 = vld [vmem:[#allocation22 + $0x70] sm:$0xf]
        %v10821 = vld [vmem:[#allocation22 + $0x74] sm:$0xf]
        %v10822 = vld [vmem:[#allocation22 + $0x78] sm:$0xf]
        %v10823 = vld [vmem:[#allocation22 + $0x7c] sm:$0xf]
        %v10824 = vld [vmem:[#allocation22 + $0x80] sm:$0xf]
        %v10825 = vld [vmem:[#allocation22 + $0x84] sm:$0xf]
        %v10826 = vld [vmem:[#allocation22 + $0x88] sm:$0xf]
        %v10827 = vld [vmem:[#allocation22 + $0x8c] sm:$0xf]
        %v10828 = vld [vmem:[#allocation22 + $0x90] sm:$0xf]
        %v10829 = vld [vmem:[#allocation22 + $0x94] sm:$0xf]
        %v10830 = vld [vmem:[#allocation22 + $0x98] sm:$0xf]
        %v10831 = vld [vmem:[#allocation22 + $0x9c] sm:$0xf]
        %v10832 = vld [vmem:[#allocation22 + $0xa0] sm:$0xf]
        %v10833 = vld [vmem:[#allocation22 + $0xa4] sm:$0xf]
        %v10834 = vld [vmem:[#allocation22 + $0xa8] sm:$0xf]
        %v10835 = vld [vmem:[#allocation22 + $0xac] sm:$0xf]
        %v10836 = vld [vmem:[#allocation22 + $0xb0] sm:$0xf]
        %v10837 = vld [vmem:[#allocation22 + $0xb4] sm:$0xf]
        %v10838 = vld [vmem:[#allocation22 + $0xb8] sm:$0xf]
        %v10839 = vld [vmem:[#allocation22 + $0xbc] sm:$0xf]
        %v10840 = vld [vmem:[#allocation22 + $0xc0] sm:$0xf]
        %v10841 = vld [vmem:[#allocation22 + $0xc4] sm:$0xf]
        %v10842 = vld [vmem:[#allocation22 + $0xc8] sm:$0xf]
        %v10843 = vld [vmem:[#allocation22 + $0xcc] sm:$0xf]
        %v10844 = vld [vmem:[#allocation22 + $0xd0] sm:$0xf]
        %v10845 = vld [vmem:[#allocation22 + $0xd4] sm:$0xf]
        %v10846 = vld [vmem:[#allocation22 + $0xd8] sm:$0xf]
        %v10847 = vld [vmem:[#allocation22 + $0xdc] sm:$0xf]
        %v10848 = vld [vmem:[#allocation22 + $0xe0] sm:$0xf]
        %v10849 = vld [vmem:[#allocation22 + $0xe4] sm:$0xf]
        %v10850 = vld [vmem:[#allocation22 + $0xe8] sm:$0xf]
        %v10851 = vld [vmem:[#allocation22 + $0xec] sm:$0xf]
        %v10852 = vld [vmem:[#allocation22 + $0xf0] sm:$0xf]
        %v10853 = vld [vmem:[#allocation22 + $0xf4] sm:$0xf]
        %v10854 = vld [vmem:[#allocation22 + $0xf8] sm:$0xf]
        %v10855 = vld [vmem:[#allocation22 + $0xfc] sm:$0xf]
        %v10856 = vld [vmem:[%s16] sm:$0x1]
        %v10858 = vperm.slane %v10856, 0
        %v10924 = vunpack.c.l.b16 %v10792
        %v10925 = vunpack.c.l.b16 %v10793
        %v10926 = vunpack.c.l.b16 %v10794
        %v10927 = vunpack.c.l.b16 %v10795
        %v10928 = vunpack.c.l.b16 %v10796
        %v10929 = vunpack.c.l.b16 %v10797
        %v10930 = vunpack.c.l.b16 %v10798
        %v10931 = vunpack.c.l.b16 %v10799
        %v10932 = vunpack.c.l.b16 %v10800
        %v10933 = vunpack.c.l.b16 %v10801
        %v10934 = vunpack.c.l.b16 %v10802
        %v10935 = vunpack.c.l.b16 %v10803
        %v10936 = vunpack.c.l.b16 %v10804
        %v10937 = vunpack.c.l.b16 %v10805
        %v10938 = vunpack.c.l.b16 %v10806
        %v10939 = vunpack.c.l.b16 %v10807
        %v10940 = vunpack.c.l.b16 %v10808
        %v10941 = vunpack.c.l.b16 %v10809
        %v10942 = vunpack.c.l.b16 %v10810
        %v10943 = vunpack.c.l.b16 %v10811
        %v10944 = vunpack.c.l.b16 %v10812
        %v10945 = vunpack.c.l.b16 %v10813
        %v10946 = vunpack.c.l.b16 %v10814
        %v10947 = vunpack.c.l.b16 %v10815
        %v10948 = vunpack.c.l.b16 %v10816
        %v10949 = vunpack.c.l.b16 %v10817
        %v10950 = vunpack.c.l.b16 %v10818
        %v10951 = vunpack.c.l.b16 %v10819
        %v10952 = vunpack.c.l.b16 %v10820
        %v10953 = vunpack.c.l.b16 %v10821
        %v10954 = vunpack.c.l.b16 %v10822
        %v10955 = vunpack.c.l.b16 %v10823
        %v10956 = vunpack.c.l.b16 %v10824
        %v10957 = vunpack.c.l.b16 %v10825
        %v10958 = vunpack.c.l.b16 %v10826
        %v10959 = vunpack.c.l.b16 %v10827
        %v10960 = vunpack.c.l.b16 %v10828
        %v10961 = vunpack.c.l.b16 %v10829
        %v10962 = vunpack.c.l.b16 %v10830
        %v10963 = vunpack.c.l.b16 %v10831
        %v10964 = vunpack.c.l.b16 %v10832
        %v10965 = vunpack.c.l.b16 %v10833
        %v10966 = vunpack.c.l.b16 %v10834
        %v10967 = vunpack.c.l.b16 %v10835
        %v10968 = vunpack.c.l.b16 %v10836
        %v10969 = vunpack.c.l.b16 %v10837
        %v10970 = vunpack.c.l.b16 %v10838
        %v10971 = vunpack.c.l.b16 %v10839
        %v10972 = vunpack.c.l.b16 %v10840
        %v10973 = vunpack.c.l.b16 %v10841
        %v10974 = vunpack.c.l.b16 %v10842
        %v10975 = vunpack.c.l.b16 %v10843
        %v10976 = vunpack.c.l.b16 %v10844
        %v10977 = vunpack.c.l.b16 %v10845
        %v10978 = vunpack.c.l.b16 %v10846
        %v10979 = vunpack.c.l.b16 %v10847
        %v10980 = vunpack.c.l.b16 %v10848
        %v10981 = vunpack.c.l.b16 %v10849
        %v10982 = vunpack.c.l.b16 %v10850
        %v10983 = vunpack.c.l.b16 %v10851
        %v10984 = vunpack.c.l.b16 %v10852
        %v10985 = vunpack.c.l.b16 %v10853
        %v10986 = vunpack.c.l.b16 %v10854
        %v10987 = vunpack.c.l.b16 %v10855
        %v10988 = vpack.c.b16 %v10925, %v10924
        %v10989 = vpack.c.b16 %v10927, %v10926
        %v10990 = vpack.c.b16 %v10929, %v10928
        %v10991 = vpack.c.b16 %v10931, %v10930
        %v10992 = vpack.c.b16 %v10933, %v10932
        %v10993 = vpack.c.b16 %v10935, %v10934
        %v10994 = vpack.c.b16 %v10937, %v10936
        %v10995 = vpack.c.b16 %v10939, %v10938
        %v10996 = vpack.c.b16 %v10941, %v10940
        %v10997 = vpack.c.b16 %v10943, %v10942
        %v10998 = vpack.c.b16 %v10945, %v10944
        %v10999 = vpack.c.b16 %v10947, %v10946
        %v11000 = vpack.c.b16 %v10949, %v10948
        %v11001 = vpack.c.b16 %v10951, %v10950
        %v11002 = vpack.c.b16 %v10953, %v10952
        %v11003 = vpack.c.b16 %v10955, %v10954
        %v11004 = vpack.c.b16 %v10957, %v10956
        %v11005 = vpack.c.b16 %v10959, %v10958
        %v11006 = vpack.c.b16 %v10961, %v10960
        %v11007 = vpack.c.b16 %v10963, %v10962
        %v11008 = vpack.c.b16 %v10965, %v10964
        %v11009 = vpack.c.b16 %v10967, %v10966
        %v11010 = vpack.c.b16 %v10969, %v10968
        %v11011 = vpack.c.b16 %v10971, %v10970
        %v11012 = vpack.c.b16 %v10973, %v10972
        %v11013 = vpack.c.b16 %v10975, %v10974
        %v11014 = vpack.c.b16 %v10977, %v10976
        %v11015 = vpack.c.b16 %v10979, %v10978
        %v11016 = vpack.c.b16 %v10981, %v10980
        %v11017 = vpack.c.b16 %v10983, %v10982
        %v11018 = vpack.c.b16 %v10985, %v10984
        %v11019 = vpack.c.b16 %v10987, %v10986
        %11052 = vmatpush.bf16.msra.mxu0 %v10995
        %11053 = vmatpush.bf16.msra.mxu0 %v10994
        %11054 = vmatpush.bf16.msra.mxu0 %v10993
        %11055 = vmatpush.bf16.msra.mxu0 %v10992
        %11056 = vmatpush.bf16.msra.mxu0 %v10991
        %11057 = vmatpush.bf16.msra.mxu0 %v10990
        %11058 = vmatpush.bf16.msra.mxu0 %v10989
        %11059 = vmatpush.bf16.msra.mxu0 %v10988
        %11060 = vmatmul.bf16.gmra.mxu0 %v10760
        %v11061 = vpop.f32.mrf.mxu0
        %v11062 = vadd.f32 %v10858, %v11061
        %v11063 = vpop.f32.mrf.mxu0
        %v11064 = vadd.f32 %v10858, %v11063
        %11065 = vmatmul.bf16.gmra.mxu0 %v10764
        %v11066 = vpop.f32.mrf.mxu0
        %v11067 = vadd.f32 %v10858, %v11066
        %v11068 = vpop.f32.mrf.mxu0
        %v11069 = vadd.f32 %v10858, %v11068
        %11070 = vmatmul.bf16.gmra.mxu0 %v10768
        %v11071 = vpop.f32.mrf.mxu0
        %v11072 = vadd.f32 %v10858, %v11071
        %v11073 = vpop.f32.mrf.mxu0
        %v11074 = vadd.f32 %v10858, %v11073
        %11075 = vmatmul.bf16.gmra.mxu0 %v10772
        %v11076 = vpop.f32.mrf.mxu0
        %v11077 = vadd.f32 %v10858, %v11076
        %v11078 = vpop.f32.mrf.mxu0
        %v11079 = vadd.f32 %v10858, %v11078
        %11080 = vmatmul.bf16.gmra.mxu0 %v10776
        %v11081 = vpop.f32.mrf.mxu0
        %v11082 = vadd.f32 %v10858, %v11081
        %v11083 = vpop.f32.mrf.mxu0
        %v11084 = vadd.f32 %v10858, %v11083
        %11085 = vmatmul.bf16.gmra.mxu0 %v10780
        %v11086 = vpop.f32.mrf.mxu0
        %v11087 = vadd.f32 %v10858, %v11086
        %v11088 = vpop.f32.mrf.mxu0
        %v11089 = vadd.f32 %v10858, %v11088
        %11090 = vmatmul.bf16.gmra.mxu0 %v10784
        %v11091 = vpop.f32.mrf.mxu0
        %v11092 = vadd.f32 %v10858, %v11091
        %v11093 = vpop.f32.mrf.mxu0
        %v11094 = vadd.f32 %v10858, %v11093
        %11095 = vmatmul.bf16.gmra.mxu0 %v10788
        %v11096 = vpop.f32.mrf.mxu0
        %v11097 = vadd.f32 %v10858, %v11096
        %v11098 = vpop.f32.mrf.mxu0
        %v11099 = vadd.f32 %v10858, %v11098
        %11100 = vdwg.mxu0
        %11101 = vmatpush.bf16.msra.mxu0 %v11003
        %11102 = vmatpush.bf16.msra.mxu0 %v11002
        %11103 = vmatpush.bf16.msra.mxu0 %v11001
        %11104 = vmatpush.bf16.msra.mxu0 %v11000
        %11105 = vmatpush.bf16.msra.mxu0 %v10999
        %11106 = vmatpush.bf16.msra.mxu0 %v10998
        %11107 = vmatpush.bf16.msra.mxu0 %v10997
        %11108 = vmatpush.bf16.msra.mxu0 %v10996
        %11109 = vmatmul.bf16.gmra.mxu0 %v10761
        %v11110 = vpop.f32.mrf.mxu0
        %v11111 = vadd.f32 %v11062, %v11110
        %v11112 = vpop.f32.mrf.mxu0
        %v11113 = vadd.f32 %v11064, %v11112
        %11114 = vmatmul.bf16.gmra.mxu0 %v10765
        %v11115 = vpop.f32.mrf.mxu0
        %v11116 = vadd.f32 %v11067, %v11115
        %v11117 = vpop.f32.mrf.mxu0
        %v11118 = vadd.f32 %v11069, %v11117
        %11119 = vmatmul.bf16.gmra.mxu0 %v10769
        %v11120 = vpop.f32.mrf.mxu0
        %v11121 = vadd.f32 %v11072, %v11120
        %v11122 = vpop.f32.mrf.mxu0
        %v11123 = vadd.f32 %v11074, %v11122
        %11124 = vmatmul.bf16.gmra.mxu0 %v10773
        %v11125 = vpop.f32.mrf.mxu0
        %v11126 = vadd.f32 %v11077, %v11125
        %v11127 = vpop.f32.mrf.mxu0
        %v11128 = vadd.f32 %v11079, %v11127
        %11129 = vmatmul.bf16.gmra.mxu0 %v10777
        %v11130 = vpop.f32.mrf.mxu0
        %v11131 = vadd.f32 %v11082, %v11130
        %v11132 = vpop.f32.mrf.mxu0
        %v11133 = vadd.f32 %v11084, %v11132
        %11134 = vmatmul.bf16.gmra.mxu0 %v10781
        %v11135 = vpop.f32.mrf.mxu0
        %v11136 = vadd.f32 %v11087, %v11135
        %v11137 = vpop.f32.mrf.mxu0
        %v11138 = vadd.f32 %v11089, %v11137
        %11139 = vmatmul.bf16.gmra.mxu0 %v10785
        %v11140 = vpop.f32.mrf.mxu0
        %v11141 = vadd.f32 %v11092, %v11140
        %v11142 = vpop.f32.mrf.mxu0
        %v11143 = vadd.f32 %v11094, %v11142
        %11144 = vmatmul.bf16.gmra.mxu0 %v10789
        %v11145 = vpop.f32.mrf.mxu0
        %v11146 = vadd.f32 %v11097, %v11145
        %v11147 = vpop.f32.mrf.mxu0
        %v11148 = vadd.f32 %v11099, %v11147
        %11149 = vdwg.mxu0
        %11150 = vmatpush.bf16.msra.mxu0 %v11011
        %11151 = vmatpush.bf16.msra.mxu0 %v11010
        %11152 = vmatpush.bf16.msra.mxu0 %v11009
        %11153 = vmatpush.bf16.msra.mxu0 %v11008
        %11154 = vmatpush.bf16.msra.mxu0 %v11007
        %11155 = vmatpush.bf16.msra.mxu0 %v11006
        %11156 = vmatpush.bf16.msra.mxu0 %v11005
        %11157 = vmatpush.bf16.msra.mxu0 %v11004
        %11158 = vmatmul.bf16.gmra.mxu0 %v10762
        %v11159 = vpop.f32.mrf.mxu0
        %v11160 = vadd.f32 %v11111, %v11159
        %v11161 = vpop.f32.mrf.mxu0
        %v11162 = vadd.f32 %v11113, %v11161
        %11163 = vmatmul.bf16.gmra.mxu0 %v10766
        %v11164 = vpop.f32.mrf.mxu0
        %v11165 = vadd.f32 %v11116, %v11164
        %v11166 = vpop.f32.mrf.mxu0
        %v11167 = vadd.f32 %v11118, %v11166
        %11168 = vmatmul.bf16.gmra.mxu0 %v10770
        %v11169 = vpop.f32.mrf.mxu0
        %v11170 = vadd.f32 %v11121, %v11169
        %v11171 = vpop.f32.mrf.mxu0
        %v11172 = vadd.f32 %v11123, %v11171
        %11173 = vmatmul.bf16.gmra.mxu0 %v10774
        %v11174 = vpop.f32.mrf.mxu0
        %v11175 = vadd.f32 %v11126, %v11174
        %v11176 = vpop.f32.mrf.mxu0
        %v11177 = vadd.f32 %v11128, %v11176
        %11178 = vmatmul.bf16.gmra.mxu0 %v10778
        %v11179 = vpop.f32.mrf.mxu0
        %v11180 = vadd.f32 %v11131, %v11179
        %v11181 = vpop.f32.mrf.mxu0
        %v11182 = vadd.f32 %v11133, %v11181
        %11183 = vmatmul.bf16.gmra.mxu0 %v10782
        %v11184 = vpop.f32.mrf.mxu0
        %v11185 = vadd.f32 %v11136, %v11184
        %v11186 = vpop.f32.mrf.mxu0
        %v11187 = vadd.f32 %v11138, %v11186
        %11188 = vmatmul.bf16.gmra.mxu0 %v10786
        %v11189 = vpop.f32.mrf.mxu0
        %v11190 = vadd.f32 %v11141, %v11189
        %v11191 = vpop.f32.mrf.mxu0
        %v11192 = vadd.f32 %v11143, %v11191
        %11193 = vmatmul.bf16.gmra.mxu0 %v10790
        %v11194 = vpop.f32.mrf.mxu0
        %v11195 = vadd.f32 %v11146, %v11194
        %v11196 = vpop.f32.mrf.mxu0
        %v11197 = vadd.f32 %v11148, %v11196
        %11198 = vdwg.mxu0
        %11199 = vmatpush.bf16.msra.mxu0 %v11019
        %11200 = vmatpush.bf16.msra.mxu0 %v11018
        %11201 = vmatpush.bf16.msra.mxu0 %v11017
        %11202 = vmatpush.bf16.msra.mxu0 %v11016
        %11203 = vmatpush.bf16.msra.mxu0 %v11015
        %11204 = vmatpush.bf16.msra.mxu0 %v11014
        %11205 = vmatpush.bf16.msra.mxu0 %v11013
        %11206 = vmatpush.bf16.msra.mxu0 %v11012
        %11207 = vmatmul.bf16.gmra.mxu0 %v10763
        %v11208 = vpop.f32.mrf.mxu0
        %v11209 = vadd.f32 %v11160, %v11208
        %v11210 = vpop.f32.mrf.mxu0
        %v11211 = vadd.f32 %v11162, %v11210
        %11212 = vmatmul.bf16.gmra.mxu0 %v10767
        %v11213 = vpop.f32.mrf.mxu0
        %v11214 = vadd.f32 %v11165, %v11213
        %v11215 = vpop.f32.mrf.mxu0
        %v11216 = vadd.f32 %v11167, %v11215
        %11217 = vmatmul.bf16.gmra.mxu0 %v10771
        %v11218 = vpop.f32.mrf.mxu0
        %v11219 = vadd.f32 %v11170, %v11218
        %v11220 = vpop.f32.mrf.mxu0
        %v11221 = vadd.f32 %v11172, %v11220
        %11222 = vmatmul.bf16.gmra.mxu0 %v10775
        %v11223 = vpop.f32.mrf.mxu0
        %v11224 = vadd.f32 %v11175, %v11223
        %v11225 = vpop.f32.mrf.mxu0
        %v11226 = vadd.f32 %v11177, %v11225
        %11227 = vmatmul.bf16.gmra.mxu0 %v10779
        %v11228 = vpop.f32.mrf.mxu0
        %v11229 = vadd.f32 %v11180, %v11228
        %v11230 = vpop.f32.mrf.mxu0
        %v11231 = vadd.f32 %v11182, %v11230
        %11232 = vmatmul.bf16.gmra.mxu0 %v10783
        %v11233 = vpop.f32.mrf.mxu0
        %v11234 = vadd.f32 %v11185, %v11233
        %v11235 = vpop.f32.mrf.mxu0
        %v11236 = vadd.f32 %v11187, %v11235
        %11237 = vmatmul.bf16.gmra.mxu0 %v10787
        %v11238 = vpop.f32.mrf.mxu0
        %v11239 = vadd.f32 %v11190, %v11238
        %v11240 = vpop.f32.mrf.mxu0
        %v11241 = vadd.f32 %v11192, %v11240
        %11242 = vmatmul.bf16.gmra.mxu0 %v10791
        %v11243 = vpop.f32.mrf.mxu0
        %v11244 = vadd.f32 %v11195, %v11243
        %v11245 = vpop.f32.mrf.mxu0
        %v11246 = vadd.f32 %v11197, %v11245
        %11247 = vdwg.mxu0
        %11248 = vst [vmem:[%s802] sm:$0xff] %v11209
        %11249 = vst [vmem:[%s802 + $0x8] sm:$0xff] %v11211
        %11250 = vst [vmem:[%s802 + $0x10] sm:$0xff] %v11214
        %11251 = vst [vmem:[%s802 + $0x18] sm:$0xff] %v11216
        %11252 = vst [vmem:[%s802 + $0x20] sm:$0xff] %v11219
        %11253 = vst [vmem:[%s802 + $0x28] sm:$0xff] %v11221
        %11254 = vst [vmem:[%s802 + $0x30] sm:$0xff] %v11224
        %11255 = vst [vmem:[%s802 + $0x38] sm:$0xff] %v11226
        %11256 = vst [vmem:[%s802 + $0x40] sm:$0xff] %v11229
        %11257 = vst [vmem:[%s802 + $0x48] sm:$0xff] %v11231
        %11258 = vst [vmem:[%s802 + $0x50] sm:$0xff] %v11234
        %11259 = vst [vmem:[%s802 + $0x58] sm:$0xff] %v11236
        %11260 = vst [vmem:[%s802 + $0x60] sm:$0xff] %v11239
        %11261 = vst [vmem:[%s802 + $0x68] sm:$0xff] %v11241
        %11262 = vst [vmem:[%s802 + $0x70] sm:$0xff] %v11244
        %11263 = vst [vmem:[%s802 + $0x78] sm:$0xff] %v11246
        %s11264 = sand.u32 %s415, 1
        %s11265 = scalar_lea.sflag [#allocation4], %s11264
        %s11266 = sand.u32 %s415, 1
        %s11267 = smul.addr %s11266, 512
        %s11268 = scalar_lea.vmem [#allocation23], %s11267
        %s11269 = sand.u32 %s441, 1
        %s11270 = scalar_lea.sflag [#allocation25], %s11269
        %s11271 = sand.u32 %s441, 1
        %s11272 = smul.addr %s11271, 128
        %s11273 = scalar_lea.vmem [#allocation24], %s11272
        // Predicated region
        $region141: #{tpu_custom_call.1} parent=87 // pred_check
          %p11274 = pneg %p425
        $region142: #{tpu_custom_call.1} parent=87 // pred_check_branch
          %11276 = sbr.rel (%p11274) target = $region144
        $region143: #{tpu_custom_call.1} parent=87 // pred_region
          %s11277 = smul.u32 16, %s45
          %11279 = vsyncadd %s11265, 0
          %s11280 = smul.addr %s11277, 4
          %s11281 = smul.addr %s11280, 8
          %s11282 = scalar_lea.hbm %s17, %s11281
          %s11283 = sshll.u32 %s11268, 4
          %s11284 = int_to_ptr.vmem [resolvable:$true] %s11283
          %s11285 = sshll.u32 %s11282, 4
          %s11286 = int_to_ptr.hbm [resolvable:$true] %s11285
          %11291 = dma.vmem_to_hbm [thread:$0]  %s11284, 8192, %s11286, %s11265, 512, 512, 32
        $region144: #{tpu_custom_call.1} parent=87 // pred_fallthru
          _
        // Predicated region
        $region145: #{tpu_custom_call.1} parent=87 // pred_check
          %p11292 = pneg %p451
        $region146: #{tpu_custom_call.1} parent=87 // pred_check_branch
          %11294 = sbr.rel (%p11292) target = $region148
        $region147: #{tpu_custom_call.1} parent=87 // pred_region
          %s11295 = smul.u32 16, %s45
          %11297 = vsyncadd %s11270, 0
          %s11298 = smul.addr %s11295, 8
          %s11299 = scalar_lea.hbm %s18, %s11298
          %s11300 = sshll.u32 %s11273, 4
          %s11301 = int_to_ptr.vmem [resolvable:$true] %s11300
          %s11302 = sshll.u32 %s11299, 4
          %s11303 = int_to_ptr.hbm [resolvable:$true] %s11302
          %11308 = dma.vmem_to_hbm [thread:$0]  %s11301, 2048, %s11303, %s11270, 128, 128, 8
        $region148: #{tpu_custom_call.1} parent=87 // pred_fallthru
          _
      $region88: #{tpu_custom_call.1} parent=5 // pred_fallthru
        _
      %p11309 = scmp.le.s32.totalorder 2, %s40
      // Predicated region
      $region149: #{tpu_custom_call.1} parent=5 // pred_check
        %p11310 = pneg %p11309
      $region150: #{tpu_custom_call.1} parent=5 // pred_check_branch
        %11312 = sbr.rel (%p11310) target = $region152
      $region151: #{tpu_custom_call.1} parent=5 // pred_region
        %s11313 = ssub.s32 %s40, 2
        // Predicated region
        $region153: #{tpu_custom_call.1} parent=151 // pred_check
          %p11314 = pneg %p431
        $region154: #{tpu_custom_call.1} parent=151 // pred_check_branch
          %11316 = sbr.rel (%p11314) target = $region156
        $region155: #{tpu_custom_call.1} parent=151 // pred_region
          %s11317 = sand.u32 %s416, 1
          %s11318 = scalar_lea.sflag [#allocation4], %s11317
          %s11319 = sand.u32 %s416, 1
          %s11320 = smul.addr %s11319, 512
          %s11321 = scalar_lea.vmem [#allocation23], %s11320
          %11323 = dma.done %s11318, 8192
        $region156: #{tpu_custom_call.1} parent=151 // pred_fallthru
          _
        // Predicated region
        $region157: #{tpu_custom_call.1} parent=151 // pred_check
          %p11324 = pneg %p457
        $region158: #{tpu_custom_call.1} parent=151 // pred_check_branch
          %11326 = sbr.rel (%p11324) target = $region160
        $region159: #{tpu_custom_call.1} parent=151 // pred_region
          %s11327 = sand.u32 %s442, 1
          %s11328 = scalar_lea.sflag [#allocation25], %s11327
          %s11329 = sand.u32 %s442, 1
          %s11330 = smul.addr %s11329, 128
          %s11331 = scalar_lea.vmem [#allocation24], %s11330
          %11333 = dma.done %s11328, 2048
        $region160: #{tpu_custom_call.1} parent=151 // pred_fallthru
          _
      $region152: #{tpu_custom_call.1} parent=5 // pred_fallthru
        _
    $region6: #{tpu_custom_call.1} parent=1 // loop_footer
      %s44 = sadd.s32 1, %s40
    $region7: #{tpu_custom_call.1} parent=1 // loop_footer_branch
      %39 = sbr.rel target = $region3
    $region8: #{tpu_custom_call.1} parent=1 // loop_exit
      _
    %11334 = vsyncpa [#allocation3], 1
    %s11335 = scalar_lea.sflag [#allocation3], 1
    %11336 = vsyncpa %s11335, 1
    %11337 = vsyncpa [#allocation6], 1
    %11338 = vsyncpa [#allocation9], 1
    %11339 = vsyncpa [#allocation12], 1
    %11340 = vsyncpa [#allocation15], 1
    %11341 = vsyncpa [#allocation18], 1
    %11342 = vsyncpa [#allocation21], 1
    %11343 = vsyncpa [#allocation4], 1
    %s11344 = scalar_lea.sflag [#allocation4], 1
    %11345 = vsyncpa %s11344, 1
    %11346 = vsyncpa [#allocation25], 1
    %s11347 = scalar_lea.sflag [#allocation25], 1
    %11348 = vsyncpa %s11347, 1

</llo_original>
